<compile_context>
chip_gen: v5e
topology: v5e:2x2
jax: 0.10.0
libtpu: 0.0.40
codegen_flags: <defaults>
</compile_context>

<pallas_src>
import jax
import jax.numpy as jnp
from jax.experimental import pallas as pl
from jax.experimental.pallas import tpu as pltpu

_BN_EPS = 1e-5


# ----------------------------------------------------------------------------
# In-kernel helpers
# ----------------------------------------------------------------------------
def _im2col_conv(pad_ref, w_ref, N, H, W, C):
    """3x3 stride-1 conv over a pre-padded (N,H+2,W+2,C) VMEM buffer.

    Builds the 9 shifted windows once, concatenates them on the lane axis and
    issues a single MXU matmul with K = 9*C (f32 accumulation).
    Returns (N*H*W, Cout) float32.
    """
    M = N * H * W
    cols = []
    for dy in range(3):
        for dx in range(3):
            cols.append(pad_ref[:, dy:dy + H, dx:dx + W, :].reshape(M, C))
    patches = jnp.concatenate(cols, axis=-1)                 # (M, 9*C)
    return jnp.dot(patches, w_ref[...],                      # (M, Cout)
                   preferred_element_type=jnp.float32)


def _bn_train(h, g, be):
    """Training-mode BatchNorm over axis 0, one-pass sum / sum-of-squares."""
    inv_n = 1.0 / h.shape[0]
    mean = jnp.sum(h, axis=0, keepdims=True) * inv_n
    ex2 = jnp.sum(h * h, axis=0, keepdims=True) * inv_n
    var = jnp.maximum(ex2 - mean * mean, 0.0)                # clamp cancellation
    return (h - mean) * jax.lax.rsqrt(var + _BN_EPS) * g + be


# ----------------------------------------------------------------------------
# Fused kernel body
# ----------------------------------------------------------------------------
def fused_block_kernel(x_ref, w1_ref, w2_ref, g1_ref, be1_ref, g2_ref, be2_ref,
                       o_ref, xpad_ref, ypad_ref):
    N, H, W, C = x_ref.shape
    M = N * H * W

    # ---- pad x by 1 pixel into VMEM scratch (padding never touches HBM) ----
    xpad_ref[...] = jnp.zeros(xpad_ref.shape, xpad_ref.dtype)
    xpad_ref[:, 1:H + 1, 1:W + 1, :] = x_ref[...]

    # ---- conv1 (bias dropped: cancelled exactly by BN mean) + bn1 + relu ----
    h1 = _im2col_conv(xpad_ref, w1_ref, N, H, W, C)
    y1 = jnp.maximum(_bn_train(h1, g1_ref[...], be1_ref[...]), 0.0)

    # ---- keep the intermediate + halo resident in VMEM ----
    ypad_ref[...] = jnp.zeros(ypad_ref.shape, ypad_ref.dtype)
    ypad_ref[:, 1:H + 1, 1:W + 1, :] = y1.reshape(N, H, W, C)

    # ---- conv2 + bn2 + residual add + relu ----
    h2 = _im2col_conv(ypad_ref, w2_ref, N, H, W, C)
    y2 = _bn_train(h2, g2_ref[...], be2_ref[...])
    res = x_ref[...].reshape(M, C)
    o_ref[...] = jnp.maximum(y2 + res, 0.0).reshape(o_ref.shape)


# ----------------------------------------------------------------------------
# Wrapper
# ----------------------------------------------------------------------------
def restnet_basic_block(x_nchw, params):
    """Pallas implementation of RestNetBasicBlock.forward (stride=1)."""
    w1, b1, g1, be1, w2, b2, g2, be2 = params
    del b1, b2  # conv biases are exactly cancelled by train-mode BatchNorm

    N, C, H, W = x_nchw.shape
    Cout = w1.shape[-1]
    assert Cout == C and w2.shape[-1] == C, "residual add requires Cin == Cout"

    # NHWC (channels on the TPU lane axis).
    # TODO(synk): the NHWC<->NCHW wrapper transposes could be folded into the
    # kernel (lane-dense (N, C, H*W) I/O + in-kernel minor-dim transposes).
    x = jnp.transpose(x_nchw, (0, 2, 3, 1)).astype(jnp.float32)

    # Fold the 3x3 taps into the contraction axis: HWIO -> (9*Cin, Cout).
    w1r = w1.astype(jnp.float32).reshape(9 * C, Cout)
    w2r = w2.astype(jnp.float32).reshape(9 * Cout, Cout)

    vmem = pl.BlockSpec(memory_space=pltpu.MemorySpace.VMEM)

    out = pl.pallas_call(
        fused_block_kernel,
        out_shape=jax.ShapeDtypeStruct((N, H, W, Cout), jnp.float32),
        in_specs=[vmem] * 7,
        out_specs=vmem,
        scratch_shapes=[
            pltpu.VMEM((N, H + 2, W + 2, C), jnp.float32),     # padded x
            pltpu.VMEM((N, H + 2, W + 2, Cout), jnp.float32),  # padded relu(bn1)
        ],
        input_output_aliases={0: 0},   # residual input x donates its buffer
    )(x, w1r, w2r, g1, be1, g2, be2)

    return jnp.transpose(out, (0, 3, 1, 2))                    # back to NCHW


# ----------------------------------------------------------------------------
# Pure-JAX reference (correctness check only; keeps the conv biases and
# two-pass BN stats to validate the in-kernel simplifications)
# ----------------------------------------------------------------------------
def _reference(x_nchw, params):
    w1, b1, g1, be1, w2, b2, g2, be2 = params
    x = jnp.transpose(x_nchw, (0, 2, 3, 1)).astype(jnp.float32)

    def conv(v, w, b):
        y = jax.lax.conv_general_dilated(
            v, w, window_strides=(1, 1), padding="SAME",
            dimension_numbers=("NHWC", "HWIO", "NHWC"))
        return y + b.reshape(1, 1, 1, -1)

    def bn(v, g, be):
        m = jnp.mean(v, axis=(0, 1, 2), keepdims=True)
        var = jnp.mean(jnp.square(v - m), axis=(0, 1, 2), keepdims=True)
        return (v - m) * jax.lax.rsqrt(var + _BN_EPS) \
            * g.reshape(1, 1, 1, -1) + be.reshape(1, 1, 1, -1)

    y = jax.nn.relu(bn(conv(x, w1, b1), g1, be1))
    y = bn(conv(y, w2, b2), g2, be2)
    y = jax.nn.relu(x + y)
    return jnp.transpose(y, (0, 3, 1, 2))


# ----------------------------------------------------------------------------
# Main
# ----------------------------------------------------------------------------
if __name__ == "__main__":
    N, C, H, W = 2, 4, 16, 16          # in_channels == out_channels, stride=1

    key = jax.random.PRNGKey(0)
    kx, kw1, kb1, kw2, kb2 = jax.random.split(key, 5)

    x = jax.random.normal(kx, (N, C, H, W), jnp.float32)

    # Conv2d-style uniform init; weights in HWIO layout. BN params at their
    # nn.BatchNorm2d defaults.
    fan_in = C * 3 * 3
    bound = 1.0 / (fan_in ** 0.5)
    w1 = jax.random.uniform(kw1, (3, 3, C, C), jnp.float32, -bound, bound)
    b1 = jax.random.uniform(kb1, (1, C), jnp.float32, -bound, bound)
    w2 = jax.random.uniform(kw2, (3, 3, C, C), jnp.float32, -bound, bound)
    b2 = jax.random.uniform(kb2, (1, C), jnp.float32, -bound, bound)
    g1 = jnp.ones((1, C), jnp.float32)
    be1 = jnp.zeros((1, C), jnp.float32)
    g2 = jnp.ones((1, C), jnp.float32)
    be2 = jnp.zeros((1, C), jnp.float32)

    params = (w1, b1, g1, be1, w2, b2, g2, be2)

    block = jax.jit(restnet_basic_block)
    out = jax.block_until_ready(block(x, params))
    ref = jax.block_until_ready(_reference(x, params))

    assert out.shape == (N, C, H, W)
    err = float(jnp.max(jnp.abs(out - ref)))
    assert err < 1e-4, f"max abs err = {err}"

    print("KERNEL_OK")
</pallas_src>

<mosaic_0001>
module attributes {stable_mosaic.version = 11 : i64} {
  func.func @fused_block_kernel(%arg0: memref<2x16x16x4xf32, #tpu.memory_space<vmem>>, %arg1: memref<36x4xf32, #tpu.memory_space<vmem>>, %arg2: memref<36x4xf32, #tpu.memory_space<vmem>>, %arg3: memref<1x4xf32, #tpu.memory_space<vmem>>, %arg4: memref<1x4xf32, #tpu.memory_space<vmem>>, %arg5: memref<1x4xf32, #tpu.memory_space<vmem>>, %arg6: memref<1x4xf32, #tpu.memory_space<vmem>>, %arg7: memref<2x16x16x4xf32, #tpu.memory_space<vmem>>, %arg8: memref<2x18x18x4xf32, #tpu.memory_space<vmem>>, %arg9: memref<2x18x18x4xf32, #tpu.memory_space<vmem>>) attributes {dimension_semantics = [], scalar_prefetch = 0 : i64, scratch_operands = 2 : i64, tpu.core_type = #tpu.core_type<tc>} {
    %cst = arith.constant 0.000000e+00 : f32
    %0 = vector.broadcast %cst : f32 to vector<2x18x18x4xf32>
    %c0 = arith.constant 0 : index
    %c0_0 = arith.constant 0 : index
    %c0_1 = arith.constant 0 : index
    %c0_2 = arith.constant 0 : index
    %1 = vector.load %arg8[%c0, %c0_0, %c0_1, %c0_2] : memref<2x18x18x4xf32, #tpu.memory_space<vmem>>, vector<2x18x18x4xf32>
    tpu.vector_store %arg8[%c0, %c0_0, %c0_1, %c0_2], %0 {strides = array<i32>} : memref<2x18x18x4xf32, #tpu.memory_space<vmem>>, vector<2x18x18x4xf32>,
    %c0_3 = arith.constant 0 : index
    %c0_4 = arith.constant 0 : index
    %c0_5 = arith.constant 0 : index
    %c0_6 = arith.constant 0 : index
    %2 = vector.load %arg0[%c0_3, %c0_4, %c0_5, %c0_6] : memref<2x16x16x4xf32, #tpu.memory_space<vmem>>, vector<2x16x16x4xf32>
    %c0_7 = arith.constant 0 : index
    %c1 = arith.constant 1 : index
    %c1_8 = arith.constant 1 : index
    %c0_9 = arith.constant 0 : index
    %3 = vector.load %arg8[%c0_7, %c1, %c1_8, %c0_9] : memref<2x18x18x4xf32, #tpu.memory_space<vmem>>, vector<2x16x16x4xf32>
    tpu.vector_store %arg8[%c0_7, %c1, %c1_8, %c0_9], %2 {strides = array<i32>} : memref<2x18x18x4xf32, #tpu.memory_space<vmem>>, vector<2x16x16x4xf32>,
    %c0_10 = arith.constant 0 : index
    %c0_11 = arith.constant 0 : index
    %c0_12 = arith.constant 0 : index
    %c0_13 = arith.constant 0 : index
    %4 = vector.load %arg8[%c0_10, %c0_11, %c0_12, %c0_13] : memref<2x18x18x4xf32, #tpu.memory_space<vmem>>, vector<2x16x16x4xf32>
    %5 = vector.shape_cast %4 : vector<2x16x16x4xf32> to vector<512x4xf32>
    %c0_14 = arith.constant 0 : index
    %c0_15 = arith.constant 0 : index
    %c1_16 = arith.constant 1 : index
    %c0_17 = arith.constant 0 : index
    %6 = vector.load %arg8[%c0_14, %c0_15, %c1_16, %c0_17] : memref<2x18x18x4xf32, #tpu.memory_space<vmem>>, vector<2x16x16x4xf32>
    %7 = vector.shape_cast %6 : vector<2x16x16x4xf32> to vector<512x4xf32>
    %c0_18 = arith.constant 0 : index
    %c0_19 = arith.constant 0 : index
    %c2 = arith.constant 2 : index
    %c0_20 = arith.constant 0 : index
    %8 = vector.load %arg8[%c0_18, %c0_19, %c2, %c0_20] : memref<2x18x18x4xf32, #tpu.memory_space<vmem>>, vector<2x16x16x4xf32>
    %9 = vector.shape_cast %8 : vector<2x16x16x4xf32> to vector<512x4xf32>
    %c0_21 = arith.constant 0 : index
    %c1_22 = arith.constant 1 : index
    %c0_23 = arith.constant 0 : index
    %c0_24 = arith.constant 0 : index
    %10 = vector.load %arg8[%c0_21, %c1_22, %c0_23, %c0_24] : memref<2x18x18x4xf32, #tpu.memory_space<vmem>>, vector<2x16x16x4xf32>
    %11 = vector.shape_cast %10 : vector<2x16x16x4xf32> to vector<512x4xf32>
    %c0_25 = arith.constant 0 : index
    %c1_26 = arith.constant 1 : index
    %c1_27 = arith.constant 1 : index
    %c0_28 = arith.constant 0 : index
    %12 = vector.load %arg8[%c0_25, %c1_26, %c1_27, %c0_28] : memref<2x18x18x4xf32, #tpu.memory_space<vmem>>, vector<2x16x16x4xf32>
    %13 = vector.shape_cast %12 : vector<2x16x16x4xf32> to vector<512x4xf32>
    %c0_29 = arith.constant 0 : index
    %c1_30 = arith.constant 1 : index
    %c2_31 = arith.constant 2 : index
    %c0_32 = arith.constant 0 : index
    %14 = vector.load %arg8[%c0_29, %c1_30, %c2_31, %c0_32] : memref<2x18x18x4xf32, #tpu.memory_space<vmem>>, vector<2x16x16x4xf32>
    %15 = vector.shape_cast %14 : vector<2x16x16x4xf32> to vector<512x4xf32>
    %c0_33 = arith.constant 0 : index
    %c2_34 = arith.constant 2 : index
    %c0_35 = arith.constant 0 : index
    %c0_36 = arith.constant 0 : index
    %16 = vector.load %arg8[%c0_33, %c2_34, %c0_35, %c0_36] : memref<2x18x18x4xf32, #tpu.memory_space<vmem>>, vector<2x16x16x4xf32>
    %17 = vector.shape_cast %16 : vector<2x16x16x4xf32> to vector<512x4xf32>
    %c0_37 = arith.constant 0 : index
    %c2_38 = arith.constant 2 : index
    %c1_39 = arith.constant 1 : index
    %c0_40 = arith.constant 0 : index
    %18 = vector.load %arg8[%c0_37, %c2_38, %c1_39, %c0_40] : memref<2x18x18x4xf32, #tpu.memory_space<vmem>>, vector<2x16x16x4xf32>
    %19 = vector.shape_cast %18 : vector<2x16x16x4xf32> to vector<512x4xf32>
    %c0_41 = arith.constant 0 : index
    %c2_42 = arith.constant 2 : index
    %c2_43 = arith.constant 2 : index
    %c0_44 = arith.constant 0 : index
    %20 = vector.load %arg8[%c0_41, %c2_42, %c2_43, %c0_44] : memref<2x18x18x4xf32, #tpu.memory_space<vmem>>, vector<2x16x16x4xf32>
    %21 = vector.shape_cast %20 : vector<2x16x16x4xf32> to vector<512x4xf32>
    %22 = tpu.concatenate %5, %7, %9, %11, %13, %15, %17, %19, %21 in 1 : vector<512x4xf32>, vector<512x4xf32>, vector<512x4xf32>, vector<512x4xf32>, vector<512x4xf32>, vector<512x4xf32>, vector<512x4xf32>, vector<512x4xf32>, vector<512x4xf32> -> vector<512x36xf32>
    %c0_45 = arith.constant 0 : index
    %c0_46 = arith.constant 0 : index
    %23 = vector.load %arg1[%c0_45, %c0_46] : memref<36x4xf32, #tpu.memory_space<vmem>>, vector<36x4xf32>
    %cst_47 = arith.constant dense<0.000000e+00> : vector<512x4xf32>
    %24 = tpu.matmul %22, %23, %cst_47 {dimension_numbers = #tpu.dot_dimension_numbers<[1], [0], [0], [1], [0, 0, 1, 1], [], []>} : vector<512x36xf32>, vector<36x4xf32>, vector<512x4xf32> -> vector<512x4xf32>
    %c0_48 = arith.constant 0 : index
    %c0_49 = arith.constant 0 : index
    %25 = vector.load %arg3[%c0_48, %c0_49] : memref<1x4xf32, #tpu.memory_space<vmem>>, vector<1x4xf32>
    %c0_50 = arith.constant 0 : index
    %c0_51 = arith.constant 0 : index
    %26 = vector.load %arg4[%c0_50, %c0_51] : memref<1x4xf32, #tpu.memory_space<vmem>>, vector<1x4xf32>
    %cst_52 = arith.constant dense<0.000000e+00> : vector<4xf32>
    %27 = vector.multi_reduction <add>, %24, %cst_52 [0] : vector<512x4xf32> to vector<4xf32>
    %28 = vector.shape_cast %27 : vector<4xf32> to vector<1x4xf32>
    %cst_53 = arith.constant 0.001953125 : f32
    %29 = vector.broadcast %cst_53 : f32 to vector<1x4xf32>
    %30 = arith.mulf %28, %29 : vector<1x4xf32>
    %31 = arith.mulf %24, %24 : vector<512x4xf32>
    %cst_54 = arith.constant dense<0.000000e+00> : vector<4xf32>
    %32 = vector.multi_reduction <add>, %31, %cst_54 [0] : vector<512x4xf32> to vector<4xf32>
    %33 = vector.shape_cast %32 : vector<4xf32> to vector<1x4xf32>
    %cst_55 = arith.constant 0.001953125 : f32
    %34 = vector.broadcast %cst_55 : f32 to vector<1x4xf32>
    %35 = arith.mulf %33, %34 : vector<1x4xf32>
    %36 = arith.mulf %30, %30 : vector<1x4xf32>
    %37 = arith.subf %35, %36 : vector<1x4xf32>
    %cst_56 = arith.constant 0.000000e+00 : f32
    %38 = vector.broadcast %cst_56 : f32 to vector<1x4xf32>
    %39 = arith.maximumf %37, %38 : vector<1x4xf32>
    %40 = vector.broadcast %30 : vector<1x4xf32> to vector<512x4xf32>
    %41 = arith.subf %24, %40 : vector<512x4xf32>
    %cst_57 = arith.constant 9.99999974E-6 : f32
    %42 = vector.broadcast %cst_57 : f32 to vector<1x4xf32>
    %43 = arith.addf %39, %42 : vector<1x4xf32>
    %44 = math.rsqrt %43 : vector<1x4xf32>
    %45 = vector.broadcast %44 : vector<1x4xf32> to vector<512x4xf32>
    %46 = arith.mulf %41, %45 : vector<512x4xf32>
    %47 = vector.broadcast %25 : vector<1x4xf32> to vector<512x4xf32>
    %48 = arith.mulf %46, %47 : vector<512x4xf32>
    %49 = vector.broadcast %26 : vector<1x4xf32> to vector<512x4xf32>
    %50 = arith.addf %48, %49 : vector<512x4xf32>
    %cst_58 = arith.constant 0.000000e+00 : f32
    %51 = vector.broadcast %cst_58 : f32 to vector<512x4xf32>
    %52 = arith.maximumf %50, %51 : vector<512x4xf32>
    %cst_59 = arith.constant 0.000000e+00 : f32
    %53 = vector.broadcast %cst_59 : f32 to vector<2x18x18x4xf32>
    %c0_60 = arith.constant 0 : index
    %c0_61 = arith.constant 0 : index
    %c0_62 = arith.constant 0 : index
    %c0_63 = arith.constant 0 : index
    %54 = vector.load %arg9[%c0_60, %c0_61, %c0_62, %c0_63] : memref<2x18x18x4xf32, #tpu.memory_space<vmem>>, vector<2x18x18x4xf32>
    tpu.vector_store %arg9[%c0_60, %c0_61, %c0_62, %c0_63], %53 {strides = array<i32>} : memref<2x18x18x4xf32, #tpu.memory_space<vmem>>, vector<2x18x18x4xf32>,
    %55 = vector.shape_cast %52 : vector<512x4xf32> to vector<2x16x16x4xf32>
    %c0_64 = arith.constant 0 : index
    %c1_65 = arith.constant 1 : index
    %c1_66 = arith.constant 1 : index
    %c0_67 = arith.constant 0 : index
    %56 = vector.load %arg9[%c0_64, %c1_65, %c1_66, %c0_67] : memref<2x18x18x4xf32, #tpu.memory_space<vmem>>, vector<2x16x16x4xf32>
    tpu.vector_store %arg9[%c0_64, %c1_65, %c1_66, %c0_67], %55 {strides = array<i32>} : memref<2x18x18x4xf32, #tpu.memory_space<vmem>>, vector<2x16x16x4xf32>,
    %c0_68 = arith.constant 0 : index
    %c0_69 = arith.constant 0 : index
    %c0_70 = arith.constant 0 : index
    %c0_71 = arith.constant 0 : index
    %57 = vector.load %arg9[%c0_68, %c0_69, %c0_70, %c0_71] : memref<2x18x18x4xf32, #tpu.memory_space<vmem>>, vector<2x16x16x4xf32>
    %58 = vector.shape_cast %57 : vector<2x16x16x4xf32> to vector<512x4xf32>
    %c0_72 = arith.constant 0 : index
    %c0_73 = arith.constant 0 : index
    %c1_74 = arith.constant 1 : index
    %c0_75 = arith.constant 0 : index
    %59 = vector.load %arg9[%c0_72, %c0_73, %c1_74, %c0_75] : memref<2x18x18x4xf32, #tpu.memory_space<vmem>>, vector<2x16x16x4xf32>
    %60 = vector.shape_cast %59 : vector<2x16x16x4xf32> to vector<512x4xf32>
    %c0_76 = arith.constant 0 : index
    %c0_77 = arith.constant 0 : index
    %c2_78 = arith.constant 2 : index
    %c0_79 = arith.constant 0 : index
    %61 = vector.load %arg9[%c0_76, %c0_77, %c2_78, %c0_79] : memref<2x18x18x4xf32, #tpu.memory_space<vmem>>, vector<2x16x16x4xf32>
    %62 = vector.shape_cast %61 : vector<2x16x16x4xf32> to vector<512x4xf32>
    %c0_80 = arith.constant 0 : index
    %c1_81 = arith.constant 1 : index
    %c0_82 = arith.constant 0 : index
    %c0_83 = arith.constant 0 : index
    %63 = vector.load %arg9[%c0_80, %c1_81, %c0_82, %c0_83] : memref<2x18x18x4xf32, #tpu.memory_space<vmem>>, vector<2x16x16x4xf32>
    %64 = vector.shape_cast %63 : vector<2x16x16x4xf32> to vector<512x4xf32>
    %c0_84 = arith.constant 0 : index
    %c1_85 = arith.constant 1 : index
    %c1_86 = arith.constant 1 : index
    %c0_87 = arith.constant 0 : index
    %65 = vector.load %arg9[%c0_84, %c1_85, %c1_86, %c0_87] : memref<2x18x18x4xf32, #tpu.memory_space<vmem>>, vector<2x16x16x4xf32>
    %66 = vector.shape_cast %65 : vector<2x16x16x4xf32> to vector<512x4xf32>
    %c0_88 = arith.constant 0 : index
    %c1_89 = arith.constant 1 : index
    %c2_90 = arith.constant 2 : index
    %c0_91 = arith.constant 0 : index
    %67 = vector.load %arg9[%c0_88, %c1_89, %c2_90, %c0_91] : memref<2x18x18x4xf32, #tpu.memory_space<vmem>>, vector<2x16x16x4xf32>
    %68 = vector.shape_cast %67 : vector<2x16x16x4xf32> to vector<512x4xf32>
    %c0_92 = arith.constant 0 : index
    %c2_93 = arith.constant 2 : index
    %c0_94 = arith.constant 0 : index
    %c0_95 = arith.constant 0 : index
    %69 = vector.load %arg9[%c0_92, %c2_93, %c0_94, %c0_95] : memref<2x18x18x4xf32, #tpu.memory_space<vmem>>, vector<2x16x16x4xf32>
    %70 = vector.shape_cast %69 : vector<2x16x16x4xf32> to vector<512x4xf32>
    %c0_96 = arith.constant 0 : index
    %c2_97 = arith.constant 2 : index
    %c1_98 = arith.constant 1 : index
    %c0_99 = arith.constant 0 : index
    %71 = vector.load %arg9[%c0_96, %c2_97, %c1_98, %c0_99] : memref<2x18x18x4xf32, #tpu.memory_space<vmem>>, vector<2x16x16x4xf32>
    %72 = vector.shape_cast %71 : vector<2x16x16x4xf32> to vector<512x4xf32>
    %c0_100 = arith.constant 0 : index
    %c2_101 = arith.constant 2 : index
    %c2_102 = arith.constant 2 : index
    %c0_103 = arith.constant 0 : index
    %73 = vector.load %arg9[%c0_100, %c2_101, %c2_102, %c0_103] : memref<2x18x18x4xf32, #tpu.memory_space<vmem>>, vector<2x16x16x4xf32>
    %74 = vector.shape_cast %73 : vector<2x16x16x4xf32> to vector<512x4xf32>
    %75 = tpu.concatenate %58, %60, %62, %64, %66, %68, %70, %72, %74 in 1 : vector<512x4xf32>, vector<512x4xf32>, vector<512x4xf32>, vector<512x4xf32>, vector<512x4xf32>, vector<512x4xf32>, vector<512x4xf32>, vector<512x4xf32>, vector<512x4xf32> -> vector<512x36xf32>
    %c0_104 = arith.constant 0 : index
    %c0_105 = arith.constant 0 : index
    %76 = vector.load %arg2[%c0_104, %c0_105] : memref<36x4xf32, #tpu.memory_space<vmem>>, vector<36x4xf32>
    %cst_106 = arith.constant dense<0.000000e+00> : vector<512x4xf32>
    %77 = tpu.matmul %75, %76, %cst_106 {dimension_numbers = #tpu.dot_dimension_numbers<[1], [0], [0], [1], [0, 0, 1, 1], [], []>} : vector<512x36xf32>, vector<36x4xf32>, vector<512x4xf32> -> vector<512x4xf32>
    %c0_107 = arith.constant 0 : index
    %c0_108 = arith.constant 0 : index
    %78 = vector.load %arg5[%c0_107, %c0_108] : memref<1x4xf32, #tpu.memory_space<vmem>>, vector<1x4xf32>
    %c0_109 = arith.constant 0 : index
    %c0_110 = arith.constant 0 : index
    %79 = vector.load %arg6[%c0_109, %c0_110] : memref<1x4xf32, #tpu.memory_space<vmem>>, vector<1x4xf32>
    %cst_111 = arith.constant dense<0.000000e+00> : vector<4xf32>
    %80 = vector.multi_reduction <add>, %77, %cst_111 [0] : vector<512x4xf32> to vector<4xf32>
    %81 = vector.shape_cast %80 : vector<4xf32> to vector<1x4xf32>
    %cst_112 = arith.constant 0.001953125 : f32
    %82 = vector.broadcast %cst_112 : f32 to vector<1x4xf32>
    %83 = arith.mulf %81, %82 : vector<1x4xf32>
    %84 = arith.mulf %77, %77 : vector<512x4xf32>
    %cst_113 = arith.constant dense<0.000000e+00> : vector<4xf32>
    %85 = vector.multi_reduction <add>, %84, %cst_113 [0] : vector<512x4xf32> to vector<4xf32>
    %86 = vector.shape_cast %85 : vector<4xf32> to vector<1x4xf32>
    %cst_114 = arith.constant 0.001953125 : f32
    %87 = vector.broadcast %cst_114 : f32 to vector<1x4xf32>
    %88 = arith.mulf %86, %87 : vector<1x4xf32>
    %89 = arith.mulf %83, %83 : vector<1x4xf32>
    %90 = arith.subf %88, %89 : vector<1x4xf32>
    %cst_115 = arith.constant 0.000000e+00 : f32
    %91 = vector.broadcast %cst_115 : f32 to vector<1x4xf32>
    %92 = arith.maximumf %90, %91 : vector<1x4xf32>
    %93 = vector.broadcast %83 : vector<1x4xf32> to vector<512x4xf32>
    %94 = arith.subf %77, %93 : vector<512x4xf32>
    %cst_116 = arith.constant 9.99999974E-6 : f32
    %95 = vector.broadcast %cst_116 : f32 to vector<1x4xf32>
    %96 = arith.addf %92, %95 : vector<1x4xf32>
    %97 = math.rsqrt %96 : vector<1x4xf32>
    %98 = vector.broadcast %97 : vector<1x4xf32> to vector<512x4xf32>
    %99 = arith.mulf %94, %98 : vector<512x4xf32>
    %100 = vector.broadcast %78 : vector<1x4xf32> to vector<512x4xf32>
    %101 = arith.mulf %99, %100 : vector<512x4xf32>
    %102 = vector.broadcast %79 : vector<1x4xf32> to vector<512x4xf32>
    %103 = arith.addf %101, %102 : vector<512x4xf32>
    %c0_117 = arith.constant 0 : index
    %c0_118 = arith.constant 0 : index
    %c0_119 = arith.constant 0 : index
    %c0_120 = arith.constant 0 : index
    %104 = vector.load %arg0[%c0_117, %c0_118, %c0_119, %c0_120] : memref<2x16x16x4xf32, #tpu.memory_space<vmem>>, vector<2x16x16x4xf32>
    %105 = vector.shape_cast %104 : vector<2x16x16x4xf32> to vector<512x4xf32>
    %106 = arith.addf %103, %105 : vector<512x4xf32>
    %cst_121 = arith.constant 0.000000e+00 : f32
    %107 = vector.broadcast %cst_121 : f32 to vector<512x4xf32>
    %108 = arith.maximumf %106, %107 : vector<512x4xf32>
    %109 = vector.shape_cast %108 : vector<512x4xf32> to vector<2x16x16x4xf32>
    %c0_122 = arith.constant 0 : index
    %c0_123 = arith.constant 0 : index
    %c0_124 = arith.constant 0 : index
    %c0_125 = arith.constant 0 : index
    %110 = vector.load %arg7[%c0_122, %c0_123, %c0_124, %c0_125] : memref<2x16x16x4xf32, #tpu.memory_space<vmem>>, vector<2x16x16x4xf32>
    tpu.vector_store %arg7[%c0_122, %c0_123, %c0_124, %c0_125], %109 {strides = array<i32>} : memref<2x16x16x4xf32, #tpu.memory_space<vmem>>, vector<2x16x16x4xf32>,
    return
  }
}

</mosaic_0001>

<llo_original>
// kernel: restnet_basic_block.1
$region0: #{restnet_basic_block.1}
  #allocation0 [shape = 'u32[]', space=smem, size = 0x4, offset = 0x4, fixed_abs, tag = 'smem constant byte address 0x4 - core index']
  #allocation1 [shape = 'u32[72,128]{1,0:T(1,128)}', space=vmem, size = 0x9000, scoped, tag = 'internal scratch']
  #allocation2 [shape = 'f32[2,18,18,4]{3,2,1,0:T(8,128)}', space=vmem, size = 0x6c000, scoped, tag = 'scratch operand']
  #allocation3 [shape = 'f32[2,18,18,4]{3,2,1,0:T(8,128)}', space=vmem, size = 0x6c000, scoped, tag = 'scratch operand']
  %s0 = inlined_call_operand.vmem [shape: f32[2,16,16,4], index: 0, kind: input, shape index: {}, may-alias: {0,7}]
  %s1 = inlined_call_operand.vmem [shape: f32[36,4], index: 1, kind: input, shape index: {}]
  %s2 = inlined_call_operand.vmem [shape: f32[36,4], index: 2, kind: input, shape index: {}]
  %s3 = inlined_call_operand.vmem [shape: f32[1,4], index: 3, kind: input, shape index: {}]
  %s4 = inlined_call_operand.vmem [shape: f32[1,4], index: 4, kind: input, shape index: {}]
  %s5 = inlined_call_operand.vmem [shape: f32[1,4], index: 5, kind: input, shape index: {}]
  %s6 = inlined_call_operand.vmem [shape: f32[1,4], index: 6, kind: input, shape index: {}]
  %s7 = inlined_call_operand.vmem [shape: f32[2,16,16,4], index: 7, kind: output, shape index: {}, may-alias: {0,7}]
  %s8 = sld [smem:[#allocation0]]
  $region38: #{restnet_basic_block.1} parent=0
    _
  %s10 = ssub.s32 1, %s8
  %s11 = scalar_select 0, %s10, %s8
  // Predicated region
  $region2: #{restnet_basic_block.1} parent=0 // pred_check
    _
  $region3: #{restnet_basic_block.1} parent=0 // pred_check_branch
    %13 = sbr.rel (0) target = $region5
  $region4: #{restnet_basic_block.1} parent=0 // pred_region
    _
  $region5: #{restnet_basic_block.1} parent=0 // pred_fallthru
    _
  // Predicated region
  $region6: #{restnet_basic_block.1} parent=0 // pred_check
    _
  $region7: #{restnet_basic_block.1} parent=0 // pred_check_branch
    %15 = sbr.rel (0) target = $region9
  $region8: #{restnet_basic_block.1} parent=0 // pred_region
    _
  $region9: #{restnet_basic_block.1} parent=0 // pred_fallthru
    _
  // Predicated region
  $region10: #{restnet_basic_block.1} parent=0 // pred_check
    _
  $region11: #{restnet_basic_block.1} parent=0 // pred_check_branch
    %17 = sbr.rel (0) target = $region13
  $region12: #{restnet_basic_block.1} parent=0 // pred_region
    _
  $region13: #{restnet_basic_block.1} parent=0 // pred_fallthru
    _
  // Predicated region
  $region14: #{restnet_basic_block.1} parent=0 // pred_check
    _
  $region15: #{restnet_basic_block.1} parent=0 // pred_check_branch
    %19 = sbr.rel (0) target = $region17
  $region16: #{restnet_basic_block.1} parent=0 // pred_region
    _
  $region17: #{restnet_basic_block.1} parent=0 // pred_fallthru
    _
  // Predicated region
  $region18: #{restnet_basic_block.1} parent=0 // pred_check
    _
  $region19: #{restnet_basic_block.1} parent=0 // pred_check_branch
    %21 = sbr.rel (0) target = $region21
  $region20: #{restnet_basic_block.1} parent=0 // pred_region
    _
  $region21: #{restnet_basic_block.1} parent=0 // pred_fallthru
    _
  // Predicated region
  $region22: #{restnet_basic_block.1} parent=0 // pred_check
    _
  $region23: #{restnet_basic_block.1} parent=0 // pred_check_branch
    %23 = sbr.rel (0) target = $region25
  $region24: #{restnet_basic_block.1} parent=0 // pred_region
    _
  $region25: #{restnet_basic_block.1} parent=0 // pred_fallthru
    _
  // Predicated region
  $region26: #{restnet_basic_block.1} parent=0 // pred_check
    _
  $region27: #{restnet_basic_block.1} parent=0 // pred_check_branch
    %25 = sbr.rel (0) target = $region29
  $region28: #{restnet_basic_block.1} parent=0 // pred_region
    _
  $region29: #{restnet_basic_block.1} parent=0 // pred_fallthru
    _
  %vm26 = vcmask 31744
  %27 = vst.msk [vmem:[#allocation2] sm:$0xff] %vm26, 0.0
  %28 = vst.msk [vmem:[#allocation2 + $0x8] sm:$0xff] %vm26, 0.0
  %vm29 = vcmask 25600
  %30 = vst.msk [vmem:[#allocation2 + $0x10] sm:$0x3] %vm29, 0.0
  %31 = vst.msk [vmem:[#allocation2 + $0x18] sm:$0xff] %vm26, 0.0
  %32 = vst.msk [vmem:[#allocation2 + $0x20] sm:$0xff] %vm26, 0.0
  %33 = vst.msk [vmem:[#allocation2 + $0x28] sm:$0x3] %vm29, 0.0
  %34 = vst.msk [vmem:[#allocation2 + $0x30] sm:$0xff] %vm26, 0.0
  %35 = vst.msk [vmem:[#allocation2 + $0x38] sm:$0xff] %vm26, 0.0
  %36 = vst.msk [vmem:[#allocation2 + $0x40] sm:$0x3] %vm29, 0.0
  %37 = vst.msk [vmem:[#allocation2 + $0x48] sm:$0xff] %vm26, 0.0
  %38 = vst.msk [vmem:[#allocation2 + $0x50] sm:$0xff] %vm26, 0.0
  %39 = vst.msk [vmem:[#allocation2 + $0x58] sm:$0x3] %vm29, 0.0
  %40 = vst.msk [vmem:[#allocation2 + $0x60] sm:$0xff] %vm26, 0.0
  %41 = vst.msk [vmem:[#allocation2 + $0x68] sm:$0xff] %vm26, 0.0
  %42 = vst.msk [vmem:[#allocation2 + $0x70] sm:$0x3] %vm29, 0.0
  %43 = vst.msk [vmem:[#allocation2 + $0x78] sm:$0xff] %vm26, 0.0
  %44 = vst.msk [vmem:[#allocation2 + $0x80] sm:$0xff] %vm26, 0.0
  %45 = vst.msk [vmem:[#allocation2 + $0x88] sm:$0x3] %vm29, 0.0
  %46 = vst.msk [vmem:[#allocation2 + $0x90] sm:$0xff] %vm26, 0.0
  %47 = vst.msk [vmem:[#allocation2 + $0x98] sm:$0xff] %vm26, 0.0
  %48 = vst.msk [vmem:[#allocation2 + $0xa0] sm:$0x3] %vm29, 0.0
  %49 = vst.msk [vmem:[#allocation2 + $0xa8] sm:$0xff] %vm26, 0.0
  %50 = vst.msk [vmem:[#allocation2 + $0xb0] sm:$0xff] %vm26, 0.0
  %51 = vst.msk [vmem:[#allocation2 + $0xb8] sm:$0x3] %vm29, 0.0
  %52 = vst.msk [vmem:[#allocation2 + $0xc0] sm:$0xff] %vm26, 0.0
  %53 = vst.msk [vmem:[#allocation2 + $0xc8] sm:$0xff] %vm26, 0.0
  %54 = vst.msk [vmem:[#allocation2 + $0xd0] sm:$0x3] %vm29, 0.0
  %55 = vst.msk [vmem:[#allocation2 + $0xd8] sm:$0xff] %vm26, 0.0
  %56 = vst.msk [vmem:[#allocation2 + $0xe0] sm:$0xff] %vm26, 0.0
  %57 = vst.msk [vmem:[#allocation2 + $0xe8] sm:$0x3] %vm29, 0.0
  %58 = vst.msk [vmem:[#allocation2 + $0xf0] sm:$0xff] %vm26, 0.0
  %59 = vst.msk [vmem:[#allocation2 + $0xf8] sm:$0xff] %vm26, 0.0
  %60 = vst.msk [vmem:[#allocation2 + $0x100] sm:$0x3] %vm29, 0.0
  %61 = vst.msk [vmem:[#allocation2 + $0x108] sm:$0xff] %vm26, 0.0
  %62 = vst.msk [vmem:[#allocation2 + $0x110] sm:$0xff] %vm26, 0.0
  %63 = vst.msk [vmem:[#allocation2 + $0x118] sm:$0x3] %vm29, 0.0
  %64 = vst.msk [vmem:[#allocation2 + $0x120] sm:$0xff] %vm26, 0.0
  %65 = vst.msk [vmem:[#allocation2 + $0x128] sm:$0xff] %vm26, 0.0
  %66 = vst.msk [vmem:[#allocation2 + $0x130] sm:$0x3] %vm29, 0.0
  %67 = vst.msk [vmem:[#allocation2 + $0x138] sm:$0xff] %vm26, 0.0
  %68 = vst.msk [vmem:[#allocation2 + $0x140] sm:$0xff] %vm26, 0.0
  %69 = vst.msk [vmem:[#allocation2 + $0x148] sm:$0x3] %vm29, 0.0
  %70 = vst.msk [vmem:[#allocation2 + $0x150] sm:$0xff] %vm26, 0.0
  %71 = vst.msk [vmem:[#allocation2 + $0x158] sm:$0xff] %vm26, 0.0
  %72 = vst.msk [vmem:[#allocation2 + $0x160] sm:$0x3] %vm29, 0.0
  %73 = vst.msk [vmem:[#allocation2 + $0x168] sm:$0xff] %vm26, 0.0
  %74 = vst.msk [vmem:[#allocation2 + $0x170] sm:$0xff] %vm26, 0.0
  %75 = vst.msk [vmem:[#allocation2 + $0x178] sm:$0x3] %vm29, 0.0
  %76 = vst.msk [vmem:[#allocation2 + $0x180] sm:$0xff] %vm26, 0.0
  %77 = vst.msk [vmem:[#allocation2 + $0x188] sm:$0xff] %vm26, 0.0
  %78 = vst.msk [vmem:[#allocation2 + $0x190] sm:$0x3] %vm29, 0.0
  %79 = vst.msk [vmem:[#allocation2 + $0x198] sm:$0xff] %vm26, 0.0
  %80 = vst.msk [vmem:[#allocation2 + $0x1a0] sm:$0xff] %vm26, 0.0
  %81 = vst.msk [vmem:[#allocation2 + $0x1a8] sm:$0x3] %vm29, 0.0
  %82 = vst.msk [vmem:[#allocation2 + $0x1b0] sm:$0xff] %vm26, 0.0
  %83 = vst.msk [vmem:[#allocation2 + $0x1b8] sm:$0xff] %vm26, 0.0
  %84 = vst.msk [vmem:[#allocation2 + $0x1c0] sm:$0x3] %vm29, 0.0
  %85 = vst.msk [vmem:[#allocation2 + $0x1c8] sm:$0xff] %vm26, 0.0
  %86 = vst.msk [vmem:[#allocation2 + $0x1d0] sm:$0xff] %vm26, 0.0
  %87 = vst.msk [vmem:[#allocation2 + $0x1d8] sm:$0x3] %vm29, 0.0
  %88 = vst.msk [vmem:[#allocation2 + $0x1e0] sm:$0xff] %vm26, 0.0
  %89 = vst.msk [vmem:[#allocation2 + $0x1e8] sm:$0xff] %vm26, 0.0
  %90 = vst.msk [vmem:[#allocation2 + $0x1f0] sm:$0x3] %vm29, 0.0
  %91 = vst.msk [vmem:[#allocation2 + $0x1f8] sm:$0xff] %vm26, 0.0
  %92 = vst.msk [vmem:[#allocation2 + $0x200] sm:$0xff] %vm26, 0.0
  %93 = vst.msk [vmem:[#allocation2 + $0x208] sm:$0x3] %vm29, 0.0
  %94 = vst.msk [vmem:[#allocation2 + $0x210] sm:$0xff] %vm26, 0.0
  %95 = vst.msk [vmem:[#allocation2 + $0x218] sm:$0xff] %vm26, 0.0
  %96 = vst.msk [vmem:[#allocation2 + $0x220] sm:$0x3] %vm29, 0.0
  %97 = vst.msk [vmem:[#allocation2 + $0x228] sm:$0xff] %vm26, 0.0
  %98 = vst.msk [vmem:[#allocation2 + $0x230] sm:$0xff] %vm26, 0.0
  %99 = vst.msk [vmem:[#allocation2 + $0x238] sm:$0x3] %vm29, 0.0
  %100 = vst.msk [vmem:[#allocation2 + $0x240] sm:$0xff] %vm26, 0.0
  %101 = vst.msk [vmem:[#allocation2 + $0x248] sm:$0xff] %vm26, 0.0
  %102 = vst.msk [vmem:[#allocation2 + $0x250] sm:$0x3] %vm29, 0.0
  %103 = vst.msk [vmem:[#allocation2 + $0x258] sm:$0xff] %vm26, 0.0
  %104 = vst.msk [vmem:[#allocation2 + $0x260] sm:$0xff] %vm26, 0.0
  %105 = vst.msk [vmem:[#allocation2 + $0x268] sm:$0x3] %vm29, 0.0
  %106 = vst.msk [vmem:[#allocation2 + $0x270] sm:$0xff] %vm26, 0.0
  %107 = vst.msk [vmem:[#allocation2 + $0x278] sm:$0xff] %vm26, 0.0
  %108 = vst.msk [vmem:[#allocation2 + $0x280] sm:$0x3] %vm29, 0.0
  %109 = vst.msk [vmem:[#allocation2 + $0x288] sm:$0xff] %vm26, 0.0
  %110 = vst.msk [vmem:[#allocation2 + $0x290] sm:$0xff] %vm26, 0.0
  %111 = vst.msk [vmem:[#allocation2 + $0x298] sm:$0x3] %vm29, 0.0
  %112 = vst.msk [vmem:[#allocation2 + $0x2a0] sm:$0xff] %vm26, 0.0
  %113 = vst.msk [vmem:[#allocation2 + $0x2a8] sm:$0xff] %vm26, 0.0
  %114 = vst.msk [vmem:[#allocation2 + $0x2b0] sm:$0x3] %vm29, 0.0
  %115 = vst.msk [vmem:[#allocation2 + $0x2b8] sm:$0xff] %vm26, 0.0
  %116 = vst.msk [vmem:[#allocation2 + $0x2c0] sm:$0xff] %vm26, 0.0
  %117 = vst.msk [vmem:[#allocation2 + $0x2c8] sm:$0x3] %vm29, 0.0
  %118 = vst.msk [vmem:[#allocation2 + $0x2d0] sm:$0xff] %vm26, 0.0
  %119 = vst.msk [vmem:[#allocation2 + $0x2d8] sm:$0xff] %vm26, 0.0
  %120 = vst.msk [vmem:[#allocation2 + $0x2e0] sm:$0x3] %vm29, 0.0
  %121 = vst.msk [vmem:[#allocation2 + $0x2e8] sm:$0xff] %vm26, 0.0
  %122 = vst.msk [vmem:[#allocation2 + $0x2f0] sm:$0xff] %vm26, 0.0
  %123 = vst.msk [vmem:[#allocation2 + $0x2f8] sm:$0x3] %vm29, 0.0
  %124 = vst.msk [vmem:[#allocation2 + $0x300] sm:$0xff] %vm26, 0.0
  %125 = vst.msk [vmem:[#allocation2 + $0x308] sm:$0xff] %vm26, 0.0
  %126 = vst.msk [vmem:[#allocation2 + $0x310] sm:$0x3] %vm29, 0.0
  %127 = vst.msk [vmem:[#allocation2 + $0x318] sm:$0xff] %vm26, 0.0
  %128 = vst.msk [vmem:[#allocation2 + $0x320] sm:$0xff] %vm26, 0.0
  %129 = vst.msk [vmem:[#allocation2 + $0x328] sm:$0x3] %vm29, 0.0
  %130 = vst.msk [vmem:[#allocation2 + $0x330] sm:$0xff] %vm26, 0.0
  %131 = vst.msk [vmem:[#allocation2 + $0x338] sm:$0xff] %vm26, 0.0
  %132 = vst.msk [vmem:[#allocation2 + $0x340] sm:$0x3] %vm29, 0.0
  %133 = vst.msk [vmem:[#allocation2 + $0x348] sm:$0xff] %vm26, 0.0
  %134 = vst.msk [vmem:[#allocation2 + $0x350] sm:$0xff] %vm26, 0.0
  %135 = vst.msk [vmem:[#allocation2 + $0x358] sm:$0x3] %vm29, 0.0
  %v136 = vld [vmem:[%s0] sm:$0xff]
  %v137 = vld [vmem:[%s0 + $0x8] sm:$0xff]
  %v138 = vld [vmem:[%s0 + $0x10] sm:$0xff]
  %v139 = vld [vmem:[%s0 + $0x18] sm:$0xff]
  %v140 = vld [vmem:[%s0 + $0x20] sm:$0xff]
  %v141 = vld [vmem:[%s0 + $0x28] sm:$0xff]
  %v142 = vld [vmem:[%s0 + $0x30] sm:$0xff]
  %v143 = vld [vmem:[%s0 + $0x38] sm:$0xff]
  %v144 = vld [vmem:[%s0 + $0x40] sm:$0xff]
  %v145 = vld [vmem:[%s0 + $0x48] sm:$0xff]
  %v146 = vld [vmem:[%s0 + $0x50] sm:$0xff]
  %v147 = vld [vmem:[%s0 + $0x58] sm:$0xff]
  %v148 = vld [vmem:[%s0 + $0x60] sm:$0xff]
  %v149 = vld [vmem:[%s0 + $0x68] sm:$0xff]
  %v150 = vld [vmem:[%s0 + $0x70] sm:$0xff]
  %v151 = vld [vmem:[%s0 + $0x78] sm:$0xff]
  %v152 = vld [vmem:[%s0 + $0x80] sm:$0xff]
  %v153 = vld [vmem:[%s0 + $0x88] sm:$0xff]
  %v154 = vld [vmem:[%s0 + $0x90] sm:$0xff]
  %v155 = vld [vmem:[%s0 + $0x98] sm:$0xff]
  %v156 = vld [vmem:[%s0 + $0xa0] sm:$0xff]
  %v157 = vld [vmem:[%s0 + $0xa8] sm:$0xff]
  %v158 = vld [vmem:[%s0 + $0xb0] sm:$0xff]
  %v159 = vld [vmem:[%s0 + $0xb8] sm:$0xff]
  %v160 = vld [vmem:[%s0 + $0xc0] sm:$0xff]
  %v161 = vld [vmem:[%s0 + $0xc8] sm:$0xff]
  %v162 = vld [vmem:[%s0 + $0xd0] sm:$0xff]
  %v163 = vld [vmem:[%s0 + $0xd8] sm:$0xff]
  %v164 = vld [vmem:[%s0 + $0xe0] sm:$0xff]
  %v165 = vld [vmem:[%s0 + $0xe8] sm:$0xff]
  %v166 = vld [vmem:[%s0 + $0xf0] sm:$0xff]
  %v167 = vld [vmem:[%s0 + $0xf8] sm:$0xff]
  %v168 = vld [vmem:[%s0 + $0x100] sm:$0xff]
  %v169 = vld [vmem:[%s0 + $0x108] sm:$0xff]
  %v170 = vld [vmem:[%s0 + $0x110] sm:$0xff]
  %v171 = vld [vmem:[%s0 + $0x118] sm:$0xff]
  %v172 = vld [vmem:[%s0 + $0x120] sm:$0xff]
  %v173 = vld [vmem:[%s0 + $0x128] sm:$0xff]
  %v174 = vld [vmem:[%s0 + $0x130] sm:$0xff]
  %v175 = vld [vmem:[%s0 + $0x138] sm:$0xff]
  %v176 = vld [vmem:[%s0 + $0x140] sm:$0xff]
  %v177 = vld [vmem:[%s0 + $0x148] sm:$0xff]
  %v178 = vld [vmem:[%s0 + $0x150] sm:$0xff]
  %v179 = vld [vmem:[%s0 + $0x158] sm:$0xff]
  %v180 = vld [vmem:[%s0 + $0x160] sm:$0xff]
  %v181 = vld [vmem:[%s0 + $0x168] sm:$0xff]
  %v182 = vld [vmem:[%s0 + $0x170] sm:$0xff]
  %v183 = vld [vmem:[%s0 + $0x178] sm:$0xff]
  %v184 = vld [vmem:[%s0 + $0x180] sm:$0xff]
  %v185 = vld [vmem:[%s0 + $0x188] sm:$0xff]
  %v186 = vld [vmem:[%s0 + $0x190] sm:$0xff]
  %v187 = vld [vmem:[%s0 + $0x198] sm:$0xff]
  %v188 = vld [vmem:[%s0 + $0x1a0] sm:$0xff]
  %v189 = vld [vmem:[%s0 + $0x1a8] sm:$0xff]
  %v190 = vld [vmem:[%s0 + $0x1b0] sm:$0xff]
  %v191 = vld [vmem:[%s0 + $0x1b8] sm:$0xff]
  %v192 = vld [vmem:[%s0 + $0x1c0] sm:$0xff]
  %v193 = vld [vmem:[%s0 + $0x1c8] sm:$0xff]
  %v194 = vld [vmem:[%s0 + $0x1d0] sm:$0xff]
  %v195 = vld [vmem:[%s0 + $0x1d8] sm:$0xff]
  %v196 = vld [vmem:[%s0 + $0x1e0] sm:$0xff]
  %v197 = vld [vmem:[%s0 + $0x1e8] sm:$0xff]
  %v198 = vld [vmem:[%s0 + $0x1f0] sm:$0xff]
  %v199 = vld [vmem:[%s0 + $0x1f8] sm:$0xff]
  %s200 = scalar_lea.vmem [#allocation2], 24
  %201 = vst.msk [vmem:[%s200 + $0x1] sm:$0xff] %vm26, %v136
  %202 = vst.msk [vmem:[%s200 + $0x9] sm:$0xff] %vm26, %v137
  %203 = vst.msk [vmem:[%s200 + $0x19] sm:$0xff] %vm26, %v138
  %204 = vst.msk [vmem:[%s200 + $0x21] sm:$0xff] %vm26, %v139
  %205 = vst.msk [vmem:[%s200 + $0x31] sm:$0xff] %vm26, %v140
  %206 = vst.msk [vmem:[%s200 + $0x39] sm:$0xff] %vm26, %v141
  %207 = vst.msk [vmem:[%s200 + $0x49] sm:$0xff] %vm26, %v142
  %208 = vst.msk [vmem:[%s200 + $0x51] sm:$0xff] %vm26, %v143
  %209 = vst.msk [vmem:[%s200 + $0x61] sm:$0xff] %vm26, %v144
  %210 = vst.msk [vmem:[%s200 + $0x69] sm:$0xff] %vm26, %v145
  %211 = vst.msk [vmem:[%s200 + $0x79] sm:$0xff] %vm26, %v146
  %212 = vst.msk [vmem:[%s200 + $0x81] sm:$0xff] %vm26, %v147
  %213 = vst.msk [vmem:[%s200 + $0x91] sm:$0xff] %vm26, %v148
  %214 = vst.msk [vmem:[%s200 + $0x99] sm:$0xff] %vm26, %v149
  %215 = vst.msk [vmem:[%s200 + $0xa9] sm:$0xff] %vm26, %v150
  %216 = vst.msk [vmem:[%s200 + $0xb1] sm:$0xff] %vm26, %v151
  %217 = vst.msk [vmem:[%s200 + $0xc1] sm:$0xff] %vm26, %v152
  %218 = vst.msk [vmem:[%s200 + $0xc9] sm:$0xff] %vm26, %v153
  %219 = vst.msk [vmem:[%s200 + $0xd9] sm:$0xff] %vm26, %v154
  %220 = vst.msk [vmem:[%s200 + $0xe1] sm:$0xff] %vm26, %v155
  %221 = vst.msk [vmem:[%s200 + $0xf1] sm:$0xff] %vm26, %v156
  %222 = vst.msk [vmem:[%s200 + $0xf9] sm:$0xff] %vm26, %v157
  %223 = vst.msk [vmem:[%s200 + $0x109] sm:$0xff] %vm26, %v158
  %224 = vst.msk [vmem:[%s200 + $0x111] sm:$0xff] %vm26, %v159
  %225 = vst.msk [vmem:[%s200 + $0x121] sm:$0xff] %vm26, %v160
  %226 = vst.msk [vmem:[%s200 + $0x129] sm:$0xff] %vm26, %v161
  %227 = vst.msk [vmem:[%s200 + $0x139] sm:$0xff] %vm26, %v162
  %228 = vst.msk [vmem:[%s200 + $0x141] sm:$0xff] %vm26, %v163
  %229 = vst.msk [vmem:[%s200 + $0x151] sm:$0xff] %vm26, %v164
  %230 = vst.msk [vmem:[%s200 + $0x159] sm:$0xff] %vm26, %v165
  %231 = vst.msk [vmem:[%s200 + $0x169] sm:$0xff] %vm26, %v166
  %232 = vst.msk [vmem:[%s200 + $0x171] sm:$0xff] %vm26, %v167
  %233 = vst.msk [vmem:[%s200 + $0x1b1] sm:$0xff] %vm26, %v168
  %234 = vst.msk [vmem:[%s200 + $0x1b9] sm:$0xff] %vm26, %v169
  %235 = vst.msk [vmem:[%s200 + $0x1c9] sm:$0xff] %vm26, %v170
  %236 = vst.msk [vmem:[%s200 + $0x1d1] sm:$0xff] %vm26, %v171
  %237 = vst.msk [vmem:[%s200 + $0x1e1] sm:$0xff] %vm26, %v172
  %238 = vst.msk [vmem:[%s200 + $0x1e9] sm:$0xff] %vm26, %v173
  %239 = vst.msk [vmem:[%s200 + $0x1f9] sm:$0xff] %vm26, %v174
  %240 = vst.msk [vmem:[%s200 + $0x201] sm:$0xff] %vm26, %v175
  %241 = vst.msk [vmem:[%s200 + $0x211] sm:$0xff] %vm26, %v176
  %242 = vst.msk [vmem:[%s200 + $0x219] sm:$0xff] %vm26, %v177
  %243 = vst.msk [vmem:[%s200 + $0x229] sm:$0xff] %vm26, %v178
  %244 = vst.msk [vmem:[%s200 + $0x231] sm:$0xff] %vm26, %v179
  %245 = vst.msk [vmem:[%s200 + $0x241] sm:$0xff] %vm26, %v180
  %246 = vst.msk [vmem:[%s200 + $0x249] sm:$0xff] %vm26, %v181
  %247 = vst.msk [vmem:[%s200 + $0x259] sm:$0xff] %vm26, %v182
  %248 = vst.msk [vmem:[%s200 + $0x261] sm:$0xff] %vm26, %v183
  %249 = vst.msk [vmem:[%s200 + $0x271] sm:$0xff] %vm26, %v184
  %250 = vst.msk [vmem:[%s200 + $0x279] sm:$0xff] %vm26, %v185
  %251 = vst.msk [vmem:[%s200 + $0x289] sm:$0xff] %vm26, %v186
  %252 = vst.msk [vmem:[%s200 + $0x291] sm:$0xff] %vm26, %v187
  %253 = vst.msk [vmem:[%s200 + $0x2a1] sm:$0xff] %vm26, %v188
  %254 = vst.msk [vmem:[%s200 + $0x2a9] sm:$0xff] %vm26, %v189
  %255 = vst.msk [vmem:[%s200 + $0x2b9] sm:$0xff] %vm26, %v190
  %256 = vst.msk [vmem:[%s200 + $0x2c1] sm:$0xff] %vm26, %v191
  %257 = vst.msk [vmem:[%s200 + $0x2d1] sm:$0xff] %vm26, %v192
  %258 = vst.msk [vmem:[%s200 + $0x2d9] sm:$0xff] %vm26, %v193
  %259 = vst.msk [vmem:[%s200 + $0x2e9] sm:$0xff] %vm26, %v194
  %260 = vst.msk [vmem:[%s200 + $0x2f1] sm:$0xff] %vm26, %v195
  %261 = vst.msk [vmem:[%s200 + $0x301] sm:$0xff] %vm26, %v196
  %262 = vst.msk [vmem:[%s200 + $0x309] sm:$0xff] %vm26, %v197
  %263 = vst.msk [vmem:[%s200 + $0x319] sm:$0xff] %vm26, %v198
  %264 = vst.msk [vmem:[%s200 + $0x321] sm:$0xff] %vm26, %v199
  %v265 = vld [vmem:[#allocation2] sm:$0xff]
  %v266 = vld [vmem:[#allocation2 + $0x8] sm:$0xff]
  %v267 = vld [vmem:[#allocation2 + $0x18] sm:$0xff]
  %v268 = vld [vmem:[#allocation2 + $0x20] sm:$0xff]
  %v269 = vld [vmem:[#allocation2 + $0x30] sm:$0xff]
  %v270 = vld [vmem:[#allocation2 + $0x38] sm:$0xff]
  %v271 = vld [vmem:[#allocation2 + $0x48] sm:$0xff]
  %v272 = vld [vmem:[#allocation2 + $0x50] sm:$0xff]
  %v273 = vld [vmem:[#allocation2 + $0x60] sm:$0xff]
  %v274 = vld [vmem:[#allocation2 + $0x68] sm:$0xff]
  %v275 = vld [vmem:[#allocation2 + $0x78] sm:$0xff]
  %v276 = vld [vmem:[#allocation2 + $0x80] sm:$0xff]
  %v277 = vld [vmem:[#allocation2 + $0x90] sm:$0xff]
  %v278 = vld [vmem:[#allocation2 + $0x98] sm:$0xff]
  %v279 = vld [vmem:[#allocation2 + $0xa8] sm:$0xff]
  %v280 = vld [vmem:[#allocation2 + $0xb0] sm:$0xff]
  %v281 = vld [vmem:[#allocation2 + $0xc0] sm:$0xff]
  %v282 = vld [vmem:[#allocation2 + $0xc8] sm:$0xff]
  %v283 = vld [vmem:[#allocation2 + $0xd8] sm:$0xff]
  %v284 = vld [vmem:[#allocation2 + $0xe0] sm:$0xff]
  %v285 = vld [vmem:[#allocation2 + $0xf0] sm:$0xff]
  %v286 = vld [vmem:[#allocation2 + $0xf8] sm:$0xff]
  %v287 = vld [vmem:[#allocation2 + $0x108] sm:$0xff]
  %v288 = vld [vmem:[#allocation2 + $0x110] sm:$0xff]
  %v289 = vld [vmem:[#allocation2 + $0x120] sm:$0xff]
  %v290 = vld [vmem:[#allocation2 + $0x128] sm:$0xff]
  %v291 = vld [vmem:[#allocation2 + $0x138] sm:$0xff]
  %v292 = vld [vmem:[#allocation2 + $0x140] sm:$0xff]
  %v293 = vld [vmem:[#allocation2 + $0x150] sm:$0xff]
  %v294 = vld [vmem:[#allocation2 + $0x158] sm:$0xff]
  %v295 = vld [vmem:[#allocation2 + $0x168] sm:$0xff]
  %v296 = vld [vmem:[#allocation2 + $0x170] sm:$0xff]
  %v297 = vld [vmem:[#allocation2 + $0x1b0] sm:$0xff]
  %v298 = vld [vmem:[#allocation2 + $0x1b8] sm:$0xff]
  %v299 = vld [vmem:[#allocation2 + $0x1c8] sm:$0xff]
  %v300 = vld [vmem:[#allocation2 + $0x1d0] sm:$0xff]
  %v301 = vld [vmem:[#allocation2 + $0x1e0] sm:$0xff]
  %v302 = vld [vmem:[#allocation2 + $0x1e8] sm:$0xff]
  %v303 = vld [vmem:[#allocation2 + $0x1f8] sm:$0xff]
  %v304 = vld [vmem:[#allocation2 + $0x200] sm:$0xff]
  %v305 = vld [vmem:[#allocation2 + $0x210] sm:$0xff]
  %v306 = vld [vmem:[#allocation2 + $0x218] sm:$0xff]
  %v307 = vld [vmem:[#allocation2 + $0x228] sm:$0xff]
  %v308 = vld [vmem:[#allocation2 + $0x230] sm:$0xff]
  %v309 = vld [vmem:[#allocation2 + $0x240] sm:$0xff]
  %v310 = vld [vmem:[#allocation2 + $0x248] sm:$0xff]
  %v311 = vld [vmem:[#allocation2 + $0x258] sm:$0xff]
  %v312 = vld [vmem:[#allocation2 + $0x260] sm:$0xff]
  %v313 = vld [vmem:[#allocation2 + $0x270] sm:$0xff]
  %v314 = vld [vmem:[#allocation2 + $0x278] sm:$0xff]
  %v315 = vld [vmem:[#allocation2 + $0x288] sm:$0xff]
  %v316 = vld [vmem:[#allocation2 + $0x290] sm:$0xff]
  %v317 = vld [vmem:[#allocation2 + $0x2a0] sm:$0xff]
  %v318 = vld [vmem:[#allocation2 + $0x2a8] sm:$0xff]
  %v319 = vld [vmem:[#allocation2 + $0x2b8] sm:$0xff]
  %v320 = vld [vmem:[#allocation2 + $0x2c0] sm:$0xff]
  %v321 = vld [vmem:[#allocation2 + $0x2d0] sm:$0xff]
  %v322 = vld [vmem:[#allocation2 + $0x2d8] sm:$0xff]
  %v323 = vld [vmem:[#allocation2 + $0x2e8] sm:$0xff]
  %v324 = vld [vmem:[#allocation2 + $0x2f0] sm:$0xff]
  %v325 = vld [vmem:[#allocation2 + $0x300] sm:$0xff]
  %v326 = vld [vmem:[#allocation2 + $0x308] sm:$0xff]
  %v327 = vld [vmem:[#allocation2 + $0x318] sm:$0xff]
  %v328 = vld [vmem:[#allocation2 + $0x320] sm:$0xff]
  %v329 = vld [vmem:[#allocation2 + $0x1] sm:$0xff]
  %v330 = vld [vmem:[#allocation2 + $0x9] sm:$0xff]
  %v331 = vld [vmem:[#allocation2 + $0x19] sm:$0xff]
  %v332 = vld [vmem:[#allocation2 + $0x21] sm:$0xff]
  %v333 = vld [vmem:[#allocation2 + $0x31] sm:$0xff]
  %v334 = vld [vmem:[#allocation2 + $0x39] sm:$0xff]
  %v335 = vld [vmem:[#allocation2 + $0x49] sm:$0xff]
  %v336 = vld [vmem:[#allocation2 + $0x51] sm:$0xff]
  %v337 = vld [vmem:[#allocation2 + $0x61] sm:$0xff]
  %v338 = vld [vmem:[#allocation2 + $0x69] sm:$0xff]
  %v339 = vld [vmem:[#allocation2 + $0x79] sm:$0xff]
  %v340 = vld [vmem:[#allocation2 + $0x81] sm:$0xff]
  %v341 = vld [vmem:[#allocation2 + $0x91] sm:$0xff]
  %v342 = vld [vmem:[#allocation2 + $0x99] sm:$0xff]
  %v343 = vld [vmem:[#allocation2 + $0xa9] sm:$0xff]
  %v344 = vld [vmem:[#allocation2 + $0xb1] sm:$0xff]
  %v345 = vld [vmem:[#allocation2 + $0xc1] sm:$0xff]
  %v346 = vld [vmem:[#allocation2 + $0xc9] sm:$0xff]
  %v347 = vld [vmem:[#allocation2 + $0xd9] sm:$0xff]
  %v348 = vld [vmem:[#allocation2 + $0xe1] sm:$0xff]
  %v349 = vld [vmem:[#allocation2 + $0xf1] sm:$0xff]
  %v350 = vld [vmem:[#allocation2 + $0xf9] sm:$0xff]
  %v351 = vld [vmem:[#allocation2 + $0x109] sm:$0xff]
  %v352 = vld [vmem:[#allocation2 + $0x111] sm:$0xff]
  %v353 = vld [vmem:[#allocation2 + $0x121] sm:$0xff]
  %v354 = vld [vmem:[#allocation2 + $0x129] sm:$0xff]
  %v355 = vld [vmem:[#allocation2 + $0x139] sm:$0xff]
  %v356 = vld [vmem:[#allocation2 + $0x141] sm:$0xff]
  %v357 = vld [vmem:[#allocation2 + $0x151] sm:$0xff]
  %v358 = vld [vmem:[#allocation2 + $0x159] sm:$0xff]
  %v359 = vld [vmem:[#allocation2 + $0x169] sm:$0xff]
  %v360 = vld [vmem:[#allocation2 + $0x171] sm:$0xff]
  %v361 = vld [vmem:[#allocation2 + $0x1b1] sm:$0xff]
  %v362 = vld [vmem:[#allocation2 + $0x1b9] sm:$0xff]
  %v363 = vld [vmem:[#allocation2 + $0x1c9] sm:$0xff]
  %v364 = vld [vmem:[#allocation2 + $0x1d1] sm:$0xff]
  %v365 = vld [vmem:[#allocation2 + $0x1e1] sm:$0xff]
  %v366 = vld [vmem:[#allocation2 + $0x1e9] sm:$0xff]
  %v367 = vld [vmem:[#allocation2 + $0x1f9] sm:$0xff]
  %v368 = vld [vmem:[#allocation2 + $0x201] sm:$0xff]
  %v369 = vld [vmem:[#allocation2 + $0x211] sm:$0xff]
  %v370 = vld [vmem:[#allocation2 + $0x219] sm:$0xff]
  %v371 = vld [vmem:[#allocation2 + $0x229] sm:$0xff]
  %v372 = vld [vmem:[#allocation2 + $0x231] sm:$0xff]
  %v373 = vld [vmem:[#allocation2 + $0x241] sm:$0xff]
  %v374 = vld [vmem:[#allocation2 + $0x249] sm:$0xff]
  %v375 = vld [vmem:[#allocation2 + $0x259] sm:$0xff]
  %v376 = vld [vmem:[#allocation2 + $0x261] sm:$0xff]
  %v377 = vld [vmem:[#allocation2 + $0x271] sm:$0xff]
  %v378 = vld [vmem:[#allocation2 + $0x279] sm:$0xff]
  %v379 = vld [vmem:[#allocation2 + $0x289] sm:$0xff]
  %v380 = vld [vmem:[#allocation2 + $0x291] sm:$0xff]
  %v381 = vld [vmem:[#allocation2 + $0x2a1] sm:$0xff]
  %v382 = vld [vmem:[#allocation2 + $0x2a9] sm:$0xff]
  %v383 = vld [vmem:[#allocation2 + $0x2b9] sm:$0xff]
  %v384 = vld [vmem:[#allocation2 + $0x2c1] sm:$0xff]
  %v385 = vld [vmem:[#allocation2 + $0x2d1] sm:$0xff]
  %v386 = vld [vmem:[#allocation2 + $0x2d9] sm:$0xff]
  %v387 = vld [vmem:[#allocation2 + $0x2e9] sm:$0xff]
  %v388 = vld [vmem:[#allocation2 + $0x2f1] sm:$0xff]
  %v389 = vld [vmem:[#allocation2 + $0x301] sm:$0xff]
  %v390 = vld [vmem:[#allocation2 + $0x309] sm:$0xff]
  %v391 = vld [vmem:[#allocation2 + $0x319] sm:$0xff]
  %v392 = vld [vmem:[#allocation2 + $0x321] sm:$0xff]
  %v393 = vld [vmem:[#allocation2 + $0x2] sm:$0xff]
  %v394 = vld [vmem:[#allocation2 + $0xa] sm:$0xff]
  %v395 = vld [vmem:[#allocation2 + $0x1a] sm:$0xff]
  %v396 = vld [vmem:[#allocation2 + $0x22] sm:$0xff]
  %v397 = vld [vmem:[#allocation2 + $0x32] sm:$0xff]
  %v398 = vld [vmem:[#allocation2 + $0x3a] sm:$0xff]
  %v399 = vld [vmem:[#allocation2 + $0x4a] sm:$0xff]
  %v400 = vld [vmem:[#allocation2 + $0x52] sm:$0xff]
  %v401 = vld [vmem:[#allocation2 + $0x62] sm:$0xff]
  %v402 = vld [vmem:[#allocation2 + $0x6a] sm:$0xff]
  %v403 = vld [vmem:[#allocation2 + $0x7a] sm:$0xff]
  %v404 = vld [vmem:[#allocation2 + $0x82] sm:$0xff]
  %v405 = vld [vmem:[#allocation2 + $0x92] sm:$0xff]
  %v406 = vld [vmem:[#allocation2 + $0x9a] sm:$0xff]
  %v407 = vld [vmem:[#allocation2 + $0xaa] sm:$0xff]
  %v408 = vld [vmem:[#allocation2 + $0xb2] sm:$0xff]
  %v409 = vld [vmem:[#allocation2 + $0xc2] sm:$0xff]
  %v410 = vld [vmem:[#allocation2 + $0xca] sm:$0xff]
  %v411 = vld [vmem:[#allocation2 + $0xda] sm:$0xff]
  %v412 = vld [vmem:[#allocation2 + $0xe2] sm:$0xff]
  %v413 = vld [vmem:[#allocation2 + $0xf2] sm:$0xff]
  %v414 = vld [vmem:[#allocation2 + $0xfa] sm:$0xff]
  %v415 = vld [vmem:[#allocation2 + $0x10a] sm:$0xff]
  %v416 = vld [vmem:[#allocation2 + $0x112] sm:$0xff]
  %v417 = vld [vmem:[#allocation2 + $0x122] sm:$0xff]
  %v418 = vld [vmem:[#allocation2 + $0x12a] sm:$0xff]
  %v419 = vld [vmem:[#allocation2 + $0x13a] sm:$0xff]
  %v420 = vld [vmem:[#allocation2 + $0x142] sm:$0xff]
  %v421 = vld [vmem:[#allocation2 + $0x152] sm:$0xff]
  %v422 = vld [vmem:[#allocation2 + $0x15a] sm:$0xff]
  %v423 = vld [vmem:[#allocation2 + $0x16a] sm:$0xff]
  %v424 = vld [vmem:[#allocation2 + $0x172] sm:$0xff]
  %v425 = vld [vmem:[#allocation2 + $0x1b2] sm:$0xff]
  %v426 = vld [vmem:[#allocation2 + $0x1ba] sm:$0xff]
  %v427 = vld [vmem:[#allocation2 + $0x1ca] sm:$0xff]
  %v428 = vld [vmem:[#allocation2 + $0x1d2] sm:$0xff]
  %v429 = vld [vmem:[#allocation2 + $0x1e2] sm:$0xff]
  %v430 = vld [vmem:[#allocation2 + $0x1ea] sm:$0xff]
  %v431 = vld [vmem:[#allocation2 + $0x1fa] sm:$0xff]
  %v432 = vld [vmem:[#allocation2 + $0x202] sm:$0xff]
  %v433 = vld [vmem:[#allocation2 + $0x212] sm:$0xff]
  %v434 = vld [vmem:[#allocation2 + $0x21a] sm:$0xff]
  %v435 = vld [vmem:[#allocation2 + $0x22a] sm:$0xff]
  %v436 = vld [vmem:[#allocation2 + $0x232] sm:$0xff]
  %v437 = vld [vmem:[#allocation2 + $0x242] sm:$0xff]
  %v438 = vld [vmem:[#allocation2 + $0x24a] sm:$0xff]
  %v439 = vld [vmem:[#allocation2 + $0x25a] sm:$0xff]
  %v440 = vld [vmem:[#allocation2 + $0x262] sm:$0xff]
  %v441 = vld [vmem:[#allocation2 + $0x272] sm:$0xff]
  %v442 = vld [vmem:[#allocation2 + $0x27a] sm:$0xff]
  %v443 = vld [vmem:[#allocation2 + $0x28a] sm:$0xff]
  %v444 = vld [vmem:[#allocation2 + $0x292] sm:$0xff]
  %v445 = vld [vmem:[#allocation2 + $0x2a2] sm:$0xff]
  %v446 = vld [vmem:[#allocation2 + $0x2aa] sm:$0xff]
  %v447 = vld [vmem:[#allocation2 + $0x2ba] sm:$0xff]
  %v448 = vld [vmem:[#allocation2 + $0x2c2] sm:$0xff]
  %v449 = vld [vmem:[#allocation2 + $0x2d2] sm:$0xff]
  %v450 = vld [vmem:[#allocation2 + $0x2da] sm:$0xff]
  %v451 = vld [vmem:[#allocation2 + $0x2ea] sm:$0xff]
  %v452 = vld [vmem:[#allocation2 + $0x2f2] sm:$0xff]
  %v453 = vld [vmem:[#allocation2 + $0x302] sm:$0xff]
  %v454 = vld [vmem:[#allocation2 + $0x30a] sm:$0xff]
  %v455 = vld [vmem:[#allocation2 + $0x31a] sm:$0xff]
  %v456 = vld [vmem:[#allocation2 + $0x322] sm:$0xff]
  %v457 = vld [vmem:[%s200] sm:$0xff]
  %v458 = vld [vmem:[%s200 + $0x8] sm:$0xff]
  %v459 = vld [vmem:[%s200 + $0x18] sm:$0xff]
  %v460 = vld [vmem:[%s200 + $0x20] sm:$0xff]
  %v461 = vld [vmem:[%s200 + $0x30] sm:$0xff]
  %v462 = vld [vmem:[%s200 + $0x38] sm:$0xff]
  %v463 = vld [vmem:[%s200 + $0x48] sm:$0xff]
  %v464 = vld [vmem:[%s200 + $0x50] sm:$0xff]
  %v465 = vld [vmem:[%s200 + $0x60] sm:$0xff]
  %v466 = vld [vmem:[%s200 + $0x68] sm:$0xff]
  %v467 = vld [vmem:[%s200 + $0x78] sm:$0xff]
  %v468 = vld [vmem:[%s200 + $0x80] sm:$0xff]
  %v469 = vld [vmem:[%s200 + $0x90] sm:$0xff]
  %v470 = vld [vmem:[%s200 + $0x98] sm:$0xff]
  %v471 = vld [vmem:[%s200 + $0xa8] sm:$0xff]
  %v472 = vld [vmem:[%s200 + $0xb0] sm:$0xff]
  %v473 = vld [vmem:[%s200 + $0xc0] sm:$0xff]
  %v474 = vld [vmem:[%s200 + $0xc8] sm:$0xff]
  %v475 = vld [vmem:[%s200 + $0xd8] sm:$0xff]
  %v476 = vld [vmem:[%s200 + $0xe0] sm:$0xff]
  %v477 = vld [vmem:[%s200 + $0xf0] sm:$0xff]
  %v478 = vld [vmem:[%s200 + $0xf8] sm:$0xff]
  %v479 = vld [vmem:[%s200 + $0x108] sm:$0xff]
  %v480 = vld [vmem:[%s200 + $0x110] sm:$0xff]
  %v481 = vld [vmem:[%s200 + $0x120] sm:$0xff]
  %v482 = vld [vmem:[%s200 + $0x128] sm:$0xff]
  %v483 = vld [vmem:[%s200 + $0x138] sm:$0xff]
  %v484 = vld [vmem:[%s200 + $0x140] sm:$0xff]
  %v485 = vld [vmem:[%s200 + $0x150] sm:$0xff]
  %v486 = vld [vmem:[%s200 + $0x158] sm:$0xff]
  %v487 = vld [vmem:[%s200 + $0x168] sm:$0xff]
  %v488 = vld [vmem:[%s200 + $0x170] sm:$0xff]
  %v489 = vld [vmem:[%s200 + $0x1b0] sm:$0xff]
  %v490 = vld [vmem:[%s200 + $0x1b8] sm:$0xff]
  %v491 = vld [vmem:[%s200 + $0x1c8] sm:$0xff]
  %v492 = vld [vmem:[%s200 + $0x1d0] sm:$0xff]
  %v493 = vld [vmem:[%s200 + $0x1e0] sm:$0xff]
  %v494 = vld [vmem:[%s200 + $0x1e8] sm:$0xff]
  %v495 = vld [vmem:[%s200 + $0x1f8] sm:$0xff]
  %v496 = vld [vmem:[%s200 + $0x200] sm:$0xff]
  %v497 = vld [vmem:[%s200 + $0x210] sm:$0xff]
  %v498 = vld [vmem:[%s200 + $0x218] sm:$0xff]
  %v499 = vld [vmem:[%s200 + $0x228] sm:$0xff]
  %v500 = vld [vmem:[%s200 + $0x230] sm:$0xff]
  %v501 = vld [vmem:[%s200 + $0x240] sm:$0xff]
  %v502 = vld [vmem:[%s200 + $0x248] sm:$0xff]
  %v503 = vld [vmem:[%s200 + $0x258] sm:$0xff]
  %v504 = vld [vmem:[%s200 + $0x260] sm:$0xff]
  %v505 = vld [vmem:[%s200 + $0x270] sm:$0xff]
  %v506 = vld [vmem:[%s200 + $0x278] sm:$0xff]
  %v507 = vld [vmem:[%s200 + $0x288] sm:$0xff]
  %v508 = vld [vmem:[%s200 + $0x290] sm:$0xff]
  %v509 = vld [vmem:[%s200 + $0x2a0] sm:$0xff]
  %v510 = vld [vmem:[%s200 + $0x2a8] sm:$0xff]
  %v511 = vld [vmem:[%s200 + $0x2b8] sm:$0xff]
  %v512 = vld [vmem:[%s200 + $0x2c0] sm:$0xff]
  %v513 = vld [vmem:[%s200 + $0x2d0] sm:$0xff]
  %v514 = vld [vmem:[%s200 + $0x2d8] sm:$0xff]
  %v515 = vld [vmem:[%s200 + $0x2e8] sm:$0xff]
  %v516 = vld [vmem:[%s200 + $0x2f0] sm:$0xff]
  %v517 = vld [vmem:[%s200 + $0x300] sm:$0xff]
  %v518 = vld [vmem:[%s200 + $0x308] sm:$0xff]
  %v519 = vld [vmem:[%s200 + $0x318] sm:$0xff]
  %v520 = vld [vmem:[%s200 + $0x320] sm:$0xff]
  %v521 = vld [vmem:[%s200 + $0x1] sm:$0xff]
  %v522 = vld [vmem:[%s200 + $0x9] sm:$0xff]
  %v523 = vld [vmem:[%s200 + $0x19] sm:$0xff]
  %v524 = vld [vmem:[%s200 + $0x21] sm:$0xff]
  %v525 = vld [vmem:[%s200 + $0x31] sm:$0xff]
  %v526 = vld [vmem:[%s200 + $0x39] sm:$0xff]
  %v527 = vld [vmem:[%s200 + $0x49] sm:$0xff]
  %v528 = vld [vmem:[%s200 + $0x51] sm:$0xff]
  %v529 = vld [vmem:[%s200 + $0x61] sm:$0xff]
  %v530 = vld [vmem:[%s200 + $0x69] sm:$0xff]
  %v531 = vld [vmem:[%s200 + $0x79] sm:$0xff]
  %v532 = vld [vmem:[%s200 + $0x81] sm:$0xff]
  %v533 = vld [vmem:[%s200 + $0x91] sm:$0xff]
  %v534 = vld [vmem:[%s200 + $0x99] sm:$0xff]
  %v535 = vld [vmem:[%s200 + $0xa9] sm:$0xff]
  %v536 = vld [vmem:[%s200 + $0xb1] sm:$0xff]
  %v537 = vld [vmem:[%s200 + $0xc1] sm:$0xff]
  %v538 = vld [vmem:[%s200 + $0xc9] sm:$0xff]
  %v539 = vld [vmem:[%s200 + $0xd9] sm:$0xff]
  %v540 = vld [vmem:[%s200 + $0xe1] sm:$0xff]
  %v541 = vld [vmem:[%s200 + $0xf1] sm:$0xff]
  %v542 = vld [vmem:[%s200 + $0xf9] sm:$0xff]
  %v543 = vld [vmem:[%s200 + $0x109] sm:$0xff]
  %v544 = vld [vmem:[%s200 + $0x111] sm:$0xff]
  %v545 = vld [vmem:[%s200 + $0x121] sm:$0xff]
  %v546 = vld [vmem:[%s200 + $0x129] sm:$0xff]
  %v547 = vld [vmem:[%s200 + $0x139] sm:$0xff]
  %v548 = vld [vmem:[%s200 + $0x141] sm:$0xff]
  %v549 = vld [vmem:[%s200 + $0x151] sm:$0xff]
  %v550 = vld [vmem:[%s200 + $0x159] sm:$0xff]
  %v551 = vld [vmem:[%s200 + $0x169] sm:$0xff]
  %v552 = vld [vmem:[%s200 + $0x171] sm:$0xff]
  %v553 = vld [vmem:[%s200 + $0x1b1] sm:$0xff]
  %v554 = vld [vmem:[%s200 + $0x1b9] sm:$0xff]
  %v555 = vld [vmem:[%s200 + $0x1c9] sm:$0xff]
  %v556 = vld [vmem:[%s200 + $0x1d1] sm:$0xff]
  %v557 = vld [vmem:[%s200 + $0x1e1] sm:$0xff]
  %v558 = vld [vmem:[%s200 + $0x1e9] sm:$0xff]
  %v559 = vld [vmem:[%s200 + $0x1f9] sm:$0xff]
  %v560 = vld [vmem:[%s200 + $0x201] sm:$0xff]
  %v561 = vld [vmem:[%s200 + $0x211] sm:$0xff]
  %v562 = vld [vmem:[%s200 + $0x219] sm:$0xff]
  %v563 = vld [vmem:[%s200 + $0x229] sm:$0xff]
  %v564 = vld [vmem:[%s200 + $0x231] sm:$0xff]
  %v565 = vld [vmem:[%s200 + $0x241] sm:$0xff]
  %v566 = vld [vmem:[%s200 + $0x249] sm:$0xff]
  %v567 = vld [vmem:[%s200 + $0x259] sm:$0xff]
  %v568 = vld [vmem:[%s200 + $0x261] sm:$0xff]
  %v569 = vld [vmem:[%s200 + $0x271] sm:$0xff]
  %v570 = vld [vmem:[%s200 + $0x279] sm:$0xff]
  %v571 = vld [vmem:[%s200 + $0x289] sm:$0xff]
  %v572 = vld [vmem:[%s200 + $0x291] sm:$0xff]
  %v573 = vld [vmem:[%s200 + $0x2a1] sm:$0xff]
  %v574 = vld [vmem:[%s200 + $0x2a9] sm:$0xff]
  %v575 = vld [vmem:[%s200 + $0x2b9] sm:$0xff]
  %v576 = vld [vmem:[%s200 + $0x2c1] sm:$0xff]
  %v577 = vld [vmem:[%s200 + $0x2d1] sm:$0xff]
  %v578 = vld [vmem:[%s200 + $0x2d9] sm:$0xff]
  %v579 = vld [vmem:[%s200 + $0x2e9] sm:$0xff]
  %v580 = vld [vmem:[%s200 + $0x2f1] sm:$0xff]
  %v581 = vld [vmem:[%s200 + $0x301] sm:$0xff]
  %v582 = vld [vmem:[%s200 + $0x309] sm:$0xff]
  %v583 = vld [vmem:[%s200 + $0x319] sm:$0xff]
  %v584 = vld [vmem:[%s200 + $0x321] sm:$0xff]
  %v585 = vld [vmem:[%s200 + $0x2] sm:$0xff]
  %v586 = vld [vmem:[%s200 + $0xa] sm:$0xff]
  %v587 = vld [vmem:[%s200 + $0x1a] sm:$0xff]
  %v588 = vld [vmem:[%s200 + $0x22] sm:$0xff]
  %v589 = vld [vmem:[%s200 + $0x32] sm:$0xff]
  %v590 = vld [vmem:[%s200 + $0x3a] sm:$0xff]
  %v591 = vld [vmem:[%s200 + $0x4a] sm:$0xff]
  %v592 = vld [vmem:[%s200 + $0x52] sm:$0xff]
  %v593 = vld [vmem:[%s200 + $0x62] sm:$0xff]
  %v594 = vld [vmem:[%s200 + $0x6a] sm:$0xff]
  %v595 = vld [vmem:[%s200 + $0x7a] sm:$0xff]
  %v596 = vld [vmem:[%s200 + $0x82] sm:$0xff]
  %v597 = vld [vmem:[%s200 + $0x92] sm:$0xff]
  %v598 = vld [vmem:[%s200 + $0x9a] sm:$0xff]
  %v599 = vld [vmem:[%s200 + $0xaa] sm:$0xff]
  %v600 = vld [vmem:[%s200 + $0xb2] sm:$0xff]
  %v601 = vld [vmem:[%s200 + $0xc2] sm:$0xff]
  %v602 = vld [vmem:[%s200 + $0xca] sm:$0xff]
  %v603 = vld [vmem:[%s200 + $0xda] sm:$0xff]
  %v604 = vld [vmem:[%s200 + $0xe2] sm:$0xff]
  %v605 = vld [vmem:[%s200 + $0xf2] sm:$0xff]
  %v606 = vld [vmem:[%s200 + $0xfa] sm:$0xff]
  %v607 = vld [vmem:[%s200 + $0x10a] sm:$0xff]
  %v608 = vld [vmem:[%s200 + $0x112] sm:$0xff]
  %v609 = vld [vmem:[%s200 + $0x122] sm:$0xff]
  %v610 = vld [vmem:[%s200 + $0x12a] sm:$0xff]
  %v611 = vld [vmem:[%s200 + $0x13a] sm:$0xff]
  %v612 = vld [vmem:[%s200 + $0x142] sm:$0xff]
  %v613 = vld [vmem:[%s200 + $0x152] sm:$0xff]
  %v614 = vld [vmem:[%s200 + $0x15a] sm:$0xff]
  %v615 = vld [vmem:[%s200 + $0x16a] sm:$0xff]
  %v616 = vld [vmem:[%s200 + $0x172] sm:$0xff]
  %v617 = vld [vmem:[%s200 + $0x1b2] sm:$0xff]
  %v618 = vld [vmem:[%s200 + $0x1ba] sm:$0xff]
  %v619 = vld [vmem:[%s200 + $0x1ca] sm:$0xff]
  %v620 = vld [vmem:[%s200 + $0x1d2] sm:$0xff]
  %v621 = vld [vmem:[%s200 + $0x1e2] sm:$0xff]
  %v622 = vld [vmem:[%s200 + $0x1ea] sm:$0xff]
  %v623 = vld [vmem:[%s200 + $0x1fa] sm:$0xff]
  %v624 = vld [vmem:[%s200 + $0x202] sm:$0xff]
  %v625 = vld [vmem:[%s200 + $0x212] sm:$0xff]
  %v626 = vld [vmem:[%s200 + $0x21a] sm:$0xff]
  %v627 = vld [vmem:[%s200 + $0x22a] sm:$0xff]
  %v628 = vld [vmem:[%s200 + $0x232] sm:$0xff]
  %v629 = vld [vmem:[%s200 + $0x242] sm:$0xff]
  %v630 = vld [vmem:[%s200 + $0x24a] sm:$0xff]
  %v631 = vld [vmem:[%s200 + $0x25a] sm:$0xff]
  %v632 = vld [vmem:[%s200 + $0x262] sm:$0xff]
  %v633 = vld [vmem:[%s200 + $0x272] sm:$0xff]
  %v634 = vld [vmem:[%s200 + $0x27a] sm:$0xff]
  %v635 = vld [vmem:[%s200 + $0x28a] sm:$0xff]
  %v636 = vld [vmem:[%s200 + $0x292] sm:$0xff]
  %v637 = vld [vmem:[%s200 + $0x2a2] sm:$0xff]
  %v638 = vld [vmem:[%s200 + $0x2aa] sm:$0xff]
  %v639 = vld [vmem:[%s200 + $0x2ba] sm:$0xff]
  %v640 = vld [vmem:[%s200 + $0x2c2] sm:$0xff]
  %v641 = vld [vmem:[%s200 + $0x2d2] sm:$0xff]
  %v642 = vld [vmem:[%s200 + $0x2da] sm:$0xff]
  %v643 = vld [vmem:[%s200 + $0x2ea] sm:$0xff]
  %v644 = vld [vmem:[%s200 + $0x2f2] sm:$0xff]
  %v645 = vld [vmem:[%s200 + $0x302] sm:$0xff]
  %v646 = vld [vmem:[%s200 + $0x30a] sm:$0xff]
  %v647 = vld [vmem:[%s200 + $0x31a] sm:$0xff]
  %v648 = vld [vmem:[%s200 + $0x322] sm:$0xff]
  %s649 = scalar_lea.vmem [#allocation2], 48
  %v650 = vld [vmem:[%s649] sm:$0xff]
  %v651 = vld [vmem:[%s649 + $0x8] sm:$0xff]
  %v652 = vld [vmem:[%s649 + $0x18] sm:$0xff]
  %v653 = vld [vmem:[%s649 + $0x20] sm:$0xff]
  %v654 = vld [vmem:[%s649 + $0x30] sm:$0xff]
  %v655 = vld [vmem:[%s649 + $0x38] sm:$0xff]
  %v656 = vld [vmem:[%s649 + $0x48] sm:$0xff]
  %v657 = vld [vmem:[%s649 + $0x50] sm:$0xff]
  %v658 = vld [vmem:[%s649 + $0x60] sm:$0xff]
  %v659 = vld [vmem:[%s649 + $0x68] sm:$0xff]
  %v660 = vld [vmem:[%s649 + $0x78] sm:$0xff]
  %v661 = vld [vmem:[%s649 + $0x80] sm:$0xff]
  %v662 = vld [vmem:[%s649 + $0x90] sm:$0xff]
  %v663 = vld [vmem:[%s649 + $0x98] sm:$0xff]
  %v664 = vld [vmem:[%s649 + $0xa8] sm:$0xff]
  %v665 = vld [vmem:[%s649 + $0xb0] sm:$0xff]
  %v666 = vld [vmem:[%s649 + $0xc0] sm:$0xff]
  %v667 = vld [vmem:[%s649 + $0xc8] sm:$0xff]
  %v668 = vld [vmem:[%s649 + $0xd8] sm:$0xff]
  %v669 = vld [vmem:[%s649 + $0xe0] sm:$0xff]
  %v670 = vld [vmem:[%s649 + $0xf0] sm:$0xff]
  %v671 = vld [vmem:[%s649 + $0xf8] sm:$0xff]
  %v672 = vld [vmem:[%s649 + $0x108] sm:$0xff]
  %v673 = vld [vmem:[%s649 + $0x110] sm:$0xff]
  %v674 = vld [vmem:[%s649 + $0x120] sm:$0xff]
  %v675 = vld [vmem:[%s649 + $0x128] sm:$0xff]
  %v676 = vld [vmem:[%s649 + $0x138] sm:$0xff]
  %v677 = vld [vmem:[%s649 + $0x140] sm:$0xff]
  %v678 = vld [vmem:[%s649 + $0x150] sm:$0xff]
  %v679 = vld [vmem:[%s649 + $0x158] sm:$0xff]
  %v680 = vld [vmem:[%s649 + $0x168] sm:$0xff]
  %v681 = vld [vmem:[%s649 + $0x170] sm:$0xff]
  %v682 = vld [vmem:[%s649 + $0x1b0] sm:$0xff]
  %v683 = vld [vmem:[%s649 + $0x1b8] sm:$0xff]
  %v684 = vld [vmem:[%s649 + $0x1c8] sm:$0xff]
  %v685 = vld [vmem:[%s649 + $0x1d0] sm:$0xff]
  %v686 = vld [vmem:[%s649 + $0x1e0] sm:$0xff]
  %v687 = vld [vmem:[%s649 + $0x1e8] sm:$0xff]
  %v688 = vld [vmem:[%s649 + $0x1f8] sm:$0xff]
  %v689 = vld [vmem:[%s649 + $0x200] sm:$0xff]
  %v690 = vld [vmem:[%s649 + $0x210] sm:$0xff]
  %v691 = vld [vmem:[%s649 + $0x218] sm:$0xff]
  %v692 = vld [vmem:[%s649 + $0x228] sm:$0xff]
  %v693 = vld [vmem:[%s649 + $0x230] sm:$0xff]
  %v694 = vld [vmem:[%s649 + $0x240] sm:$0xff]
  %v695 = vld [vmem:[%s649 + $0x248] sm:$0xff]
  %v696 = vld [vmem:[%s649 + $0x258] sm:$0xff]
  %v697 = vld [vmem:[%s649 + $0x260] sm:$0xff]
  %v698 = vld [vmem:[%s649 + $0x270] sm:$0xff]
  %v699 = vld [vmem:[%s649 + $0x278] sm:$0xff]
  %v700 = vld [vmem:[%s649 + $0x288] sm:$0xff]
  %v701 = vld [vmem:[%s649 + $0x290] sm:$0xff]
  %v702 = vld [vmem:[%s649 + $0x2a0] sm:$0xff]
  %v703 = vld [vmem:[%s649 + $0x2a8] sm:$0xff]
  %v704 = vld [vmem:[%s649 + $0x2b8] sm:$0xff]
  %v705 = vld [vmem:[%s649 + $0x2c0] sm:$0xff]
  %v706 = vld [vmem:[%s649 + $0x2d0] sm:$0xff]
  %v707 = vld [vmem:[%s649 + $0x2d8] sm:$0xff]
  %v708 = vld [vmem:[%s649 + $0x2e8] sm:$0xff]
  %v709 = vld [vmem:[%s649 + $0x2f0] sm:$0xff]
  %v710 = vld [vmem:[%s649 + $0x300] sm:$0xff]
  %v711 = vld [vmem:[%s649 + $0x308] sm:$0xff]
  %v712 = vld [vmem:[%s649 + $0x318] sm:$0xff]
  %v713 = vld [vmem:[%s649 + $0x320] sm:$0xff]
  %v714 = vld [vmem:[%s649 + $0x1] sm:$0xff]
  %v715 = vld [vmem:[%s649 + $0x9] sm:$0xff]
  %v716 = vld [vmem:[%s649 + $0x19] sm:$0xff]
  %v717 = vld [vmem:[%s649 + $0x21] sm:$0xff]
  %v718 = vld [vmem:[%s649 + $0x31] sm:$0xff]
  %v719 = vld [vmem:[%s649 + $0x39] sm:$0xff]
  %v720 = vld [vmem:[%s649 + $0x49] sm:$0xff]
  %v721 = vld [vmem:[%s649 + $0x51] sm:$0xff]
  %v722 = vld [vmem:[%s649 + $0x61] sm:$0xff]
  %v723 = vld [vmem:[%s649 + $0x69] sm:$0xff]
  %v724 = vld [vmem:[%s649 + $0x79] sm:$0xff]
  %v725 = vld [vmem:[%s649 + $0x81] sm:$0xff]
  %v726 = vld [vmem:[%s649 + $0x91] sm:$0xff]
  %v727 = vld [vmem:[%s649 + $0x99] sm:$0xff]
  %v728 = vld [vmem:[%s649 + $0xa9] sm:$0xff]
  %v729 = vld [vmem:[%s649 + $0xb1] sm:$0xff]
  %v730 = vld [vmem:[%s649 + $0xc1] sm:$0xff]
  %v731 = vld [vmem:[%s649 + $0xc9] sm:$0xff]
  %v732 = vld [vmem:[%s649 + $0xd9] sm:$0xff]
  %v733 = vld [vmem:[%s649 + $0xe1] sm:$0xff]
  %v734 = vld [vmem:[%s649 + $0xf1] sm:$0xff]
  %v735 = vld [vmem:[%s649 + $0xf9] sm:$0xff]
  %v736 = vld [vmem:[%s649 + $0x109] sm:$0xff]
  %v737 = vld [vmem:[%s649 + $0x111] sm:$0xff]
  %v738 = vld [vmem:[%s649 + $0x121] sm:$0xff]
  %v739 = vld [vmem:[%s649 + $0x129] sm:$0xff]
  %v740 = vld [vmem:[%s649 + $0x139] sm:$0xff]
  %v741 = vld [vmem:[%s649 + $0x141] sm:$0xff]
  %v742 = vld [vmem:[%s649 + $0x151] sm:$0xff]
  %v743 = vld [vmem:[%s649 + $0x159] sm:$0xff]
  %v744 = vld [vmem:[%s649 + $0x169] sm:$0xff]
  %v745 = vld [vmem:[%s649 + $0x171] sm:$0xff]
  %v746 = vld [vmem:[%s649 + $0x1b1] sm:$0xff]
  %v747 = vld [vmem:[%s649 + $0x1b9] sm:$0xff]
  %v748 = vld [vmem:[%s649 + $0x1c9] sm:$0xff]
  %v749 = vld [vmem:[%s649 + $0x1d1] sm:$0xff]
  %v750 = vld [vmem:[%s649 + $0x1e1] sm:$0xff]
  %v751 = vld [vmem:[%s649 + $0x1e9] sm:$0xff]
  %v752 = vld [vmem:[%s649 + $0x1f9] sm:$0xff]
  %v753 = vld [vmem:[%s649 + $0x201] sm:$0xff]
  %v754 = vld [vmem:[%s649 + $0x211] sm:$0xff]
  %v755 = vld [vmem:[%s649 + $0x219] sm:$0xff]
  %v756 = vld [vmem:[%s649 + $0x229] sm:$0xff]
  %v757 = vld [vmem:[%s649 + $0x231] sm:$0xff]
  %v758 = vld [vmem:[%s649 + $0x241] sm:$0xff]
  %v759 = vld [vmem:[%s649 + $0x249] sm:$0xff]
  %v760 = vld [vmem:[%s649 + $0x259] sm:$0xff]
  %v761 = vld [vmem:[%s649 + $0x261] sm:$0xff]
  %v762 = vld [vmem:[%s649 + $0x271] sm:$0xff]
  %v763 = vld [vmem:[%s649 + $0x279] sm:$0xff]
  %v764 = vld [vmem:[%s649 + $0x289] sm:$0xff]
  %v765 = vld [vmem:[%s649 + $0x291] sm:$0xff]
  %v766 = vld [vmem:[%s649 + $0x2a1] sm:$0xff]
  %v767 = vld [vmem:[%s649 + $0x2a9] sm:$0xff]
  %v768 = vld [vmem:[%s649 + $0x2b9] sm:$0xff]
  %v769 = vld [vmem:[%s649 + $0x2c1] sm:$0xff]
  %v770 = vld [vmem:[%s649 + $0x2d1] sm:$0xff]
  %v771 = vld [vmem:[%s649 + $0x2d9] sm:$0xff]
  %v772 = vld [vmem:[%s649 + $0x2e9] sm:$0xff]
  %v773 = vld [vmem:[%s649 + $0x2f1] sm:$0xff]
  %v774 = vld [vmem:[%s649 + $0x301] sm:$0xff]
  %v775 = vld [vmem:[%s649 + $0x309] sm:$0xff]
  %v776 = vld [vmem:[%s649 + $0x319] sm:$0xff]
  %v777 = vld [vmem:[%s649 + $0x321] sm:$0xff]
  %v778 = vld [vmem:[%s649 + $0x2] sm:$0xff]
  %v779 = vld [vmem:[%s649 + $0xa] sm:$0xff]
  %v780 = vld [vmem:[%s649 + $0x1a] sm:$0xff]
  %v781 = vld [vmem:[%s649 + $0x22] sm:$0xff]
  %v782 = vld [vmem:[%s649 + $0x32] sm:$0xff]
  %v783 = vld [vmem:[%s649 + $0x3a] sm:$0xff]
  %v784 = vld [vmem:[%s649 + $0x4a] sm:$0xff]
  %v785 = vld [vmem:[%s649 + $0x52] sm:$0xff]
  %v786 = vld [vmem:[%s649 + $0x62] sm:$0xff]
  %v787 = vld [vmem:[%s649 + $0x6a] sm:$0xff]
  %v788 = vld [vmem:[%s649 + $0x7a] sm:$0xff]
  %v789 = vld [vmem:[%s649 + $0x82] sm:$0xff]
  %v790 = vld [vmem:[%s649 + $0x92] sm:$0xff]
  %v791 = vld [vmem:[%s649 + $0x9a] sm:$0xff]
  %v792 = vld [vmem:[%s649 + $0xaa] sm:$0xff]
  %v793 = vld [vmem:[%s649 + $0xb2] sm:$0xff]
  %v794 = vld [vmem:[%s649 + $0xc2] sm:$0xff]
  %v795 = vld [vmem:[%s649 + $0xca] sm:$0xff]
  %v796 = vld [vmem:[%s649 + $0xda] sm:$0xff]
  %v797 = vld [vmem:[%s649 + $0xe2] sm:$0xff]
  %v798 = vld [vmem:[%s649 + $0xf2] sm:$0xff]
  %v799 = vld [vmem:[%s649 + $0xfa] sm:$0xff]
  %v800 = vld [vmem:[%s649 + $0x10a] sm:$0xff]
  %v801 = vld [vmem:[%s649 + $0x112] sm:$0xff]
  %v802 = vld [vmem:[%s649 + $0x122] sm:$0xff]
  %v803 = vld [vmem:[%s649 + $0x12a] sm:$0xff]
  %v804 = vld [vmem:[%s649 + $0x13a] sm:$0xff]
  %v805 = vld [vmem:[%s649 + $0x142] sm:$0xff]
  %v806 = vld [vmem:[%s649 + $0x152] sm:$0xff]
  %v807 = vld [vmem:[%s649 + $0x15a] sm:$0xff]
  %v808 = vld [vmem:[%s649 + $0x16a] sm:$0xff]
  %v809 = vld [vmem:[%s649 + $0x172] sm:$0xff]
  %v810 = vld [vmem:[%s649 + $0x1b2] sm:$0xff]
  %v811 = vld [vmem:[%s649 + $0x1ba] sm:$0xff]
  %v812 = vld [vmem:[%s649 + $0x1ca] sm:$0xff]
  %v813 = vld [vmem:[%s649 + $0x1d2] sm:$0xff]
  %v814 = vld [vmem:[%s649 + $0x1e2] sm:$0xff]
  %v815 = vld [vmem:[%s649 + $0x1ea] sm:$0xff]
  %v816 = vld [vmem:[%s649 + $0x1fa] sm:$0xff]
  %v817 = vld [vmem:[%s649 + $0x202] sm:$0xff]
  %v818 = vld [vmem:[%s649 + $0x212] sm:$0xff]
  %v819 = vld [vmem:[%s649 + $0x21a] sm:$0xff]
  %v820 = vld [vmem:[%s649 + $0x22a] sm:$0xff]
  %v821 = vld [vmem:[%s649 + $0x232] sm:$0xff]
  %v822 = vld [vmem:[%s649 + $0x242] sm:$0xff]
  %v823 = vld [vmem:[%s649 + $0x24a] sm:$0xff]
  %v824 = vld [vmem:[%s649 + $0x25a] sm:$0xff]
  %v825 = vld [vmem:[%s649 + $0x262] sm:$0xff]
  %v826 = vld [vmem:[%s649 + $0x272] sm:$0xff]
  %v827 = vld [vmem:[%s649 + $0x27a] sm:$0xff]
  %v828 = vld [vmem:[%s649 + $0x28a] sm:$0xff]
  %v829 = vld [vmem:[%s649 + $0x292] sm:$0xff]
  %v830 = vld [vmem:[%s649 + $0x2a2] sm:$0xff]
  %v831 = vld [vmem:[%s649 + $0x2aa] sm:$0xff]
  %v832 = vld [vmem:[%s649 + $0x2ba] sm:$0xff]
  %v833 = vld [vmem:[%s649 + $0x2c2] sm:$0xff]
  %v834 = vld [vmem:[%s649 + $0x2d2] sm:$0xff]
  %v835 = vld [vmem:[%s649 + $0x2da] sm:$0xff]
  %v836 = vld [vmem:[%s649 + $0x2ea] sm:$0xff]
  %v837 = vld [vmem:[%s649 + $0x2f2] sm:$0xff]
  %v838 = vld [vmem:[%s649 + $0x302] sm:$0xff]
  %v839 = vld [vmem:[%s649 + $0x30a] sm:$0xff]
  %v840 = vld [vmem:[%s649 + $0x31a] sm:$0xff]
  %v841 = vld [vmem:[%s649 + $0x322] sm:$0xff]
  %906 = vrot.lane.b32.xlu0 %v329, 4
  %v907 = vpop.permute.xlu0 %906
  %908 = vrot.lane.b32.xlu0 %v330, 4
  %v909 = vpop.permute.xlu0 %908
  %910 = vrot.lane.b32.xlu0 %v331, 4
  %v911 = vpop.permute.xlu0 %910
  %912 = vrot.lane.b32.xlu0 %v332, 4
  %v913 = vpop.permute.xlu0 %912
  %914 = vrot.lane.b32.xlu0 %v333, 4
  %v915 = vpop.permute.xlu0 %914
  %916 = vrot.lane.b32.xlu0 %v334, 4
  %v917 = vpop.permute.xlu0 %916
  %918 = vrot.lane.b32.xlu0 %v335, 4
  %v919 = vpop.permute.xlu0 %918
  %920 = vrot.lane.b32.xlu0 %v336, 4
  %v921 = vpop.permute.xlu0 %920
  %922 = vrot.lane.b32.xlu0 %v337, 4
  %v923 = vpop.permute.xlu0 %922
  %924 = vrot.lane.b32.xlu0 %v338, 4
  %v925 = vpop.permute.xlu0 %924
  %926 = vrot.lane.b32.xlu0 %v339, 4
  %v927 = vpop.permute.xlu0 %926
  %928 = vrot.lane.b32.xlu0 %v340, 4
  %v929 = vpop.permute.xlu0 %928
  %930 = vrot.lane.b32.xlu0 %v341, 4
  %v931 = vpop.permute.xlu0 %930
  %932 = vrot.lane.b32.xlu0 %v342, 4
  %v933 = vpop.permute.xlu0 %932
  %934 = vrot.lane.b32.xlu0 %v343, 4
  %v935 = vpop.permute.xlu0 %934
  %936 = vrot.lane.b32.xlu0 %v344, 4
  %v937 = vpop.permute.xlu0 %936
  %938 = vrot.lane.b32.xlu0 %v345, 4
  %v939 = vpop.permute.xlu0 %938
  %940 = vrot.lane.b32.xlu0 %v346, 4
  %v941 = vpop.permute.xlu0 %940
  %942 = vrot.lane.b32.xlu0 %v347, 4
  %v943 = vpop.permute.xlu0 %942
  %944 = vrot.lane.b32.xlu0 %v348, 4
  %v945 = vpop.permute.xlu0 %944
  %946 = vrot.lane.b32.xlu0 %v349, 4
  %v947 = vpop.permute.xlu0 %946
  %948 = vrot.lane.b32.xlu0 %v350, 4
  %v949 = vpop.permute.xlu0 %948
  %950 = vrot.lane.b32.xlu0 %v351, 4
  %v951 = vpop.permute.xlu0 %950
  %952 = vrot.lane.b32.xlu0 %v352, 4
  %v953 = vpop.permute.xlu0 %952
  %954 = vrot.lane.b32.xlu0 %v353, 4
  %v955 = vpop.permute.xlu0 %954
  %956 = vrot.lane.b32.xlu0 %v354, 4
  %v957 = vpop.permute.xlu0 %956
  %958 = vrot.lane.b32.xlu0 %v355, 4
  %v959 = vpop.permute.xlu0 %958
  %960 = vrot.lane.b32.xlu0 %v356, 4
  %v961 = vpop.permute.xlu0 %960
  %962 = vrot.lane.b32.xlu0 %v357, 4
  %v963 = vpop.permute.xlu0 %962
  %964 = vrot.lane.b32.xlu0 %v358, 4
  %v965 = vpop.permute.xlu0 %964
  %966 = vrot.lane.b32.xlu0 %v359, 4
  %v967 = vpop.permute.xlu0 %966
  %968 = vrot.lane.b32.xlu0 %v360, 4
  %v969 = vpop.permute.xlu0 %968
  %970 = vrot.lane.b32.xlu0 %v361, 4
  %v971 = vpop.permute.xlu0 %970
  %972 = vrot.lane.b32.xlu0 %v362, 4
  %v973 = vpop.permute.xlu0 %972
  %974 = vrot.lane.b32.xlu0 %v363, 4
  %v975 = vpop.permute.xlu0 %974
  %976 = vrot.lane.b32.xlu0 %v364, 4
  %v977 = vpop.permute.xlu0 %976
  %978 = vrot.lane.b32.xlu0 %v365, 4
  %v979 = vpop.permute.xlu0 %978
  %980 = vrot.lane.b32.xlu0 %v366, 4
  %v981 = vpop.permute.xlu0 %980
  %982 = vrot.lane.b32.xlu0 %v367, 4
  %v983 = vpop.permute.xlu0 %982
  %984 = vrot.lane.b32.xlu0 %v368, 4
  %v985 = vpop.permute.xlu0 %984
  %986 = vrot.lane.b32.xlu0 %v369, 4
  %v987 = vpop.permute.xlu0 %986
  %988 = vrot.lane.b32.xlu0 %v370, 4
  %v989 = vpop.permute.xlu0 %988
  %990 = vrot.lane.b32.xlu0 %v371, 4
  %v991 = vpop.permute.xlu0 %990
  %992 = vrot.lane.b32.xlu0 %v372, 4
  %v993 = vpop.permute.xlu0 %992
  %994 = vrot.lane.b32.xlu0 %v373, 4
  %v995 = vpop.permute.xlu0 %994
  %996 = vrot.lane.b32.xlu0 %v374, 4
  %v997 = vpop.permute.xlu0 %996
  %998 = vrot.lane.b32.xlu0 %v375, 4
  %v999 = vpop.permute.xlu0 %998
  %1000 = vrot.lane.b32.xlu0 %v376, 4
  %v1001 = vpop.permute.xlu0 %1000
  %1002 = vrot.lane.b32.xlu0 %v377, 4
  %v1003 = vpop.permute.xlu0 %1002
  %1004 = vrot.lane.b32.xlu0 %v378, 4
  %v1005 = vpop.permute.xlu0 %1004
  %1006 = vrot.lane.b32.xlu0 %v379, 4
  %v1007 = vpop.permute.xlu0 %1006
  %1008 = vrot.lane.b32.xlu0 %v380, 4
  %v1009 = vpop.permute.xlu0 %1008
  %1010 = vrot.lane.b32.xlu0 %v381, 4
  %v1011 = vpop.permute.xlu0 %1010
  %1012 = vrot.lane.b32.xlu0 %v382, 4
  %v1013 = vpop.permute.xlu0 %1012
  %1014 = vrot.lane.b32.xlu0 %v383, 4
  %v1015 = vpop.permute.xlu0 %1014
  %1016 = vrot.lane.b32.xlu0 %v384, 4
  %v1017 = vpop.permute.xlu0 %1016
  %1018 = vrot.lane.b32.xlu0 %v385, 4
  %v1019 = vpop.permute.xlu0 %1018
  %1020 = vrot.lane.b32.xlu0 %v386, 4
  %v1021 = vpop.permute.xlu0 %1020
  %1022 = vrot.lane.b32.xlu0 %v387, 4
  %v1023 = vpop.permute.xlu0 %1022
  %1024 = vrot.lane.b32.xlu0 %v388, 4
  %v1025 = vpop.permute.xlu0 %1024
  %1026 = vrot.lane.b32.xlu0 %v389, 4
  %v1027 = vpop.permute.xlu0 %1026
  %1028 = vrot.lane.b32.xlu0 %v390, 4
  %v1029 = vpop.permute.xlu0 %1028
  %1030 = vrot.lane.b32.xlu0 %v391, 4
  %v1031 = vpop.permute.xlu0 %1030
  %1032 = vrot.lane.b32.xlu0 %v392, 4
  %v1033 = vpop.permute.xlu0 %1032
  %1162 = vrot.lane.b32.xlu0 %v393, 8
  %v1163 = vpop.permute.xlu0 %1162
  %1164 = vrot.lane.b32.xlu0 %v394, 8
  %v1165 = vpop.permute.xlu0 %1164
  %1166 = vrot.lane.b32.xlu0 %v395, 8
  %v1167 = vpop.permute.xlu0 %1166
  %1168 = vrot.lane.b32.xlu0 %v396, 8
  %v1169 = vpop.permute.xlu0 %1168
  %1170 = vrot.lane.b32.xlu0 %v397, 8
  %v1171 = vpop.permute.xlu0 %1170
  %1172 = vrot.lane.b32.xlu0 %v398, 8
  %v1173 = vpop.permute.xlu0 %1172
  %1174 = vrot.lane.b32.xlu0 %v399, 8
  %v1175 = vpop.permute.xlu0 %1174
  %1176 = vrot.lane.b32.xlu0 %v400, 8
  %v1177 = vpop.permute.xlu0 %1176
  %1178 = vrot.lane.b32.xlu0 %v401, 8
  %v1179 = vpop.permute.xlu0 %1178
  %1180 = vrot.lane.b32.xlu0 %v402, 8
  %v1181 = vpop.permute.xlu0 %1180
  %1182 = vrot.lane.b32.xlu0 %v403, 8
  %v1183 = vpop.permute.xlu0 %1182
  %1184 = vrot.lane.b32.xlu0 %v404, 8
  %v1185 = vpop.permute.xlu0 %1184
  %1186 = vrot.lane.b32.xlu0 %v405, 8
  %v1187 = vpop.permute.xlu0 %1186
  %1188 = vrot.lane.b32.xlu0 %v406, 8
  %v1189 = vpop.permute.xlu0 %1188
  %1190 = vrot.lane.b32.xlu0 %v407, 8
  %v1191 = vpop.permute.xlu0 %1190
  %1192 = vrot.lane.b32.xlu0 %v408, 8
  %v1193 = vpop.permute.xlu0 %1192
  %1194 = vrot.lane.b32.xlu0 %v409, 8
  %v1195 = vpop.permute.xlu0 %1194
  %1196 = vrot.lane.b32.xlu0 %v410, 8
  %v1197 = vpop.permute.xlu0 %1196
  %1198 = vrot.lane.b32.xlu0 %v411, 8
  %v1199 = vpop.permute.xlu0 %1198
  %1200 = vrot.lane.b32.xlu0 %v412, 8
  %v1201 = vpop.permute.xlu0 %1200
  %1202 = vrot.lane.b32.xlu0 %v413, 8
  %v1203 = vpop.permute.xlu0 %1202
  %1204 = vrot.lane.b32.xlu0 %v414, 8
  %v1205 = vpop.permute.xlu0 %1204
  %1206 = vrot.lane.b32.xlu0 %v415, 8
  %v1207 = vpop.permute.xlu0 %1206
  %1208 = vrot.lane.b32.xlu0 %v416, 8
  %v1209 = vpop.permute.xlu0 %1208
  %1210 = vrot.lane.b32.xlu0 %v417, 8
  %v1211 = vpop.permute.xlu0 %1210
  %1212 = vrot.lane.b32.xlu0 %v418, 8
  %v1213 = vpop.permute.xlu0 %1212
  %1214 = vrot.lane.b32.xlu0 %v419, 8
  %v1215 = vpop.permute.xlu0 %1214
  %1216 = vrot.lane.b32.xlu0 %v420, 8
  %v1217 = vpop.permute.xlu0 %1216
  %1218 = vrot.lane.b32.xlu0 %v421, 8
  %v1219 = vpop.permute.xlu0 %1218
  %1220 = vrot.lane.b32.xlu0 %v422, 8
  %v1221 = vpop.permute.xlu0 %1220
  %1222 = vrot.lane.b32.xlu0 %v423, 8
  %v1223 = vpop.permute.xlu0 %1222
  %1224 = vrot.lane.b32.xlu0 %v424, 8
  %v1225 = vpop.permute.xlu0 %1224
  %1226 = vrot.lane.b32.xlu0 %v425, 8
  %v1227 = vpop.permute.xlu0 %1226
  %1228 = vrot.lane.b32.xlu0 %v426, 8
  %v1229 = vpop.permute.xlu0 %1228
  %1230 = vrot.lane.b32.xlu0 %v427, 8
  %v1231 = vpop.permute.xlu0 %1230
  %1232 = vrot.lane.b32.xlu0 %v428, 8
  %v1233 = vpop.permute.xlu0 %1232
  %1234 = vrot.lane.b32.xlu0 %v429, 8
  %v1235 = vpop.permute.xlu0 %1234
  %1236 = vrot.lane.b32.xlu0 %v430, 8
  %v1237 = vpop.permute.xlu0 %1236
  %1238 = vrot.lane.b32.xlu0 %v431, 8
  %v1239 = vpop.permute.xlu0 %1238
  %1240 = vrot.lane.b32.xlu0 %v432, 8
  %v1241 = vpop.permute.xlu0 %1240
  %1242 = vrot.lane.b32.xlu0 %v433, 8
  %v1243 = vpop.permute.xlu0 %1242
  %1244 = vrot.lane.b32.xlu0 %v434, 8
  %v1245 = vpop.permute.xlu0 %1244
  %1246 = vrot.lane.b32.xlu0 %v435, 8
  %v1247 = vpop.permute.xlu0 %1246
  %1248 = vrot.lane.b32.xlu0 %v436, 8
  %v1249 = vpop.permute.xlu0 %1248
  %1250 = vrot.lane.b32.xlu0 %v437, 8
  %v1251 = vpop.permute.xlu0 %1250
  %1252 = vrot.lane.b32.xlu0 %v438, 8
  %v1253 = vpop.permute.xlu0 %1252
  %1254 = vrot.lane.b32.xlu0 %v439, 8
  %v1255 = vpop.permute.xlu0 %1254
  %1256 = vrot.lane.b32.xlu0 %v440, 8
  %v1257 = vpop.permute.xlu0 %1256
  %1258 = vrot.lane.b32.xlu0 %v441, 8
  %v1259 = vpop.permute.xlu0 %1258
  %1260 = vrot.lane.b32.xlu0 %v442, 8
  %v1261 = vpop.permute.xlu0 %1260
  %1262 = vrot.lane.b32.xlu0 %v443, 8
  %v1263 = vpop.permute.xlu0 %1262
  %1264 = vrot.lane.b32.xlu0 %v444, 8
  %v1265 = vpop.permute.xlu0 %1264
  %1266 = vrot.lane.b32.xlu0 %v445, 8
  %v1267 = vpop.permute.xlu0 %1266
  %1268 = vrot.lane.b32.xlu0 %v446, 8
  %v1269 = vpop.permute.xlu0 %1268
  %1270 = vrot.lane.b32.xlu0 %v447, 8
  %v1271 = vpop.permute.xlu0 %1270
  %1272 = vrot.lane.b32.xlu0 %v448, 8
  %v1273 = vpop.permute.xlu0 %1272
  %1274 = vrot.lane.b32.xlu0 %v449, 8
  %v1275 = vpop.permute.xlu0 %1274
  %1276 = vrot.lane.b32.xlu0 %v450, 8
  %v1277 = vpop.permute.xlu0 %1276
  %1278 = vrot.lane.b32.xlu0 %v451, 8
  %v1279 = vpop.permute.xlu0 %1278
  %1280 = vrot.lane.b32.xlu0 %v452, 8
  %v1281 = vpop.permute.xlu0 %1280
  %1282 = vrot.lane.b32.xlu0 %v453, 8
  %v1283 = vpop.permute.xlu0 %1282
  %1284 = vrot.lane.b32.xlu0 %v454, 8
  %v1285 = vpop.permute.xlu0 %1284
  %1286 = vrot.lane.b32.xlu0 %v455, 8
  %v1287 = vpop.permute.xlu0 %1286
  %1288 = vrot.lane.b32.xlu0 %v456, 8
  %v1289 = vpop.permute.xlu0 %1288
  %1418 = vrot.lane.b32.xlu0 %v457, 12
  %v1419 = vpop.permute.xlu0 %1418
  %1420 = vrot.lane.b32.xlu0 %v458, 12
  %v1421 = vpop.permute.xlu0 %1420
  %1422 = vrot.lane.b32.xlu0 %v459, 12
  %v1423 = vpop.permute.xlu0 %1422
  %1424 = vrot.lane.b32.xlu0 %v460, 12
  %v1425 = vpop.permute.xlu0 %1424
  %1426 = vrot.lane.b32.xlu0 %v461, 12
  %v1427 = vpop.permute.xlu0 %1426
  %1428 = vrot.lane.b32.xlu0 %v462, 12
  %v1429 = vpop.permute.xlu0 %1428
  %1430 = vrot.lane.b32.xlu0 %v463, 12
  %v1431 = vpop.permute.xlu0 %1430
  %1432 = vrot.lane.b32.xlu0 %v464, 12
  %v1433 = vpop.permute.xlu0 %1432
  %1434 = vrot.lane.b32.xlu0 %v465, 12
  %v1435 = vpop.permute.xlu0 %1434
  %1436 = vrot.lane.b32.xlu0 %v466, 12
  %v1437 = vpop.permute.xlu0 %1436
  %1438 = vrot.lane.b32.xlu0 %v467, 12
  %v1439 = vpop.permute.xlu0 %1438
  %1440 = vrot.lane.b32.xlu0 %v468, 12
  %v1441 = vpop.permute.xlu0 %1440
  %1442 = vrot.lane.b32.xlu0 %v469, 12
  %v1443 = vpop.permute.xlu0 %1442
  %1444 = vrot.lane.b32.xlu0 %v470, 12
  %v1445 = vpop.permute.xlu0 %1444
  %1446 = vrot.lane.b32.xlu0 %v471, 12
  %v1447 = vpop.permute.xlu0 %1446
  %1448 = vrot.lane.b32.xlu0 %v472, 12
  %v1449 = vpop.permute.xlu0 %1448
  %1450 = vrot.lane.b32.xlu0 %v473, 12
  %v1451 = vpop.permute.xlu0 %1450
  %1452 = vrot.lane.b32.xlu0 %v474, 12
  %v1453 = vpop.permute.xlu0 %1452
  %1454 = vrot.lane.b32.xlu0 %v475, 12
  %v1455 = vpop.permute.xlu0 %1454
  %1456 = vrot.lane.b32.xlu0 %v476, 12
  %v1457 = vpop.permute.xlu0 %1456
  %1458 = vrot.lane.b32.xlu0 %v477, 12
  %v1459 = vpop.permute.xlu0 %1458
  %1460 = vrot.lane.b32.xlu0 %v478, 12
  %v1461 = vpop.permute.xlu0 %1460
  %1462 = vrot.lane.b32.xlu0 %v479, 12
  %v1463 = vpop.permute.xlu0 %1462
  %1464 = vrot.lane.b32.xlu0 %v480, 12
  %v1465 = vpop.permute.xlu0 %1464
  %1466 = vrot.lane.b32.xlu0 %v481, 12
  %v1467 = vpop.permute.xlu0 %1466
  %1468 = vrot.lane.b32.xlu0 %v482, 12
  %v1469 = vpop.permute.xlu0 %1468
  %1470 = vrot.lane.b32.xlu0 %v483, 12
  %v1471 = vpop.permute.xlu0 %1470
  %1472 = vrot.lane.b32.xlu0 %v484, 12
  %v1473 = vpop.permute.xlu0 %1472
  %1474 = vrot.lane.b32.xlu0 %v485, 12
  %v1475 = vpop.permute.xlu0 %1474
  %1476 = vrot.lane.b32.xlu0 %v486, 12
  %v1477 = vpop.permute.xlu0 %1476
  %1478 = vrot.lane.b32.xlu0 %v487, 12
  %v1479 = vpop.permute.xlu0 %1478
  %1480 = vrot.lane.b32.xlu0 %v488, 12
  %v1481 = vpop.permute.xlu0 %1480
  %1482 = vrot.lane.b32.xlu0 %v489, 12
  %v1483 = vpop.permute.xlu0 %1482
  %1484 = vrot.lane.b32.xlu0 %v490, 12
  %v1485 = vpop.permute.xlu0 %1484
  %1486 = vrot.lane.b32.xlu0 %v491, 12
  %v1487 = vpop.permute.xlu0 %1486
  %1488 = vrot.lane.b32.xlu0 %v492, 12
  %v1489 = vpop.permute.xlu0 %1488
  %1490 = vrot.lane.b32.xlu0 %v493, 12
  %v1491 = vpop.permute.xlu0 %1490
  %1492 = vrot.lane.b32.xlu0 %v494, 12
  %v1493 = vpop.permute.xlu0 %1492
  %1494 = vrot.lane.b32.xlu0 %v495, 12
  %v1495 = vpop.permute.xlu0 %1494
  %1496 = vrot.lane.b32.xlu0 %v496, 12
  %v1497 = vpop.permute.xlu0 %1496
  %1498 = vrot.lane.b32.xlu0 %v497, 12
  %v1499 = vpop.permute.xlu0 %1498
  %1500 = vrot.lane.b32.xlu0 %v498, 12
  %v1501 = vpop.permute.xlu0 %1500
  %1502 = vrot.lane.b32.xlu0 %v499, 12
  %v1503 = vpop.permute.xlu0 %1502
  %1504 = vrot.lane.b32.xlu0 %v500, 12
  %v1505 = vpop.permute.xlu0 %1504
  %1506 = vrot.lane.b32.xlu0 %v501, 12
  %v1507 = vpop.permute.xlu0 %1506
  %1508 = vrot.lane.b32.xlu0 %v502, 12
  %v1509 = vpop.permute.xlu0 %1508
  %1510 = vrot.lane.b32.xlu0 %v503, 12
  %v1511 = vpop.permute.xlu0 %1510
  %1512 = vrot.lane.b32.xlu0 %v504, 12
  %v1513 = vpop.permute.xlu0 %1512
  %1514 = vrot.lane.b32.xlu0 %v505, 12
  %v1515 = vpop.permute.xlu0 %1514
  %1516 = vrot.lane.b32.xlu0 %v506, 12
  %v1517 = vpop.permute.xlu0 %1516
  %1518 = vrot.lane.b32.xlu0 %v507, 12
  %v1519 = vpop.permute.xlu0 %1518
  %1520 = vrot.lane.b32.xlu0 %v508, 12
  %v1521 = vpop.permute.xlu0 %1520
  %1522 = vrot.lane.b32.xlu0 %v509, 12
  %v1523 = vpop.permute.xlu0 %1522
  %1524 = vrot.lane.b32.xlu0 %v510, 12
  %v1525 = vpop.permute.xlu0 %1524
  %1526 = vrot.lane.b32.xlu0 %v511, 12
  %v1527 = vpop.permute.xlu0 %1526
  %1528 = vrot.lane.b32.xlu0 %v512, 12
  %v1529 = vpop.permute.xlu0 %1528
  %1530 = vrot.lane.b32.xlu0 %v513, 12
  %v1531 = vpop.permute.xlu0 %1530
  %1532 = vrot.lane.b32.xlu0 %v514, 12
  %v1533 = vpop.permute.xlu0 %1532
  %1534 = vrot.lane.b32.xlu0 %v515, 12
  %v1535 = vpop.permute.xlu0 %1534
  %1536 = vrot.lane.b32.xlu0 %v516, 12
  %v1537 = vpop.permute.xlu0 %1536
  %1538 = vrot.lane.b32.xlu0 %v517, 12
  %v1539 = vpop.permute.xlu0 %1538
  %1540 = vrot.lane.b32.xlu0 %v518, 12
  %v1541 = vpop.permute.xlu0 %1540
  %1542 = vrot.lane.b32.xlu0 %v519, 12
  %v1543 = vpop.permute.xlu0 %1542
  %1544 = vrot.lane.b32.xlu0 %v520, 12
  %v1545 = vpop.permute.xlu0 %1544
  %1674 = vrot.lane.b32.xlu0 %v521, 16
  %v1675 = vpop.permute.xlu0 %1674
  %1676 = vrot.lane.b32.xlu0 %v522, 16
  %v1677 = vpop.permute.xlu0 %1676
  %1678 = vrot.lane.b32.xlu0 %v523, 16
  %v1679 = vpop.permute.xlu0 %1678
  %1680 = vrot.lane.b32.xlu0 %v524, 16
  %v1681 = vpop.permute.xlu0 %1680
  %1682 = vrot.lane.b32.xlu0 %v525, 16
  %v1683 = vpop.permute.xlu0 %1682
  %1684 = vrot.lane.b32.xlu0 %v526, 16
  %v1685 = vpop.permute.xlu0 %1684
  %1686 = vrot.lane.b32.xlu0 %v527, 16
  %v1687 = vpop.permute.xlu0 %1686
  %1688 = vrot.lane.b32.xlu0 %v528, 16
  %v1689 = vpop.permute.xlu0 %1688
  %1690 = vrot.lane.b32.xlu0 %v529, 16
  %v1691 = vpop.permute.xlu0 %1690
  %1692 = vrot.lane.b32.xlu0 %v530, 16
  %v1693 = vpop.permute.xlu0 %1692
  %1694 = vrot.lane.b32.xlu0 %v531, 16
  %v1695 = vpop.permute.xlu0 %1694
  %1696 = vrot.lane.b32.xlu0 %v532, 16
  %v1697 = vpop.permute.xlu0 %1696
  %1698 = vrot.lane.b32.xlu0 %v533, 16
  %v1699 = vpop.permute.xlu0 %1698
  %1700 = vrot.lane.b32.xlu0 %v534, 16
  %v1701 = vpop.permute.xlu0 %1700
  %1702 = vrot.lane.b32.xlu0 %v535, 16
  %v1703 = vpop.permute.xlu0 %1702
  %1704 = vrot.lane.b32.xlu0 %v536, 16
  %v1705 = vpop.permute.xlu0 %1704
  %1706 = vrot.lane.b32.xlu0 %v537, 16
  %v1707 = vpop.permute.xlu0 %1706
  %1708 = vrot.lane.b32.xlu0 %v538, 16
  %v1709 = vpop.permute.xlu0 %1708
  %1710 = vrot.lane.b32.xlu0 %v539, 16
  %v1711 = vpop.permute.xlu0 %1710
  %1712 = vrot.lane.b32.xlu0 %v540, 16
  %v1713 = vpop.permute.xlu0 %1712
  %1714 = vrot.lane.b32.xlu0 %v541, 16
  %v1715 = vpop.permute.xlu0 %1714
  %1716 = vrot.lane.b32.xlu0 %v542, 16
  %v1717 = vpop.permute.xlu0 %1716
  %1718 = vrot.lane.b32.xlu0 %v543, 16
  %v1719 = vpop.permute.xlu0 %1718
  %1720 = vrot.lane.b32.xlu0 %v544, 16
  %v1721 = vpop.permute.xlu0 %1720
  %1722 = vrot.lane.b32.xlu0 %v545, 16
  %v1723 = vpop.permute.xlu0 %1722
  %1724 = vrot.lane.b32.xlu0 %v546, 16
  %v1725 = vpop.permute.xlu0 %1724
  %1726 = vrot.lane.b32.xlu0 %v547, 16
  %v1727 = vpop.permute.xlu0 %1726
  %1728 = vrot.lane.b32.xlu0 %v548, 16
  %v1729 = vpop.permute.xlu0 %1728
  %1730 = vrot.lane.b32.xlu0 %v549, 16
  %v1731 = vpop.permute.xlu0 %1730
  %1732 = vrot.lane.b32.xlu0 %v550, 16
  %v1733 = vpop.permute.xlu0 %1732
  %1734 = vrot.lane.b32.xlu0 %v551, 16
  %v1735 = vpop.permute.xlu0 %1734
  %1736 = vrot.lane.b32.xlu0 %v552, 16
  %v1737 = vpop.permute.xlu0 %1736
  %1738 = vrot.lane.b32.xlu0 %v553, 16
  %v1739 = vpop.permute.xlu0 %1738
  %1740 = vrot.lane.b32.xlu0 %v554, 16
  %v1741 = vpop.permute.xlu0 %1740
  %1742 = vrot.lane.b32.xlu0 %v555, 16
  %v1743 = vpop.permute.xlu0 %1742
  %1744 = vrot.lane.b32.xlu0 %v556, 16
  %v1745 = vpop.permute.xlu0 %1744
  %1746 = vrot.lane.b32.xlu0 %v557, 16
  %v1747 = vpop.permute.xlu0 %1746
  %1748 = vrot.lane.b32.xlu0 %v558, 16
  %v1749 = vpop.permute.xlu0 %1748
  %1750 = vrot.lane.b32.xlu0 %v559, 16
  %v1751 = vpop.permute.xlu0 %1750
  %1752 = vrot.lane.b32.xlu0 %v560, 16
  %v1753 = vpop.permute.xlu0 %1752
  %1754 = vrot.lane.b32.xlu0 %v561, 16
  %v1755 = vpop.permute.xlu0 %1754
  %1756 = vrot.lane.b32.xlu0 %v562, 16
  %v1757 = vpop.permute.xlu0 %1756
  %1758 = vrot.lane.b32.xlu0 %v563, 16
  %v1759 = vpop.permute.xlu0 %1758
  %1760 = vrot.lane.b32.xlu0 %v564, 16
  %v1761 = vpop.permute.xlu0 %1760
  %1762 = vrot.lane.b32.xlu0 %v565, 16
  %v1763 = vpop.permute.xlu0 %1762
  %1764 = vrot.lane.b32.xlu0 %v566, 16
  %v1765 = vpop.permute.xlu0 %1764
  %1766 = vrot.lane.b32.xlu0 %v567, 16
  %v1767 = vpop.permute.xlu0 %1766
  %1768 = vrot.lane.b32.xlu0 %v568, 16
  %v1769 = vpop.permute.xlu0 %1768
  %1770 = vrot.lane.b32.xlu0 %v569, 16
  %v1771 = vpop.permute.xlu0 %1770
  %1772 = vrot.lane.b32.xlu0 %v570, 16
  %v1773 = vpop.permute.xlu0 %1772
  %1774 = vrot.lane.b32.xlu0 %v571, 16
  %v1775 = vpop.permute.xlu0 %1774
  %1776 = vrot.lane.b32.xlu0 %v572, 16
  %v1777 = vpop.permute.xlu0 %1776
  %1778 = vrot.lane.b32.xlu0 %v573, 16
  %v1779 = vpop.permute.xlu0 %1778
  %1780 = vrot.lane.b32.xlu0 %v574, 16
  %v1781 = vpop.permute.xlu0 %1780
  %1782 = vrot.lane.b32.xlu0 %v575, 16
  %v1783 = vpop.permute.xlu0 %1782
  %1784 = vrot.lane.b32.xlu0 %v576, 16
  %v1785 = vpop.permute.xlu0 %1784
  %1786 = vrot.lane.b32.xlu0 %v577, 16
  %v1787 = vpop.permute.xlu0 %1786
  %1788 = vrot.lane.b32.xlu0 %v578, 16
  %v1789 = vpop.permute.xlu0 %1788
  %1790 = vrot.lane.b32.xlu0 %v579, 16
  %v1791 = vpop.permute.xlu0 %1790
  %1792 = vrot.lane.b32.xlu0 %v580, 16
  %v1793 = vpop.permute.xlu0 %1792
  %1794 = vrot.lane.b32.xlu0 %v581, 16
  %v1795 = vpop.permute.xlu0 %1794
  %1796 = vrot.lane.b32.xlu0 %v582, 16
  %v1797 = vpop.permute.xlu0 %1796
  %1798 = vrot.lane.b32.xlu0 %v583, 16
  %v1799 = vpop.permute.xlu0 %1798
  %1800 = vrot.lane.b32.xlu0 %v584, 16
  %v1801 = vpop.permute.xlu0 %1800
  %1930 = vrot.lane.b32.xlu0 %v585, 20
  %v1931 = vpop.permute.xlu0 %1930
  %1932 = vrot.lane.b32.xlu0 %v586, 20
  %v1933 = vpop.permute.xlu0 %1932
  %1934 = vrot.lane.b32.xlu0 %v587, 20
  %v1935 = vpop.permute.xlu0 %1934
  %1936 = vrot.lane.b32.xlu0 %v588, 20
  %v1937 = vpop.permute.xlu0 %1936
  %1938 = vrot.lane.b32.xlu0 %v589, 20
  %v1939 = vpop.permute.xlu0 %1938
  %1940 = vrot.lane.b32.xlu0 %v590, 20
  %v1941 = vpop.permute.xlu0 %1940
  %1942 = vrot.lane.b32.xlu0 %v591, 20
  %v1943 = vpop.permute.xlu0 %1942
  %1944 = vrot.lane.b32.xlu0 %v592, 20
  %v1945 = vpop.permute.xlu0 %1944
  %1946 = vrot.lane.b32.xlu0 %v593, 20
  %v1947 = vpop.permute.xlu0 %1946
  %1948 = vrot.lane.b32.xlu0 %v594, 20
  %v1949 = vpop.permute.xlu0 %1948
  %1950 = vrot.lane.b32.xlu0 %v595, 20
  %v1951 = vpop.permute.xlu0 %1950
  %1952 = vrot.lane.b32.xlu0 %v596, 20
  %v1953 = vpop.permute.xlu0 %1952
  %1954 = vrot.lane.b32.xlu0 %v597, 20
  %v1955 = vpop.permute.xlu0 %1954
  %1956 = vrot.lane.b32.xlu0 %v598, 20
  %v1957 = vpop.permute.xlu0 %1956
  %1958 = vrot.lane.b32.xlu0 %v599, 20
  %v1959 = vpop.permute.xlu0 %1958
  %1960 = vrot.lane.b32.xlu0 %v600, 20
  %v1961 = vpop.permute.xlu0 %1960
  %1962 = vrot.lane.b32.xlu0 %v601, 20
  %v1963 = vpop.permute.xlu0 %1962
  %1964 = vrot.lane.b32.xlu0 %v602, 20
  %v1965 = vpop.permute.xlu0 %1964
  %1966 = vrot.lane.b32.xlu0 %v603, 20
  %v1967 = vpop.permute.xlu0 %1966
  %1968 = vrot.lane.b32.xlu0 %v604, 20
  %v1969 = vpop.permute.xlu0 %1968
  %1970 = vrot.lane.b32.xlu0 %v605, 20
  %v1971 = vpop.permute.xlu0 %1970
  %1972 = vrot.lane.b32.xlu0 %v606, 20
  %v1973 = vpop.permute.xlu0 %1972
  %1974 = vrot.lane.b32.xlu0 %v607, 20
  %v1975 = vpop.permute.xlu0 %1974
  %1976 = vrot.lane.b32.xlu0 %v608, 20
  %v1977 = vpop.permute.xlu0 %1976
  %1978 = vrot.lane.b32.xlu0 %v609, 20
  %v1979 = vpop.permute.xlu0 %1978
  %1980 = vrot.lane.b32.xlu0 %v610, 20
  %v1981 = vpop.permute.xlu0 %1980
  %1982 = vrot.lane.b32.xlu0 %v611, 20
  %v1983 = vpop.permute.xlu0 %1982
  %1984 = vrot.lane.b32.xlu0 %v612, 20
  %v1985 = vpop.permute.xlu0 %1984
  %1986 = vrot.lane.b32.xlu0 %v613, 20
  %v1987 = vpop.permute.xlu0 %1986
  %1988 = vrot.lane.b32.xlu0 %v614, 20
  %v1989 = vpop.permute.xlu0 %1988
  %1990 = vrot.lane.b32.xlu0 %v615, 20
  %v1991 = vpop.permute.xlu0 %1990
  %1992 = vrot.lane.b32.xlu0 %v616, 20
  %v1993 = vpop.permute.xlu0 %1992
  %1994 = vrot.lane.b32.xlu0 %v617, 20
  %v1995 = vpop.permute.xlu0 %1994
  %1996 = vrot.lane.b32.xlu0 %v618, 20
  %v1997 = vpop.permute.xlu0 %1996
  %1998 = vrot.lane.b32.xlu0 %v619, 20
  %v1999 = vpop.permute.xlu0 %1998
  %2000 = vrot.lane.b32.xlu0 %v620, 20
  %v2001 = vpop.permute.xlu0 %2000
  %2002 = vrot.lane.b32.xlu0 %v621, 20
  %v2003 = vpop.permute.xlu0 %2002
  %2004 = vrot.lane.b32.xlu0 %v622, 20
  %v2005 = vpop.permute.xlu0 %2004
  %2006 = vrot.lane.b32.xlu0 %v623, 20
  %v2007 = vpop.permute.xlu0 %2006
  %2008 = vrot.lane.b32.xlu0 %v624, 20
  %v2009 = vpop.permute.xlu0 %2008
  %2010 = vrot.lane.b32.xlu0 %v625, 20
  %v2011 = vpop.permute.xlu0 %2010
  %2012 = vrot.lane.b32.xlu0 %v626, 20
  %v2013 = vpop.permute.xlu0 %2012
  %2014 = vrot.lane.b32.xlu0 %v627, 20
  %v2015 = vpop.permute.xlu0 %2014
  %2016 = vrot.lane.b32.xlu0 %v628, 20
  %v2017 = vpop.permute.xlu0 %2016
  %2018 = vrot.lane.b32.xlu0 %v629, 20
  %v2019 = vpop.permute.xlu0 %2018
  %2020 = vrot.lane.b32.xlu0 %v630, 20
  %v2021 = vpop.permute.xlu0 %2020
  %2022 = vrot.lane.b32.xlu0 %v631, 20
  %v2023 = vpop.permute.xlu0 %2022
  %2024 = vrot.lane.b32.xlu0 %v632, 20
  %v2025 = vpop.permute.xlu0 %2024
  %2026 = vrot.lane.b32.xlu0 %v633, 20
  %v2027 = vpop.permute.xlu0 %2026
  %2028 = vrot.lane.b32.xlu0 %v634, 20
  %v2029 = vpop.permute.xlu0 %2028
  %2030 = vrot.lane.b32.xlu0 %v635, 20
  %v2031 = vpop.permute.xlu0 %2030
  %2032 = vrot.lane.b32.xlu0 %v636, 20
  %v2033 = vpop.permute.xlu0 %2032
  %2034 = vrot.lane.b32.xlu0 %v637, 20
  %v2035 = vpop.permute.xlu0 %2034
  %2036 = vrot.lane.b32.xlu0 %v638, 20
  %v2037 = vpop.permute.xlu0 %2036
  %2038 = vrot.lane.b32.xlu0 %v639, 20
  %v2039 = vpop.permute.xlu0 %2038
  %2040 = vrot.lane.b32.xlu0 %v640, 20
  %v2041 = vpop.permute.xlu0 %2040
  %2042 = vrot.lane.b32.xlu0 %v641, 20
  %v2043 = vpop.permute.xlu0 %2042
  %2044 = vrot.lane.b32.xlu0 %v642, 20
  %v2045 = vpop.permute.xlu0 %2044
  %2046 = vrot.lane.b32.xlu0 %v643, 20
  %v2047 = vpop.permute.xlu0 %2046
  %2048 = vrot.lane.b32.xlu0 %v644, 20
  %v2049 = vpop.permute.xlu0 %2048
  %2050 = vrot.lane.b32.xlu0 %v645, 20
  %v2051 = vpop.permute.xlu0 %2050
  %2052 = vrot.lane.b32.xlu0 %v646, 20
  %v2053 = vpop.permute.xlu0 %2052
  %2054 = vrot.lane.b32.xlu0 %v647, 20
  %v2055 = vpop.permute.xlu0 %2054
  %2056 = vrot.lane.b32.xlu0 %v648, 20
  %v2057 = vpop.permute.xlu0 %2056
  %2186 = vrot.lane.b32.xlu0 %v650, 24
  %v2187 = vpop.permute.xlu0 %2186
  %2188 = vrot.lane.b32.xlu0 %v651, 24
  %v2189 = vpop.permute.xlu0 %2188
  %2190 = vrot.lane.b32.xlu0 %v652, 24
  %v2191 = vpop.permute.xlu0 %2190
  %2192 = vrot.lane.b32.xlu0 %v653, 24
  %v2193 = vpop.permute.xlu0 %2192
  %2194 = vrot.lane.b32.xlu0 %v654, 24
  %v2195 = vpop.permute.xlu0 %2194
  %2196 = vrot.lane.b32.xlu0 %v655, 24
  %v2197 = vpop.permute.xlu0 %2196
  %2198 = vrot.lane.b32.xlu0 %v656, 24
  %v2199 = vpop.permute.xlu0 %2198
  %2200 = vrot.lane.b32.xlu0 %v657, 24
  %v2201 = vpop.permute.xlu0 %2200
  %2202 = vrot.lane.b32.xlu0 %v658, 24
  %v2203 = vpop.permute.xlu0 %2202
  %2204 = vrot.lane.b32.xlu0 %v659, 24
  %v2205 = vpop.permute.xlu0 %2204
  %2206 = vrot.lane.b32.xlu0 %v660, 24
  %v2207 = vpop.permute.xlu0 %2206
  %2208 = vrot.lane.b32.xlu0 %v661, 24
  %v2209 = vpop.permute.xlu0 %2208
  %2210 = vrot.lane.b32.xlu0 %v662, 24
  %v2211 = vpop.permute.xlu0 %2210
  %2212 = vrot.lane.b32.xlu0 %v663, 24
  %v2213 = vpop.permute.xlu0 %2212
  %2214 = vrot.lane.b32.xlu0 %v664, 24
  %v2215 = vpop.permute.xlu0 %2214
  %2216 = vrot.lane.b32.xlu0 %v665, 24
  %v2217 = vpop.permute.xlu0 %2216
  %2218 = vrot.lane.b32.xlu0 %v666, 24
  %v2219 = vpop.permute.xlu0 %2218
  %2220 = vrot.lane.b32.xlu0 %v667, 24
  %v2221 = vpop.permute.xlu0 %2220
  %2222 = vrot.lane.b32.xlu0 %v668, 24
  %v2223 = vpop.permute.xlu0 %2222
  %2224 = vrot.lane.b32.xlu0 %v669, 24
  %v2225 = vpop.permute.xlu0 %2224
  %2226 = vrot.lane.b32.xlu0 %v670, 24
  %v2227 = vpop.permute.xlu0 %2226
  %2228 = vrot.lane.b32.xlu0 %v671, 24
  %v2229 = vpop.permute.xlu0 %2228
  %2230 = vrot.lane.b32.xlu0 %v672, 24
  %v2231 = vpop.permute.xlu0 %2230
  %2232 = vrot.lane.b32.xlu0 %v673, 24
  %v2233 = vpop.permute.xlu0 %2232
  %2234 = vrot.lane.b32.xlu0 %v674, 24
  %v2235 = vpop.permute.xlu0 %2234
  %2236 = vrot.lane.b32.xlu0 %v675, 24
  %v2237 = vpop.permute.xlu0 %2236
  %2238 = vrot.lane.b32.xlu0 %v676, 24
  %v2239 = vpop.permute.xlu0 %2238
  %2240 = vrot.lane.b32.xlu0 %v677, 24
  %v2241 = vpop.permute.xlu0 %2240
  %2242 = vrot.lane.b32.xlu0 %v678, 24
  %v2243 = vpop.permute.xlu0 %2242
  %2244 = vrot.lane.b32.xlu0 %v679, 24
  %v2245 = vpop.permute.xlu0 %2244
  %2246 = vrot.lane.b32.xlu0 %v680, 24
  %v2247 = vpop.permute.xlu0 %2246
  %2248 = vrot.lane.b32.xlu0 %v681, 24
  %v2249 = vpop.permute.xlu0 %2248
  %2250 = vrot.lane.b32.xlu0 %v682, 24
  %v2251 = vpop.permute.xlu0 %2250
  %2252 = vrot.lane.b32.xlu0 %v683, 24
  %v2253 = vpop.permute.xlu0 %2252
  %2254 = vrot.lane.b32.xlu0 %v684, 24
  %v2255 = vpop.permute.xlu0 %2254
  %2256 = vrot.lane.b32.xlu0 %v685, 24
  %v2257 = vpop.permute.xlu0 %2256
  %2258 = vrot.lane.b32.xlu0 %v686, 24
  %v2259 = vpop.permute.xlu0 %2258
  %2260 = vrot.lane.b32.xlu0 %v687, 24
  %v2261 = vpop.permute.xlu0 %2260
  %2262 = vrot.lane.b32.xlu0 %v688, 24
  %v2263 = vpop.permute.xlu0 %2262
  %2264 = vrot.lane.b32.xlu0 %v689, 24
  %v2265 = vpop.permute.xlu0 %2264
  %2266 = vrot.lane.b32.xlu0 %v690, 24
  %v2267 = vpop.permute.xlu0 %2266
  %2268 = vrot.lane.b32.xlu0 %v691, 24
  %v2269 = vpop.permute.xlu0 %2268
  %2270 = vrot.lane.b32.xlu0 %v692, 24
  %v2271 = vpop.permute.xlu0 %2270
  %2272 = vrot.lane.b32.xlu0 %v693, 24
  %v2273 = vpop.permute.xlu0 %2272
  %2274 = vrot.lane.b32.xlu0 %v694, 24
  %v2275 = vpop.permute.xlu0 %2274
  %2276 = vrot.lane.b32.xlu0 %v695, 24
  %v2277 = vpop.permute.xlu0 %2276
  %2278 = vrot.lane.b32.xlu0 %v696, 24
  %v2279 = vpop.permute.xlu0 %2278
  %2280 = vrot.lane.b32.xlu0 %v697, 24
  %v2281 = vpop.permute.xlu0 %2280
  %2282 = vrot.lane.b32.xlu0 %v698, 24
  %v2283 = vpop.permute.xlu0 %2282
  %2284 = vrot.lane.b32.xlu0 %v699, 24
  %v2285 = vpop.permute.xlu0 %2284
  %2286 = vrot.lane.b32.xlu0 %v700, 24
  %v2287 = vpop.permute.xlu0 %2286
  %2288 = vrot.lane.b32.xlu0 %v701, 24
  %v2289 = vpop.permute.xlu0 %2288
  %2290 = vrot.lane.b32.xlu0 %v702, 24
  %v2291 = vpop.permute.xlu0 %2290
  %2292 = vrot.lane.b32.xlu0 %v703, 24
  %v2293 = vpop.permute.xlu0 %2292
  %2294 = vrot.lane.b32.xlu0 %v704, 24
  %v2295 = vpop.permute.xlu0 %2294
  %2296 = vrot.lane.b32.xlu0 %v705, 24
  %v2297 = vpop.permute.xlu0 %2296
  %2298 = vrot.lane.b32.xlu0 %v706, 24
  %v2299 = vpop.permute.xlu0 %2298
  %2300 = vrot.lane.b32.xlu0 %v707, 24
  %v2301 = vpop.permute.xlu0 %2300
  %2302 = vrot.lane.b32.xlu0 %v708, 24
  %v2303 = vpop.permute.xlu0 %2302
  %2304 = vrot.lane.b32.xlu0 %v709, 24
  %v2305 = vpop.permute.xlu0 %2304
  %2306 = vrot.lane.b32.xlu0 %v710, 24
  %v2307 = vpop.permute.xlu0 %2306
  %2308 = vrot.lane.b32.xlu0 %v711, 24
  %v2309 = vpop.permute.xlu0 %2308
  %2310 = vrot.lane.b32.xlu0 %v712, 24
  %v2311 = vpop.permute.xlu0 %2310
  %2312 = vrot.lane.b32.xlu0 %v713, 24
  %v2313 = vpop.permute.xlu0 %2312
  %2442 = vrot.lane.b32.xlu0 %v714, 28
  %v2443 = vpop.permute.xlu0 %2442
  %2444 = vrot.lane.b32.xlu0 %v715, 28
  %v2445 = vpop.permute.xlu0 %2444
  %2446 = vrot.lane.b32.xlu0 %v716, 28
  %v2447 = vpop.permute.xlu0 %2446
  %2448 = vrot.lane.b32.xlu0 %v717, 28
  %v2449 = vpop.permute.xlu0 %2448
  %2450 = vrot.lane.b32.xlu0 %v718, 28
  %v2451 = vpop.permute.xlu0 %2450
  %2452 = vrot.lane.b32.xlu0 %v719, 28
  %v2453 = vpop.permute.xlu0 %2452
  %2454 = vrot.lane.b32.xlu0 %v720, 28
  %v2455 = vpop.permute.xlu0 %2454
  %2456 = vrot.lane.b32.xlu0 %v721, 28
  %v2457 = vpop.permute.xlu0 %2456
  %2458 = vrot.lane.b32.xlu0 %v722, 28
  %v2459 = vpop.permute.xlu0 %2458
  %2460 = vrot.lane.b32.xlu0 %v723, 28
  %v2461 = vpop.permute.xlu0 %2460
  %2462 = vrot.lane.b32.xlu0 %v724, 28
  %v2463 = vpop.permute.xlu0 %2462
  %2464 = vrot.lane.b32.xlu0 %v725, 28
  %v2465 = vpop.permute.xlu0 %2464
  %2466 = vrot.lane.b32.xlu0 %v726, 28
  %v2467 = vpop.permute.xlu0 %2466
  %2468 = vrot.lane.b32.xlu0 %v727, 28
  %v2469 = vpop.permute.xlu0 %2468
  %2470 = vrot.lane.b32.xlu0 %v728, 28
  %v2471 = vpop.permute.xlu0 %2470
  %2472 = vrot.lane.b32.xlu0 %v729, 28
  %v2473 = vpop.permute.xlu0 %2472
  %2474 = vrot.lane.b32.xlu0 %v730, 28
  %v2475 = vpop.permute.xlu0 %2474
  %2476 = vrot.lane.b32.xlu0 %v731, 28
  %v2477 = vpop.permute.xlu0 %2476
  %2478 = vrot.lane.b32.xlu0 %v732, 28
  %v2479 = vpop.permute.xlu0 %2478
  %2480 = vrot.lane.b32.xlu0 %v733, 28
  %v2481 = vpop.permute.xlu0 %2480
  %2482 = vrot.lane.b32.xlu0 %v734, 28
  %v2483 = vpop.permute.xlu0 %2482
  %2484 = vrot.lane.b32.xlu0 %v735, 28
  %v2485 = vpop.permute.xlu0 %2484
  %2486 = vrot.lane.b32.xlu0 %v736, 28
  %v2487 = vpop.permute.xlu0 %2486
  %2488 = vrot.lane.b32.xlu0 %v737, 28
  %v2489 = vpop.permute.xlu0 %2488
  %2490 = vrot.lane.b32.xlu0 %v738, 28
  %v2491 = vpop.permute.xlu0 %2490
  %2492 = vrot.lane.b32.xlu0 %v739, 28
  %v2493 = vpop.permute.xlu0 %2492
  %2494 = vrot.lane.b32.xlu0 %v740, 28
  %v2495 = vpop.permute.xlu0 %2494
  %2496 = vrot.lane.b32.xlu0 %v741, 28
  %v2497 = vpop.permute.xlu0 %2496
  %2498 = vrot.lane.b32.xlu0 %v742, 28
  %v2499 = vpop.permute.xlu0 %2498
  %2500 = vrot.lane.b32.xlu0 %v743, 28
  %v2501 = vpop.permute.xlu0 %2500
  %2502 = vrot.lane.b32.xlu0 %v744, 28
  %v2503 = vpop.permute.xlu0 %2502
  %2504 = vrot.lane.b32.xlu0 %v745, 28
  %v2505 = vpop.permute.xlu0 %2504
  %2506 = vrot.lane.b32.xlu0 %v746, 28
  %v2507 = vpop.permute.xlu0 %2506
  %2508 = vrot.lane.b32.xlu0 %v747, 28
  %v2509 = vpop.permute.xlu0 %2508
  %2510 = vrot.lane.b32.xlu0 %v748, 28
  %v2511 = vpop.permute.xlu0 %2510
  %2512 = vrot.lane.b32.xlu0 %v749, 28
  %v2513 = vpop.permute.xlu0 %2512
  %2514 = vrot.lane.b32.xlu0 %v750, 28
  %v2515 = vpop.permute.xlu0 %2514
  %2516 = vrot.lane.b32.xlu0 %v751, 28
  %v2517 = vpop.permute.xlu0 %2516
  %2518 = vrot.lane.b32.xlu0 %v752, 28
  %v2519 = vpop.permute.xlu0 %2518
  %2520 = vrot.lane.b32.xlu0 %v753, 28
  %v2521 = vpop.permute.xlu0 %2520
  %2522 = vrot.lane.b32.xlu0 %v754, 28
  %v2523 = vpop.permute.xlu0 %2522
  %2524 = vrot.lane.b32.xlu0 %v755, 28
  %v2525 = vpop.permute.xlu0 %2524
  %2526 = vrot.lane.b32.xlu0 %v756, 28
  %v2527 = vpop.permute.xlu0 %2526
  %2528 = vrot.lane.b32.xlu0 %v757, 28
  %v2529 = vpop.permute.xlu0 %2528
  %2530 = vrot.lane.b32.xlu0 %v758, 28
  %v2531 = vpop.permute.xlu0 %2530
  %2532 = vrot.lane.b32.xlu0 %v759, 28
  %v2533 = vpop.permute.xlu0 %2532
  %2534 = vrot.lane.b32.xlu0 %v760, 28
  %v2535 = vpop.permute.xlu0 %2534
  %2536 = vrot.lane.b32.xlu0 %v761, 28
  %v2537 = vpop.permute.xlu0 %2536
  %2538 = vrot.lane.b32.xlu0 %v762, 28
  %v2539 = vpop.permute.xlu0 %2538
  %2540 = vrot.lane.b32.xlu0 %v763, 28
  %v2541 = vpop.permute.xlu0 %2540
  %2542 = vrot.lane.b32.xlu0 %v764, 28
  %v2543 = vpop.permute.xlu0 %2542
  %2544 = vrot.lane.b32.xlu0 %v765, 28
  %v2545 = vpop.permute.xlu0 %2544
  %2546 = vrot.lane.b32.xlu0 %v766, 28
  %v2547 = vpop.permute.xlu0 %2546
  %2548 = vrot.lane.b32.xlu0 %v767, 28
  %v2549 = vpop.permute.xlu0 %2548
  %2550 = vrot.lane.b32.xlu0 %v768, 28
  %v2551 = vpop.permute.xlu0 %2550
  %2552 = vrot.lane.b32.xlu0 %v769, 28
  %v2553 = vpop.permute.xlu0 %2552
  %2554 = vrot.lane.b32.xlu0 %v770, 28
  %v2555 = vpop.permute.xlu0 %2554
  %2556 = vrot.lane.b32.xlu0 %v771, 28
  %v2557 = vpop.permute.xlu0 %2556
  %2558 = vrot.lane.b32.xlu0 %v772, 28
  %v2559 = vpop.permute.xlu0 %2558
  %2560 = vrot.lane.b32.xlu0 %v773, 28
  %v2561 = vpop.permute.xlu0 %2560
  %2562 = vrot.lane.b32.xlu0 %v774, 28
  %v2563 = vpop.permute.xlu0 %2562
  %2564 = vrot.lane.b32.xlu0 %v775, 28
  %v2565 = vpop.permute.xlu0 %2564
  %2566 = vrot.lane.b32.xlu0 %v776, 28
  %v2567 = vpop.permute.xlu0 %2566
  %2568 = vrot.lane.b32.xlu0 %v777, 28
  %v2569 = vpop.permute.xlu0 %2568
  %2698 = vrot.lane.b32.xlu0 %v778, 32
  %v2699 = vpop.permute.xlu0 %2698
  %2700 = vrot.lane.b32.xlu0 %v779, 32
  %v2701 = vpop.permute.xlu0 %2700
  %2702 = vrot.lane.b32.xlu0 %v780, 32
  %v2703 = vpop.permute.xlu0 %2702
  %2704 = vrot.lane.b32.xlu0 %v781, 32
  %v2705 = vpop.permute.xlu0 %2704
  %2706 = vrot.lane.b32.xlu0 %v782, 32
  %v2707 = vpop.permute.xlu0 %2706
  %2708 = vrot.lane.b32.xlu0 %v783, 32
  %v2709 = vpop.permute.xlu0 %2708
  %2710 = vrot.lane.b32.xlu0 %v784, 32
  %v2711 = vpop.permute.xlu0 %2710
  %2712 = vrot.lane.b32.xlu0 %v785, 32
  %v2713 = vpop.permute.xlu0 %2712
  %2714 = vrot.lane.b32.xlu0 %v786, 32
  %v2715 = vpop.permute.xlu0 %2714
  %2716 = vrot.lane.b32.xlu0 %v787, 32
  %v2717 = vpop.permute.xlu0 %2716
  %2718 = vrot.lane.b32.xlu0 %v788, 32
  %v2719 = vpop.permute.xlu0 %2718
  %2720 = vrot.lane.b32.xlu0 %v789, 32
  %v2721 = vpop.permute.xlu0 %2720
  %2722 = vrot.lane.b32.xlu0 %v790, 32
  %v2723 = vpop.permute.xlu0 %2722
  %2724 = vrot.lane.b32.xlu0 %v791, 32
  %v2725 = vpop.permute.xlu0 %2724
  %2726 = vrot.lane.b32.xlu0 %v792, 32
  %v2727 = vpop.permute.xlu0 %2726
  %2728 = vrot.lane.b32.xlu0 %v793, 32
  %v2729 = vpop.permute.xlu0 %2728
  %2730 = vrot.lane.b32.xlu0 %v794, 32
  %v2731 = vpop.permute.xlu0 %2730
  %2732 = vrot.lane.b32.xlu0 %v795, 32
  %v2733 = vpop.permute.xlu0 %2732
  %2734 = vrot.lane.b32.xlu0 %v796, 32
  %v2735 = vpop.permute.xlu0 %2734
  %2736 = vrot.lane.b32.xlu0 %v797, 32
  %v2737 = vpop.permute.xlu0 %2736
  %2738 = vrot.lane.b32.xlu0 %v798, 32
  %v2739 = vpop.permute.xlu0 %2738
  %2740 = vrot.lane.b32.xlu0 %v799, 32
  %v2741 = vpop.permute.xlu0 %2740
  %2742 = vrot.lane.b32.xlu0 %v800, 32
  %v2743 = vpop.permute.xlu0 %2742
  %2744 = vrot.lane.b32.xlu0 %v801, 32
  %v2745 = vpop.permute.xlu0 %2744
  %2746 = vrot.lane.b32.xlu0 %v802, 32
  %v2747 = vpop.permute.xlu0 %2746
  %2748 = vrot.lane.b32.xlu0 %v803, 32
  %v2749 = vpop.permute.xlu0 %2748
  %2750 = vrot.lane.b32.xlu0 %v804, 32
  %v2751 = vpop.permute.xlu0 %2750
  %2752 = vrot.lane.b32.xlu0 %v805, 32
  %v2753 = vpop.permute.xlu0 %2752
  %2754 = vrot.lane.b32.xlu0 %v806, 32
  %v2755 = vpop.permute.xlu0 %2754
  %2756 = vrot.lane.b32.xlu0 %v807, 32
  %v2757 = vpop.permute.xlu0 %2756
  %2758 = vrot.lane.b32.xlu0 %v808, 32
  %v2759 = vpop.permute.xlu0 %2758
  %2760 = vrot.lane.b32.xlu0 %v809, 32
  %v2761 = vpop.permute.xlu0 %2760
  %2762 = vrot.lane.b32.xlu0 %v810, 32
  %v2763 = vpop.permute.xlu0 %2762
  %2764 = vrot.lane.b32.xlu0 %v811, 32
  %v2765 = vpop.permute.xlu0 %2764
  %2766 = vrot.lane.b32.xlu0 %v812, 32
  %v2767 = vpop.permute.xlu0 %2766
  %2768 = vrot.lane.b32.xlu0 %v813, 32
  %v2769 = vpop.permute.xlu0 %2768
  %2770 = vrot.lane.b32.xlu0 %v814, 32
  %v2771 = vpop.permute.xlu0 %2770
  %2772 = vrot.lane.b32.xlu0 %v815, 32
  %v2773 = vpop.permute.xlu0 %2772
  %2774 = vrot.lane.b32.xlu0 %v816, 32
  %v2775 = vpop.permute.xlu0 %2774
  %2776 = vrot.lane.b32.xlu0 %v817, 32
  %v2777 = vpop.permute.xlu0 %2776
  %2778 = vrot.lane.b32.xlu0 %v818, 32
  %v2779 = vpop.permute.xlu0 %2778
  %2780 = vrot.lane.b32.xlu0 %v819, 32
  %v2781 = vpop.permute.xlu0 %2780
  %2782 = vrot.lane.b32.xlu0 %v820, 32
  %v2783 = vpop.permute.xlu0 %2782
  %2784 = vrot.lane.b32.xlu0 %v821, 32
  %v2785 = vpop.permute.xlu0 %2784
  %2786 = vrot.lane.b32.xlu0 %v822, 32
  %v2787 = vpop.permute.xlu0 %2786
  %2788 = vrot.lane.b32.xlu0 %v823, 32
  %v2789 = vpop.permute.xlu0 %2788
  %2790 = vrot.lane.b32.xlu0 %v824, 32
  %v2791 = vpop.permute.xlu0 %2790
  %2792 = vrot.lane.b32.xlu0 %v825, 32
  %v2793 = vpop.permute.xlu0 %2792
  %2794 = vrot.lane.b32.xlu0 %v826, 32
  %v2795 = vpop.permute.xlu0 %2794
  %2796 = vrot.lane.b32.xlu0 %v827, 32
  %v2797 = vpop.permute.xlu0 %2796
  %2798 = vrot.lane.b32.xlu0 %v828, 32
  %v2799 = vpop.permute.xlu0 %2798
  %2800 = vrot.lane.b32.xlu0 %v829, 32
  %v2801 = vpop.permute.xlu0 %2800
  %2802 = vrot.lane.b32.xlu0 %v830, 32
  %v2803 = vpop.permute.xlu0 %2802
  %2804 = vrot.lane.b32.xlu0 %v831, 32
  %v2805 = vpop.permute.xlu0 %2804
  %2806 = vrot.lane.b32.xlu0 %v832, 32
  %v2807 = vpop.permute.xlu0 %2806
  %2808 = vrot.lane.b32.xlu0 %v833, 32
  %v2809 = vpop.permute.xlu0 %2808
  %2810 = vrot.lane.b32.xlu0 %v834, 32
  %v2811 = vpop.permute.xlu0 %2810
  %2812 = vrot.lane.b32.xlu0 %v835, 32
  %v2813 = vpop.permute.xlu0 %2812
  %2814 = vrot.lane.b32.xlu0 %v836, 32
  %v2815 = vpop.permute.xlu0 %2814
  %2816 = vrot.lane.b32.xlu0 %v837, 32
  %v2817 = vpop.permute.xlu0 %2816
  %2818 = vrot.lane.b32.xlu0 %v838, 32
  %v2819 = vpop.permute.xlu0 %2818
  %2820 = vrot.lane.b32.xlu0 %v839, 32
  %v2821 = vpop.permute.xlu0 %2820
  %2822 = vrot.lane.b32.xlu0 %v840, 32
  %v2823 = vpop.permute.xlu0 %2822
  %2824 = vrot.lane.b32.xlu0 %v841, 32
  %v2825 = vpop.permute.xlu0 %2824
  %v2890 = vsel %vm26, %v265, %v907
  %v2891 = vsel %vm26, %v266, %v909
  %v2892 = vsel %vm26, %v267, %v911
  %v2893 = vsel %vm26, %v268, %v913
  %v2894 = vsel %vm26, %v269, %v915
  %v2895 = vsel %vm26, %v270, %v917
  %v2896 = vsel %vm26, %v271, %v919
  %v2897 = vsel %vm26, %v272, %v921
  %v2898 = vsel %vm26, %v273, %v923
  %v2899 = vsel %vm26, %v274, %v925
  %v2900 = vsel %vm26, %v275, %v927
  %v2901 = vsel %vm26, %v276, %v929
  %v2902 = vsel %vm26, %v277, %v931
  %v2903 = vsel %vm26, %v278, %v933
  %v2904 = vsel %vm26, %v279, %v935
  %v2905 = vsel %vm26, %v280, %v937
  %v2906 = vsel %vm26, %v281, %v939
  %v2907 = vsel %vm26, %v282, %v941
  %v2908 = vsel %vm26, %v283, %v943
  %v2909 = vsel %vm26, %v284, %v945
  %v2910 = vsel %vm26, %v285, %v947
  %v2911 = vsel %vm26, %v286, %v949
  %v2912 = vsel %vm26, %v287, %v951
  %v2913 = vsel %vm26, %v288, %v953
  %v2914 = vsel %vm26, %v289, %v955
  %v2915 = vsel %vm26, %v290, %v957
  %v2916 = vsel %vm26, %v291, %v959
  %v2917 = vsel %vm26, %v292, %v961
  %v2918 = vsel %vm26, %v293, %v963
  %v2919 = vsel %vm26, %v294, %v965
  %v2920 = vsel %vm26, %v295, %v967
  %v2921 = vsel %vm26, %v296, %v969
  %v2922 = vsel %vm26, %v297, %v971
  %v2923 = vsel %vm26, %v298, %v973
  %v2924 = vsel %vm26, %v299, %v975
  %v2925 = vsel %vm26, %v300, %v977
  %v2926 = vsel %vm26, %v301, %v979
  %v2927 = vsel %vm26, %v302, %v981
  %v2928 = vsel %vm26, %v303, %v983
  %v2929 = vsel %vm26, %v304, %v985
  %v2930 = vsel %vm26, %v305, %v987
  %v2931 = vsel %vm26, %v306, %v989
  %v2932 = vsel %vm26, %v307, %v991
  %v2933 = vsel %vm26, %v308, %v993
  %v2934 = vsel %vm26, %v309, %v995
  %v2935 = vsel %vm26, %v310, %v997
  %v2936 = vsel %vm26, %v311, %v999
  %v2937 = vsel %vm26, %v312, %v1001
  %v2938 = vsel %vm26, %v313, %v1003
  %v2939 = vsel %vm26, %v314, %v1005
  %v2940 = vsel %vm26, %v315, %v1007
  %v2941 = vsel %vm26, %v316, %v1009
  %v2942 = vsel %vm26, %v317, %v1011
  %v2943 = vsel %vm26, %v318, %v1013
  %v2944 = vsel %vm26, %v319, %v1015
  %v2945 = vsel %vm26, %v320, %v1017
  %v2946 = vsel %vm26, %v321, %v1019
  %v2947 = vsel %vm26, %v322, %v1021
  %v2948 = vsel %vm26, %v323, %v1023
  %v2949 = vsel %vm26, %v324, %v1025
  %v2950 = vsel %vm26, %v325, %v1027
  %v2951 = vsel %vm26, %v326, %v1029
  %v2952 = vsel %vm26, %v327, %v1031
  %v2953 = vsel %vm26, %v328, %v1033
  %vm2954 = vcmask 64512
  %v2955 = vsel %vm2954, %v2890, %v1163
  %v2956 = vsel %vm2954, %v2891, %v1165
  %v2957 = vsel %vm2954, %v2892, %v1167
  %v2958 = vsel %vm2954, %v2893, %v1169
  %v2959 = vsel %vm2954, %v2894, %v1171
  %v2960 = vsel %vm2954, %v2895, %v1173
  %v2961 = vsel %vm2954, %v2896, %v1175
  %v2962 = vsel %vm2954, %v2897, %v1177
  %v2963 = vsel %vm2954, %v2898, %v1179
  %v2964 = vsel %vm2954, %v2899, %v1181
  %v2965 = vsel %vm2954, %v2900, %v1183
  %v2966 = vsel %vm2954, %v2901, %v1185
  %v2967 = vsel %vm2954, %v2902, %v1187
  %v2968 = vsel %vm2954, %v2903, %v1189
  %v2969 = vsel %vm2954, %v2904, %v1191
  %v2970 = vsel %vm2954, %v2905, %v1193
  %v2971 = vsel %vm2954, %v2906, %v1195
  %v2972 = vsel %vm2954, %v2907, %v1197
  %v2973 = vsel %vm2954, %v2908, %v1199
  %v2974 = vsel %vm2954, %v2909, %v1201
  %v2975 = vsel %vm2954, %v2910, %v1203
  %v2976 = vsel %vm2954, %v2911, %v1205
  %v2977 = vsel %vm2954, %v2912, %v1207
  %v2978 = vsel %vm2954, %v2913, %v1209
  %v2979 = vsel %vm2954, %v2914, %v1211
  %v2980 = vsel %vm2954, %v2915, %v1213
  %v2981 = vsel %vm2954, %v2916, %v1215
  %v2982 = vsel %vm2954, %v2917, %v1217
  %v2983 = vsel %vm2954, %v2918, %v1219
  %v2984 = vsel %vm2954, %v2919, %v1221
  %v2985 = vsel %vm2954, %v2920, %v1223
  %v2986 = vsel %vm2954, %v2921, %v1225
  %v2987 = vsel %vm2954, %v2922, %v1227
  %v2988 = vsel %vm2954, %v2923, %v1229
  %v2989 = vsel %vm2954, %v2924, %v1231
  %v2990 = vsel %vm2954, %v2925, %v1233
  %v2991 = vsel %vm2954, %v2926, %v1235
  %v2992 = vsel %vm2954, %v2927, %v1237
  %v2993 = vsel %vm2954, %v2928, %v1239
  %v2994 = vsel %vm2954, %v2929, %v1241
  %v2995 = vsel %vm2954, %v2930, %v1243
  %v2996 = vsel %vm2954, %v2931, %v1245
  %v2997 = vsel %vm2954, %v2932, %v1247
  %v2998 = vsel %vm2954, %v2933, %v1249
  %v2999 = vsel %vm2954, %v2934, %v1251
  %v3000 = vsel %vm2954, %v2935, %v1253
  %v3001 = vsel %vm2954, %v2936, %v1255
  %v3002 = vsel %vm2954, %v2937, %v1257
  %v3003 = vsel %vm2954, %v2938, %v1259
  %v3004 = vsel %vm2954, %v2939, %v1261
  %v3005 = vsel %vm2954, %v2940, %v1263
  %v3006 = vsel %vm2954, %v2941, %v1265
  %v3007 = vsel %vm2954, %v2942, %v1267
  %v3008 = vsel %vm2954, %v2943, %v1269
  %v3009 = vsel %vm2954, %v2944, %v1271
  %v3010 = vsel %vm2954, %v2945, %v1273
  %v3011 = vsel %vm2954, %v2946, %v1275
  %v3012 = vsel %vm2954, %v2947, %v1277
  %v3013 = vsel %vm2954, %v2948, %v1279
  %v3014 = vsel %vm2954, %v2949, %v1281
  %v3015 = vsel %vm2954, %v2950, %v1283
  %v3016 = vsel %vm2954, %v2951, %v1285
  %v3017 = vsel %vm2954, %v2952, %v1287
  %v3018 = vsel %vm2954, %v2953, %v1289
  %vm3019 = vcmask 97280
  %v3020 = vsel %vm3019, %v2955, %v1419
  %v3021 = vsel %vm3019, %v2956, %v1421
  %v3022 = vsel %vm3019, %v2957, %v1423
  %v3023 = vsel %vm3019, %v2958, %v1425
  %v3024 = vsel %vm3019, %v2959, %v1427
  %v3025 = vsel %vm3019, %v2960, %v1429
  %v3026 = vsel %vm3019, %v2961, %v1431
  %v3027 = vsel %vm3019, %v2962, %v1433
  %v3028 = vsel %vm3019, %v2963, %v1435
  %v3029 = vsel %vm3019, %v2964, %v1437
  %v3030 = vsel %vm3019, %v2965, %v1439
  %v3031 = vsel %vm3019, %v2966, %v1441
  %v3032 = vsel %vm3019, %v2967, %v1443
  %v3033 = vsel %vm3019, %v2968, %v1445
  %v3034 = vsel %vm3019, %v2969, %v1447
  %v3035 = vsel %vm3019, %v2970, %v1449
  %v3036 = vsel %vm3019, %v2971, %v1451
  %v3037 = vsel %vm3019, %v2972, %v1453
  %v3038 = vsel %vm3019, %v2973, %v1455
  %v3039 = vsel %vm3019, %v2974, %v1457
  %v3040 = vsel %vm3019, %v2975, %v1459
  %v3041 = vsel %vm3019, %v2976, %v1461
  %v3042 = vsel %vm3019, %v2977, %v1463
  %v3043 = vsel %vm3019, %v2978, %v1465
  %v3044 = vsel %vm3019, %v2979, %v1467
  %v3045 = vsel %vm3019, %v2980, %v1469
  %v3046 = vsel %vm3019, %v2981, %v1471
  %v3047 = vsel %vm3019, %v2982, %v1473
  %v3048 = vsel %vm3019, %v2983, %v1475
  %v3049 = vsel %vm3019, %v2984, %v1477
  %v3050 = vsel %vm3019, %v2985, %v1479
  %v3051 = vsel %vm3019, %v2986, %v1481
  %v3052 = vsel %vm3019, %v2987, %v1483
  %v3053 = vsel %vm3019, %v2988, %v1485
  %v3054 = vsel %vm3019, %v2989, %v1487
  %v3055 = vsel %vm3019, %v2990, %v1489
  %v3056 = vsel %vm3019, %v2991, %v1491
  %v3057 = vsel %vm3019, %v2992, %v1493
  %v3058 = vsel %vm3019, %v2993, %v1495
  %v3059 = vsel %vm3019, %v2994, %v1497
  %v3060 = vsel %vm3019, %v2995, %v1499
  %v3061 = vsel %vm3019, %v2996, %v1501
  %v3062 = vsel %vm3019, %v2997, %v1503
  %v3063 = vsel %vm3019, %v2998, %v1505
  %v3064 = vsel %vm3019, %v2999, %v1507
  %v3065 = vsel %vm3019, %v3000, %v1509
  %v3066 = vsel %vm3019, %v3001, %v1511
  %v3067 = vsel %vm3019, %v3002, %v1513
  %v3068 = vsel %vm3019, %v3003, %v1515
  %v3069 = vsel %vm3019, %v3004, %v1517
  %v3070 = vsel %vm3019, %v3005, %v1519
  %v3071 = vsel %vm3019, %v3006, %v1521
  %v3072 = vsel %vm3019, %v3007, %v1523
  %v3073 = vsel %vm3019, %v3008, %v1525
  %v3074 = vsel %vm3019, %v3009, %v1527
  %v3075 = vsel %vm3019, %v3010, %v1529
  %v3076 = vsel %vm3019, %v3011, %v1531
  %v3077 = vsel %vm3019, %v3012, %v1533
  %v3078 = vsel %vm3019, %v3013, %v1535
  %v3079 = vsel %vm3019, %v3014, %v1537
  %v3080 = vsel %vm3019, %v3015, %v1539
  %v3081 = vsel %vm3019, %v3016, %v1541
  %v3082 = vsel %vm3019, %v3017, %v1543
  %v3083 = vsel %vm3019, %v3018, %v1545
  %vm3084 = vcmask 130048
  %v3085 = vsel %vm3084, %v3020, %v1675
  %v3086 = vsel %vm3084, %v3021, %v1677
  %v3087 = vsel %vm3084, %v3022, %v1679
  %v3088 = vsel %vm3084, %v3023, %v1681
  %v3089 = vsel %vm3084, %v3024, %v1683
  %v3090 = vsel %vm3084, %v3025, %v1685
  %v3091 = vsel %vm3084, %v3026, %v1687
  %v3092 = vsel %vm3084, %v3027, %v1689
  %v3093 = vsel %vm3084, %v3028, %v1691
  %v3094 = vsel %vm3084, %v3029, %v1693
  %v3095 = vsel %vm3084, %v3030, %v1695
  %v3096 = vsel %vm3084, %v3031, %v1697
  %v3097 = vsel %vm3084, %v3032, %v1699
  %v3098 = vsel %vm3084, %v3033, %v1701
  %v3099 = vsel %vm3084, %v3034, %v1703
  %v3100 = vsel %vm3084, %v3035, %v1705
  %v3101 = vsel %vm3084, %v3036, %v1707
  %v3102 = vsel %vm3084, %v3037, %v1709
  %v3103 = vsel %vm3084, %v3038, %v1711
  %v3104 = vsel %vm3084, %v3039, %v1713
  %v3105 = vsel %vm3084, %v3040, %v1715
  %v3106 = vsel %vm3084, %v3041, %v1717
  %v3107 = vsel %vm3084, %v3042, %v1719
  %v3108 = vsel %vm3084, %v3043, %v1721
  %v3109 = vsel %vm3084, %v3044, %v1723
  %v3110 = vsel %vm3084, %v3045, %v1725
  %v3111 = vsel %vm3084, %v3046, %v1727
  %v3112 = vsel %vm3084, %v3047, %v1729
  %v3113 = vsel %vm3084, %v3048, %v1731
  %v3114 = vsel %vm3084, %v3049, %v1733
  %v3115 = vsel %vm3084, %v3050, %v1735
  %v3116 = vsel %vm3084, %v3051, %v1737
  %v3117 = vsel %vm3084, %v3052, %v1739
  %v3118 = vsel %vm3084, %v3053, %v1741
  %v3119 = vsel %vm3084, %v3054, %v1743
  %v3120 = vsel %vm3084, %v3055, %v1745
  %v3121 = vsel %vm3084, %v3056, %v1747
  %v3122 = vsel %vm3084, %v3057, %v1749
  %v3123 = vsel %vm3084, %v3058, %v1751
  %v3124 = vsel %vm3084, %v3059, %v1753
  %v3125 = vsel %vm3084, %v3060, %v1755
  %v3126 = vsel %vm3084, %v3061, %v1757
  %v3127 = vsel %vm3084, %v3062, %v1759
  %v3128 = vsel %vm3084, %v3063, %v1761
  %v3129 = vsel %vm3084, %v3064, %v1763
  %v3130 = vsel %vm3084, %v3065, %v1765
  %v3131 = vsel %vm3084, %v3066, %v1767
  %v3132 = vsel %vm3084, %v3067, %v1769
  %v3133 = vsel %vm3084, %v3068, %v1771
  %v3134 = vsel %vm3084, %v3069, %v1773
  %v3135 = vsel %vm3084, %v3070, %v1775
  %v3136 = vsel %vm3084, %v3071, %v1777
  %v3137 = vsel %vm3084, %v3072, %v1779
  %v3138 = vsel %vm3084, %v3073, %v1781
  %v3139 = vsel %vm3084, %v3074, %v1783
  %v3140 = vsel %vm3084, %v3075, %v1785
  %v3141 = vsel %vm3084, %v3076, %v1787
  %v3142 = vsel %vm3084, %v3077, %v1789
  %v3143 = vsel %vm3084, %v3078, %v1791
  %v3144 = vsel %vm3084, %v3079, %v1793
  %v3145 = vsel %vm3084, %v3080, %v1795
  %v3146 = vsel %vm3084, %v3081, %v1797
  %v3147 = vsel %vm3084, %v3082, %v1799
  %v3148 = vsel %vm3084, %v3083, %v1801
  %vm3149 = vcmask 162816
  %v3150 = vsel %vm3149, %v3085, %v1931
  %v3151 = vsel %vm3149, %v3086, %v1933
  %v3152 = vsel %vm3149, %v3087, %v1935
  %v3153 = vsel %vm3149, %v3088, %v1937
  %v3154 = vsel %vm3149, %v3089, %v1939
  %v3155 = vsel %vm3149, %v3090, %v1941
  %v3156 = vsel %vm3149, %v3091, %v1943
  %v3157 = vsel %vm3149, %v3092, %v1945
  %v3158 = vsel %vm3149, %v3093, %v1947
  %v3159 = vsel %vm3149, %v3094, %v1949
  %v3160 = vsel %vm3149, %v3095, %v1951
  %v3161 = vsel %vm3149, %v3096, %v1953
  %v3162 = vsel %vm3149, %v3097, %v1955
  %v3163 = vsel %vm3149, %v3098, %v1957
  %v3164 = vsel %vm3149, %v3099, %v1959
  %v3165 = vsel %vm3149, %v3100, %v1961
  %v3166 = vsel %vm3149, %v3101, %v1963
  %v3167 = vsel %vm3149, %v3102, %v1965
  %v3168 = vsel %vm3149, %v3103, %v1967
  %v3169 = vsel %vm3149, %v3104, %v1969
  %v3170 = vsel %vm3149, %v3105, %v1971
  %v3171 = vsel %vm3149, %v3106, %v1973
  %v3172 = vsel %vm3149, %v3107, %v1975
  %v3173 = vsel %vm3149, %v3108, %v1977
  %v3174 = vsel %vm3149, %v3109, %v1979
  %v3175 = vsel %vm3149, %v3110, %v1981
  %v3176 = vsel %vm3149, %v3111, %v1983
  %v3177 = vsel %vm3149, %v3112, %v1985
  %v3178 = vsel %vm3149, %v3113, %v1987
  %v3179 = vsel %vm3149, %v3114, %v1989
  %v3180 = vsel %vm3149, %v3115, %v1991
  %v3181 = vsel %vm3149, %v3116, %v1993
  %v3182 = vsel %vm3149, %v3117, %v1995
  %v3183 = vsel %vm3149, %v3118, %v1997
  %v3184 = vsel %vm3149, %v3119, %v1999
  %v3185 = vsel %vm3149, %v3120, %v2001
  %v3186 = vsel %vm3149, %v3121, %v2003
  %v3187 = vsel %vm3149, %v3122, %v2005
  %v3188 = vsel %vm3149, %v3123, %v2007
  %v3189 = vsel %vm3149, %v3124, %v2009
  %v3190 = vsel %vm3149, %v3125, %v2011
  %v3191 = vsel %vm3149, %v3126, %v2013
  %v3192 = vsel %vm3149, %v3127, %v2015
  %v3193 = vsel %vm3149, %v3128, %v2017
  %v3194 = vsel %vm3149, %v3129, %v2019
  %v3195 = vsel %vm3149, %v3130, %v2021
  %v3196 = vsel %vm3149, %v3131, %v2023
  %v3197 = vsel %vm3149, %v3132, %v2025
  %v3198 = vsel %vm3149, %v3133, %v2027
  %v3199 = vsel %vm3149, %v3134, %v2029
  %v3200 = vsel %vm3149, %v3135, %v2031
  %v3201 = vsel %vm3149, %v3136, %v2033
  %v3202 = vsel %vm3149, %v3137, %v2035
  %v3203 = vsel %vm3149, %v3138, %v2037
  %v3204 = vsel %vm3149, %v3139, %v2039
  %v3205 = vsel %vm3149, %v3140, %v2041
  %v3206 = vsel %vm3149, %v3141, %v2043
  %v3207 = vsel %vm3149, %v3142, %v2045
  %v3208 = vsel %vm3149, %v3143, %v2047
  %v3209 = vsel %vm3149, %v3144, %v2049
  %v3210 = vsel %vm3149, %v3145, %v2051
  %v3211 = vsel %vm3149, %v3146, %v2053
  %v3212 = vsel %vm3149, %v3147, %v2055
  %v3213 = vsel %vm3149, %v3148, %v2057
  %vm3214 = vcmask 195584
  %v3215 = vsel %vm3214, %v3150, %v2187
  %v3216 = vsel %vm3214, %v3151, %v2189
  %v3217 = vsel %vm3214, %v3152, %v2191
  %v3218 = vsel %vm3214, %v3153, %v2193
  %v3219 = vsel %vm3214, %v3154, %v2195
  %v3220 = vsel %vm3214, %v3155, %v2197
  %v3221 = vsel %vm3214, %v3156, %v2199
  %v3222 = vsel %vm3214, %v3157, %v2201
  %v3223 = vsel %vm3214, %v3158, %v2203
  %v3224 = vsel %vm3214, %v3159, %v2205
  %v3225 = vsel %vm3214, %v3160, %v2207
  %v3226 = vsel %vm3214, %v3161, %v2209
  %v3227 = vsel %vm3214, %v3162, %v2211
  %v3228 = vsel %vm3214, %v3163, %v2213
  %v3229 = vsel %vm3214, %v3164, %v2215
  %v3230 = vsel %vm3214, %v3165, %v2217
  %v3231 = vsel %vm3214, %v3166, %v2219
  %v3232 = vsel %vm3214, %v3167, %v2221
  %v3233 = vsel %vm3214, %v3168, %v2223
  %v3234 = vsel %vm3214, %v3169, %v2225
  %v3235 = vsel %vm3214, %v3170, %v2227
  %v3236 = vsel %vm3214, %v3171, %v2229
  %v3237 = vsel %vm3214, %v3172, %v2231
  %v3238 = vsel %vm3214, %v3173, %v2233
  %v3239 = vsel %vm3214, %v3174, %v2235
  %v3240 = vsel %vm3214, %v3175, %v2237
  %v3241 = vsel %vm3214, %v3176, %v2239
  %v3242 = vsel %vm3214, %v3177, %v2241
  %v3243 = vsel %vm3214, %v3178, %v2243
  %v3244 = vsel %vm3214, %v3179, %v2245
  %v3245 = vsel %vm3214, %v3180, %v2247
  %v3246 = vsel %vm3214, %v3181, %v2249
  %v3247 = vsel %vm3214, %v3182, %v2251
  %v3248 = vsel %vm3214, %v3183, %v2253
  %v3249 = vsel %vm3214, %v3184, %v2255
  %v3250 = vsel %vm3214, %v3185, %v2257
  %v3251 = vsel %vm3214, %v3186, %v2259
  %v3252 = vsel %vm3214, %v3187, %v2261
  %v3253 = vsel %vm3214, %v3188, %v2263
  %v3254 = vsel %vm3214, %v3189, %v2265
  %v3255 = vsel %vm3214, %v3190, %v2267
  %v3256 = vsel %vm3214, %v3191, %v2269
  %v3257 = vsel %vm3214, %v3192, %v2271
  %v3258 = vsel %vm3214, %v3193, %v2273
  %v3259 = vsel %vm3214, %v3194, %v2275
  %v3260 = vsel %vm3214, %v3195, %v2277
  %v3261 = vsel %vm3214, %v3196, %v2279
  %v3262 = vsel %vm3214, %v3197, %v2281
  %v3263 = vsel %vm3214, %v3198, %v2283
  %v3264 = vsel %vm3214, %v3199, %v2285
  %v3265 = vsel %vm3214, %v3200, %v2287
  %v3266 = vsel %vm3214, %v3201, %v2289
  %v3267 = vsel %vm3214, %v3202, %v2291
  %v3268 = vsel %vm3214, %v3203, %v2293
  %v3269 = vsel %vm3214, %v3204, %v2295
  %v3270 = vsel %vm3214, %v3205, %v2297
  %v3271 = vsel %vm3214, %v3206, %v2299
  %v3272 = vsel %vm3214, %v3207, %v2301
  %v3273 = vsel %vm3214, %v3208, %v2303
  %v3274 = vsel %vm3214, %v3209, %v2305
  %v3275 = vsel %vm3214, %v3210, %v2307
  %v3276 = vsel %vm3214, %v3211, %v2309
  %v3277 = vsel %vm3214, %v3212, %v2311
  %v3278 = vsel %vm3214, %v3213, %v2313
  %vm3279 = vcmask 228352
  %v3280 = vsel %vm3279, %v3215, %v2443
  %v3281 = vsel %vm3279, %v3216, %v2445
  %v3282 = vsel %vm3279, %v3217, %v2447
  %v3283 = vsel %vm3279, %v3218, %v2449
  %v3284 = vsel %vm3279, %v3219, %v2451
  %v3285 = vsel %vm3279, %v3220, %v2453
  %v3286 = vsel %vm3279, %v3221, %v2455
  %v3287 = vsel %vm3279, %v3222, %v2457
  %v3288 = vsel %vm3279, %v3223, %v2459
  %v3289 = vsel %vm3279, %v3224, %v2461
  %v3290 = vsel %vm3279, %v3225, %v2463
  %v3291 = vsel %vm3279, %v3226, %v2465
  %v3292 = vsel %vm3279, %v3227, %v2467
  %v3293 = vsel %vm3279, %v3228, %v2469
  %v3294 = vsel %vm3279, %v3229, %v2471
  %v3295 = vsel %vm3279, %v3230, %v2473
  %v3296 = vsel %vm3279, %v3231, %v2475
  %v3297 = vsel %vm3279, %v3232, %v2477
  %v3298 = vsel %vm3279, %v3233, %v2479
  %v3299 = vsel %vm3279, %v3234, %v2481
  %v3300 = vsel %vm3279, %v3235, %v2483
  %v3301 = vsel %vm3279, %v3236, %v2485
  %v3302 = vsel %vm3279, %v3237, %v2487
  %v3303 = vsel %vm3279, %v3238, %v2489
  %v3304 = vsel %vm3279, %v3239, %v2491
  %v3305 = vsel %vm3279, %v3240, %v2493
  %v3306 = vsel %vm3279, %v3241, %v2495
  %v3307 = vsel %vm3279, %v3242, %v2497
  %v3308 = vsel %vm3279, %v3243, %v2499
  %v3309 = vsel %vm3279, %v3244, %v2501
  %v3310 = vsel %vm3279, %v3245, %v2503
  %v3311 = vsel %vm3279, %v3246, %v2505
  %v3312 = vsel %vm3279, %v3247, %v2507
  %v3313 = vsel %vm3279, %v3248, %v2509
  %v3314 = vsel %vm3279, %v3249, %v2511
  %v3315 = vsel %vm3279, %v3250, %v2513
  %v3316 = vsel %vm3279, %v3251, %v2515
  %v3317 = vsel %vm3279, %v3252, %v2517
  %v3318 = vsel %vm3279, %v3253, %v2519
  %v3319 = vsel %vm3279, %v3254, %v2521
  %v3320 = vsel %vm3279, %v3255, %v2523
  %v3321 = vsel %vm3279, %v3256, %v2525
  %v3322 = vsel %vm3279, %v3257, %v2527
  %v3323 = vsel %vm3279, %v3258, %v2529
  %v3324 = vsel %vm3279, %v3259, %v2531
  %v3325 = vsel %vm3279, %v3260, %v2533
  %v3326 = vsel %vm3279, %v3261, %v2535
  %v3327 = vsel %vm3279, %v3262, %v2537
  %v3328 = vsel %vm3279, %v3263, %v2539
  %v3329 = vsel %vm3279, %v3264, %v2541
  %v3330 = vsel %vm3279, %v3265, %v2543
  %v3331 = vsel %vm3279, %v3266, %v2545
  %v3332 = vsel %vm3279, %v3267, %v2547
  %v3333 = vsel %vm3279, %v3268, %v2549
  %v3334 = vsel %vm3279, %v3269, %v2551
  %v3335 = vsel %vm3279, %v3270, %v2553
  %v3336 = vsel %vm3279, %v3271, %v2555
  %v3337 = vsel %vm3279, %v3272, %v2557
  %v3338 = vsel %vm3279, %v3273, %v2559
  %v3339 = vsel %vm3279, %v3274, %v2561
  %v3340 = vsel %vm3279, %v3275, %v2563
  %v3341 = vsel %vm3279, %v3276, %v2565
  %v3342 = vsel %vm3279, %v3277, %v2567
  %v3343 = vsel %vm3279, %v3278, %v2569
  %vm3344 = vcmask 261120
  %v3345 = vsel %vm3344, %v3280, %v2699
  %v3346 = vsel %vm3344, %v3281, %v2701
  %v3347 = vsel %vm3344, %v3282, %v2703
  %v3348 = vsel %vm3344, %v3283, %v2705
  %v3349 = vsel %vm3344, %v3284, %v2707
  %v3350 = vsel %vm3344, %v3285, %v2709
  %v3351 = vsel %vm3344, %v3286, %v2711
  %v3352 = vsel %vm3344, %v3287, %v2713
  %v3353 = vsel %vm3344, %v3288, %v2715
  %v3354 = vsel %vm3344, %v3289, %v2717
  %v3355 = vsel %vm3344, %v3290, %v2719
  %v3356 = vsel %vm3344, %v3291, %v2721
  %v3357 = vsel %vm3344, %v3292, %v2723
  %v3358 = vsel %vm3344, %v3293, %v2725
  %v3359 = vsel %vm3344, %v3294, %v2727
  %v3360 = vsel %vm3344, %v3295, %v2729
  %v3361 = vsel %vm3344, %v3296, %v2731
  %v3362 = vsel %vm3344, %v3297, %v2733
  %v3363 = vsel %vm3344, %v3298, %v2735
  %v3364 = vsel %vm3344, %v3299, %v2737
  %v3365 = vsel %vm3344, %v3300, %v2739
  %v3366 = vsel %vm3344, %v3301, %v2741
  %v3367 = vsel %vm3344, %v3302, %v2743
  %v3368 = vsel %vm3344, %v3303, %v2745
  %v3369 = vsel %vm3344, %v3304, %v2747
  %v3370 = vsel %vm3344, %v3305, %v2749
  %v3371 = vsel %vm3344, %v3306, %v2751
  %v3372 = vsel %vm3344, %v3307, %v2753
  %v3373 = vsel %vm3344, %v3308, %v2755
  %v3374 = vsel %vm3344, %v3309, %v2757
  %v3375 = vsel %vm3344, %v3310, %v2759
  %v3376 = vsel %vm3344, %v3311, %v2761
  %v3377 = vsel %vm3344, %v3312, %v2763
  %v3378 = vsel %vm3344, %v3313, %v2765
  %v3379 = vsel %vm3344, %v3314, %v2767
  %v3380 = vsel %vm3344, %v3315, %v2769
  %v3381 = vsel %vm3344, %v3316, %v2771
  %v3382 = vsel %vm3344, %v3317, %v2773
  %v3383 = vsel %vm3344, %v3318, %v2775
  %v3384 = vsel %vm3344, %v3319, %v2777
  %v3385 = vsel %vm3344, %v3320, %v2779
  %v3386 = vsel %vm3344, %v3321, %v2781
  %v3387 = vsel %vm3344, %v3322, %v2783
  %v3388 = vsel %vm3344, %v3323, %v2785
  %v3389 = vsel %vm3344, %v3324, %v2787
  %v3390 = vsel %vm3344, %v3325, %v2789
  %v3391 = vsel %vm3344, %v3326, %v2791
  %v3392 = vsel %vm3344, %v3327, %v2793
  %v3393 = vsel %vm3344, %v3328, %v2795
  %v3394 = vsel %vm3344, %v3329, %v2797
  %v3395 = vsel %vm3344, %v3330, %v2799
  %v3396 = vsel %vm3344, %v3331, %v2801
  %v3397 = vsel %vm3344, %v3332, %v2803
  %v3398 = vsel %vm3344, %v3333, %v2805
  %v3399 = vsel %vm3344, %v3334, %v2807
  %v3400 = vsel %vm3344, %v3335, %v2809
  %v3401 = vsel %vm3344, %v3336, %v2811
  %v3402 = vsel %vm3344, %v3337, %v2813
  %v3403 = vsel %vm3344, %v3338, %v2815
  %v3404 = vsel %vm3344, %v3339, %v2817
  %v3405 = vsel %vm3344, %v3340, %v2819
  %v3406 = vsel %vm3344, %v3341, %v2821
  %v3407 = vsel %vm3344, %v3342, %v2823
  %v3408 = vsel %vm3344, %v3343, %v2825
  %v3409 = vld [vmem:[%s1] sm:$0xff]
  %v3410 = vld [vmem:[%s1 + $0x8] sm:$0xff]
  %v3411 = vld [vmem:[%s1 + $0x10] sm:$0xff]
  %v3412 = vld [vmem:[%s1 + $0x18] sm:$0xff]
  %v3413 = vld [vmem:[%s1 + $0x20] sm:$0xf]
  %vm3414 = vcmask 293888
  %v3416 = vsel %vm3414, %v3345, 0
  %v3419 = vsel %vm3414, %v3346, 0
  %v3422 = vsel %vm3414, %v3347, 0
  %v3425 = vsel %vm3414, %v3348, 0
  %v3428 = vsel %vm3414, %v3349, 0
  %v3431 = vsel %vm3414, %v3350, 0
  %v3434 = vsel %vm3414, %v3351, 0
  %v3437 = vsel %vm3414, %v3352, 0
  %v3440 = vsel %vm3414, %v3353, 0
  %v3443 = vsel %vm3414, %v3354, 0
  %v3446 = vsel %vm3414, %v3355, 0
  %v3449 = vsel %vm3414, %v3356, 0
  %v3452 = vsel %vm3414, %v3357, 0
  %v3455 = vsel %vm3414, %v3358, 0
  %v3458 = vsel %vm3414, %v3359, 0
  %v3461 = vsel %vm3414, %v3360, 0
  %v3464 = vsel %vm3414, %v3361, 0
  %v3467 = vsel %vm3414, %v3362, 0
  %v3470 = vsel %vm3414, %v3363, 0
  %v3473 = vsel %vm3414, %v3364, 0
  %v3476 = vsel %vm3414, %v3365, 0
  %v3479 = vsel %vm3414, %v3366, 0
  %v3482 = vsel %vm3414, %v3367, 0
  %v3485 = vsel %vm3414, %v3368, 0
  %v3488 = vsel %vm3414, %v3369, 0
  %v3491 = vsel %vm3414, %v3370, 0
  %v3494 = vsel %vm3414, %v3371, 0
  %v3497 = vsel %vm3414, %v3372, 0
  %v3500 = vsel %vm3414, %v3373, 0
  %v3503 = vsel %vm3414, %v3374, 0
  %v3506 = vsel %vm3414, %v3375, 0
  %v3509 = vsel %vm3414, %v3376, 0
  %v3512 = vsel %vm3414, %v3377, 0
  %v3515 = vsel %vm3414, %v3378, 0
  %v3518 = vsel %vm3414, %v3379, 0
  %v3521 = vsel %vm3414, %v3380, 0
  %v3524 = vsel %vm3414, %v3381, 0
  %v3527 = vsel %vm3414, %v3382, 0
  %v3530 = vsel %vm3414, %v3383, 0
  %v3533 = vsel %vm3414, %v3384, 0
  %v3536 = vsel %vm3414, %v3385, 0
  %v3539 = vsel %vm3414, %v3386, 0
  %v3542 = vsel %vm3414, %v3387, 0
  %v3545 = vsel %vm3414, %v3388, 0
  %v3548 = vsel %vm3414, %v3389, 0
  %v3551 = vsel %vm3414, %v3390, 0
  %v3554 = vsel %vm3414, %v3391, 0
  %v3557 = vsel %vm3414, %v3392, 0
  %v3560 = vsel %vm3414, %v3393, 0
  %v3563 = vsel %vm3414, %v3394, 0
  %v3566 = vsel %vm3414, %v3395, 0
  %v3569 = vsel %vm3414, %v3396, 0
  %v3572 = vsel %vm3414, %v3397, 0
  %v3575 = vsel %vm3414, %v3398, 0
  %v3578 = vsel %vm3414, %v3399, 0
  %v3581 = vsel %vm3414, %v3400, 0
  %v3584 = vsel %vm3414, %v3401, 0
  %v3587 = vsel %vm3414, %v3402, 0
  %v3590 = vsel %vm3414, %v3403, 0
  %v3593 = vsel %vm3414, %v3404, 0
  %v3596 = vsel %vm3414, %v3405, 0
  %v3599 = vsel %vm3414, %v3406, 0
  %v3602 = vsel %vm3414, %v3407, 0
  %v3605 = vsel %vm3414, %v3408, 0
  %vm3607 = vcmask 1043456
  %v3609 = vsel %vm3607, %v3413, 0
  %3611 = vmatpush.msra.mxu0 0.0
  %3612 = vmatpush.msra.mxu0 0.0
  %3613 = vmatpush.msra.mxu0 0.0
  %3614 = vmatpush.msra.mxu0 0.0
  %3615 = vmatpush.msra.mxu0 0.0
  %3616 = vmatpush.msra.mxu0 0.0
  %3617 = vmatpush.msra.mxu0 0.0
  %3618 = vmatpush.msra.mxu0 0.0
  %3619 = vmatpush.msra.mxu0 0.0
  %3620 = vmatpush.msra.mxu0 0.0
  %3621 = vmatpush.msra.mxu0 0.0
  %3622 = vmatpush.msra.mxu0 %v3609
  %3623 = vmatpush.msra.mxu0 %v3412
  %3624 = vmatpush.msra.mxu0 %v3411
  %3625 = vmatpush.msra.mxu0 %v3410
  %3626 = vmatpush.msra.mxu0 %v3409
  %3627 = vmatmul.f32.gmra.mxu0 %v3416
  %v3628 = vpop.f32.mrf.mxu0
  %v3629 = vadd.f32 0.0, %v3628
  %3630 = vmatmul.f32.gmra.mxu0 %v3419
  %v3631 = vpop.f32.mrf.mxu0
  %v3632 = vadd.f32 0.0, %v3631
  %3633 = vmatmul.f32.gmra.mxu0 %v3422
  %v3634 = vpop.f32.mrf.mxu0
  %v3635 = vadd.f32 0.0, %v3634
  %3636 = vmatmul.f32.gmra.mxu0 %v3425
  %v3637 = vpop.f32.mrf.mxu0
  %v3638 = vadd.f32 0.0, %v3637
  %3639 = vmatmul.f32.gmra.mxu0 %v3428
  %v3640 = vpop.f32.mrf.mxu0
  %v3641 = vadd.f32 0.0, %v3640
  %3642 = vmatmul.f32.gmra.mxu0 %v3431
  %v3643 = vpop.f32.mrf.mxu0
  %v3644 = vadd.f32 0.0, %v3643
  %3645 = vmatmul.f32.gmra.mxu0 %v3434
  %v3646 = vpop.f32.mrf.mxu0
  %v3647 = vadd.f32 0.0, %v3646
  %3648 = vmatmul.f32.gmra.mxu0 %v3437
  %v3649 = vpop.f32.mrf.mxu0
  %v3650 = vadd.f32 0.0, %v3649
  %3651 = vmatmul.f32.gmra.mxu0 %v3440
  %v3652 = vpop.f32.mrf.mxu0
  %v3653 = vadd.f32 0.0, %v3652
  %3654 = vmatmul.f32.gmra.mxu0 %v3443
  %v3655 = vpop.f32.mrf.mxu0
  %v3656 = vadd.f32 0.0, %v3655
  %3657 = vmatmul.f32.gmra.mxu0 %v3446
  %v3658 = vpop.f32.mrf.mxu0
  %v3659 = vadd.f32 0.0, %v3658
  %3660 = vmatmul.f32.gmra.mxu0 %v3449
  %v3661 = vpop.f32.mrf.mxu0
  %v3662 = vadd.f32 0.0, %v3661
  %3663 = vmatmul.f32.gmra.mxu0 %v3452
  %v3664 = vpop.f32.mrf.mxu0
  %v3665 = vadd.f32 0.0, %v3664
  %3666 = vmatmul.f32.gmra.mxu0 %v3455
  %v3667 = vpop.f32.mrf.mxu0
  %v3668 = vadd.f32 0.0, %v3667
  %3669 = vmatmul.f32.gmra.mxu0 %v3458
  %v3670 = vpop.f32.mrf.mxu0
  %v3671 = vadd.f32 0.0, %v3670
  %3672 = vmatmul.f32.gmra.mxu0 %v3461
  %v3673 = vpop.f32.mrf.mxu0
  %v3674 = vadd.f32 0.0, %v3673
  %3675 = vmatmul.f32.gmra.mxu0 %v3464
  %v3676 = vpop.f32.mrf.mxu0
  %v3677 = vadd.f32 0.0, %v3676
  %3678 = vmatmul.f32.gmra.mxu0 %v3467
  %v3679 = vpop.f32.mrf.mxu0
  %v3680 = vadd.f32 0.0, %v3679
  %3681 = vmatmul.f32.gmra.mxu0 %v3470
  %v3682 = vpop.f32.mrf.mxu0
  %v3683 = vadd.f32 0.0, %v3682
  %3684 = vmatmul.f32.gmra.mxu0 %v3473
  %v3685 = vpop.f32.mrf.mxu0
  %v3686 = vadd.f32 0.0, %v3685
  %3687 = vmatmul.f32.gmra.mxu0 %v3476
  %v3688 = vpop.f32.mrf.mxu0
  %v3689 = vadd.f32 0.0, %v3688
  %3690 = vmatmul.f32.gmra.mxu0 %v3479
  %v3691 = vpop.f32.mrf.mxu0
  %v3692 = vadd.f32 0.0, %v3691
  %3693 = vmatmul.f32.gmra.mxu0 %v3482
  %v3694 = vpop.f32.mrf.mxu0
  %v3695 = vadd.f32 0.0, %v3694
  %3696 = vmatmul.f32.gmra.mxu0 %v3485
  %v3697 = vpop.f32.mrf.mxu0
  %v3698 = vadd.f32 0.0, %v3697
  %3699 = vmatmul.f32.gmra.mxu0 %v3488
  %v3700 = vpop.f32.mrf.mxu0
  %v3701 = vadd.f32 0.0, %v3700
  %3702 = vmatmul.f32.gmra.mxu0 %v3491
  %v3703 = vpop.f32.mrf.mxu0
  %v3704 = vadd.f32 0.0, %v3703
  %3705 = vmatmul.f32.gmra.mxu0 %v3494
  %v3706 = vpop.f32.mrf.mxu0
  %v3707 = vadd.f32 0.0, %v3706
  %3708 = vmatmul.f32.gmra.mxu0 %v3497
  %v3709 = vpop.f32.mrf.mxu0
  %v3710 = vadd.f32 0.0, %v3709
  %3711 = vmatmul.f32.gmra.mxu0 %v3500
  %v3712 = vpop.f32.mrf.mxu0
  %v3713 = vadd.f32 0.0, %v3712
  %3714 = vmatmul.f32.gmra.mxu0 %v3503
  %v3715 = vpop.f32.mrf.mxu0
  %v3716 = vadd.f32 0.0, %v3715
  %3717 = vmatmul.f32.gmra.mxu0 %v3506
  %v3718 = vpop.f32.mrf.mxu0
  %v3719 = vadd.f32 0.0, %v3718
  %3720 = vmatmul.f32.gmra.mxu0 %v3509
  %v3721 = vpop.f32.mrf.mxu0
  %v3722 = vadd.f32 0.0, %v3721
  %3723 = vmatmul.f32.gmra.mxu0 %v3512
  %v3724 = vpop.f32.mrf.mxu0
  %v3725 = vadd.f32 0.0, %v3724
  %3726 = vmatmul.f32.gmra.mxu0 %v3515
  %v3727 = vpop.f32.mrf.mxu0
  %v3728 = vadd.f32 0.0, %v3727
  %3729 = vmatmul.f32.gmra.mxu0 %v3518
  %v3730 = vpop.f32.mrf.mxu0
  %v3731 = vadd.f32 0.0, %v3730
  %3732 = vmatmul.f32.gmra.mxu0 %v3521
  %v3733 = vpop.f32.mrf.mxu0
  %v3734 = vadd.f32 0.0, %v3733
  %3735 = vmatmul.f32.gmra.mxu0 %v3524
  %v3736 = vpop.f32.mrf.mxu0
  %v3737 = vadd.f32 0.0, %v3736
  %3738 = vmatmul.f32.gmra.mxu0 %v3527
  %v3739 = vpop.f32.mrf.mxu0
  %v3740 = vadd.f32 0.0, %v3739
  %3741 = vmatmul.f32.gmra.mxu0 %v3530
  %v3742 = vpop.f32.mrf.mxu0
  %v3743 = vadd.f32 0.0, %v3742
  %3744 = vmatmul.f32.gmra.mxu0 %v3533
  %v3745 = vpop.f32.mrf.mxu0
  %v3746 = vadd.f32 0.0, %v3745
  %3747 = vmatmul.f32.gmra.mxu0 %v3536
  %v3748 = vpop.f32.mrf.mxu0
  %v3749 = vadd.f32 0.0, %v3748
  %3750 = vmatmul.f32.gmra.mxu0 %v3539
  %v3751 = vpop.f32.mrf.mxu0
  %v3752 = vadd.f32 0.0, %v3751
  %3753 = vmatmul.f32.gmra.mxu0 %v3542
  %v3754 = vpop.f32.mrf.mxu0
  %v3755 = vadd.f32 0.0, %v3754
  %3756 = vmatmul.f32.gmra.mxu0 %v3545
  %v3757 = vpop.f32.mrf.mxu0
  %v3758 = vadd.f32 0.0, %v3757
  %3759 = vmatmul.f32.gmra.mxu0 %v3548
  %v3760 = vpop.f32.mrf.mxu0
  %v3761 = vadd.f32 0.0, %v3760
  %3762 = vmatmul.f32.gmra.mxu0 %v3551
  %v3763 = vpop.f32.mrf.mxu0
  %v3764 = vadd.f32 0.0, %v3763
  %3765 = vmatmul.f32.gmra.mxu0 %v3554
  %v3766 = vpop.f32.mrf.mxu0
  %v3767 = vadd.f32 0.0, %v3766
  %3768 = vmatmul.f32.gmra.mxu0 %v3557
  %v3769 = vpop.f32.mrf.mxu0
  %v3770 = vadd.f32 0.0, %v3769
  %3771 = vmatmul.f32.gmra.mxu0 %v3560
  %v3772 = vpop.f32.mrf.mxu0
  %v3773 = vadd.f32 0.0, %v3772
  %3774 = vmatmul.f32.gmra.mxu0 %v3563
  %v3775 = vpop.f32.mrf.mxu0
  %v3776 = vadd.f32 0.0, %v3775
  %3777 = vmatmul.f32.gmra.mxu0 %v3566
  %v3778 = vpop.f32.mrf.mxu0
  %v3779 = vadd.f32 0.0, %v3778
  %3780 = vmatmul.f32.gmra.mxu0 %v3569
  %v3781 = vpop.f32.mrf.mxu0
  %v3782 = vadd.f32 0.0, %v3781
  %3783 = vmatmul.f32.gmra.mxu0 %v3572
  %v3784 = vpop.f32.mrf.mxu0
  %v3785 = vadd.f32 0.0, %v3784
  %3786 = vmatmul.f32.gmra.mxu0 %v3575
  %v3787 = vpop.f32.mrf.mxu0
  %v3788 = vadd.f32 0.0, %v3787
  %3789 = vmatmul.f32.gmra.mxu0 %v3578
  %v3790 = vpop.f32.mrf.mxu0
  %v3791 = vadd.f32 0.0, %v3790
  %3792 = vmatmul.f32.gmra.mxu0 %v3581
  %v3793 = vpop.f32.mrf.mxu0
  %v3794 = vadd.f32 0.0, %v3793
  %3795 = vmatmul.f32.gmra.mxu0 %v3584
  %v3796 = vpop.f32.mrf.mxu0
  %v3797 = vadd.f32 0.0, %v3796
  %3798 = vmatmul.f32.gmra.mxu0 %v3587
  %v3799 = vpop.f32.mrf.mxu0
  %v3800 = vadd.f32 0.0, %v3799
  %3801 = vmatmul.f32.gmra.mxu0 %v3590
  %v3802 = vpop.f32.mrf.mxu0
  %v3803 = vadd.f32 0.0, %v3802
  %3804 = vmatmul.f32.gmra.mxu0 %v3593
  %v3805 = vpop.f32.mrf.mxu0
  %v3806 = vadd.f32 0.0, %v3805
  %3807 = vmatmul.f32.gmra.mxu0 %v3596
  %v3808 = vpop.f32.mrf.mxu0
  %v3809 = vadd.f32 0.0, %v3808
  %3810 = vmatmul.f32.gmra.mxu0 %v3599
  %v3811 = vpop.f32.mrf.mxu0
  %v3812 = vadd.f32 0.0, %v3811
  %3813 = vmatmul.f32.gmra.mxu0 %v3602
  %v3814 = vpop.f32.mrf.mxu0
  %v3815 = vadd.f32 0.0, %v3814
  %3816 = vmatmul.f32.gmra.mxu0 %v3605
  %v3817 = vpop.f32.mrf.mxu0
  %v3818 = vadd.f32 0.0, %v3817
  %3819 = vdwg.mxu0
  %v3820 = vld [vmem:[%s3] sm:$0x1]
  %v3821 = vld [vmem:[%s4] sm:$0x1]
  %v3822 = vsel %vm26, %v3629, 0.0
  %v3823 = vsel %vm26, %v3632, 0.0
  %v3824 = vadd.f32 %v3822, %v3823
  %v3825 = vsel %vm26, %v3635, 0.0
  %v3826 = vadd.f32 %v3824, %v3825
  %v3827 = vsel %vm26, %v3638, 0.0
  %v3828 = vadd.f32 %v3826, %v3827
  %v3829 = vsel %vm26, %v3641, 0.0
  %v3830 = vadd.f32 %v3828, %v3829
  %v3831 = vsel %vm26, %v3644, 0.0
  %v3832 = vadd.f32 %v3830, %v3831
  %v3833 = vsel %vm26, %v3647, 0.0
  %v3834 = vadd.f32 %v3832, %v3833
  %v3835 = vsel %vm26, %v3650, 0.0
  %v3836 = vadd.f32 %v3834, %v3835
  %v3837 = vsel %vm26, %v3653, 0.0
  %v3838 = vadd.f32 %v3836, %v3837
  %v3839 = vsel %vm26, %v3656, 0.0
  %v3840 = vadd.f32 %v3838, %v3839
  %v3841 = vsel %vm26, %v3659, 0.0
  %v3842 = vadd.f32 %v3840, %v3841
  %v3843 = vsel %vm26, %v3662, 0.0
  %v3844 = vadd.f32 %v3842, %v3843
  %v3845 = vsel %vm26, %v3665, 0.0
  %v3846 = vadd.f32 %v3844, %v3845
  %v3847 = vsel %vm26, %v3668, 0.0
  %v3848 = vadd.f32 %v3846, %v3847
  %v3849 = vsel %vm26, %v3671, 0.0
  %v3850 = vadd.f32 %v3848, %v3849
  %v3851 = vsel %vm26, %v3674, 0.0
  %v3852 = vadd.f32 %v3850, %v3851
  %v3853 = vsel %vm26, %v3677, 0.0
  %v3854 = vadd.f32 %v3852, %v3853
  %v3855 = vsel %vm26, %v3680, 0.0
  %v3856 = vadd.f32 %v3854, %v3855
  %v3857 = vsel %vm26, %v3683, 0.0
  %v3858 = vadd.f32 %v3856, %v3857
  %v3859 = vsel %vm26, %v3686, 0.0
  %v3860 = vadd.f32 %v3858, %v3859
  %v3861 = vsel %vm26, %v3689, 0.0
  %v3862 = vadd.f32 %v3860, %v3861
  %v3863 = vsel %vm26, %v3692, 0.0
  %v3864 = vadd.f32 %v3862, %v3863
  %v3865 = vsel %vm26, %v3695, 0.0
  %v3866 = vadd.f32 %v3864, %v3865
  %v3867 = vsel %vm26, %v3698, 0.0
  %v3868 = vadd.f32 %v3866, %v3867
  %v3869 = vsel %vm26, %v3701, 0.0
  %v3870 = vadd.f32 %v3868, %v3869
  %v3871 = vsel %vm26, %v3704, 0.0
  %v3872 = vadd.f32 %v3870, %v3871
  %v3873 = vsel %vm26, %v3707, 0.0
  %v3874 = vadd.f32 %v3872, %v3873
  %v3875 = vsel %vm26, %v3710, 0.0
  %v3876 = vadd.f32 %v3874, %v3875
  %v3877 = vsel %vm26, %v3713, 0.0
  %v3878 = vadd.f32 %v3876, %v3877
  %v3879 = vsel %vm26, %v3716, 0.0
  %v3880 = vadd.f32 %v3878, %v3879
  %v3881 = vsel %vm26, %v3719, 0.0
  %v3882 = vadd.f32 %v3880, %v3881
  %v3883 = vsel %vm26, %v3722, 0.0
  %v3884 = vadd.f32 %v3882, %v3883
  %v3885 = vsel %vm26, %v3725, 0.0
  %v3886 = vadd.f32 %v3884, %v3885
  %v3887 = vsel %vm26, %v3728, 0.0
  %v3888 = vadd.f32 %v3886, %v3887
  %v3889 = vsel %vm26, %v3731, 0.0
  %v3890 = vadd.f32 %v3888, %v3889
  %v3891 = vsel %vm26, %v3734, 0.0
  %v3892 = vadd.f32 %v3890, %v3891
  %v3893 = vsel %vm26, %v3737, 0.0
  %v3894 = vadd.f32 %v3892, %v3893
  %v3895 = vsel %vm26, %v3740, 0.0
  %v3896 = vadd.f32 %v3894, %v3895
  %v3897 = vsel %vm26, %v3743, 0.0
  %v3898 = vadd.f32 %v3896, %v3897
  %v3899 = vsel %vm26, %v3746, 0.0
  %v3900 = vadd.f32 %v3898, %v3899
  %v3901 = vsel %vm26, %v3749, 0.0
  %v3902 = vadd.f32 %v3900, %v3901
  %v3903 = vsel %vm26, %v3752, 0.0
  %v3904 = vadd.f32 %v3902, %v3903
  %v3905 = vsel %vm26, %v3755, 0.0
  %v3906 = vadd.f32 %v3904, %v3905
  %v3907 = vsel %vm26, %v3758, 0.0
  %v3908 = vadd.f32 %v3906, %v3907
  %v3909 = vsel %vm26, %v3761, 0.0
  %v3910 = vadd.f32 %v3908, %v3909
  %v3911 = vsel %vm26, %v3764, 0.0
  %v3912 = vadd.f32 %v3910, %v3911
  %v3913 = vsel %vm26, %v3767, 0.0
  %v3914 = vadd.f32 %v3912, %v3913
  %v3915 = vsel %vm26, %v3770, 0.0
  %v3916 = vadd.f32 %v3914, %v3915
  %v3917 = vsel %vm26, %v3773, 0.0
  %v3918 = vadd.f32 %v3916, %v3917
  %v3919 = vsel %vm26, %v3776, 0.0
  %v3920 = vadd.f32 %v3918, %v3919
  %v3921 = vsel %vm26, %v3779, 0.0
  %v3922 = vadd.f32 %v3920, %v3921
  %v3923 = vsel %vm26, %v3782, 0.0
  %v3924 = vadd.f32 %v3922, %v3923
  %v3925 = vsel %vm26, %v3785, 0.0
  %v3926 = vadd.f32 %v3924, %v3925
  %v3927 = vsel %vm26, %v3788, 0.0
  %v3928 = vadd.f32 %v3926, %v3927
  %v3929 = vsel %vm26, %v3791, 0.0
  %v3930 = vadd.f32 %v3928, %v3929
  %v3931 = vsel %vm26, %v3794, 0.0
  %v3932 = vadd.f32 %v3930, %v3931
  %v3933 = vsel %vm26, %v3797, 0.0
  %v3934 = vadd.f32 %v3932, %v3933
  %v3935 = vsel %vm26, %v3800, 0.0
  %v3936 = vadd.f32 %v3934, %v3935
  %v3937 = vsel %vm26, %v3803, 0.0
  %v3938 = vadd.f32 %v3936, %v3937
  %v3939 = vsel %vm26, %v3806, 0.0
  %v3940 = vadd.f32 %v3938, %v3939
  %v3941 = vsel %vm26, %v3809, 0.0
  %v3942 = vadd.f32 %v3940, %v3941
  %v3943 = vsel %vm26, %v3812, 0.0
  %v3944 = vadd.f32 %v3942, %v3943
  %v3945 = vsel %vm26, %v3815, 0.0
  %v3946 = vadd.f32 %v3944, %v3945
  %v3947 = vsel %vm26, %v3818, 0.0
  %v3948 = vadd.f32 %v3946, %v3947
  %v3949 = vrot.slane %v3948, 4
  %v3950 = vadd.f32 %v3948, %v3949
  %v3951 = vrot.slane %v3950, 2
  %v3952 = vadd.f32 %v3950, %v3951
  %v3953 = vrot.slane %v3952, 1
  %v3954 = vadd.f32 %v3952, %v3953
  %v3955 = vmul.f32 %v3954, 0.001953125
  %v3956 = vmul.f32 %v3629, %v3629
  %v3957 = vmul.f32 %v3632, %v3632
  %v3958 = vmul.f32 %v3635, %v3635
  %v3959 = vmul.f32 %v3638, %v3638
  %v3960 = vmul.f32 %v3641, %v3641
  %v3961 = vmul.f32 %v3644, %v3644
  %v3962 = vmul.f32 %v3647, %v3647
  %v3963 = vmul.f32 %v3650, %v3650
  %v3964 = vmul.f32 %v3653, %v3653
  %v3965 = vmul.f32 %v3656, %v3656
  %v3966 = vmul.f32 %v3659, %v3659
  %v3967 = vmul.f32 %v3662, %v3662
  %v3968 = vmul.f32 %v3665, %v3665
  %v3969 = vmul.f32 %v3668, %v3668
  %v3970 = vmul.f32 %v3671, %v3671
  %v3971 = vmul.f32 %v3674, %v3674
  %v3972 = vmul.f32 %v3677, %v3677
  %v3973 = vmul.f32 %v3680, %v3680
  %v3974 = vmul.f32 %v3683, %v3683
  %v3975 = vmul.f32 %v3686, %v3686
  %v3976 = vmul.f32 %v3689, %v3689
  %v3977 = vmul.f32 %v3692, %v3692
  %v3978 = vmul.f32 %v3695, %v3695
  %v3979 = vmul.f32 %v3698, %v3698
  %v3980 = vmul.f32 %v3701, %v3701
  %v3981 = vmul.f32 %v3704, %v3704
  %v3982 = vmul.f32 %v3707, %v3707
  %v3983 = vmul.f32 %v3710, %v3710
  %v3984 = vmul.f32 %v3713, %v3713
  %v3985 = vmul.f32 %v3716, %v3716
  %v3986 = vmul.f32 %v3719, %v3719
  %v3987 = vmul.f32 %v3722, %v3722
  %v3988 = vmul.f32 %v3725, %v3725
  %v3989 = vmul.f32 %v3728, %v3728
  %v3990 = vmul.f32 %v3731, %v3731
  %v3991 = vmul.f32 %v3734, %v3734
  %v3992 = vmul.f32 %v3737, %v3737
  %v3993 = vmul.f32 %v3740, %v3740
  %v3994 = vmul.f32 %v3743, %v3743
  %v3995 = vmul.f32 %v3746, %v3746
  %v3996 = vmul.f32 %v3749, %v3749
  %v3997 = vmul.f32 %v3752, %v3752
  %v3998 = vmul.f32 %v3755, %v3755
  %v3999 = vmul.f32 %v3758, %v3758
  %v4000 = vmul.f32 %v3761, %v3761
  %v4001 = vmul.f32 %v3764, %v3764
  %v4002 = vmul.f32 %v3767, %v3767
  %v4003 = vmul.f32 %v3770, %v3770
  %v4004 = vmul.f32 %v3773, %v3773
  %v4005 = vmul.f32 %v3776, %v3776
  %v4006 = vmul.f32 %v3779, %v3779
  %v4007 = vmul.f32 %v3782, %v3782
  %v4008 = vmul.f32 %v3785, %v3785
  %v4009 = vmul.f32 %v3788, %v3788
  %v4010 = vmul.f32 %v3791, %v3791
  %v4011 = vmul.f32 %v3794, %v3794
  %v4012 = vmul.f32 %v3797, %v3797
  %v4013 = vmul.f32 %v3800, %v3800
  %v4014 = vmul.f32 %v3803, %v3803
  %v4015 = vmul.f32 %v3806, %v3806
  %v4016 = vmul.f32 %v3809, %v3809
  %v4017 = vmul.f32 %v3812, %v3812
  %v4018 = vmul.f32 %v3815, %v3815
  %v4019 = vmul.f32 %v3818, %v3818
  %v4020 = vsel %vm26, %v3956, 0.0
  %v4021 = vsel %vm26, %v3957, 0.0
  %v4022 = vadd.f32 %v4020, %v4021
  %v4023 = vsel %vm26, %v3958, 0.0
  %v4024 = vadd.f32 %v4022, %v4023
  %v4025 = vsel %vm26, %v3959, 0.0
  %v4026 = vadd.f32 %v4024, %v4025
  %v4027 = vsel %vm26, %v3960, 0.0
  %v4028 = vadd.f32 %v4026, %v4027
  %v4029 = vsel %vm26, %v3961, 0.0
  %v4030 = vadd.f32 %v4028, %v4029
  %v4031 = vsel %vm26, %v3962, 0.0
  %v4032 = vadd.f32 %v4030, %v4031
  %v4033 = vsel %vm26, %v3963, 0.0
  %v4034 = vadd.f32 %v4032, %v4033
  %v4035 = vsel %vm26, %v3964, 0.0
  %v4036 = vadd.f32 %v4034, %v4035
  %v4037 = vsel %vm26, %v3965, 0.0
  %v4038 = vadd.f32 %v4036, %v4037
  %v4039 = vsel %vm26, %v3966, 0.0
  %v4040 = vadd.f32 %v4038, %v4039
  %v4041 = vsel %vm26, %v3967, 0.0
  %v4042 = vadd.f32 %v4040, %v4041
  %v4043 = vsel %vm26, %v3968, 0.0
  %v4044 = vadd.f32 %v4042, %v4043
  %v4045 = vsel %vm26, %v3969, 0.0
  %v4046 = vadd.f32 %v4044, %v4045
  %v4047 = vsel %vm26, %v3970, 0.0
  %v4048 = vadd.f32 %v4046, %v4047
  %v4049 = vsel %vm26, %v3971, 0.0
  %v4050 = vadd.f32 %v4048, %v4049
  %v4051 = vsel %vm26, %v3972, 0.0
  %v4052 = vadd.f32 %v4050, %v4051
  %v4053 = vsel %vm26, %v3973, 0.0
  %v4054 = vadd.f32 %v4052, %v4053
  %v4055 = vsel %vm26, %v3974, 0.0
  %v4056 = vadd.f32 %v4054, %v4055
  %v4057 = vsel %vm26, %v3975, 0.0
  %v4058 = vadd.f32 %v4056, %v4057
  %v4059 = vsel %vm26, %v3976, 0.0
  %v4060 = vadd.f32 %v4058, %v4059
  %v4061 = vsel %vm26, %v3977, 0.0
  %v4062 = vadd.f32 %v4060, %v4061
  %v4063 = vsel %vm26, %v3978, 0.0
  %v4064 = vadd.f32 %v4062, %v4063
  %v4065 = vsel %vm26, %v3979, 0.0
  %v4066 = vadd.f32 %v4064, %v4065
  %v4067 = vsel %vm26, %v3980, 0.0
  %v4068 = vadd.f32 %v4066, %v4067
  %v4069 = vsel %vm26, %v3981, 0.0
  %v4070 = vadd.f32 %v4068, %v4069
  %v4071 = vsel %vm26, %v3982, 0.0
  %v4072 = vadd.f32 %v4070, %v4071
  %v4073 = vsel %vm26, %v3983, 0.0
  %v4074 = vadd.f32 %v4072, %v4073
  %v4075 = vsel %vm26, %v3984, 0.0
  %v4076 = vadd.f32 %v4074, %v4075
  %v4077 = vsel %vm26, %v3985, 0.0
  %v4078 = vadd.f32 %v4076, %v4077
  %v4079 = vsel %vm26, %v3986, 0.0
  %v4080 = vadd.f32 %v4078, %v4079
  %v4081 = vsel %vm26, %v3987, 0.0
  %v4082 = vadd.f32 %v4080, %v4081
  %v4083 = vsel %vm26, %v3988, 0.0
  %v4084 = vadd.f32 %v4082, %v4083
  %v4085 = vsel %vm26, %v3989, 0.0
  %v4086 = vadd.f32 %v4084, %v4085
  %v4087 = vsel %vm26, %v3990, 0.0
  %v4088 = vadd.f32 %v4086, %v4087
  %v4089 = vsel %vm26, %v3991, 0.0
  %v4090 = vadd.f32 %v4088, %v4089
  %v4091 = vsel %vm26, %v3992, 0.0
  %v4092 = vadd.f32 %v4090, %v4091
  %v4093 = vsel %vm26, %v3993, 0.0
  %v4094 = vadd.f32 %v4092, %v4093
  %v4095 = vsel %vm26, %v3994, 0.0
  %v4096 = vadd.f32 %v4094, %v4095
  %v4097 = vsel %vm26, %v3995, 0.0
  %v4098 = vadd.f32 %v4096, %v4097
  %v4099 = vsel %vm26, %v3996, 0.0
  %v4100 = vadd.f32 %v4098, %v4099
  %v4101 = vsel %vm26, %v3997, 0.0
  %v4102 = vadd.f32 %v4100, %v4101
  %v4103 = vsel %vm26, %v3998, 0.0
  %v4104 = vadd.f32 %v4102, %v4103
  %v4105 = vsel %vm26, %v3999, 0.0
  %v4106 = vadd.f32 %v4104, %v4105
  %v4107 = vsel %vm26, %v4000, 0.0
  %v4108 = vadd.f32 %v4106, %v4107
  %v4109 = vsel %vm26, %v4001, 0.0
  %v4110 = vadd.f32 %v4108, %v4109
  %v4111 = vsel %vm26, %v4002, 0.0
  %v4112 = vadd.f32 %v4110, %v4111
  %v4113 = vsel %vm26, %v4003, 0.0
  %v4114 = vadd.f32 %v4112, %v4113
  %v4115 = vsel %vm26, %v4004, 0.0
  %v4116 = vadd.f32 %v4114, %v4115
  %v4117 = vsel %vm26, %v4005, 0.0
  %v4118 = vadd.f32 %v4116, %v4117
  %v4119 = vsel %vm26, %v4006, 0.0
  %v4120 = vadd.f32 %v4118, %v4119
  %v4121 = vsel %vm26, %v4007, 0.0
  %v4122 = vadd.f32 %v4120, %v4121
  %v4123 = vsel %vm26, %v4008, 0.0
  %v4124 = vadd.f32 %v4122, %v4123
  %v4125 = vsel %vm26, %v4009, 0.0
  %v4126 = vadd.f32 %v4124, %v4125
  %v4127 = vsel %vm26, %v4010, 0.0
  %v4128 = vadd.f32 %v4126, %v4127
  %v4129 = vsel %vm26, %v4011, 0.0
  %v4130 = vadd.f32 %v4128, %v4129
  %v4131 = vsel %vm26, %v4012, 0.0
  %v4132 = vadd.f32 %v4130, %v4131
  %v4133 = vsel %vm26, %v4013, 0.0
  %v4134 = vadd.f32 %v4132, %v4133
  %v4135 = vsel %vm26, %v4014, 0.0
  %v4136 = vadd.f32 %v4134, %v4135
  %v4137 = vsel %vm26, %v4015, 0.0
  %v4138 = vadd.f32 %v4136, %v4137
  %v4139 = vsel %vm26, %v4016, 0.0
  %v4140 = vadd.f32 %v4138, %v4139
  %v4141 = vsel %vm26, %v4017, 0.0
  %v4142 = vadd.f32 %v4140, %v4141
  %v4143 = vsel %vm26, %v4018, 0.0
  %v4144 = vadd.f32 %v4142, %v4143
  %v4145 = vsel %vm26, %v4019, 0.0
  %v4146 = vadd.f32 %v4144, %v4145
  %v4147 = vrot.slane %v4146, 4
  %v4148 = vadd.f32 %v4146, %v4147
  %v4149 = vrot.slane %v4148, 2
  %v4150 = vadd.f32 %v4148, %v4149
  %v4151 = vrot.slane %v4150, 1
  %v4152 = vadd.f32 %v4150, %v4151
  %v4153 = vmul.f32 %v4152, 0.001953125
  %v4154 = vmul.f32 %v3955, %v3955
  %v4155 = vsub.f32 %v4153, %v4154
  %v4156 = vmax.f32 %v4155, 0.0
  %v4157 = vsub.f32 %v3629, %v3955
  %v4158 = vsub.f32 %v3632, %v3955
  %v4159 = vsub.f32 %v3635, %v3955
  %v4160 = vsub.f32 %v3638, %v3955
  %v4161 = vsub.f32 %v3641, %v3955
  %v4162 = vsub.f32 %v3644, %v3955
  %v4163 = vsub.f32 %v3647, %v3955
  %v4164 = vsub.f32 %v3650, %v3955
  %v4165 = vsub.f32 %v3653, %v3955
  %v4166 = vsub.f32 %v3656, %v3955
  %v4167 = vsub.f32 %v3659, %v3955
  %v4168 = vsub.f32 %v3662, %v3955
  %v4169 = vsub.f32 %v3665, %v3955
  %v4170 = vsub.f32 %v3668, %v3955
  %v4171 = vsub.f32 %v3671, %v3955
  %v4172 = vsub.f32 %v3674, %v3955
  %v4173 = vsub.f32 %v3677, %v3955
  %v4174 = vsub.f32 %v3680, %v3955
  %v4175 = vsub.f32 %v3683, %v3955
  %v4176 = vsub.f32 %v3686, %v3955
  %v4177 = vsub.f32 %v3689, %v3955
  %v4178 = vsub.f32 %v3692, %v3955
  %v4179 = vsub.f32 %v3695, %v3955
  %v4180 = vsub.f32 %v3698, %v3955
  %v4181 = vsub.f32 %v3701, %v3955
  %v4182 = vsub.f32 %v3704, %v3955
  %v4183 = vsub.f32 %v3707, %v3955
  %v4184 = vsub.f32 %v3710, %v3955
  %v4185 = vsub.f32 %v3713, %v3955
  %v4186 = vsub.f32 %v3716, %v3955
  %v4187 = vsub.f32 %v3719, %v3955
  %v4188 = vsub.f32 %v3722, %v3955
  %v4189 = vsub.f32 %v3725, %v3955
  %v4190 = vsub.f32 %v3728, %v3955
  %v4191 = vsub.f32 %v3731, %v3955
  %v4192 = vsub.f32 %v3734, %v3955
  %v4193 = vsub.f32 %v3737, %v3955
  %v4194 = vsub.f32 %v3740, %v3955
  %v4195 = vsub.f32 %v3743, %v3955
  %v4196 = vsub.f32 %v3746, %v3955
  %v4197 = vsub.f32 %v3749, %v3955
  %v4198 = vsub.f32 %v3752, %v3955
  %v4199 = vsub.f32 %v3755, %v3955
  %v4200 = vsub.f32 %v3758, %v3955
  %v4201 = vsub.f32 %v3761, %v3955
  %v4202 = vsub.f32 %v3764, %v3955
  %v4203 = vsub.f32 %v3767, %v3955
  %v4204 = vsub.f32 %v3770, %v3955
  %v4205 = vsub.f32 %v3773, %v3955
  %v4206 = vsub.f32 %v3776, %v3955
  %v4207 = vsub.f32 %v3779, %v3955
  %v4208 = vsub.f32 %v3782, %v3955
  %v4209 = vsub.f32 %v3785, %v3955
  %v4210 = vsub.f32 %v3788, %v3955
  %v4211 = vsub.f32 %v3791, %v3955
  %v4212 = vsub.f32 %v3794, %v3955
  %v4213 = vsub.f32 %v3797, %v3955
  %v4214 = vsub.f32 %v3800, %v3955
  %v4215 = vsub.f32 %v3803, %v3955
  %v4216 = vsub.f32 %v3806, %v3955
  %v4217 = vsub.f32 %v3809, %v3955
  %v4218 = vsub.f32 %v3812, %v3955
  %v4219 = vsub.f32 %v3815, %v3955
  %v4220 = vsub.f32 %v3818, %v3955
  %v4221 = vadd.f32 %v4156, 1e-05
  %v4222 = vrsqrt.pop %v4221
  %v4223 = vmul.f32 %v4222, %v4221
  %v4224 = vmul.f32 %v4223, %v4222
  %v4225 = vmul.f32 0.5, %v4224
  %v4226 = vsub.f32 1.5, %v4225
  %v4227 = vmul.f32 %v4222, %v4226
  %vm4228 = vweird.f32 %v4221
  %vm4229 = vweird.f32 %v4222
  %vm4230 = vmor %vm4228, %vm4229
  %v4231 = vsel %vm4230, %v4222, %v4227
  %v4232 = vmul.f32 %v4157, %v4231
  %v4233 = vmul.f32 %v4158, %v4231
  %v4234 = vmul.f32 %v4159, %v4231
  %v4235 = vmul.f32 %v4160, %v4231
  %v4236 = vmul.f32 %v4161, %v4231
  %v4237 = vmul.f32 %v4162, %v4231
  %v4238 = vmul.f32 %v4163, %v4231
  %v4239 = vmul.f32 %v4164, %v4231
  %v4240 = vmul.f32 %v4165, %v4231
  %v4241 = vmul.f32 %v4166, %v4231
  %v4242 = vmul.f32 %v4167, %v4231
  %v4243 = vmul.f32 %v4168, %v4231
  %v4244 = vmul.f32 %v4169, %v4231
  %v4245 = vmul.f32 %v4170, %v4231
  %v4246 = vmul.f32 %v4171, %v4231
  %v4247 = vmul.f32 %v4172, %v4231
  %v4248 = vmul.f32 %v4173, %v4231
  %v4249 = vmul.f32 %v4174, %v4231
  %v4250 = vmul.f32 %v4175, %v4231
  %v4251 = vmul.f32 %v4176, %v4231
  %v4252 = vmul.f32 %v4177, %v4231
  %v4253 = vmul.f32 %v4178, %v4231
  %v4254 = vmul.f32 %v4179, %v4231
  %v4255 = vmul.f32 %v4180, %v4231
  %v4256 = vmul.f32 %v4181, %v4231
  %v4257 = vmul.f32 %v4182, %v4231
  %v4258 = vmul.f32 %v4183, %v4231
  %v4259 = vmul.f32 %v4184, %v4231
  %v4260 = vmul.f32 %v4185, %v4231
  %v4261 = vmul.f32 %v4186, %v4231
  %v4262 = vmul.f32 %v4187, %v4231
  %v4263 = vmul.f32 %v4188, %v4231
  %v4264 = vmul.f32 %v4189, %v4231
  %v4265 = vmul.f32 %v4190, %v4231
  %v4266 = vmul.f32 %v4191, %v4231
  %v4267 = vmul.f32 %v4192, %v4231
  %v4268 = vmul.f32 %v4193, %v4231
  %v4269 = vmul.f32 %v4194, %v4231
  %v4270 = vmul.f32 %v4195, %v4231
  %v4271 = vmul.f32 %v4196, %v4231
  %v4272 = vmul.f32 %v4197, %v4231
  %v4273 = vmul.f32 %v4198, %v4231
  %v4274 = vmul.f32 %v4199, %v4231
  %v4275 = vmul.f32 %v4200, %v4231
  %v4276 = vmul.f32 %v4201, %v4231
  %v4277 = vmul.f32 %v4202, %v4231
  %v4278 = vmul.f32 %v4203, %v4231
  %v4279 = vmul.f32 %v4204, %v4231
  %v4280 = vmul.f32 %v4205, %v4231
  %v4281 = vmul.f32 %v4206, %v4231
  %v4282 = vmul.f32 %v4207, %v4231
  %v4283 = vmul.f32 %v4208, %v4231
  %v4284 = vmul.f32 %v4209, %v4231
  %v4285 = vmul.f32 %v4210, %v4231
  %v4286 = vmul.f32 %v4211, %v4231
  %v4287 = vmul.f32 %v4212, %v4231
  %v4288 = vmul.f32 %v4213, %v4231
  %v4289 = vmul.f32 %v4214, %v4231
  %v4290 = vmul.f32 %v4215, %v4231
  %v4291 = vmul.f32 %v4216, %v4231
  %v4292 = vmul.f32 %v4217, %v4231
  %v4293 = vmul.f32 %v4218, %v4231
  %v4294 = vmul.f32 %v4219, %v4231
  %v4295 = vmul.f32 %v4220, %v4231
  %v4297 = vperm.slane %v3820, 0
  %v4299 = vmul.f32 %v4232, %v4297
  %v4300 = vmul.f32 %v4233, %v4297
  %v4301 = vmul.f32 %v4234, %v4297
  %v4302 = vmul.f32 %v4235, %v4297
  %v4303 = vmul.f32 %v4236, %v4297
  %v4304 = vmul.f32 %v4237, %v4297
  %v4305 = vmul.f32 %v4238, %v4297
  %v4306 = vmul.f32 %v4239, %v4297
  %v4307 = vmul.f32 %v4240, %v4297
  %v4308 = vmul.f32 %v4241, %v4297
  %v4309 = vmul.f32 %v4242, %v4297
  %v4310 = vmul.f32 %v4243, %v4297
  %v4311 = vmul.f32 %v4244, %v4297
  %v4312 = vmul.f32 %v4245, %v4297
  %v4313 = vmul.f32 %v4246, %v4297
  %v4314 = vmul.f32 %v4247, %v4297
  %v4315 = vmul.f32 %v4248, %v4297
  %v4316 = vmul.f32 %v4249, %v4297
  %v4317 = vmul.f32 %v4250, %v4297
  %v4318 = vmul.f32 %v4251, %v4297
  %v4319 = vmul.f32 %v4252, %v4297
  %v4320 = vmul.f32 %v4253, %v4297
  %v4321 = vmul.f32 %v4254, %v4297
  %v4322 = vmul.f32 %v4255, %v4297
  %v4323 = vmul.f32 %v4256, %v4297
  %v4324 = vmul.f32 %v4257, %v4297
  %v4325 = vmul.f32 %v4258, %v4297
  %v4326 = vmul.f32 %v4259, %v4297
  %v4327 = vmul.f32 %v4260, %v4297
  %v4328 = vmul.f32 %v4261, %v4297
  %v4329 = vmul.f32 %v4262, %v4297
  %v4330 = vmul.f32 %v4263, %v4297
  %v4331 = vmul.f32 %v4264, %v4297
  %v4332 = vmul.f32 %v4265, %v4297
  %v4333 = vmul.f32 %v4266, %v4297
  %v4334 = vmul.f32 %v4267, %v4297
  %v4335 = vmul.f32 %v4268, %v4297
  %v4336 = vmul.f32 %v4269, %v4297
  %v4337 = vmul.f32 %v4270, %v4297
  %v4338 = vmul.f32 %v4271, %v4297
  %v4339 = vmul.f32 %v4272, %v4297
  %v4340 = vmul.f32 %v4273, %v4297
  %v4341 = vmul.f32 %v4274, %v4297
  %v4342 = vmul.f32 %v4275, %v4297
  %v4343 = vmul.f32 %v4276, %v4297
  %v4344 = vmul.f32 %v4277, %v4297
  %v4345 = vmul.f32 %v4278, %v4297
  %v4346 = vmul.f32 %v4279, %v4297
  %v4347 = vmul.f32 %v4280, %v4297
  %v4348 = vmul.f32 %v4281, %v4297
  %v4349 = vmul.f32 %v4282, %v4297
  %v4350 = vmul.f32 %v4283, %v4297
  %v4351 = vmul.f32 %v4284, %v4297
  %v4352 = vmul.f32 %v4285, %v4297
  %v4353 = vmul.f32 %v4286, %v4297
  %v4354 = vmul.f32 %v4287, %v4297
  %v4355 = vmul.f32 %v4288, %v4297
  %v4356 = vmul.f32 %v4289, %v4297
  %v4357 = vmul.f32 %v4290, %v4297
  %v4358 = vmul.f32 %v4291, %v4297
  %v4359 = vmul.f32 %v4292, %v4297
  %v4360 = vmul.f32 %v4293, %v4297
  %v4361 = vmul.f32 %v4294, %v4297
  %v4362 = vmul.f32 %v4295, %v4297
  %v4364 = vperm.slane %v3821, 0
  %v4366 = vadd.f32 %v4299, %v4364
  %v4367 = vadd.f32 %v4300, %v4364
  %v4368 = vadd.f32 %v4301, %v4364
  %v4369 = vadd.f32 %v4302, %v4364
  %v4370 = vadd.f32 %v4303, %v4364
  %v4371 = vadd.f32 %v4304, %v4364
  %v4372 = vadd.f32 %v4305, %v4364
  %v4373 = vadd.f32 %v4306, %v4364
  %v4374 = vadd.f32 %v4307, %v4364
  %v4375 = vadd.f32 %v4308, %v4364
  %v4376 = vadd.f32 %v4309, %v4364
  %v4377 = vadd.f32 %v4310, %v4364
  %v4378 = vadd.f32 %v4311, %v4364
  %v4379 = vadd.f32 %v4312, %v4364
  %v4380 = vadd.f32 %v4313, %v4364
  %v4381 = vadd.f32 %v4314, %v4364
  %v4382 = vadd.f32 %v4315, %v4364
  %v4383 = vadd.f32 %v4316, %v4364
  %v4384 = vadd.f32 %v4317, %v4364
  %v4385 = vadd.f32 %v4318, %v4364
  %v4386 = vadd.f32 %v4319, %v4364
  %v4387 = vadd.f32 %v4320, %v4364
  %v4388 = vadd.f32 %v4321, %v4364
  %v4389 = vadd.f32 %v4322, %v4364
  %v4390 = vadd.f32 %v4323, %v4364
  %v4391 = vadd.f32 %v4324, %v4364
  %v4392 = vadd.f32 %v4325, %v4364
  %v4393 = vadd.f32 %v4326, %v4364
  %v4394 = vadd.f32 %v4327, %v4364
  %v4395 = vadd.f32 %v4328, %v4364
  %v4396 = vadd.f32 %v4329, %v4364
  %v4397 = vadd.f32 %v4330, %v4364
  %v4398 = vadd.f32 %v4331, %v4364
  %v4399 = vadd.f32 %v4332, %v4364
  %v4400 = vadd.f32 %v4333, %v4364
  %v4401 = vadd.f32 %v4334, %v4364
  %v4402 = vadd.f32 %v4335, %v4364
  %v4403 = vadd.f32 %v4336, %v4364
  %v4404 = vadd.f32 %v4337, %v4364
  %v4405 = vadd.f32 %v4338, %v4364
  %v4406 = vadd.f32 %v4339, %v4364
  %v4407 = vadd.f32 %v4340, %v4364
  %v4408 = vadd.f32 %v4341, %v4364
  %v4409 = vadd.f32 %v4342, %v4364
  %v4410 = vadd.f32 %v4343, %v4364
  %v4411 = vadd.f32 %v4344, %v4364
  %v4412 = vadd.f32 %v4345, %v4364
  %v4413 = vadd.f32 %v4346, %v4364
  %v4414 = vadd.f32 %v4347, %v4364
  %v4415 = vadd.f32 %v4348, %v4364
  %v4416 = vadd.f32 %v4349, %v4364
  %v4417 = vadd.f32 %v4350, %v4364
  %v4418 = vadd.f32 %v4351, %v4364
  %v4419 = vadd.f32 %v4352, %v4364
  %v4420 = vadd.f32 %v4353, %v4364
  %v4421 = vadd.f32 %v4354, %v4364
  %v4422 = vadd.f32 %v4355, %v4364
  %v4423 = vadd.f32 %v4356, %v4364
  %v4424 = vadd.f32 %v4357, %v4364
  %v4425 = vadd.f32 %v4358, %v4364
  %v4426 = vadd.f32 %v4359, %v4364
  %v4427 = vadd.f32 %v4360, %v4364
  %v4428 = vadd.f32 %v4361, %v4364
  %v4429 = vadd.f32 %v4362, %v4364
  %v4430 = vmax.f32 %v4366, 0.0
  %v4431 = vmax.f32 %v4367, 0.0
  %v4432 = vmax.f32 %v4368, 0.0
  %v4433 = vmax.f32 %v4369, 0.0
  %v4434 = vmax.f32 %v4370, 0.0
  %v4435 = vmax.f32 %v4371, 0.0
  %v4436 = vmax.f32 %v4372, 0.0
  %v4437 = vmax.f32 %v4373, 0.0
  %v4438 = vmax.f32 %v4374, 0.0
  %v4439 = vmax.f32 %v4375, 0.0
  %v4440 = vmax.f32 %v4376, 0.0
  %v4441 = vmax.f32 %v4377, 0.0
  %v4442 = vmax.f32 %v4378, 0.0
  %v4443 = vmax.f32 %v4379, 0.0
  %v4444 = vmax.f32 %v4380, 0.0
  %v4445 = vmax.f32 %v4381, 0.0
  %v4446 = vmax.f32 %v4382, 0.0
  %v4447 = vmax.f32 %v4383, 0.0
  %v4448 = vmax.f32 %v4384, 0.0
  %v4449 = vmax.f32 %v4385, 0.0
  %v4450 = vmax.f32 %v4386, 0.0
  %v4451 = vmax.f32 %v4387, 0.0
  %v4452 = vmax.f32 %v4388, 0.0
  %v4453 = vmax.f32 %v4389, 0.0
  %v4454 = vmax.f32 %v4390, 0.0
  %v4455 = vmax.f32 %v4391, 0.0
  %v4456 = vmax.f32 %v4392, 0.0
  %v4457 = vmax.f32 %v4393, 0.0
  %v4458 = vmax.f32 %v4394, 0.0
  %v4459 = vmax.f32 %v4395, 0.0
  %v4460 = vmax.f32 %v4396, 0.0
  %v4461 = vmax.f32 %v4397, 0.0
  %v4462 = vmax.f32 %v4398, 0.0
  %v4463 = vmax.f32 %v4399, 0.0
  %v4464 = vmax.f32 %v4400, 0.0
  %v4465 = vmax.f32 %v4401, 0.0
  %v4466 = vmax.f32 %v4402, 0.0
  %v4467 = vmax.f32 %v4403, 0.0
  %v4468 = vmax.f32 %v4404, 0.0
  %v4469 = vmax.f32 %v4405, 0.0
  %v4470 = vmax.f32 %v4406, 0.0
  %v4471 = vmax.f32 %v4407, 0.0
  %v4472 = vmax.f32 %v4408, 0.0
  %v4473 = vmax.f32 %v4409, 0.0
  %v4474 = vmax.f32 %v4410, 0.0
  %v4475 = vmax.f32 %v4411, 0.0
  %v4476 = vmax.f32 %v4412, 0.0
  %v4477 = vmax.f32 %v4413, 0.0
  %v4478 = vmax.f32 %v4414, 0.0
  %v4479 = vmax.f32 %v4415, 0.0
  %v4480 = vmax.f32 %v4416, 0.0
  %v4481 = vmax.f32 %v4417, 0.0
  %v4482 = vmax.f32 %v4418, 0.0
  %v4483 = vmax.f32 %v4419, 0.0
  %v4484 = vmax.f32 %v4420, 0.0
  %v4485 = vmax.f32 %v4421, 0.0
  %v4486 = vmax.f32 %v4422, 0.0
  %v4487 = vmax.f32 %v4423, 0.0
  %v4488 = vmax.f32 %v4424, 0.0
  %v4489 = vmax.f32 %v4425, 0.0
  %v4490 = vmax.f32 %v4426, 0.0
  %v4491 = vmax.f32 %v4427, 0.0
  %v4492 = vmax.f32 %v4428, 0.0
  %v4493 = vmax.f32 %v4429, 0.0
  %4494 = vst.msk [vmem:[#allocation3] sm:$0xff] %vm26, 0.0
  %4495 = vst.msk [vmem:[#allocation3 + $0x8] sm:$0xff] %vm26, 0.0
  %4496 = vst.msk [vmem:[#allocation3 + $0x10] sm:$0x3] %vm29, 0.0
  %4497 = vst.msk [vmem:[#allocation3 + $0x18] sm:$0xff] %vm26, 0.0
  %4498 = vst.msk [vmem:[#allocation3 + $0x20] sm:$0xff] %vm26, 0.0
  %4499 = vst.msk [vmem:[#allocation3 + $0x28] sm:$0x3] %vm29, 0.0
  %4500 = vst.msk [vmem:[#allocation3 + $0x30] sm:$0xff] %vm26, 0.0
  %4501 = vst.msk [vmem:[#allocation3 + $0x38] sm:$0xff] %vm26, 0.0
  %4502 = vst.msk [vmem:[#allocation3 + $0x40] sm:$0x3] %vm29, 0.0
  %4503 = vst.msk [vmem:[#allocation3 + $0x48] sm:$0xff] %vm26, 0.0
  %4504 = vst.msk [vmem:[#allocation3 + $0x50] sm:$0xff] %vm26, 0.0
  %4505 = vst.msk [vmem:[#allocation3 + $0x58] sm:$0x3] %vm29, 0.0
  %4506 = vst.msk [vmem:[#allocation3 + $0x60] sm:$0xff] %vm26, 0.0
  %4507 = vst.msk [vmem:[#allocation3 + $0x68] sm:$0xff] %vm26, 0.0
  %4508 = vst.msk [vmem:[#allocation3 + $0x70] sm:$0x3] %vm29, 0.0
  %4509 = vst.msk [vmem:[#allocation3 + $0x78] sm:$0xff] %vm26, 0.0
  %4510 = vst.msk [vmem:[#allocation3 + $0x80] sm:$0xff] %vm26, 0.0
  %4511 = vst.msk [vmem:[#allocation3 + $0x88] sm:$0x3] %vm29, 0.0
  %4512 = vst.msk [vmem:[#allocation3 + $0x90] sm:$0xff] %vm26, 0.0
  %4513 = vst.msk [vmem:[#allocation3 + $0x98] sm:$0xff] %vm26, 0.0
  %4514 = vst.msk [vmem:[#allocation3 + $0xa0] sm:$0x3] %vm29, 0.0
  %4515 = vst.msk [vmem:[#allocation3 + $0xa8] sm:$0xff] %vm26, 0.0
  %4516 = vst.msk [vmem:[#allocation3 + $0xb0] sm:$0xff] %vm26, 0.0
  %4517 = vst.msk [vmem:[#allocation3 + $0xb8] sm:$0x3] %vm29, 0.0
  %4518 = vst.msk [vmem:[#allocation3 + $0xc0] sm:$0xff] %vm26, 0.0
  %4519 = vst.msk [vmem:[#allocation3 + $0xc8] sm:$0xff] %vm26, 0.0
  %4520 = vst.msk [vmem:[#allocation3 + $0xd0] sm:$0x3] %vm29, 0.0
  %4521 = vst.msk [vmem:[#allocation3 + $0xd8] sm:$0xff] %vm26, 0.0
  %4522 = vst.msk [vmem:[#allocation3 + $0xe0] sm:$0xff] %vm26, 0.0
  %4523 = vst.msk [vmem:[#allocation3 + $0xe8] sm:$0x3] %vm29, 0.0
  %4524 = vst.msk [vmem:[#allocation3 + $0xf0] sm:$0xff] %vm26, 0.0
  %4525 = vst.msk [vmem:[#allocation3 + $0xf8] sm:$0xff] %vm26, 0.0
  %4526 = vst.msk [vmem:[#allocation3 + $0x100] sm:$0x3] %vm29, 0.0
  %4527 = vst.msk [vmem:[#allocation3 + $0x108] sm:$0xff] %vm26, 0.0
  %4528 = vst.msk [vmem:[#allocation3 + $0x110] sm:$0xff] %vm26, 0.0
  %4529 = vst.msk [vmem:[#allocation3 + $0x118] sm:$0x3] %vm29, 0.0
  %4530 = vst.msk [vmem:[#allocation3 + $0x120] sm:$0xff] %vm26, 0.0
  %4531 = vst.msk [vmem:[#allocation3 + $0x128] sm:$0xff] %vm26, 0.0
  %4532 = vst.msk [vmem:[#allocation3 + $0x130] sm:$0x3] %vm29, 0.0
  %4533 = vst.msk [vmem:[#allocation3 + $0x138] sm:$0xff] %vm26, 0.0
  %4534 = vst.msk [vmem:[#allocation3 + $0x140] sm:$0xff] %vm26, 0.0
  %4535 = vst.msk [vmem:[#allocation3 + $0x148] sm:$0x3] %vm29, 0.0
  %4536 = vst.msk [vmem:[#allocation3 + $0x150] sm:$0xff] %vm26, 0.0
  %4537 = vst.msk [vmem:[#allocation3 + $0x158] sm:$0xff] %vm26, 0.0
  %4538 = vst.msk [vmem:[#allocation3 + $0x160] sm:$0x3] %vm29, 0.0
  %4539 = vst.msk [vmem:[#allocation3 + $0x168] sm:$0xff] %vm26, 0.0
  %4540 = vst.msk [vmem:[#allocation3 + $0x170] sm:$0xff] %vm26, 0.0
  %4541 = vst.msk [vmem:[#allocation3 + $0x178] sm:$0x3] %vm29, 0.0
  %4542 = vst.msk [vmem:[#allocation3 + $0x180] sm:$0xff] %vm26, 0.0
  %4543 = vst.msk [vmem:[#allocation3 + $0x188] sm:$0xff] %vm26, 0.0
  %4544 = vst.msk [vmem:[#allocation3 + $0x190] sm:$0x3] %vm29, 0.0
  %4545 = vst.msk [vmem:[#allocation3 + $0x198] sm:$0xff] %vm26, 0.0
  %4546 = vst.msk [vmem:[#allocation3 + $0x1a0] sm:$0xff] %vm26, 0.0
  %4547 = vst.msk [vmem:[#allocation3 + $0x1a8] sm:$0x3] %vm29, 0.0
  %4548 = vst.msk [vmem:[#allocation3 + $0x1b0] sm:$0xff] %vm26, 0.0
  %4549 = vst.msk [vmem:[#allocation3 + $0x1b8] sm:$0xff] %vm26, 0.0
  %4550 = vst.msk [vmem:[#allocation3 + $0x1c0] sm:$0x3] %vm29, 0.0
  %4551 = vst.msk [vmem:[#allocation3 + $0x1c8] sm:$0xff] %vm26, 0.0
  %4552 = vst.msk [vmem:[#allocation3 + $0x1d0] sm:$0xff] %vm26, 0.0
  %4553 = vst.msk [vmem:[#allocation3 + $0x1d8] sm:$0x3] %vm29, 0.0
  %4554 = vst.msk [vmem:[#allocation3 + $0x1e0] sm:$0xff] %vm26, 0.0
  %4555 = vst.msk [vmem:[#allocation3 + $0x1e8] sm:$0xff] %vm26, 0.0
  %4556 = vst.msk [vmem:[#allocation3 + $0x1f0] sm:$0x3] %vm29, 0.0
  %4557 = vst.msk [vmem:[#allocation3 + $0x1f8] sm:$0xff] %vm26, 0.0
  %4558 = vst.msk [vmem:[#allocation3 + $0x200] sm:$0xff] %vm26, 0.0
  %4559 = vst.msk [vmem:[#allocation3 + $0x208] sm:$0x3] %vm29, 0.0
  %4560 = vst.msk [vmem:[#allocation3 + $0x210] sm:$0xff] %vm26, 0.0
  %4561 = vst.msk [vmem:[#allocation3 + $0x218] sm:$0xff] %vm26, 0.0
  %4562 = vst.msk [vmem:[#allocation3 + $0x220] sm:$0x3] %vm29, 0.0
  %4563 = vst.msk [vmem:[#allocation3 + $0x228] sm:$0xff] %vm26, 0.0
  %4564 = vst.msk [vmem:[#allocation3 + $0x230] sm:$0xff] %vm26, 0.0
  %4565 = vst.msk [vmem:[#allocation3 + $0x238] sm:$0x3] %vm29, 0.0
  %4566 = vst.msk [vmem:[#allocation3 + $0x240] sm:$0xff] %vm26, 0.0
  %4567 = vst.msk [vmem:[#allocation3 + $0x248] sm:$0xff] %vm26, 0.0
  %4568 = vst.msk [vmem:[#allocation3 + $0x250] sm:$0x3] %vm29, 0.0
  %4569 = vst.msk [vmem:[#allocation3 + $0x258] sm:$0xff] %vm26, 0.0
  %4570 = vst.msk [vmem:[#allocation3 + $0x260] sm:$0xff] %vm26, 0.0
  %4571 = vst.msk [vmem:[#allocation3 + $0x268] sm:$0x3] %vm29, 0.0
  %4572 = vst.msk [vmem:[#allocation3 + $0x270] sm:$0xff] %vm26, 0.0
  %4573 = vst.msk [vmem:[#allocation3 + $0x278] sm:$0xff] %vm26, 0.0
  %4574 = vst.msk [vmem:[#allocation3 + $0x280] sm:$0x3] %vm29, 0.0
  %4575 = vst.msk [vmem:[#allocation3 + $0x288] sm:$0xff] %vm26, 0.0
  %4576 = vst.msk [vmem:[#allocation3 + $0x290] sm:$0xff] %vm26, 0.0
  %4577 = vst.msk [vmem:[#allocation3 + $0x298] sm:$0x3] %vm29, 0.0
  %4578 = vst.msk [vmem:[#allocation3 + $0x2a0] sm:$0xff] %vm26, 0.0
  %4579 = vst.msk [vmem:[#allocation3 + $0x2a8] sm:$0xff] %vm26, 0.0
  %4580 = vst.msk [vmem:[#allocation3 + $0x2b0] sm:$0x3] %vm29, 0.0
  %4581 = vst.msk [vmem:[#allocation3 + $0x2b8] sm:$0xff] %vm26, 0.0
  %4582 = vst.msk [vmem:[#allocation3 + $0x2c0] sm:$0xff] %vm26, 0.0
  %4583 = vst.msk [vmem:[#allocation3 + $0x2c8] sm:$0x3] %vm29, 0.0
  %4584 = vst.msk [vmem:[#allocation3 + $0x2d0] sm:$0xff] %vm26, 0.0
  %4585 = vst.msk [vmem:[#allocation3 + $0x2d8] sm:$0xff] %vm26, 0.0
  %4586 = vst.msk [vmem:[#allocation3 + $0x2e0] sm:$0x3] %vm29, 0.0
  %4587 = vst.msk [vmem:[#allocation3 + $0x2e8] sm:$0xff] %vm26, 0.0
  %4588 = vst.msk [vmem:[#allocation3 + $0x2f0] sm:$0xff] %vm26, 0.0
  %4589 = vst.msk [vmem:[#allocation3 + $0x2f8] sm:$0x3] %vm29, 0.0
  %4590 = vst.msk [vmem:[#allocation3 + $0x300] sm:$0xff] %vm26, 0.0
  %4591 = vst.msk [vmem:[#allocation3 + $0x308] sm:$0xff] %vm26, 0.0
  %4592 = vst.msk [vmem:[#allocation3 + $0x310] sm:$0x3] %vm29, 0.0
  %4593 = vst.msk [vmem:[#allocation3 + $0x318] sm:$0xff] %vm26, 0.0
  %4594 = vst.msk [vmem:[#allocation3 + $0x320] sm:$0xff] %vm26, 0.0
  %4595 = vst.msk [vmem:[#allocation3 + $0x328] sm:$0x3] %vm29, 0.0
  %4596 = vst.msk [vmem:[#allocation3 + $0x330] sm:$0xff] %vm26, 0.0
  %4597 = vst.msk [vmem:[#allocation3 + $0x338] sm:$0xff] %vm26, 0.0
  %4598 = vst.msk [vmem:[#allocation3 + $0x340] sm:$0x3] %vm29, 0.0
  %4599 = vst.msk [vmem:[#allocation3 + $0x348] sm:$0xff] %vm26, 0.0
  %4600 = vst.msk [vmem:[#allocation3 + $0x350] sm:$0xff] %vm26, 0.0
  %4601 = vst.msk [vmem:[#allocation3 + $0x358] sm:$0x3] %vm29, 0.0
  %s4602 = scalar_lea.vmem [#allocation3], 24
  %4603 = vst.msk [vmem:[%s4602 + $0x1] sm:$0xff] %vm26, %v4430
  %4604 = vst.msk [vmem:[%s4602 + $0x9] sm:$0xff] %vm26, %v4431
  %4605 = vst.msk [vmem:[%s4602 + $0x19] sm:$0xff] %vm26, %v4432
  %4606 = vst.msk [vmem:[%s4602 + $0x21] sm:$0xff] %vm26, %v4433
  %4607 = vst.msk [vmem:[%s4602 + $0x31] sm:$0xff] %vm26, %v4434
  %4608 = vst.msk [vmem:[%s4602 + $0x39] sm:$0xff] %vm26, %v4435
  %4609 = vst.msk [vmem:[%s4602 + $0x49] sm:$0xff] %vm26, %v4436
  %4610 = vst.msk [vmem:[%s4602 + $0x51] sm:$0xff] %vm26, %v4437
  %4611 = vst.msk [vmem:[%s4602 + $0x61] sm:$0xff] %vm26, %v4438
  %4612 = vst.msk [vmem:[%s4602 + $0x69] sm:$0xff] %vm26, %v4439
  %4613 = vst.msk [vmem:[%s4602 + $0x79] sm:$0xff] %vm26, %v4440
  %4614 = vst.msk [vmem:[%s4602 + $0x81] sm:$0xff] %vm26, %v4441
  %4615 = vst.msk [vmem:[%s4602 + $0x91] sm:$0xff] %vm26, %v4442
  %4616 = vst.msk [vmem:[%s4602 + $0x99] sm:$0xff] %vm26, %v4443
  %4617 = vst.msk [vmem:[%s4602 + $0xa9] sm:$0xff] %vm26, %v4444
  %4618 = vst.msk [vmem:[%s4602 + $0xb1] sm:$0xff] %vm26, %v4445
  %4619 = vst.msk [vmem:[%s4602 + $0xc1] sm:$0xff] %vm26, %v4446
  %4620 = vst.msk [vmem:[%s4602 + $0xc9] sm:$0xff] %vm26, %v4447
  %4621 = vst.msk [vmem:[%s4602 + $0xd9] sm:$0xff] %vm26, %v4448
  %4622 = vst.msk [vmem:[%s4602 + $0xe1] sm:$0xff] %vm26, %v4449
  %4623 = vst.msk [vmem:[%s4602 + $0xf1] sm:$0xff] %vm26, %v4450
  %4624 = vst.msk [vmem:[%s4602 + $0xf9] sm:$0xff] %vm26, %v4451
  %4625 = vst.msk [vmem:[%s4602 + $0x109] sm:$0xff] %vm26, %v4452
  %4626 = vst.msk [vmem:[%s4602 + $0x111] sm:$0xff] %vm26, %v4453
  %4627 = vst.msk [vmem:[%s4602 + $0x121] sm:$0xff] %vm26, %v4454
  %4628 = vst.msk [vmem:[%s4602 + $0x129] sm:$0xff] %vm26, %v4455
  %4629 = vst.msk [vmem:[%s4602 + $0x139] sm:$0xff] %vm26, %v4456
  %4630 = vst.msk [vmem:[%s4602 + $0x141] sm:$0xff] %vm26, %v4457
  %4631 = vst.msk [vmem:[%s4602 + $0x151] sm:$0xff] %vm26, %v4458
  %4632 = vst.msk [vmem:[%s4602 + $0x159] sm:$0xff] %vm26, %v4459
  %4633 = vst.msk [vmem:[%s4602 + $0x169] sm:$0xff] %vm26, %v4460
  %4634 = vst.msk [vmem:[%s4602 + $0x171] sm:$0xff] %vm26, %v4461
  %4635 = vst.msk [vmem:[%s4602 + $0x1b1] sm:$0xff] %vm26, %v4462
  %4636 = vst.msk [vmem:[%s4602 + $0x1b9] sm:$0xff] %vm26, %v4463
  %4637 = vst.msk [vmem:[%s4602 + $0x1c9] sm:$0xff] %vm26, %v4464
  %4638 = vst.msk [vmem:[%s4602 + $0x1d1] sm:$0xff] %vm26, %v4465
  %4639 = vst.msk [vmem:[%s4602 + $0x1e1] sm:$0xff] %vm26, %v4466
  %4640 = vst.msk [vmem:[%s4602 + $0x1e9] sm:$0xff] %vm26, %v4467
  %4641 = vst.msk [vmem:[%s4602 + $0x1f9] sm:$0xff] %vm26, %v4468
  %4642 = vst.msk [vmem:[%s4602 + $0x201] sm:$0xff] %vm26, %v4469
  %4643 = vst.msk [vmem:[%s4602 + $0x211] sm:$0xff] %vm26, %v4470
  %4644 = vst.msk [vmem:[%s4602 + $0x219] sm:$0xff] %vm26, %v4471
  %4645 = vst.msk [vmem:[%s4602 + $0x229] sm:$0xff] %vm26, %v4472
  %4646 = vst.msk [vmem:[%s4602 + $0x231] sm:$0xff] %vm26, %v4473
  %4647 = vst.msk [vmem:[%s4602 + $0x241] sm:$0xff] %vm26, %v4474
  %4648 = vst.msk [vmem:[%s4602 + $0x249] sm:$0xff] %vm26, %v4475
  %4649 = vst.msk [vmem:[%s4602 + $0x259] sm:$0xff] %vm26, %v4476
  %4650 = vst.msk [vmem:[%s4602 + $0x261] sm:$0xff] %vm26, %v4477
  %4651 = vst.msk [vmem:[%s4602 + $0x271] sm:$0xff] %vm26, %v4478
  %4652 = vst.msk [vmem:[%s4602 + $0x279] sm:$0xff] %vm26, %v4479
  %4653 = vst.msk [vmem:[%s4602 + $0x289] sm:$0xff] %vm26, %v4480
  %4654 = vst.msk [vmem:[%s4602 + $0x291] sm:$0xff] %vm26, %v4481
  %4655 = vst.msk [vmem:[%s4602 + $0x2a1] sm:$0xff] %vm26, %v4482
  %4656 = vst.msk [vmem:[%s4602 + $0x2a9] sm:$0xff] %vm26, %v4483
  %4657 = vst.msk [vmem:[%s4602 + $0x2b9] sm:$0xff] %vm26, %v4484
  %4658 = vst.msk [vmem:[%s4602 + $0x2c1] sm:$0xff] %vm26, %v4485
  %4659 = vst.msk [vmem:[%s4602 + $0x2d1] sm:$0xff] %vm26, %v4486
  %4660 = vst.msk [vmem:[%s4602 + $0x2d9] sm:$0xff] %vm26, %v4487
  %4661 = vst.msk [vmem:[%s4602 + $0x2e9] sm:$0xff] %vm26, %v4488
  %4662 = vst.msk [vmem:[%s4602 + $0x2f1] sm:$0xff] %vm26, %v4489
  %4663 = vst.msk [vmem:[%s4602 + $0x301] sm:$0xff] %vm26, %v4490
  %4664 = vst.msk [vmem:[%s4602 + $0x309] sm:$0xff] %vm26, %v4491
  %4665 = vst.msk [vmem:[%s4602 + $0x319] sm:$0xff] %vm26, %v4492
  %4666 = vst.msk [vmem:[%s4602 + $0x321] sm:$0xff] %vm26, %v4493
  %v4667 = vld [vmem:[#allocation3] sm:$0xff]
  %v4668 = vld [vmem:[#allocation3 + $0x8] sm:$0xff]
  %v4669 = vld [vmem:[#allocation3 + $0x18] sm:$0xff]
  %v4670 = vld [vmem:[#allocation3 + $0x20] sm:$0xff]
  %v4671 = vld [vmem:[#allocation3 + $0x30] sm:$0xff]
  %v4672 = vld [vmem:[#allocation3 + $0x38] sm:$0xff]
  %v4673 = vld [vmem:[#allocation3 + $0x48] sm:$0xff]
  %v4674 = vld [vmem:[#allocation3 + $0x50] sm:$0xff]
  %v4675 = vld [vmem:[#allocation3 + $0x60] sm:$0xff]
  %v4676 = vld [vmem:[#allocation3 + $0x68] sm:$0xff]
  %v4677 = vld [vmem:[#allocation3 + $0x78] sm:$0xff]
  %v4678 = vld [vmem:[#allocation3 + $0x80] sm:$0xff]
  %v4679 = vld [vmem:[#allocation3 + $0x90] sm:$0xff]
  %v4680 = vld [vmem:[#allocation3 + $0x98] sm:$0xff]
  %v4681 = vld [vmem:[#allocation3 + $0xa8] sm:$0xff]
  %v4682 = vld [vmem:[#allocation3 + $0xb0] sm:$0xff]
  %v4683 = vld [vmem:[#allocation3 + $0xc0] sm:$0xff]
  %v4684 = vld [vmem:[#allocation3 + $0xc8] sm:$0xff]
  %v4685 = vld [vmem:[#allocation3 + $0xd8] sm:$0xff]
  %v4686 = vld [vmem:[#allocation3 + $0xe0] sm:$0xff]
  %v4687 = vld [vmem:[#allocation3 + $0xf0] sm:$0xff]
  %v4688 = vld [vmem:[#allocation3 + $0xf8] sm:$0xff]
  %v4689 = vld [vmem:[#allocation3 + $0x108] sm:$0xff]
  %v4690 = vld [vmem:[#allocation3 + $0x110] sm:$0xff]
  %v4691 = vld [vmem:[#allocation3 + $0x120] sm:$0xff]
  %v4692 = vld [vmem:[#allocation3 + $0x128] sm:$0xff]
  %v4693 = vld [vmem:[#allocation3 + $0x138] sm:$0xff]
  %v4694 = vld [vmem:[#allocation3 + $0x140] sm:$0xff]
  %v4695 = vld [vmem:[#allocation3 + $0x150] sm:$0xff]
  %v4696 = vld [vmem:[#allocation3 + $0x158] sm:$0xff]
  %v4697 = vld [vmem:[#allocation3 + $0x168] sm:$0xff]
  %v4698 = vld [vmem:[#allocation3 + $0x170] sm:$0xff]
  %v4699 = vld [vmem:[#allocation3 + $0x1b0] sm:$0xff]
  %v4700 = vld [vmem:[#allocation3 + $0x1b8] sm:$0xff]
  %v4701 = vld [vmem:[#allocation3 + $0x1c8] sm:$0xff]
  %v4702 = vld [vmem:[#allocation3 + $0x1d0] sm:$0xff]
  %v4703 = vld [vmem:[#allocation3 + $0x1e0] sm:$0xff]
  %v4704 = vld [vmem:[#allocation3 + $0x1e8] sm:$0xff]
  %v4705 = vld [vmem:[#allocation3 + $0x1f8] sm:$0xff]
  %v4706 = vld [vmem:[#allocation3 + $0x200] sm:$0xff]
  %v4707 = vld [vmem:[#allocation3 + $0x210] sm:$0xff]
  %v4708 = vld [vmem:[#allocation3 + $0x218] sm:$0xff]
  %v4709 = vld [vmem:[#allocation3 + $0x228] sm:$0xff]
  %v4710 = vld [vmem:[#allocation3 + $0x230] sm:$0xff]
  %v4711 = vld [vmem:[#allocation3 + $0x240] sm:$0xff]
  %v4712 = vld [vmem:[#allocation3 + $0x248] sm:$0xff]
  %v4713 = vld [vmem:[#allocation3 + $0x258] sm:$0xff]
  %v4714 = vld [vmem:[#allocation3 + $0x260] sm:$0xff]
  %v4715 = vld [vmem:[#allocation3 + $0x270] sm:$0xff]
  %v4716 = vld [vmem:[#allocation3 + $0x278] sm:$0xff]
  %v4717 = vld [vmem:[#allocation3 + $0x288] sm:$0xff]
  %v4718 = vld [vmem:[#allocation3 + $0x290] sm:$0xff]
  %v4719 = vld [vmem:[#allocation3 + $0x2a0] sm:$0xff]
  %v4720 = vld [vmem:[#allocation3 + $0x2a8] sm:$0xff]
  %v4721 = vld [vmem:[#allocation3 + $0x2b8] sm:$0xff]
  %v4722 = vld [vmem:[#allocation3 + $0x2c0] sm:$0xff]
  %v4723 = vld [vmem:[#allocation3 + $0x2d0] sm:$0xff]
  %v4724 = vld [vmem:[#allocation3 + $0x2d8] sm:$0xff]
  %v4725 = vld [vmem:[#allocation3 + $0x2e8] sm:$0xff]
  %v4726 = vld [vmem:[#allocation3 + $0x2f0] sm:$0xff]
  %v4727 = vld [vmem:[#allocation3 + $0x300] sm:$0xff]
  %v4728 = vld [vmem:[#allocation3 + $0x308] sm:$0xff]
  %v4729 = vld [vmem:[#allocation3 + $0x318] sm:$0xff]
  %v4730 = vld [vmem:[#allocation3 + $0x320] sm:$0xff]
  %v4731 = vld [vmem:[#allocation3 + $0x1] sm:$0xff]
  %v4732 = vld [vmem:[#allocation3 + $0x9] sm:$0xff]
  %v4733 = vld [vmem:[#allocation3 + $0x19] sm:$0xff]
  %v4734 = vld [vmem:[#allocation3 + $0x21] sm:$0xff]
  %v4735 = vld [vmem:[#allocation3 + $0x31] sm:$0xff]
  %v4736 = vld [vmem:[#allocation3 + $0x39] sm:$0xff]
  %v4737 = vld [vmem:[#allocation3 + $0x49] sm:$0xff]
  %v4738 = vld [vmem:[#allocation3 + $0x51] sm:$0xff]
  %v4739 = vld [vmem:[#allocation3 + $0x61] sm:$0xff]
  %v4740 = vld [vmem:[#allocation3 + $0x69] sm:$0xff]
  %v4741 = vld [vmem:[#allocation3 + $0x79] sm:$0xff]
  %v4742 = vld [vmem:[#allocation3 + $0x81] sm:$0xff]
  %v4743 = vld [vmem:[#allocation3 + $0x91] sm:$0xff]
  %v4744 = vld [vmem:[#allocation3 + $0x99] sm:$0xff]
  %v4745 = vld [vmem:[#allocation3 + $0xa9] sm:$0xff]
  %v4746 = vld [vmem:[#allocation3 + $0xb1] sm:$0xff]
  %v4747 = vld [vmem:[#allocation3 + $0xc1] sm:$0xff]
  %v4748 = vld [vmem:[#allocation3 + $0xc9] sm:$0xff]
  %v4749 = vld [vmem:[#allocation3 + $0xd9] sm:$0xff]
  %v4750 = vld [vmem:[#allocation3 + $0xe1] sm:$0xff]
  %v4751 = vld [vmem:[#allocation3 + $0xf1] sm:$0xff]
  %v4752 = vld [vmem:[#allocation3 + $0xf9] sm:$0xff]
  %v4753 = vld [vmem:[#allocation3 + $0x109] sm:$0xff]
  %v4754 = vld [vmem:[#allocation3 + $0x111] sm:$0xff]
  %v4755 = vld [vmem:[#allocation3 + $0x121] sm:$0xff]
  %v4756 = vld [vmem:[#allocation3 + $0x129] sm:$0xff]
  %v4757 = vld [vmem:[#allocation3 + $0x139] sm:$0xff]
  %v4758 = vld [vmem:[#allocation3 + $0x141] sm:$0xff]
  %v4759 = vld [vmem:[#allocation3 + $0x151] sm:$0xff]
  %v4760 = vld [vmem:[#allocation3 + $0x159] sm:$0xff]
  %v4761 = vld [vmem:[#allocation3 + $0x169] sm:$0xff]
  %v4762 = vld [vmem:[#allocation3 + $0x171] sm:$0xff]
  %v4763 = vld [vmem:[#allocation3 + $0x1b1] sm:$0xff]
  %v4764 = vld [vmem:[#allocation3 + $0x1b9] sm:$0xff]
  %v4765 = vld [vmem:[#allocation3 + $0x1c9] sm:$0xff]
  %v4766 = vld [vmem:[#allocation3 + $0x1d1] sm:$0xff]
  %v4767 = vld [vmem:[#allocation3 + $0x1e1] sm:$0xff]
  %v4768 = vld [vmem:[#allocation3 + $0x1e9] sm:$0xff]
  %v4769 = vld [vmem:[#allocation3 + $0x1f9] sm:$0xff]
  %v4770 = vld [vmem:[#allocation3 + $0x201] sm:$0xff]
  %v4771 = vld [vmem:[#allocation3 + $0x211] sm:$0xff]
  %v4772 = vld [vmem:[#allocation3 + $0x219] sm:$0xff]
  %v4773 = vld [vmem:[#allocation3 + $0x229] sm:$0xff]
  %v4774 = vld [vmem:[#allocation3 + $0x231] sm:$0xff]
  %v4775 = vld [vmem:[#allocation3 + $0x241] sm:$0xff]
  %v4776 = vld [vmem:[#allocation3 + $0x249] sm:$0xff]
  %v4777 = vld [vmem:[#allocation3 + $0x259] sm:$0xff]
  %v4778 = vld [vmem:[#allocation3 + $0x261] sm:$0xff]
  %v4779 = vld [vmem:[#allocation3 + $0x271] sm:$0xff]
  %v4780 = vld [vmem:[#allocation3 + $0x279] sm:$0xff]
  %v4781 = vld [vmem:[#allocation3 + $0x289] sm:$0xff]
  %v4782 = vld [vmem:[#allocation3 + $0x291] sm:$0xff]
  %v4783 = vld [vmem:[#allocation3 + $0x2a1] sm:$0xff]
  %v4784 = vld [vmem:[#allocation3 + $0x2a9] sm:$0xff]
  %v4785 = vld [vmem:[#allocation3 + $0x2b9] sm:$0xff]
  %v4786 = vld [vmem:[#allocation3 + $0x2c1] sm:$0xff]
  %v4787 = vld [vmem:[#allocation3 + $0x2d1] sm:$0xff]
  %v4788 = vld [vmem:[#allocation3 + $0x2d9] sm:$0xff]
  %v4789 = vld [vmem:[#allocation3 + $0x2e9] sm:$0xff]
  %v4790 = vld [vmem:[#allocation3 + $0x2f1] sm:$0xff]
  %v4791 = vld [vmem:[#allocation3 + $0x301] sm:$0xff]
  %v4792 = vld [vmem:[#allocation3 + $0x309] sm:$0xff]
  %v4793 = vld [vmem:[#allocation3 + $0x319] sm:$0xff]
  %v4794 = vld [vmem:[#allocation3 + $0x321] sm:$0xff]
  %v4795 = vld [vmem:[#allocation3 + $0x2] sm:$0xff]
  %v4796 = vld [vmem:[#allocation3 + $0xa] sm:$0xff]
  %v4797 = vld [vmem:[#allocation3 + $0x1a] sm:$0xff]
  %v4798 = vld [vmem:[#allocation3 + $0x22] sm:$0xff]
  %v4799 = vld [vmem:[#allocation3 + $0x32] sm:$0xff]
  %v4800 = vld [vmem:[#allocation3 + $0x3a] sm:$0xff]
  %v4801 = vld [vmem:[#allocation3 + $0x4a] sm:$0xff]
  %v4802 = vld [vmem:[#allocation3 + $0x52] sm:$0xff]
  %v4803 = vld [vmem:[#allocation3 + $0x62] sm:$0xff]
  %v4804 = vld [vmem:[#allocation3 + $0x6a] sm:$0xff]
  %v4805 = vld [vmem:[#allocation3 + $0x7a] sm:$0xff]
  %v4806 = vld [vmem:[#allocation3 + $0x82] sm:$0xff]
  %v4807 = vld [vmem:[#allocation3 + $0x92] sm:$0xff]
  %v4808 = vld [vmem:[#allocation3 + $0x9a] sm:$0xff]
  %v4809 = vld [vmem:[#allocation3 + $0xaa] sm:$0xff]
  %v4810 = vld [vmem:[#allocation3 + $0xb2] sm:$0xff]
  %v4811 = vld [vmem:[#allocation3 + $0xc2] sm:$0xff]
  %v4812 = vld [vmem:[#allocation3 + $0xca] sm:$0xff]
  %v4813 = vld [vmem:[#allocation3 + $0xda] sm:$0xff]
  %v4814 = vld [vmem:[#allocation3 + $0xe2] sm:$0xff]
  %v4815 = vld [vmem:[#allocation3 + $0xf2] sm:$0xff]
  %v4816 = vld [vmem:[#allocation3 + $0xfa] sm:$0xff]
  %v4817 = vld [vmem:[#allocation3 + $0x10a] sm:$0xff]
  %v4818 = vld [vmem:[#allocation3 + $0x112] sm:$0xff]
  %v4819 = vld [vmem:[#allocation3 + $0x122] sm:$0xff]
  %v4820 = vld [vmem:[#allocation3 + $0x12a] sm:$0xff]
  %v4821 = vld [vmem:[#allocation3 + $0x13a] sm:$0xff]
  %v4822 = vld [vmem:[#allocation3 + $0x142] sm:$0xff]
  %v4823 = vld [vmem:[#allocation3 + $0x152] sm:$0xff]
  %v4824 = vld [vmem:[#allocation3 + $0x15a] sm:$0xff]
  %v4825 = vld [vmem:[#allocation3 + $0x16a] sm:$0xff]
  %v4826 = vld [vmem:[#allocation3 + $0x172] sm:$0xff]
  %v4827 = vld [vmem:[#allocation3 + $0x1b2] sm:$0xff]
  %v4828 = vld [vmem:[#allocation3 + $0x1ba] sm:$0xff]
  %v4829 = vld [vmem:[#allocation3 + $0x1ca] sm:$0xff]
  %v4830 = vld [vmem:[#allocation3 + $0x1d2] sm:$0xff]
  %v4831 = vld [vmem:[#allocation3 + $0x1e2] sm:$0xff]
  %v4832 = vld [vmem:[#allocation3 + $0x1ea] sm:$0xff]
  %v4833 = vld [vmem:[#allocation3 + $0x1fa] sm:$0xff]
  %v4834 = vld [vmem:[#allocation3 + $0x202] sm:$0xff]
  %v4835 = vld [vmem:[#allocation3 + $0x212] sm:$0xff]
  %v4836 = vld [vmem:[#allocation3 + $0x21a] sm:$0xff]
  %v4837 = vld [vmem:[#allocation3 + $0x22a] sm:$0xff]
  %v4838 = vld [vmem:[#allocation3 + $0x232] sm:$0xff]
  %v4839 = vld [vmem:[#allocation3 + $0x242] sm:$0xff]
  %v4840 = vld [vmem:[#allocation3 + $0x24a] sm:$0xff]
  %v4841 = vld [vmem:[#allocation3 + $0x25a] sm:$0xff]
  %v4842 = vld [vmem:[#allocation3 + $0x262] sm:$0xff]
  %v4843 = vld [vmem:[#allocation3 + $0x272] sm:$0xff]
  %v4844 = vld [vmem:[#allocation3 + $0x27a] sm:$0xff]
  %v4845 = vld [vmem:[#allocation3 + $0x28a] sm:$0xff]
  %v4846 = vld [vmem:[#allocation3 + $0x292] sm:$0xff]
  %v4847 = vld [vmem:[#allocation3 + $0x2a2] sm:$0xff]
  %v4848 = vld [vmem:[#allocation3 + $0x2aa] sm:$0xff]
  %v4849 = vld [vmem:[#allocation3 + $0x2ba] sm:$0xff]
  %v4850 = vld [vmem:[#allocation3 + $0x2c2] sm:$0xff]
  %v4851 = vld [vmem:[#allocation3 + $0x2d2] sm:$0xff]
  %v4852 = vld [vmem:[#allocation3 + $0x2da] sm:$0xff]
  %v4853 = vld [vmem:[#allocation3 + $0x2ea] sm:$0xff]
  %v4854 = vld [vmem:[#allocation3 + $0x2f2] sm:$0xff]
  %v4855 = vld [vmem:[#allocation3 + $0x302] sm:$0xff]
  %v4856 = vld [vmem:[#allocation3 + $0x30a] sm:$0xff]
  %v4857 = vld [vmem:[#allocation3 + $0x31a] sm:$0xff]
  %v4858 = vld [vmem:[#allocation3 + $0x322] sm:$0xff]
  %v4859 = vld [vmem:[%s4602] sm:$0xff]
  %v4860 = vld [vmem:[%s4602 + $0x8] sm:$0xff]
  %v4861 = vld [vmem:[%s4602 + $0x18] sm:$0xff]
  %v4862 = vld [vmem:[%s4602 + $0x20] sm:$0xff]
  %v4863 = vld [vmem:[%s4602 + $0x30] sm:$0xff]
  %v4864 = vld [vmem:[%s4602 + $0x38] sm:$0xff]
  %v4865 = vld [vmem:[%s4602 + $0x48] sm:$0xff]
  %v4866 = vld [vmem:[%s4602 + $0x50] sm:$0xff]
  %v4867 = vld [vmem:[%s4602 + $0x60] sm:$0xff]
  %v4868 = vld [vmem:[%s4602 + $0x68] sm:$0xff]
  %v4869 = vld [vmem:[%s4602 + $0x78] sm:$0xff]
  %v4870 = vld [vmem:[%s4602 + $0x80] sm:$0xff]
  %v4871 = vld [vmem:[%s4602 + $0x90] sm:$0xff]
  %v4872 = vld [vmem:[%s4602 + $0x98] sm:$0xff]
  %v4873 = vld [vmem:[%s4602 + $0xa8] sm:$0xff]
  %v4874 = vld [vmem:[%s4602 + $0xb0] sm:$0xff]
  %v4875 = vld [vmem:[%s4602 + $0xc0] sm:$0xff]
  %v4876 = vld [vmem:[%s4602 + $0xc8] sm:$0xff]
  %v4877 = vld [vmem:[%s4602 + $0xd8] sm:$0xff]
  %v4878 = vld [vmem:[%s4602 + $0xe0] sm:$0xff]
  %v4879 = vld [vmem:[%s4602 + $0xf0] sm:$0xff]
  %v4880 = vld [vmem:[%s4602 + $0xf8] sm:$0xff]
  %v4881 = vld [vmem:[%s4602 + $0x108] sm:$0xff]
  %v4882 = vld [vmem:[%s4602 + $0x110] sm:$0xff]
  %v4883 = vld [vmem:[%s4602 + $0x120] sm:$0xff]
  %v4884 = vld [vmem:[%s4602 + $0x128] sm:$0xff]
  %v4885 = vld [vmem:[%s4602 + $0x138] sm:$0xff]
  %v4886 = vld [vmem:[%s4602 + $0x140] sm:$0xff]
  %v4887 = vld [vmem:[%s4602 + $0x150] sm:$0xff]
  %v4888 = vld [vmem:[%s4602 + $0x158] sm:$0xff]
  %v4889 = vld [vmem:[%s4602 + $0x168] sm:$0xff]
  %v4890 = vld [vmem:[%s4602 + $0x170] sm:$0xff]
  %v4891 = vld [vmem:[%s4602 + $0x1b0] sm:$0xff]
  %v4892 = vld [vmem:[%s4602 + $0x1b8] sm:$0xff]
  %v4893 = vld [vmem:[%s4602 + $0x1c8] sm:$0xff]
  %v4894 = vld [vmem:[%s4602 + $0x1d0] sm:$0xff]
  %v4895 = vld [vmem:[%s4602 + $0x1e0] sm:$0xff]
  %v4896 = vld [vmem:[%s4602 + $0x1e8] sm:$0xff]
  %v4897 = vld [vmem:[%s4602 + $0x1f8] sm:$0xff]
  %v4898 = vld [vmem:[%s4602 + $0x200] sm:$0xff]
  %v4899 = vld [vmem:[%s4602 + $0x210] sm:$0xff]
  %v4900 = vld [vmem:[%s4602 + $0x218] sm:$0xff]
  %v4901 = vld [vmem:[%s4602 + $0x228] sm:$0xff]
  %v4902 = vld [vmem:[%s4602 + $0x230] sm:$0xff]
  %v4903 = vld [vmem:[%s4602 + $0x240] sm:$0xff]
  %v4904 = vld [vmem:[%s4602 + $0x248] sm:$0xff]
  %v4905 = vld [vmem:[%s4602 + $0x258] sm:$0xff]
  %v4906 = vld [vmem:[%s4602 + $0x260] sm:$0xff]
  %v4907 = vld [vmem:[%s4602 + $0x270] sm:$0xff]
  %v4908 = vld [vmem:[%s4602 + $0x278] sm:$0xff]
  %v4909 = vld [vmem:[%s4602 + $0x288] sm:$0xff]
  %v4910 = vld [vmem:[%s4602 + $0x290] sm:$0xff]
  %v4911 = vld [vmem:[%s4602 + $0x2a0] sm:$0xff]
  %v4912 = vld [vmem:[%s4602 + $0x2a8] sm:$0xff]
  %v4913 = vld [vmem:[%s4602 + $0x2b8] sm:$0xff]
  %v4914 = vld [vmem:[%s4602 + $0x2c0] sm:$0xff]
  %v4915 = vld [vmem:[%s4602 + $0x2d0] sm:$0xff]
  %v4916 = vld [vmem:[%s4602 + $0x2d8] sm:$0xff]
  %v4917 = vld [vmem:[%s4602 + $0x2e8] sm:$0xff]
  %v4918 = vld [vmem:[%s4602 + $0x2f0] sm:$0xff]
  %v4919 = vld [vmem:[%s4602 + $0x300] sm:$0xff]
  %v4920 = vld [vmem:[%s4602 + $0x308] sm:$0xff]
  %v4921 = vld [vmem:[%s4602 + $0x318] sm:$0xff]
  %v4922 = vld [vmem:[%s4602 + $0x320] sm:$0xff]
  %v4923 = vld [vmem:[%s4602 + $0x1] sm:$0xff]
  %v4924 = vld [vmem:[%s4602 + $0x9] sm:$0xff]
  %v4925 = vld [vmem:[%s4602 + $0x19] sm:$0xff]
  %v4926 = vld [vmem:[%s4602 + $0x21] sm:$0xff]
  %v4927 = vld [vmem:[%s4602 + $0x31] sm:$0xff]
  %v4928 = vld [vmem:[%s4602 + $0x39] sm:$0xff]
  %v4929 = vld [vmem:[%s4602 + $0x49] sm:$0xff]
  %v4930 = vld [vmem:[%s4602 + $0x51] sm:$0xff]
  %v4931 = vld [vmem:[%s4602 + $0x61] sm:$0xff]
  %v4932 = vld [vmem:[%s4602 + $0x69] sm:$0xff]
  %v4933 = vld [vmem:[%s4602 + $0x79] sm:$0xff]
  %v4934 = vld [vmem:[%s4602 + $0x81] sm:$0xff]
  %v4935 = vld [vmem:[%s4602 + $0x91] sm:$0xff]
  %v4936 = vld [vmem:[%s4602 + $0x99] sm:$0xff]
  %v4937 = vld [vmem:[%s4602 + $0xa9] sm:$0xff]
  %v4938 = vld [vmem:[%s4602 + $0xb1] sm:$0xff]
  %v4939 = vld [vmem:[%s4602 + $0xc1] sm:$0xff]
  %v4940 = vld [vmem:[%s4602 + $0xc9] sm:$0xff]
  %v4941 = vld [vmem:[%s4602 + $0xd9] sm:$0xff]
  %v4942 = vld [vmem:[%s4602 + $0xe1] sm:$0xff]
  %v4943 = vld [vmem:[%s4602 + $0xf1] sm:$0xff]
  %v4944 = vld [vmem:[%s4602 + $0xf9] sm:$0xff]
  %v4945 = vld [vmem:[%s4602 + $0x109] sm:$0xff]
  %v4946 = vld [vmem:[%s4602 + $0x111] sm:$0xff]
  %v4947 = vld [vmem:[%s4602 + $0x121] sm:$0xff]
  %v4948 = vld [vmem:[%s4602 + $0x129] sm:$0xff]
  %v4949 = vld [vmem:[%s4602 + $0x139] sm:$0xff]
  %v4950 = vld [vmem:[%s4602 + $0x141] sm:$0xff]
  %v4951 = vld [vmem:[%s4602 + $0x151] sm:$0xff]
  %v4952 = vld [vmem:[%s4602 + $0x159] sm:$0xff]
  %v4953 = vld [vmem:[%s4602 + $0x169] sm:$0xff]
  %v4954 = vld [vmem:[%s4602 + $0x171] sm:$0xff]
  %v4955 = vld [vmem:[%s4602 + $0x1b1] sm:$0xff]
  %v4956 = vld [vmem:[%s4602 + $0x1b9] sm:$0xff]
  %v4957 = vld [vmem:[%s4602 + $0x1c9] sm:$0xff]
  %v4958 = vld [vmem:[%s4602 + $0x1d1] sm:$0xff]
  %v4959 = vld [vmem:[%s4602 + $0x1e1] sm:$0xff]
  %v4960 = vld [vmem:[%s4602 + $0x1e9] sm:$0xff]
  %v4961 = vld [vmem:[%s4602 + $0x1f9] sm:$0xff]
  %v4962 = vld [vmem:[%s4602 + $0x201] sm:$0xff]
  %v4963 = vld [vmem:[%s4602 + $0x211] sm:$0xff]
  %v4964 = vld [vmem:[%s4602 + $0x219] sm:$0xff]
  %v4965 = vld [vmem:[%s4602 + $0x229] sm:$0xff]
  %v4966 = vld [vmem:[%s4602 + $0x231] sm:$0xff]
  %v4967 = vld [vmem:[%s4602 + $0x241] sm:$0xff]
  %v4968 = vld [vmem:[%s4602 + $0x249] sm:$0xff]
  %v4969 = vld [vmem:[%s4602 + $0x259] sm:$0xff]
  %v4970 = vld [vmem:[%s4602 + $0x261] sm:$0xff]
  %v4971 = vld [vmem:[%s4602 + $0x271] sm:$0xff]
  %v4972 = vld [vmem:[%s4602 + $0x279] sm:$0xff]
  %v4973 = vld [vmem:[%s4602 + $0x289] sm:$0xff]
  %v4974 = vld [vmem:[%s4602 + $0x291] sm:$0xff]
  %v4975 = vld [vmem:[%s4602 + $0x2a1] sm:$0xff]
  %v4976 = vld [vmem:[%s4602 + $0x2a9] sm:$0xff]
  %v4977 = vld [vmem:[%s4602 + $0x2b9] sm:$0xff]
  %v4978 = vld [vmem:[%s4602 + $0x2c1] sm:$0xff]
  %v4979 = vld [vmem:[%s4602 + $0x2d1] sm:$0xff]
  %v4980 = vld [vmem:[%s4602 + $0x2d9] sm:$0xff]
  %v4981 = vld [vmem:[%s4602 + $0x2e9] sm:$0xff]
  %v4982 = vld [vmem:[%s4602 + $0x2f1] sm:$0xff]
  %v4983 = vld [vmem:[%s4602 + $0x301] sm:$0xff]
  %v4984 = vld [vmem:[%s4602 + $0x309] sm:$0xff]
  %v4985 = vld [vmem:[%s4602 + $0x319] sm:$0xff]
  %v4986 = vld [vmem:[%s4602 + $0x321] sm:$0xff]
  %v4987 = vld [vmem:[%s4602 + $0x2] sm:$0xff]
  %v4988 = vld [vmem:[%s4602 + $0xa] sm:$0xff]
  %v4989 = vld [vmem:[%s4602 + $0x1a] sm:$0xff]
  %v4990 = vld [vmem:[%s4602 + $0x22] sm:$0xff]
  %v4991 = vld [vmem:[%s4602 + $0x32] sm:$0xff]
  %v4992 = vld [vmem:[%s4602 + $0x3a] sm:$0xff]
  %v4993 = vld [vmem:[%s4602 + $0x4a] sm:$0xff]
  %v4994 = vld [vmem:[%s4602 + $0x52] sm:$0xff]
  %v4995 = vld [vmem:[%s4602 + $0x62] sm:$0xff]
  %v4996 = vld [vmem:[%s4602 + $0x6a] sm:$0xff]
  %v4997 = vld [vmem:[%s4602 + $0x7a] sm:$0xff]
  %v4998 = vld [vmem:[%s4602 + $0x82] sm:$0xff]
  %v4999 = vld [vmem:[%s4602 + $0x92] sm:$0xff]
  %v5000 = vld [vmem:[%s4602 + $0x9a] sm:$0xff]
  %v5001 = vld [vmem:[%s4602 + $0xaa] sm:$0xff]
  %v5002 = vld [vmem:[%s4602 + $0xb2] sm:$0xff]
  %v5003 = vld [vmem:[%s4602 + $0xc2] sm:$0xff]
  %v5004 = vld [vmem:[%s4602 + $0xca] sm:$0xff]
  %v5005 = vld [vmem:[%s4602 + $0xda] sm:$0xff]
  %v5006 = vld [vmem:[%s4602 + $0xe2] sm:$0xff]
  %v5007 = vld [vmem:[%s4602 + $0xf2] sm:$0xff]
  %v5008 = vld [vmem:[%s4602 + $0xfa] sm:$0xff]
  %v5009 = vld [vmem:[%s4602 + $0x10a] sm:$0xff]
  %v5010 = vld [vmem:[%s4602 + $0x112] sm:$0xff]
  %v5011 = vld [vmem:[%s4602 + $0x122] sm:$0xff]
  %v5012 = vld [vmem:[%s4602 + $0x12a] sm:$0xff]
  %v5013 = vld [vmem:[%s4602 + $0x13a] sm:$0xff]
  %v5014 = vld [vmem:[%s4602 + $0x142] sm:$0xff]
  %v5015 = vld [vmem:[%s4602 + $0x152] sm:$0xff]
  %v5016 = vld [vmem:[%s4602 + $0x15a] sm:$0xff]
  %v5017 = vld [vmem:[%s4602 + $0x16a] sm:$0xff]
  %v5018 = vld [vmem:[%s4602 + $0x172] sm:$0xff]
  %v5019 = vld [vmem:[%s4602 + $0x1b2] sm:$0xff]
  %v5020 = vld [vmem:[%s4602 + $0x1ba] sm:$0xff]
  %v5021 = vld [vmem:[%s4602 + $0x1ca] sm:$0xff]
  %v5022 = vld [vmem:[%s4602 + $0x1d2] sm:$0xff]
  %v5023 = vld [vmem:[%s4602 + $0x1e2] sm:$0xff]
  %v5024 = vld [vmem:[%s4602 + $0x1ea] sm:$0xff]
  %v5025 = vld [vmem:[%s4602 + $0x1fa] sm:$0xff]
  %v5026 = vld [vmem:[%s4602 + $0x202] sm:$0xff]
  %v5027 = vld [vmem:[%s4602 + $0x212] sm:$0xff]
  %v5028 = vld [vmem:[%s4602 + $0x21a] sm:$0xff]
  %v5029 = vld [vmem:[%s4602 + $0x22a] sm:$0xff]
  %v5030 = vld [vmem:[%s4602 + $0x232] sm:$0xff]
  %v5031 = vld [vmem:[%s4602 + $0x242] sm:$0xff]
  %v5032 = vld [vmem:[%s4602 + $0x24a] sm:$0xff]
  %v5033 = vld [vmem:[%s4602 + $0x25a] sm:$0xff]
  %v5034 = vld [vmem:[%s4602 + $0x262] sm:$0xff]
  %v5035 = vld [vmem:[%s4602 + $0x272] sm:$0xff]
  %v5036 = vld [vmem:[%s4602 + $0x27a] sm:$0xff]
  %v5037 = vld [vmem:[%s4602 + $0x28a] sm:$0xff]
  %v5038 = vld [vmem:[%s4602 + $0x292] sm:$0xff]
  %v5039 = vld [vmem:[%s4602 + $0x2a2] sm:$0xff]
  %v5040 = vld [vmem:[%s4602 + $0x2aa] sm:$0xff]
  %v5041 = vld [vmem:[%s4602 + $0x2ba] sm:$0xff]
  %v5042 = vld [vmem:[%s4602 + $0x2c2] sm:$0xff]
  %v5043 = vld [vmem:[%s4602 + $0x2d2] sm:$0xff]
  %v5044 = vld [vmem:[%s4602 + $0x2da] sm:$0xff]
  %v5045 = vld [vmem:[%s4602 + $0x2ea] sm:$0xff]
  %v5046 = vld [vmem:[%s4602 + $0x2f2] sm:$0xff]
  %v5047 = vld [vmem:[%s4602 + $0x302] sm:$0xff]
  %v5048 = vld [vmem:[%s4602 + $0x30a] sm:$0xff]
  %v5049 = vld [vmem:[%s4602 + $0x31a] sm:$0xff]
  %v5050 = vld [vmem:[%s4602 + $0x322] sm:$0xff]
  %s5051 = scalar_lea.vmem [#allocation3], 48
  %v5052 = vld [vmem:[%s5051] sm:$0xff]
  %v5053 = vld [vmem:[%s5051 + $0x8] sm:$0xff]
  %v5054 = vld [vmem:[%s5051 + $0x18] sm:$0xff]
  %v5055 = vld [vmem:[%s5051 + $0x20] sm:$0xff]
  %v5056 = vld [vmem:[%s5051 + $0x30] sm:$0xff]
  %v5057 = vld [vmem:[%s5051 + $0x38] sm:$0xff]
  %v5058 = vld [vmem:[%s5051 + $0x48] sm:$0xff]
  %v5059 = vld [vmem:[%s5051 + $0x50] sm:$0xff]
  %v5060 = vld [vmem:[%s5051 + $0x60] sm:$0xff]
  %v5061 = vld [vmem:[%s5051 + $0x68] sm:$0xff]
  %v5062 = vld [vmem:[%s5051 + $0x78] sm:$0xff]
  %v5063 = vld [vmem:[%s5051 + $0x80] sm:$0xff]
  %v5064 = vld [vmem:[%s5051 + $0x90] sm:$0xff]
  %v5065 = vld [vmem:[%s5051 + $0x98] sm:$0xff]
  %v5066 = vld [vmem:[%s5051 + $0xa8] sm:$0xff]
  %v5067 = vld [vmem:[%s5051 + $0xb0] sm:$0xff]
  %v5068 = vld [vmem:[%s5051 + $0xc0] sm:$0xff]
  %v5069 = vld [vmem:[%s5051 + $0xc8] sm:$0xff]
  %v5070 = vld [vmem:[%s5051 + $0xd8] sm:$0xff]
  %v5071 = vld [vmem:[%s5051 + $0xe0] sm:$0xff]
  %v5072 = vld [vmem:[%s5051 + $0xf0] sm:$0xff]
  %v5073 = vld [vmem:[%s5051 + $0xf8] sm:$0xff]
  %v5074 = vld [vmem:[%s5051 + $0x108] sm:$0xff]
  %v5075 = vld [vmem:[%s5051 + $0x110] sm:$0xff]
  %v5076 = vld [vmem:[%s5051 + $0x120] sm:$0xff]
  %v5077 = vld [vmem:[%s5051 + $0x128] sm:$0xff]
  %v5078 = vld [vmem:[%s5051 + $0x138] sm:$0xff]
  %v5079 = vld [vmem:[%s5051 + $0x140] sm:$0xff]
  %v5080 = vld [vmem:[%s5051 + $0x150] sm:$0xff]
  %v5081 = vld [vmem:[%s5051 + $0x158] sm:$0xff]
  %v5082 = vld [vmem:[%s5051 + $0x168] sm:$0xff]
  %v5083 = vld [vmem:[%s5051 + $0x170] sm:$0xff]
  %v5084 = vld [vmem:[%s5051 + $0x1b0] sm:$0xff]
  %v5085 = vld [vmem:[%s5051 + $0x1b8] sm:$0xff]
  %v5086 = vld [vmem:[%s5051 + $0x1c8] sm:$0xff]
  %v5087 = vld [vmem:[%s5051 + $0x1d0] sm:$0xff]
  %v5088 = vld [vmem:[%s5051 + $0x1e0] sm:$0xff]
  %v5089 = vld [vmem:[%s5051 + $0x1e8] sm:$0xff]
  %v5090 = vld [vmem:[%s5051 + $0x1f8] sm:$0xff]
  %v5091 = vld [vmem:[%s5051 + $0x200] sm:$0xff]
  %v5092 = vld [vmem:[%s5051 + $0x210] sm:$0xff]
  %v5093 = vld [vmem:[%s5051 + $0x218] sm:$0xff]
  %v5094 = vld [vmem:[%s5051 + $0x228] sm:$0xff]
  %v5095 = vld [vmem:[%s5051 + $0x230] sm:$0xff]
  %v5096 = vld [vmem:[%s5051 + $0x240] sm:$0xff]
  %v5097 = vld [vmem:[%s5051 + $0x248] sm:$0xff]
  %v5098 = vld [vmem:[%s5051 + $0x258] sm:$0xff]
  %v5099 = vld [vmem:[%s5051 + $0x260] sm:$0xff]
  %v5100 = vld [vmem:[%s5051 + $0x270] sm:$0xff]
  %v5101 = vld [vmem:[%s5051 + $0x278] sm:$0xff]
  %v5102 = vld [vmem:[%s5051 + $0x288] sm:$0xff]
  %v5103 = vld [vmem:[%s5051 + $0x290] sm:$0xff]
  %v5104 = vld [vmem:[%s5051 + $0x2a0] sm:$0xff]
  %v5105 = vld [vmem:[%s5051 + $0x2a8] sm:$0xff]
  %v5106 = vld [vmem:[%s5051 + $0x2b8] sm:$0xff]
  %v5107 = vld [vmem:[%s5051 + $0x2c0] sm:$0xff]
  %v5108 = vld [vmem:[%s5051 + $0x2d0] sm:$0xff]
  %v5109 = vld [vmem:[%s5051 + $0x2d8] sm:$0xff]
  %v5110 = vld [vmem:[%s5051 + $0x2e8] sm:$0xff]
  %v5111 = vld [vmem:[%s5051 + $0x2f0] sm:$0xff]
  %v5112 = vld [vmem:[%s5051 + $0x300] sm:$0xff]
  %v5113 = vld [vmem:[%s5051 + $0x308] sm:$0xff]
  %v5114 = vld [vmem:[%s5051 + $0x318] sm:$0xff]
  %v5115 = vld [vmem:[%s5051 + $0x320] sm:$0xff]
  %v5116 = vld [vmem:[%s5051 + $0x1] sm:$0xff]
  %v5117 = vld [vmem:[%s5051 + $0x9] sm:$0xff]
  %v5118 = vld [vmem:[%s5051 + $0x19] sm:$0xff]
  %v5119 = vld [vmem:[%s5051 + $0x21] sm:$0xff]
  %v5120 = vld [vmem:[%s5051 + $0x31] sm:$0xff]
  %v5121 = vld [vmem:[%s5051 + $0x39] sm:$0xff]
  %v5122 = vld [vmem:[%s5051 + $0x49] sm:$0xff]
  %v5123 = vld [vmem:[%s5051 + $0x51] sm:$0xff]
  %v5124 = vld [vmem:[%s5051 + $0x61] sm:$0xff]
  %v5125 = vld [vmem:[%s5051 + $0x69] sm:$0xff]
  %v5126 = vld [vmem:[%s5051 + $0x79] sm:$0xff]
  %v5127 = vld [vmem:[%s5051 + $0x81] sm:$0xff]
  %v5128 = vld [vmem:[%s5051 + $0x91] sm:$0xff]
  %v5129 = vld [vmem:[%s5051 + $0x99] sm:$0xff]
  %v5130 = vld [vmem:[%s5051 + $0xa9] sm:$0xff]
  %v5131 = vld [vmem:[%s5051 + $0xb1] sm:$0xff]
  %v5132 = vld [vmem:[%s5051 + $0xc1] sm:$0xff]
  %v5133 = vld [vmem:[%s5051 + $0xc9] sm:$0xff]
  %v5134 = vld [vmem:[%s5051 + $0xd9] sm:$0xff]
  %v5135 = vld [vmem:[%s5051 + $0xe1] sm:$0xff]
  %v5136 = vld [vmem:[%s5051 + $0xf1] sm:$0xff]
  %v5137 = vld [vmem:[%s5051 + $0xf9] sm:$0xff]
  %v5138 = vld [vmem:[%s5051 + $0x109] sm:$0xff]
  %v5139 = vld [vmem:[%s5051 + $0x111] sm:$0xff]
  %v5140 = vld [vmem:[%s5051 + $0x121] sm:$0xff]
  %v5141 = vld [vmem:[%s5051 + $0x129] sm:$0xff]
  %v5142 = vld [vmem:[%s5051 + $0x139] sm:$0xff]
  %v5143 = vld [vmem:[%s5051 + $0x141] sm:$0xff]
  %v5144 = vld [vmem:[%s5051 + $0x151] sm:$0xff]
  %v5145 = vld [vmem:[%s5051 + $0x159] sm:$0xff]
  %v5146 = vld [vmem:[%s5051 + $0x169] sm:$0xff]
  %v5147 = vld [vmem:[%s5051 + $0x171] sm:$0xff]
  %v5148 = vld [vmem:[%s5051 + $0x1b1] sm:$0xff]
  %v5149 = vld [vmem:[%s5051 + $0x1b9] sm:$0xff]
  %v5150 = vld [vmem:[%s5051 + $0x1c9] sm:$0xff]
  %v5151 = vld [vmem:[%s5051 + $0x1d1] sm:$0xff]
  %v5152 = vld [vmem:[%s5051 + $0x1e1] sm:$0xff]
  %v5153 = vld [vmem:[%s5051 + $0x1e9] sm:$0xff]
  %v5154 = vld [vmem:[%s5051 + $0x1f9] sm:$0xff]
  %v5155 = vld [vmem:[%s5051 + $0x201] sm:$0xff]
  %v5156 = vld [vmem:[%s5051 + $0x211] sm:$0xff]
  %v5157 = vld [vmem:[%s5051 + $0x219] sm:$0xff]
  %v5158 = vld [vmem:[%s5051 + $0x229] sm:$0xff]
  %v5159 = vld [vmem:[%s5051 + $0x231] sm:$0xff]
  %v5160 = vld [vmem:[%s5051 + $0x241] sm:$0xff]
  %v5161 = vld [vmem:[%s5051 + $0x249] sm:$0xff]
  %v5162 = vld [vmem:[%s5051 + $0x259] sm:$0xff]
  %v5163 = vld [vmem:[%s5051 + $0x261] sm:$0xff]
  %v5164 = vld [vmem:[%s5051 + $0x271] sm:$0xff]
  %v5165 = vld [vmem:[%s5051 + $0x279] sm:$0xff]
  %v5166 = vld [vmem:[%s5051 + $0x289] sm:$0xff]
  %v5167 = vld [vmem:[%s5051 + $0x291] sm:$0xff]
  %v5168 = vld [vmem:[%s5051 + $0x2a1] sm:$0xff]
  %v5169 = vld [vmem:[%s5051 + $0x2a9] sm:$0xff]
  %v5170 = vld [vmem:[%s5051 + $0x2b9] sm:$0xff]
  %v5171 = vld [vmem:[%s5051 + $0x2c1] sm:$0xff]
  %v5172 = vld [vmem:[%s5051 + $0x2d1] sm:$0xff]
  %v5173 = vld [vmem:[%s5051 + $0x2d9] sm:$0xff]
  %v5174 = vld [vmem:[%s5051 + $0x2e9] sm:$0xff]
  %v5175 = vld [vmem:[%s5051 + $0x2f1] sm:$0xff]
  %v5176 = vld [vmem:[%s5051 + $0x301] sm:$0xff]
  %v5177 = vld [vmem:[%s5051 + $0x309] sm:$0xff]
  %v5178 = vld [vmem:[%s5051 + $0x319] sm:$0xff]
  %v5179 = vld [vmem:[%s5051 + $0x321] sm:$0xff]
  %v5180 = vld [vmem:[%s5051 + $0x2] sm:$0xff]
  %v5181 = vld [vmem:[%s5051 + $0xa] sm:$0xff]
  %v5182 = vld [vmem:[%s5051 + $0x1a] sm:$0xff]
  %v5183 = vld [vmem:[%s5051 + $0x22] sm:$0xff]
  %v5184 = vld [vmem:[%s5051 + $0x32] sm:$0xff]
  %v5185 = vld [vmem:[%s5051 + $0x3a] sm:$0xff]
  %v5186 = vld [vmem:[%s5051 + $0x4a] sm:$0xff]
  %v5187 = vld [vmem:[%s5051 + $0x52] sm:$0xff]
  %v5188 = vld [vmem:[%s5051 + $0x62] sm:$0xff]
  %v5189 = vld [vmem:[%s5051 + $0x6a] sm:$0xff]
  %v5190 = vld [vmem:[%s5051 + $0x7a] sm:$0xff]
  %v5191 = vld [vmem:[%s5051 + $0x82] sm:$0xff]
  %v5192 = vld [vmem:[%s5051 + $0x92] sm:$0xff]
  %v5193 = vld [vmem:[%s5051 + $0x9a] sm:$0xff]
  %v5194 = vld [vmem:[%s5051 + $0xaa] sm:$0xff]
  %v5195 = vld [vmem:[%s5051 + $0xb2] sm:$0xff]
  %v5196 = vld [vmem:[%s5051 + $0xc2] sm:$0xff]
  %v5197 = vld [vmem:[%s5051 + $0xca] sm:$0xff]
  %v5198 = vld [vmem:[%s5051 + $0xda] sm:$0xff]
  %v5199 = vld [vmem:[%s5051 + $0xe2] sm:$0xff]
  %v5200 = vld [vmem:[%s5051 + $0xf2] sm:$0xff]
  %v5201 = vld [vmem:[%s5051 + $0xfa] sm:$0xff]
  %v5202 = vld [vmem:[%s5051 + $0x10a] sm:$0xff]
  %v5203 = vld [vmem:[%s5051 + $0x112] sm:$0xff]
  %v5204 = vld [vmem:[%s5051 + $0x122] sm:$0xff]
  %v5205 = vld [vmem:[%s5051 + $0x12a] sm:$0xff]
  %v5206 = vld [vmem:[%s5051 + $0x13a] sm:$0xff]
  %v5207 = vld [vmem:[%s5051 + $0x142] sm:$0xff]
  %v5208 = vld [vmem:[%s5051 + $0x152] sm:$0xff]
  %v5209 = vld [vmem:[%s5051 + $0x15a] sm:$0xff]
  %v5210 = vld [vmem:[%s5051 + $0x16a] sm:$0xff]
  %v5211 = vld [vmem:[%s5051 + $0x172] sm:$0xff]
  %v5212 = vld [vmem:[%s5051 + $0x1b2] sm:$0xff]
  %v5213 = vld [vmem:[%s5051 + $0x1ba] sm:$0xff]
  %v5214 = vld [vmem:[%s5051 + $0x1ca] sm:$0xff]
  %v5215 = vld [vmem:[%s5051 + $0x1d2] sm:$0xff]
  %v5216 = vld [vmem:[%s5051 + $0x1e2] sm:$0xff]
  %v5217 = vld [vmem:[%s5051 + $0x1ea] sm:$0xff]
  %v5218 = vld [vmem:[%s5051 + $0x1fa] sm:$0xff]
  %v5219 = vld [vmem:[%s5051 + $0x202] sm:$0xff]
  %v5220 = vld [vmem:[%s5051 + $0x212] sm:$0xff]
  %v5221 = vld [vmem:[%s5051 + $0x21a] sm:$0xff]
  %v5222 = vld [vmem:[%s5051 + $0x22a] sm:$0xff]
  %v5223 = vld [vmem:[%s5051 + $0x232] sm:$0xff]
  %v5224 = vld [vmem:[%s5051 + $0x242] sm:$0xff]
  %v5225 = vld [vmem:[%s5051 + $0x24a] sm:$0xff]
  %v5226 = vld [vmem:[%s5051 + $0x25a] sm:$0xff]
  %v5227 = vld [vmem:[%s5051 + $0x262] sm:$0xff]
  %v5228 = vld [vmem:[%s5051 + $0x272] sm:$0xff]
  %v5229 = vld [vmem:[%s5051 + $0x27a] sm:$0xff]
  %v5230 = vld [vmem:[%s5051 + $0x28a] sm:$0xff]
  %v5231 = vld [vmem:[%s5051 + $0x292] sm:$0xff]
  %v5232 = vld [vmem:[%s5051 + $0x2a2] sm:$0xff]
  %v5233 = vld [vmem:[%s5051 + $0x2aa] sm:$0xff]
  %v5234 = vld [vmem:[%s5051 + $0x2ba] sm:$0xff]
  %v5235 = vld [vmem:[%s5051 + $0x2c2] sm:$0xff]
  %v5236 = vld [vmem:[%s5051 + $0x2d2] sm:$0xff]
  %v5237 = vld [vmem:[%s5051 + $0x2da] sm:$0xff]
  %v5238 = vld [vmem:[%s5051 + $0x2ea] sm:$0xff]
  %v5239 = vld [vmem:[%s5051 + $0x2f2] sm:$0xff]
  %v5240 = vld [vmem:[%s5051 + $0x302] sm:$0xff]
  %v5241 = vld [vmem:[%s5051 + $0x30a] sm:$0xff]
  %v5242 = vld [vmem:[%s5051 + $0x31a] sm:$0xff]
  %v5243 = vld [vmem:[%s5051 + $0x322] sm:$0xff]
  %5308 = vrot.lane.b32.xlu0 %v4731, 4
  %v5309 = vpop.permute.xlu0 %5308
  %5310 = vrot.lane.b32.xlu0 %v4732, 4
  %v5311 = vpop.permute.xlu0 %5310
  %5312 = vrot.lane.b32.xlu0 %v4733, 4
  %v5313 = vpop.permute.xlu0 %5312
  %5314 = vrot.lane.b32.xlu0 %v4734, 4
  %v5315 = vpop.permute.xlu0 %5314
  %5316 = vrot.lane.b32.xlu0 %v4735, 4
  %v5317 = vpop.permute.xlu0 %5316
  %5318 = vrot.lane.b32.xlu0 %v4736, 4
  %v5319 = vpop.permute.xlu0 %5318
  %5320 = vrot.lane.b32.xlu0 %v4737, 4
  %v5321 = vpop.permute.xlu0 %5320
  %5322 = vrot.lane.b32.xlu0 %v4738, 4
  %v5323 = vpop.permute.xlu0 %5322
  %5324 = vrot.lane.b32.xlu0 %v4739, 4
  %v5325 = vpop.permute.xlu0 %5324
  %5326 = vrot.lane.b32.xlu0 %v4740, 4
  %v5327 = vpop.permute.xlu0 %5326
  %5328 = vrot.lane.b32.xlu0 %v4741, 4
  %v5329 = vpop.permute.xlu0 %5328
  %5330 = vrot.lane.b32.xlu0 %v4742, 4
  %v5331 = vpop.permute.xlu0 %5330
  %5332 = vrot.lane.b32.xlu0 %v4743, 4
  %v5333 = vpop.permute.xlu0 %5332
  %5334 = vrot.lane.b32.xlu0 %v4744, 4
  %v5335 = vpop.permute.xlu0 %5334
  %5336 = vrot.lane.b32.xlu0 %v4745, 4
  %v5337 = vpop.permute.xlu0 %5336
  %5338 = vrot.lane.b32.xlu0 %v4746, 4
  %v5339 = vpop.permute.xlu0 %5338
  %5340 = vrot.lane.b32.xlu0 %v4747, 4
  %v5341 = vpop.permute.xlu0 %5340
  %5342 = vrot.lane.b32.xlu0 %v4748, 4
  %v5343 = vpop.permute.xlu0 %5342
  %5344 = vrot.lane.b32.xlu0 %v4749, 4
  %v5345 = vpop.permute.xlu0 %5344
  %5346 = vrot.lane.b32.xlu0 %v4750, 4
  %v5347 = vpop.permute.xlu0 %5346
  %5348 = vrot.lane.b32.xlu0 %v4751, 4
  %v5349 = vpop.permute.xlu0 %5348
  %5350 = vrot.lane.b32.xlu0 %v4752, 4
  %v5351 = vpop.permute.xlu0 %5350
  %5352 = vrot.lane.b32.xlu0 %v4753, 4
  %v5353 = vpop.permute.xlu0 %5352
  %5354 = vrot.lane.b32.xlu0 %v4754, 4
  %v5355 = vpop.permute.xlu0 %5354
  %5356 = vrot.lane.b32.xlu0 %v4755, 4
  %v5357 = vpop.permute.xlu0 %5356
  %5358 = vrot.lane.b32.xlu0 %v4756, 4
  %v5359 = vpop.permute.xlu0 %5358
  %5360 = vrot.lane.b32.xlu0 %v4757, 4
  %v5361 = vpop.permute.xlu0 %5360
  %5362 = vrot.lane.b32.xlu0 %v4758, 4
  %v5363 = vpop.permute.xlu0 %5362
  %5364 = vrot.lane.b32.xlu0 %v4759, 4
  %v5365 = vpop.permute.xlu0 %5364
  %5366 = vrot.lane.b32.xlu0 %v4760, 4
  %v5367 = vpop.permute.xlu0 %5366
  %5368 = vrot.lane.b32.xlu0 %v4761, 4
  %v5369 = vpop.permute.xlu0 %5368
  %5370 = vrot.lane.b32.xlu0 %v4762, 4
  %v5371 = vpop.permute.xlu0 %5370
  %5372 = vrot.lane.b32.xlu0 %v4763, 4
  %v5373 = vpop.permute.xlu0 %5372
  %5374 = vrot.lane.b32.xlu0 %v4764, 4
  %v5375 = vpop.permute.xlu0 %5374
  %5376 = vrot.lane.b32.xlu0 %v4765, 4
  %v5377 = vpop.permute.xlu0 %5376
  %5378 = vrot.lane.b32.xlu0 %v4766, 4
  %v5379 = vpop.permute.xlu0 %5378
  %5380 = vrot.lane.b32.xlu0 %v4767, 4
  %v5381 = vpop.permute.xlu0 %5380
  %5382 = vrot.lane.b32.xlu0 %v4768, 4
  %v5383 = vpop.permute.xlu0 %5382
  %5384 = vrot.lane.b32.xlu0 %v4769, 4
  %v5385 = vpop.permute.xlu0 %5384
  %5386 = vrot.lane.b32.xlu0 %v4770, 4
  %v5387 = vpop.permute.xlu0 %5386
  %5388 = vrot.lane.b32.xlu0 %v4771, 4
  %v5389 = vpop.permute.xlu0 %5388
  %5390 = vrot.lane.b32.xlu0 %v4772, 4
  %v5391 = vpop.permute.xlu0 %5390
  %5392 = vrot.lane.b32.xlu0 %v4773, 4
  %v5393 = vpop.permute.xlu0 %5392
  %5394 = vrot.lane.b32.xlu0 %v4774, 4
  %v5395 = vpop.permute.xlu0 %5394
  %5396 = vrot.lane.b32.xlu0 %v4775, 4
  %v5397 = vpop.permute.xlu0 %5396
  %5398 = vrot.lane.b32.xlu0 %v4776, 4
  %v5399 = vpop.permute.xlu0 %5398
  %5400 = vrot.lane.b32.xlu0 %v4777, 4
  %v5401 = vpop.permute.xlu0 %5400
  %5402 = vrot.lane.b32.xlu0 %v4778, 4
  %v5403 = vpop.permute.xlu0 %5402
  %5404 = vrot.lane.b32.xlu0 %v4779, 4
  %v5405 = vpop.permute.xlu0 %5404
  %5406 = vrot.lane.b32.xlu0 %v4780, 4
  %v5407 = vpop.permute.xlu0 %5406
  %5408 = vrot.lane.b32.xlu0 %v4781, 4
  %v5409 = vpop.permute.xlu0 %5408
  %5410 = vrot.lane.b32.xlu0 %v4782, 4
  %v5411 = vpop.permute.xlu0 %5410
  %5412 = vrot.lane.b32.xlu0 %v4783, 4
  %v5413 = vpop.permute.xlu0 %5412
  %5414 = vrot.lane.b32.xlu0 %v4784, 4
  %v5415 = vpop.permute.xlu0 %5414
  %5416 = vrot.lane.b32.xlu0 %v4785, 4
  %v5417 = vpop.permute.xlu0 %5416
  %5418 = vrot.lane.b32.xlu0 %v4786, 4
  %v5419 = vpop.permute.xlu0 %5418
  %5420 = vrot.lane.b32.xlu0 %v4787, 4
  %v5421 = vpop.permute.xlu0 %5420
  %5422 = vrot.lane.b32.xlu0 %v4788, 4
  %v5423 = vpop.permute.xlu0 %5422
  %5424 = vrot.lane.b32.xlu0 %v4789, 4
  %v5425 = vpop.permute.xlu0 %5424
  %5426 = vrot.lane.b32.xlu0 %v4790, 4
  %v5427 = vpop.permute.xlu0 %5426
  %5428 = vrot.lane.b32.xlu0 %v4791, 4
  %v5429 = vpop.permute.xlu0 %5428
  %5430 = vrot.lane.b32.xlu0 %v4792, 4
  %v5431 = vpop.permute.xlu0 %5430
  %5432 = vrot.lane.b32.xlu0 %v4793, 4
  %v5433 = vpop.permute.xlu0 %5432
  %5434 = vrot.lane.b32.xlu0 %v4794, 4
  %v5435 = vpop.permute.xlu0 %5434
  %5564 = vrot.lane.b32.xlu0 %v4795, 8
  %v5565 = vpop.permute.xlu0 %5564
  %5566 = vrot.lane.b32.xlu0 %v4796, 8
  %v5567 = vpop.permute.xlu0 %5566
  %5568 = vrot.lane.b32.xlu0 %v4797, 8
  %v5569 = vpop.permute.xlu0 %5568
  %5570 = vrot.lane.b32.xlu0 %v4798, 8
  %v5571 = vpop.permute.xlu0 %5570
  %5572 = vrot.lane.b32.xlu0 %v4799, 8
  %v5573 = vpop.permute.xlu0 %5572
  %5574 = vrot.lane.b32.xlu0 %v4800, 8
  %v5575 = vpop.permute.xlu0 %5574
  %5576 = vrot.lane.b32.xlu0 %v4801, 8
  %v5577 = vpop.permute.xlu0 %5576
  %5578 = vrot.lane.b32.xlu0 %v4802, 8
  %v5579 = vpop.permute.xlu0 %5578
  %5580 = vrot.lane.b32.xlu0 %v4803, 8
  %v5581 = vpop.permute.xlu0 %5580
  %5582 = vrot.lane.b32.xlu0 %v4804, 8
  %v5583 = vpop.permute.xlu0 %5582
  %5584 = vrot.lane.b32.xlu0 %v4805, 8
  %v5585 = vpop.permute.xlu0 %5584
  %5586 = vrot.lane.b32.xlu0 %v4806, 8
  %v5587 = vpop.permute.xlu0 %5586
  %5588 = vrot.lane.b32.xlu0 %v4807, 8
  %v5589 = vpop.permute.xlu0 %5588
  %5590 = vrot.lane.b32.xlu0 %v4808, 8
  %v5591 = vpop.permute.xlu0 %5590
  %5592 = vrot.lane.b32.xlu0 %v4809, 8
  %v5593 = vpop.permute.xlu0 %5592
  %5594 = vrot.lane.b32.xlu0 %v4810, 8
  %v5595 = vpop.permute.xlu0 %5594
  %5596 = vrot.lane.b32.xlu0 %v4811, 8
  %v5597 = vpop.permute.xlu0 %5596
  %5598 = vrot.lane.b32.xlu0 %v4812, 8
  %v5599 = vpop.permute.xlu0 %5598
  %5600 = vrot.lane.b32.xlu0 %v4813, 8
  %v5601 = vpop.permute.xlu0 %5600
  %5602 = vrot.lane.b32.xlu0 %v4814, 8
  %v5603 = vpop.permute.xlu0 %5602
  %5604 = vrot.lane.b32.xlu0 %v4815, 8
  %v5605 = vpop.permute.xlu0 %5604
  %5606 = vrot.lane.b32.xlu0 %v4816, 8
  %v5607 = vpop.permute.xlu0 %5606
  %5608 = vrot.lane.b32.xlu0 %v4817, 8
  %v5609 = vpop.permute.xlu0 %5608
  %5610 = vrot.lane.b32.xlu0 %v4818, 8
  %v5611 = vpop.permute.xlu0 %5610
  %5612 = vrot.lane.b32.xlu0 %v4819, 8
  %v5613 = vpop.permute.xlu0 %5612
  %5614 = vrot.lane.b32.xlu0 %v4820, 8
  %v5615 = vpop.permute.xlu0 %5614
  %5616 = vrot.lane.b32.xlu0 %v4821, 8
  %v5617 = vpop.permute.xlu0 %5616
  %5618 = vrot.lane.b32.xlu0 %v4822, 8
  %v5619 = vpop.permute.xlu0 %5618
  %5620 = vrot.lane.b32.xlu0 %v4823, 8
  %v5621 = vpop.permute.xlu0 %5620
  %5622 = vrot.lane.b32.xlu0 %v4824, 8
  %v5623 = vpop.permute.xlu0 %5622
  %5624 = vrot.lane.b32.xlu0 %v4825, 8
  %v5625 = vpop.permute.xlu0 %5624
  %5626 = vrot.lane.b32.xlu0 %v4826, 8
  %v5627 = vpop.permute.xlu0 %5626
  %5628 = vrot.lane.b32.xlu0 %v4827, 8
  %v5629 = vpop.permute.xlu0 %5628
  %5630 = vrot.lane.b32.xlu0 %v4828, 8
  %v5631 = vpop.permute.xlu0 %5630
  %5632 = vrot.lane.b32.xlu0 %v4829, 8
  %v5633 = vpop.permute.xlu0 %5632
  %5634 = vrot.lane.b32.xlu0 %v4830, 8
  %v5635 = vpop.permute.xlu0 %5634
  %5636 = vrot.lane.b32.xlu0 %v4831, 8
  %v5637 = vpop.permute.xlu0 %5636
  %5638 = vrot.lane.b32.xlu0 %v4832, 8
  %v5639 = vpop.permute.xlu0 %5638
  %5640 = vrot.lane.b32.xlu0 %v4833, 8
  %v5641 = vpop.permute.xlu0 %5640
  %5642 = vrot.lane.b32.xlu0 %v4834, 8
  %v5643 = vpop.permute.xlu0 %5642
  %5644 = vrot.lane.b32.xlu0 %v4835, 8
  %v5645 = vpop.permute.xlu0 %5644
  %5646 = vrot.lane.b32.xlu0 %v4836, 8
  %v5647 = vpop.permute.xlu0 %5646
  %5648 = vrot.lane.b32.xlu0 %v4837, 8
  %v5649 = vpop.permute.xlu0 %5648
  %5650 = vrot.lane.b32.xlu0 %v4838, 8
  %v5651 = vpop.permute.xlu0 %5650
  %5652 = vrot.lane.b32.xlu0 %v4839, 8
  %v5653 = vpop.permute.xlu0 %5652
  %5654 = vrot.lane.b32.xlu0 %v4840, 8
  %v5655 = vpop.permute.xlu0 %5654
  %5656 = vrot.lane.b32.xlu0 %v4841, 8
  %v5657 = vpop.permute.xlu0 %5656
  %5658 = vrot.lane.b32.xlu0 %v4842, 8
  %v5659 = vpop.permute.xlu0 %5658
  %5660 = vrot.lane.b32.xlu0 %v4843, 8
  %v5661 = vpop.permute.xlu0 %5660
  %5662 = vrot.lane.b32.xlu0 %v4844, 8
  %v5663 = vpop.permute.xlu0 %5662
  %5664 = vrot.lane.b32.xlu0 %v4845, 8
  %v5665 = vpop.permute.xlu0 %5664
  %5666 = vrot.lane.b32.xlu0 %v4846, 8
  %v5667 = vpop.permute.xlu0 %5666
  %5668 = vrot.lane.b32.xlu0 %v4847, 8
  %v5669 = vpop.permute.xlu0 %5668
  %5670 = vrot.lane.b32.xlu0 %v4848, 8
  %v5671 = vpop.permute.xlu0 %5670
  %5672 = vrot.lane.b32.xlu0 %v4849, 8
  %v5673 = vpop.permute.xlu0 %5672
  %5674 = vrot.lane.b32.xlu0 %v4850, 8
  %v5675 = vpop.permute.xlu0 %5674
  %5676 = vrot.lane.b32.xlu0 %v4851, 8
  %v5677 = vpop.permute.xlu0 %5676
  %5678 = vrot.lane.b32.xlu0 %v4852, 8
  %v5679 = vpop.permute.xlu0 %5678
  %5680 = vrot.lane.b32.xlu0 %v4853, 8
  %v5681 = vpop.permute.xlu0 %5680
  %5682 = vrot.lane.b32.xlu0 %v4854, 8
  %v5683 = vpop.permute.xlu0 %5682
  %5684 = vrot.lane.b32.xlu0 %v4855, 8
  %v5685 = vpop.permute.xlu0 %5684
  %5686 = vrot.lane.b32.xlu0 %v4856, 8
  %v5687 = vpop.permute.xlu0 %5686
  %5688 = vrot.lane.b32.xlu0 %v4857, 8
  %v5689 = vpop.permute.xlu0 %5688
  %5690 = vrot.lane.b32.xlu0 %v4858, 8
  %v5691 = vpop.permute.xlu0 %5690
  %5820 = vrot.lane.b32.xlu0 %v4859, 12
  %v5821 = vpop.permute.xlu0 %5820
  %5822 = vrot.lane.b32.xlu0 %v4860, 12
  %v5823 = vpop.permute.xlu0 %5822
  %5824 = vrot.lane.b32.xlu0 %v4861, 12
  %v5825 = vpop.permute.xlu0 %5824
  %5826 = vrot.lane.b32.xlu0 %v4862, 12
  %v5827 = vpop.permute.xlu0 %5826
  %5828 = vrot.lane.b32.xlu0 %v4863, 12
  %v5829 = vpop.permute.xlu0 %5828
  %5830 = vrot.lane.b32.xlu0 %v4864, 12
  %v5831 = vpop.permute.xlu0 %5830
  %5832 = vrot.lane.b32.xlu0 %v4865, 12
  %v5833 = vpop.permute.xlu0 %5832
  %5834 = vrot.lane.b32.xlu0 %v4866, 12
  %v5835 = vpop.permute.xlu0 %5834
  %5836 = vrot.lane.b32.xlu0 %v4867, 12
  %v5837 = vpop.permute.xlu0 %5836
  %5838 = vrot.lane.b32.xlu0 %v4868, 12
  %v5839 = vpop.permute.xlu0 %5838
  %5840 = vrot.lane.b32.xlu0 %v4869, 12
  %v5841 = vpop.permute.xlu0 %5840
  %5842 = vrot.lane.b32.xlu0 %v4870, 12
  %v5843 = vpop.permute.xlu0 %5842
  %5844 = vrot.lane.b32.xlu0 %v4871, 12
  %v5845 = vpop.permute.xlu0 %5844
  %5846 = vrot.lane.b32.xlu0 %v4872, 12
  %v5847 = vpop.permute.xlu0 %5846
  %5848 = vrot.lane.b32.xlu0 %v4873, 12
  %v5849 = vpop.permute.xlu0 %5848
  %5850 = vrot.lane.b32.xlu0 %v4874, 12
  %v5851 = vpop.permute.xlu0 %5850
  %5852 = vrot.lane.b32.xlu0 %v4875, 12
  %v5853 = vpop.permute.xlu0 %5852
  %5854 = vrot.lane.b32.xlu0 %v4876, 12
  %v5855 = vpop.permute.xlu0 %5854
  %5856 = vrot.lane.b32.xlu0 %v4877, 12
  %v5857 = vpop.permute.xlu0 %5856
  %5858 = vrot.lane.b32.xlu0 %v4878, 12
  %v5859 = vpop.permute.xlu0 %5858
  %5860 = vrot.lane.b32.xlu0 %v4879, 12
  %v5861 = vpop.permute.xlu0 %5860
  %5862 = vrot.lane.b32.xlu0 %v4880, 12
  %v5863 = vpop.permute.xlu0 %5862
  %5864 = vrot.lane.b32.xlu0 %v4881, 12
  %v5865 = vpop.permute.xlu0 %5864
  %5866 = vrot.lane.b32.xlu0 %v4882, 12
  %v5867 = vpop.permute.xlu0 %5866
  %5868 = vrot.lane.b32.xlu0 %v4883, 12
  %v5869 = vpop.permute.xlu0 %5868
  %5870 = vrot.lane.b32.xlu0 %v4884, 12
  %v5871 = vpop.permute.xlu0 %5870
  %5872 = vrot.lane.b32.xlu0 %v4885, 12
  %v5873 = vpop.permute.xlu0 %5872
  %5874 = vrot.lane.b32.xlu0 %v4886, 12
  %v5875 = vpop.permute.xlu0 %5874
  %5876 = vrot.lane.b32.xlu0 %v4887, 12
  %v5877 = vpop.permute.xlu0 %5876
  %5878 = vrot.lane.b32.xlu0 %v4888, 12
  %v5879 = vpop.permute.xlu0 %5878
  %5880 = vrot.lane.b32.xlu0 %v4889, 12
  %v5881 = vpop.permute.xlu0 %5880
  %5882 = vrot.lane.b32.xlu0 %v4890, 12
  %v5883 = vpop.permute.xlu0 %5882
  %5884 = vrot.lane.b32.xlu0 %v4891, 12
  %v5885 = vpop.permute.xlu0 %5884
  %5886 = vrot.lane.b32.xlu0 %v4892, 12
  %v5887 = vpop.permute.xlu0 %5886
  %5888 = vrot.lane.b32.xlu0 %v4893, 12
  %v5889 = vpop.permute.xlu0 %5888
  %5890 = vrot.lane.b32.xlu0 %v4894, 12
  %v5891 = vpop.permute.xlu0 %5890
  %5892 = vrot.lane.b32.xlu0 %v4895, 12
  %v5893 = vpop.permute.xlu0 %5892
  %5894 = vrot.lane.b32.xlu0 %v4896, 12
  %v5895 = vpop.permute.xlu0 %5894
  %5896 = vrot.lane.b32.xlu0 %v4897, 12
  %v5897 = vpop.permute.xlu0 %5896
  %5898 = vrot.lane.b32.xlu0 %v4898, 12
  %v5899 = vpop.permute.xlu0 %5898
  %5900 = vrot.lane.b32.xlu0 %v4899, 12
  %v5901 = vpop.permute.xlu0 %5900
  %5902 = vrot.lane.b32.xlu0 %v4900, 12
  %v5903 = vpop.permute.xlu0 %5902
  %5904 = vrot.lane.b32.xlu0 %v4901, 12
  %v5905 = vpop.permute.xlu0 %5904
  %5906 = vrot.lane.b32.xlu0 %v4902, 12
  %v5907 = vpop.permute.xlu0 %5906
  %5908 = vrot.lane.b32.xlu0 %v4903, 12
  %v5909 = vpop.permute.xlu0 %5908
  %5910 = vrot.lane.b32.xlu0 %v4904, 12
  %v5911 = vpop.permute.xlu0 %5910
  %5912 = vrot.lane.b32.xlu0 %v4905, 12
  %v5913 = vpop.permute.xlu0 %5912
  %5914 = vrot.lane.b32.xlu0 %v4906, 12
  %v5915 = vpop.permute.xlu0 %5914
  %5916 = vrot.lane.b32.xlu0 %v4907, 12
  %v5917 = vpop.permute.xlu0 %5916
  %5918 = vrot.lane.b32.xlu0 %v4908, 12
  %v5919 = vpop.permute.xlu0 %5918
  %5920 = vrot.lane.b32.xlu0 %v4909, 12
  %v5921 = vpop.permute.xlu0 %5920
  %5922 = vrot.lane.b32.xlu0 %v4910, 12
  %v5923 = vpop.permute.xlu0 %5922
  %5924 = vrot.lane.b32.xlu0 %v4911, 12
  %v5925 = vpop.permute.xlu0 %5924
  %5926 = vrot.lane.b32.xlu0 %v4912, 12
  %v5927 = vpop.permute.xlu0 %5926
  %5928 = vrot.lane.b32.xlu0 %v4913, 12
  %v5929 = vpop.permute.xlu0 %5928
  %5930 = vrot.lane.b32.xlu0 %v4914, 12
  %v5931 = vpop.permute.xlu0 %5930
  %5932 = vrot.lane.b32.xlu0 %v4915, 12
  %v5933 = vpop.permute.xlu0 %5932
  %5934 = vrot.lane.b32.xlu0 %v4916, 12
  %v5935 = vpop.permute.xlu0 %5934
  %5936 = vrot.lane.b32.xlu0 %v4917, 12
  %v5937 = vpop.permute.xlu0 %5936
  %5938 = vrot.lane.b32.xlu0 %v4918, 12
  %v5939 = vpop.permute.xlu0 %5938
  %5940 = vrot.lane.b32.xlu0 %v4919, 12
  %v5941 = vpop.permute.xlu0 %5940
  %5942 = vrot.lane.b32.xlu0 %v4920, 12
  %v5943 = vpop.permute.xlu0 %5942
  %5944 = vrot.lane.b32.xlu0 %v4921, 12
  %v5945 = vpop.permute.xlu0 %5944
  %5946 = vrot.lane.b32.xlu0 %v4922, 12
  %v5947 = vpop.permute.xlu0 %5946
  %6076 = vrot.lane.b32.xlu0 %v4923, 16
  %v6077 = vpop.permute.xlu0 %6076
  %6078 = vrot.lane.b32.xlu0 %v4924, 16
  %v6079 = vpop.permute.xlu0 %6078
  %6080 = vrot.lane.b32.xlu0 %v4925, 16
  %v6081 = vpop.permute.xlu0 %6080
  %6082 = vrot.lane.b32.xlu0 %v4926, 16
  %v6083 = vpop.permute.xlu0 %6082
  %6084 = vrot.lane.b32.xlu0 %v4927, 16
  %v6085 = vpop.permute.xlu0 %6084
  %6086 = vrot.lane.b32.xlu0 %v4928, 16
  %v6087 = vpop.permute.xlu0 %6086
  %6088 = vrot.lane.b32.xlu0 %v4929, 16
  %v6089 = vpop.permute.xlu0 %6088
  %6090 = vrot.lane.b32.xlu0 %v4930, 16
  %v6091 = vpop.permute.xlu0 %6090
  %6092 = vrot.lane.b32.xlu0 %v4931, 16
  %v6093 = vpop.permute.xlu0 %6092
  %6094 = vrot.lane.b32.xlu0 %v4932, 16
  %v6095 = vpop.permute.xlu0 %6094
  %6096 = vrot.lane.b32.xlu0 %v4933, 16
  %v6097 = vpop.permute.xlu0 %6096
  %6098 = vrot.lane.b32.xlu0 %v4934, 16
  %v6099 = vpop.permute.xlu0 %6098
  %6100 = vrot.lane.b32.xlu0 %v4935, 16
  %v6101 = vpop.permute.xlu0 %6100
  %6102 = vrot.lane.b32.xlu0 %v4936, 16
  %v6103 = vpop.permute.xlu0 %6102
  %6104 = vrot.lane.b32.xlu0 %v4937, 16
  %v6105 = vpop.permute.xlu0 %6104
  %6106 = vrot.lane.b32.xlu0 %v4938, 16
  %v6107 = vpop.permute.xlu0 %6106
  %6108 = vrot.lane.b32.xlu0 %v4939, 16
  %v6109 = vpop.permute.xlu0 %6108
  %6110 = vrot.lane.b32.xlu0 %v4940, 16
  %v6111 = vpop.permute.xlu0 %6110
  %6112 = vrot.lane.b32.xlu0 %v4941, 16
  %v6113 = vpop.permute.xlu0 %6112
  %6114 = vrot.lane.b32.xlu0 %v4942, 16
  %v6115 = vpop.permute.xlu0 %6114
  %6116 = vrot.lane.b32.xlu0 %v4943, 16
  %v6117 = vpop.permute.xlu0 %6116
  %6118 = vrot.lane.b32.xlu0 %v4944, 16
  %v6119 = vpop.permute.xlu0 %6118
  %6120 = vrot.lane.b32.xlu0 %v4945, 16
  %v6121 = vpop.permute.xlu0 %6120
  %6122 = vrot.lane.b32.xlu0 %v4946, 16
  %v6123 = vpop.permute.xlu0 %6122
  %6124 = vrot.lane.b32.xlu0 %v4947, 16
  %v6125 = vpop.permute.xlu0 %6124
  %6126 = vrot.lane.b32.xlu0 %v4948, 16
  %v6127 = vpop.permute.xlu0 %6126
  %6128 = vrot.lane.b32.xlu0 %v4949, 16
  %v6129 = vpop.permute.xlu0 %6128
  %6130 = vrot.lane.b32.xlu0 %v4950, 16
  %v6131 = vpop.permute.xlu0 %6130
  %6132 = vrot.lane.b32.xlu0 %v4951, 16
  %v6133 = vpop.permute.xlu0 %6132
  %6134 = vrot.lane.b32.xlu0 %v4952, 16
  %v6135 = vpop.permute.xlu0 %6134
  %6136 = vrot.lane.b32.xlu0 %v4953, 16
  %v6137 = vpop.permute.xlu0 %6136
  %6138 = vrot.lane.b32.xlu0 %v4954, 16
  %v6139 = vpop.permute.xlu0 %6138
  %6140 = vrot.lane.b32.xlu0 %v4955, 16
  %v6141 = vpop.permute.xlu0 %6140
  %6142 = vrot.lane.b32.xlu0 %v4956, 16
  %v6143 = vpop.permute.xlu0 %6142
  %6144 = vrot.lane.b32.xlu0 %v4957, 16
  %v6145 = vpop.permute.xlu0 %6144
  %6146 = vrot.lane.b32.xlu0 %v4958, 16
  %v6147 = vpop.permute.xlu0 %6146
  %6148 = vrot.lane.b32.xlu0 %v4959, 16
  %v6149 = vpop.permute.xlu0 %6148
  %6150 = vrot.lane.b32.xlu0 %v4960, 16
  %v6151 = vpop.permute.xlu0 %6150
  %6152 = vrot.lane.b32.xlu0 %v4961, 16
  %v6153 = vpop.permute.xlu0 %6152
  %6154 = vrot.lane.b32.xlu0 %v4962, 16
  %v6155 = vpop.permute.xlu0 %6154
  %6156 = vrot.lane.b32.xlu0 %v4963, 16
  %v6157 = vpop.permute.xlu0 %6156
  %6158 = vrot.lane.b32.xlu0 %v4964, 16
  %v6159 = vpop.permute.xlu0 %6158
  %6160 = vrot.lane.b32.xlu0 %v4965, 16
  %v6161 = vpop.permute.xlu0 %6160
  %6162 = vrot.lane.b32.xlu0 %v4966, 16
  %v6163 = vpop.permute.xlu0 %6162
  %6164 = vrot.lane.b32.xlu0 %v4967, 16
  %v6165 = vpop.permute.xlu0 %6164
  %6166 = vrot.lane.b32.xlu0 %v4968, 16
  %v6167 = vpop.permute.xlu0 %6166
  %6168 = vrot.lane.b32.xlu0 %v4969, 16
  %v6169 = vpop.permute.xlu0 %6168
  %6170 = vrot.lane.b32.xlu0 %v4970, 16
  %v6171 = vpop.permute.xlu0 %6170
  %6172 = vrot.lane.b32.xlu0 %v4971, 16
  %v6173 = vpop.permute.xlu0 %6172
  %6174 = vrot.lane.b32.xlu0 %v4972, 16
  %v6175 = vpop.permute.xlu0 %6174
  %6176 = vrot.lane.b32.xlu0 %v4973, 16
  %v6177 = vpop.permute.xlu0 %6176
  %6178 = vrot.lane.b32.xlu0 %v4974, 16
  %v6179 = vpop.permute.xlu0 %6178
  %6180 = vrot.lane.b32.xlu0 %v4975, 16
  %v6181 = vpop.permute.xlu0 %6180
  %6182 = vrot.lane.b32.xlu0 %v4976, 16
  %v6183 = vpop.permute.xlu0 %6182
  %6184 = vrot.lane.b32.xlu0 %v4977, 16
  %v6185 = vpop.permute.xlu0 %6184
  %6186 = vrot.lane.b32.xlu0 %v4978, 16
  %v6187 = vpop.permute.xlu0 %6186
  %6188 = vrot.lane.b32.xlu0 %v4979, 16
  %v6189 = vpop.permute.xlu0 %6188
  %6190 = vrot.lane.b32.xlu0 %v4980, 16
  %v6191 = vpop.permute.xlu0 %6190
  %6192 = vrot.lane.b32.xlu0 %v4981, 16
  %v6193 = vpop.permute.xlu0 %6192
  %6194 = vrot.lane.b32.xlu0 %v4982, 16
  %v6195 = vpop.permute.xlu0 %6194
  %6196 = vrot.lane.b32.xlu0 %v4983, 16
  %v6197 = vpop.permute.xlu0 %6196
  %6198 = vrot.lane.b32.xlu0 %v4984, 16
  %v6199 = vpop.permute.xlu0 %6198
  %6200 = vrot.lane.b32.xlu0 %v4985, 16
  %v6201 = vpop.permute.xlu0 %6200
  %6202 = vrot.lane.b32.xlu0 %v4986, 16
  %v6203 = vpop.permute.xlu0 %6202
  %6332 = vrot.lane.b32.xlu0 %v4987, 20
  %v6333 = vpop.permute.xlu0 %6332
  %6334 = vrot.lane.b32.xlu0 %v4988, 20
  %v6335 = vpop.permute.xlu0 %6334
  %6336 = vrot.lane.b32.xlu0 %v4989, 20
  %v6337 = vpop.permute.xlu0 %6336
  %6338 = vrot.lane.b32.xlu0 %v4990, 20
  %v6339 = vpop.permute.xlu0 %6338
  %6340 = vrot.lane.b32.xlu0 %v4991, 20
  %v6341 = vpop.permute.xlu0 %6340
  %6342 = vrot.lane.b32.xlu0 %v4992, 20
  %v6343 = vpop.permute.xlu0 %6342
  %6344 = vrot.lane.b32.xlu0 %v4993, 20
  %v6345 = vpop.permute.xlu0 %6344
  %6346 = vrot.lane.b32.xlu0 %v4994, 20
  %v6347 = vpop.permute.xlu0 %6346
  %6348 = vrot.lane.b32.xlu0 %v4995, 20
  %v6349 = vpop.permute.xlu0 %6348
  %6350 = vrot.lane.b32.xlu0 %v4996, 20
  %v6351 = vpop.permute.xlu0 %6350
  %6352 = vrot.lane.b32.xlu0 %v4997, 20
  %v6353 = vpop.permute.xlu0 %6352
  %6354 = vrot.lane.b32.xlu0 %v4998, 20
  %v6355 = vpop.permute.xlu0 %6354
  %6356 = vrot.lane.b32.xlu0 %v4999, 20
  %v6357 = vpop.permute.xlu0 %6356
  %6358 = vrot.lane.b32.xlu0 %v5000, 20
  %v6359 = vpop.permute.xlu0 %6358
  %6360 = vrot.lane.b32.xlu0 %v5001, 20
  %v6361 = vpop.permute.xlu0 %6360
  %6362 = vrot.lane.b32.xlu0 %v5002, 20
  %v6363 = vpop.permute.xlu0 %6362
  %6364 = vrot.lane.b32.xlu0 %v5003, 20
  %v6365 = vpop.permute.xlu0 %6364
  %6366 = vrot.lane.b32.xlu0 %v5004, 20
  %v6367 = vpop.permute.xlu0 %6366
  %6368 = vrot.lane.b32.xlu0 %v5005, 20
  %v6369 = vpop.permute.xlu0 %6368
  %6370 = vrot.lane.b32.xlu0 %v5006, 20
  %v6371 = vpop.permute.xlu0 %6370
  %6372 = vrot.lane.b32.xlu0 %v5007, 20
  %v6373 = vpop.permute.xlu0 %6372
  %6374 = vrot.lane.b32.xlu0 %v5008, 20
  %v6375 = vpop.permute.xlu0 %6374
  %6376 = vrot.lane.b32.xlu0 %v5009, 20
  %v6377 = vpop.permute.xlu0 %6376
  %6378 = vrot.lane.b32.xlu0 %v5010, 20
  %v6379 = vpop.permute.xlu0 %6378
  %6380 = vrot.lane.b32.xlu0 %v5011, 20
  %v6381 = vpop.permute.xlu0 %6380
  %6382 = vrot.lane.b32.xlu0 %v5012, 20
  %v6383 = vpop.permute.xlu0 %6382
  %6384 = vrot.lane.b32.xlu0 %v5013, 20
  %v6385 = vpop.permute.xlu0 %6384
  %6386 = vrot.lane.b32.xlu0 %v5014, 20
  %v6387 = vpop.permute.xlu0 %6386
  %6388 = vrot.lane.b32.xlu0 %v5015, 20
  %v6389 = vpop.permute.xlu0 %6388
  %6390 = vrot.lane.b32.xlu0 %v5016, 20
  %v6391 = vpop.permute.xlu0 %6390
  %6392 = vrot.lane.b32.xlu0 %v5017, 20
  %v6393 = vpop.permute.xlu0 %6392
  %6394 = vrot.lane.b32.xlu0 %v5018, 20
  %v6395 = vpop.permute.xlu0 %6394
  %6396 = vrot.lane.b32.xlu0 %v5019, 20
  %v6397 = vpop.permute.xlu0 %6396
  %6398 = vrot.lane.b32.xlu0 %v5020, 20
  %v6399 = vpop.permute.xlu0 %6398
  %6400 = vrot.lane.b32.xlu0 %v5021, 20
  %v6401 = vpop.permute.xlu0 %6400
  %6402 = vrot.lane.b32.xlu0 %v5022, 20
  %v6403 = vpop.permute.xlu0 %6402
  %6404 = vrot.lane.b32.xlu0 %v5023, 20
  %v6405 = vpop.permute.xlu0 %6404
  %6406 = vrot.lane.b32.xlu0 %v5024, 20
  %v6407 = vpop.permute.xlu0 %6406
  %6408 = vrot.lane.b32.xlu0 %v5025, 20
  %v6409 = vpop.permute.xlu0 %6408
  %6410 = vrot.lane.b32.xlu0 %v5026, 20
  %v6411 = vpop.permute.xlu0 %6410
  %6412 = vrot.lane.b32.xlu0 %v5027, 20
  %v6413 = vpop.permute.xlu0 %6412
  %6414 = vrot.lane.b32.xlu0 %v5028, 20
  %v6415 = vpop.permute.xlu0 %6414
  %6416 = vrot.lane.b32.xlu0 %v5029, 20
  %v6417 = vpop.permute.xlu0 %6416
  %6418 = vrot.lane.b32.xlu0 %v5030, 20
  %v6419 = vpop.permute.xlu0 %6418
  %6420 = vrot.lane.b32.xlu0 %v5031, 20
  %v6421 = vpop.permute.xlu0 %6420
  %6422 = vrot.lane.b32.xlu0 %v5032, 20
  %v6423 = vpop.permute.xlu0 %6422
  %6424 = vrot.lane.b32.xlu0 %v5033, 20
  %v6425 = vpop.permute.xlu0 %6424
  %6426 = vrot.lane.b32.xlu0 %v5034, 20
  %v6427 = vpop.permute.xlu0 %6426
  %6428 = vrot.lane.b32.xlu0 %v5035, 20
  %v6429 = vpop.permute.xlu0 %6428
  %6430 = vrot.lane.b32.xlu0 %v5036, 20
  %v6431 = vpop.permute.xlu0 %6430
  %6432 = vrot.lane.b32.xlu0 %v5037, 20
  %v6433 = vpop.permute.xlu0 %6432
  %6434 = vrot.lane.b32.xlu0 %v5038, 20
  %v6435 = vpop.permute.xlu0 %6434
  %6436 = vrot.lane.b32.xlu0 %v5039, 20
  %v6437 = vpop.permute.xlu0 %6436
  %6438 = vrot.lane.b32.xlu0 %v5040, 20
  %v6439 = vpop.permute.xlu0 %6438
  %6440 = vrot.lane.b32.xlu0 %v5041, 20
  %v6441 = vpop.permute.xlu0 %6440
  %6442 = vrot.lane.b32.xlu0 %v5042, 20
  %v6443 = vpop.permute.xlu0 %6442
  %6444 = vrot.lane.b32.xlu0 %v5043, 20
  %v6445 = vpop.permute.xlu0 %6444
  %6446 = vrot.lane.b32.xlu0 %v5044, 20
  %v6447 = vpop.permute.xlu0 %6446
  %6448 = vrot.lane.b32.xlu0 %v5045, 20
  %v6449 = vpop.permute.xlu0 %6448
  %6450 = vrot.lane.b32.xlu0 %v5046, 20
  %v6451 = vpop.permute.xlu0 %6450
  %6452 = vrot.lane.b32.xlu0 %v5047, 20
  %v6453 = vpop.permute.xlu0 %6452
  %6454 = vrot.lane.b32.xlu0 %v5048, 20
  %v6455 = vpop.permute.xlu0 %6454
  %6456 = vrot.lane.b32.xlu0 %v5049, 20
  %v6457 = vpop.permute.xlu0 %6456
  %6458 = vrot.lane.b32.xlu0 %v5050, 20
  %v6459 = vpop.permute.xlu0 %6458
  %6588 = vrot.lane.b32.xlu0 %v5052, 24
  %v6589 = vpop.permute.xlu0 %6588
  %6590 = vrot.lane.b32.xlu0 %v5053, 24
  %v6591 = vpop.permute.xlu0 %6590
  %6592 = vrot.lane.b32.xlu0 %v5054, 24
  %v6593 = vpop.permute.xlu0 %6592
  %6594 = vrot.lane.b32.xlu0 %v5055, 24
  %v6595 = vpop.permute.xlu0 %6594
  %6596 = vrot.lane.b32.xlu0 %v5056, 24
  %v6597 = vpop.permute.xlu0 %6596
  %6598 = vrot.lane.b32.xlu0 %v5057, 24
  %v6599 = vpop.permute.xlu0 %6598
  %6600 = vrot.lane.b32.xlu0 %v5058, 24
  %v6601 = vpop.permute.xlu0 %6600
  %6602 = vrot.lane.b32.xlu0 %v5059, 24
  %v6603 = vpop.permute.xlu0 %6602
  %6604 = vrot.lane.b32.xlu0 %v5060, 24
  %v6605 = vpop.permute.xlu0 %6604
  %6606 = vrot.lane.b32.xlu0 %v5061, 24
  %v6607 = vpop.permute.xlu0 %6606
  %6608 = vrot.lane.b32.xlu0 %v5062, 24
  %v6609 = vpop.permute.xlu0 %6608
  %6610 = vrot.lane.b32.xlu0 %v5063, 24
  %v6611 = vpop.permute.xlu0 %6610
  %6612 = vrot.lane.b32.xlu0 %v5064, 24
  %v6613 = vpop.permute.xlu0 %6612
  %6614 = vrot.lane.b32.xlu0 %v5065, 24
  %v6615 = vpop.permute.xlu0 %6614
  %6616 = vrot.lane.b32.xlu0 %v5066, 24
  %v6617 = vpop.permute.xlu0 %6616
  %6618 = vrot.lane.b32.xlu0 %v5067, 24
  %v6619 = vpop.permute.xlu0 %6618
  %6620 = vrot.lane.b32.xlu0 %v5068, 24
  %v6621 = vpop.permute.xlu0 %6620
  %6622 = vrot.lane.b32.xlu0 %v5069, 24
  %v6623 = vpop.permute.xlu0 %6622
  %6624 = vrot.lane.b32.xlu0 %v5070, 24
  %v6625 = vpop.permute.xlu0 %6624
  %6626 = vrot.lane.b32.xlu0 %v5071, 24
  %v6627 = vpop.permute.xlu0 %6626
  %6628 = vrot.lane.b32.xlu0 %v5072, 24
  %v6629 = vpop.permute.xlu0 %6628
  %6630 = vrot.lane.b32.xlu0 %v5073, 24
  %v6631 = vpop.permute.xlu0 %6630
  %6632 = vrot.lane.b32.xlu0 %v5074, 24
  %v6633 = vpop.permute.xlu0 %6632
  %6634 = vrot.lane.b32.xlu0 %v5075, 24
  %v6635 = vpop.permute.xlu0 %6634
  %6636 = vrot.lane.b32.xlu0 %v5076, 24
  %v6637 = vpop.permute.xlu0 %6636
  %6638 = vrot.lane.b32.xlu0 %v5077, 24
  %v6639 = vpop.permute.xlu0 %6638
  %6640 = vrot.lane.b32.xlu0 %v5078, 24
  %v6641 = vpop.permute.xlu0 %6640
  %6642 = vrot.lane.b32.xlu0 %v5079, 24
  %v6643 = vpop.permute.xlu0 %6642
  %6644 = vrot.lane.b32.xlu0 %v5080, 24
  %v6645 = vpop.permute.xlu0 %6644
  %6646 = vrot.lane.b32.xlu0 %v5081, 24
  %v6647 = vpop.permute.xlu0 %6646
  %6648 = vrot.lane.b32.xlu0 %v5082, 24
  %v6649 = vpop.permute.xlu0 %6648
  %6650 = vrot.lane.b32.xlu0 %v5083, 24
  %v6651 = vpop.permute.xlu0 %6650
  %6652 = vrot.lane.b32.xlu0 %v5084, 24
  %v6653 = vpop.permute.xlu0 %6652
  %6654 = vrot.lane.b32.xlu0 %v5085, 24
  %v6655 = vpop.permute.xlu0 %6654
  %6656 = vrot.lane.b32.xlu0 %v5086, 24
  %v6657 = vpop.permute.xlu0 %6656
  %6658 = vrot.lane.b32.xlu0 %v5087, 24
  %v6659 = vpop.permute.xlu0 %6658
  %6660 = vrot.lane.b32.xlu0 %v5088, 24
  %v6661 = vpop.permute.xlu0 %6660
  %6662 = vrot.lane.b32.xlu0 %v5089, 24
  %v6663 = vpop.permute.xlu0 %6662
  %6664 = vrot.lane.b32.xlu0 %v5090, 24
  %v6665 = vpop.permute.xlu0 %6664
  %6666 = vrot.lane.b32.xlu0 %v5091, 24
  %v6667 = vpop.permute.xlu0 %6666
  %6668 = vrot.lane.b32.xlu0 %v5092, 24
  %v6669 = vpop.permute.xlu0 %6668
  %6670 = vrot.lane.b32.xlu0 %v5093, 24
  %v6671 = vpop.permute.xlu0 %6670
  %6672 = vrot.lane.b32.xlu0 %v5094, 24
  %v6673 = vpop.permute.xlu0 %6672
  %6674 = vrot.lane.b32.xlu0 %v5095, 24
  %v6675 = vpop.permute.xlu0 %6674
  %6676 = vrot.lane.b32.xlu0 %v5096, 24
  %v6677 = vpop.permute.xlu0 %6676
  %6678 = vrot.lane.b32.xlu0 %v5097, 24
  %v6679 = vpop.permute.xlu0 %6678
  %6680 = vrot.lane.b32.xlu0 %v5098, 24
  %v6681 = vpop.permute.xlu0 %6680
  %6682 = vrot.lane.b32.xlu0 %v5099, 24
  %v6683 = vpop.permute.xlu0 %6682
  %6684 = vrot.lane.b32.xlu0 %v5100, 24
  %v6685 = vpop.permute.xlu0 %6684
  %6686 = vrot.lane.b32.xlu0 %v5101, 24
  %v6687 = vpop.permute.xlu0 %6686
  %6688 = vrot.lane.b32.xlu0 %v5102, 24
  %v6689 = vpop.permute.xlu0 %6688
  %6690 = vrot.lane.b32.xlu0 %v5103, 24
  %v6691 = vpop.permute.xlu0 %6690
  %6692 = vrot.lane.b32.xlu0 %v5104, 24
  %v6693 = vpop.permute.xlu0 %6692
  %6694 = vrot.lane.b32.xlu0 %v5105, 24
  %v6695 = vpop.permute.xlu0 %6694
  %6696 = vrot.lane.b32.xlu0 %v5106, 24
  %v6697 = vpop.permute.xlu0 %6696
  %6698 = vrot.lane.b32.xlu0 %v5107, 24
  %v6699 = vpop.permute.xlu0 %6698
  %6700 = vrot.lane.b32.xlu0 %v5108, 24
  %v6701 = vpop.permute.xlu0 %6700
  %6702 = vrot.lane.b32.xlu0 %v5109, 24
  %v6703 = vpop.permute.xlu0 %6702
  %6704 = vrot.lane.b32.xlu0 %v5110, 24
  %v6705 = vpop.permute.xlu0 %6704
  %6706 = vrot.lane.b32.xlu0 %v5111, 24
  %v6707 = vpop.permute.xlu0 %6706
  %6708 = vrot.lane.b32.xlu0 %v5112, 24
  %v6709 = vpop.permute.xlu0 %6708
  %6710 = vrot.lane.b32.xlu0 %v5113, 24
  %v6711 = vpop.permute.xlu0 %6710
  %6712 = vrot.lane.b32.xlu0 %v5114, 24
  %v6713 = vpop.permute.xlu0 %6712
  %6714 = vrot.lane.b32.xlu0 %v5115, 24
  %v6715 = vpop.permute.xlu0 %6714
  %6844 = vrot.lane.b32.xlu0 %v5116, 28
  %v6845 = vpop.permute.xlu0 %6844
  %6846 = vrot.lane.b32.xlu0 %v5117, 28
  %v6847 = vpop.permute.xlu0 %6846
  %6848 = vrot.lane.b32.xlu0 %v5118, 28
  %v6849 = vpop.permute.xlu0 %6848
  %6850 = vrot.lane.b32.xlu0 %v5119, 28
  %v6851 = vpop.permute.xlu0 %6850
  %6852 = vrot.lane.b32.xlu0 %v5120, 28
  %v6853 = vpop.permute.xlu0 %6852
  %6854 = vrot.lane.b32.xlu0 %v5121, 28
  %v6855 = vpop.permute.xlu0 %6854
  %6856 = vrot.lane.b32.xlu0 %v5122, 28
  %v6857 = vpop.permute.xlu0 %6856
  %6858 = vrot.lane.b32.xlu0 %v5123, 28
  %v6859 = vpop.permute.xlu0 %6858
  %6860 = vrot.lane.b32.xlu0 %v5124, 28
  %v6861 = vpop.permute.xlu0 %6860
  %6862 = vrot.lane.b32.xlu0 %v5125, 28
  %v6863 = vpop.permute.xlu0 %6862
  %6864 = vrot.lane.b32.xlu0 %v5126, 28
  %v6865 = vpop.permute.xlu0 %6864
  %6866 = vrot.lane.b32.xlu0 %v5127, 28
  %v6867 = vpop.permute.xlu0 %6866
  %6868 = vrot.lane.b32.xlu0 %v5128, 28
  %v6869 = vpop.permute.xlu0 %6868
  %6870 = vrot.lane.b32.xlu0 %v5129, 28
  %v6871 = vpop.permute.xlu0 %6870
  %6872 = vrot.lane.b32.xlu0 %v5130, 28
  %v6873 = vpop.permute.xlu0 %6872
  %6874 = vrot.lane.b32.xlu0 %v5131, 28
  %v6875 = vpop.permute.xlu0 %6874
  %6876 = vrot.lane.b32.xlu0 %v5132, 28
  %v6877 = vpop.permute.xlu0 %6876
  %6878 = vrot.lane.b32.xlu0 %v5133, 28
  %v6879 = vpop.permute.xlu0 %6878
  %6880 = vrot.lane.b32.xlu0 %v5134, 28
  %v6881 = vpop.permute.xlu0 %6880
  %6882 = vrot.lane.b32.xlu0 %v5135, 28
  %v6883 = vpop.permute.xlu0 %6882
  %6884 = vrot.lane.b32.xlu0 %v5136, 28
  %v6885 = vpop.permute.xlu0 %6884
  %6886 = vrot.lane.b32.xlu0 %v5137, 28
  %v6887 = vpop.permute.xlu0 %6886
  %6888 = vrot.lane.b32.xlu0 %v5138, 28
  %v6889 = vpop.permute.xlu0 %6888
  %6890 = vrot.lane.b32.xlu0 %v5139, 28
  %v6891 = vpop.permute.xlu0 %6890
  %6892 = vrot.lane.b32.xlu0 %v5140, 28
  %v6893 = vpop.permute.xlu0 %6892
  %6894 = vrot.lane.b32.xlu0 %v5141, 28
  %v6895 = vpop.permute.xlu0 %6894
  %6896 = vrot.lane.b32.xlu0 %v5142, 28
  %v6897 = vpop.permute.xlu0 %6896
  %6898 = vrot.lane.b32.xlu0 %v5143, 28
  %v6899 = vpop.permute.xlu0 %6898
  %6900 = vrot.lane.b32.xlu0 %v5144, 28
  %v6901 = vpop.permute.xlu0 %6900
  %6902 = vrot.lane.b32.xlu0 %v5145, 28
  %v6903 = vpop.permute.xlu0 %6902
  %6904 = vrot.lane.b32.xlu0 %v5146, 28
  %v6905 = vpop.permute.xlu0 %6904
  %6906 = vrot.lane.b32.xlu0 %v5147, 28
  %v6907 = vpop.permute.xlu0 %6906
  %6908 = vrot.lane.b32.xlu0 %v5148, 28
  %v6909 = vpop.permute.xlu0 %6908
  %6910 = vrot.lane.b32.xlu0 %v5149, 28
  %v6911 = vpop.permute.xlu0 %6910
  %6912 = vrot.lane.b32.xlu0 %v5150, 28
  %v6913 = vpop.permute.xlu0 %6912
  %6914 = vrot.lane.b32.xlu0 %v5151, 28
  %v6915 = vpop.permute.xlu0 %6914
  %6916 = vrot.lane.b32.xlu0 %v5152, 28
  %v6917 = vpop.permute.xlu0 %6916
  %6918 = vrot.lane.b32.xlu0 %v5153, 28
  %v6919 = vpop.permute.xlu0 %6918
  %6920 = vrot.lane.b32.xlu0 %v5154, 28
  %v6921 = vpop.permute.xlu0 %6920
  %6922 = vrot.lane.b32.xlu0 %v5155, 28
  %v6923 = vpop.permute.xlu0 %6922
  %6924 = vrot.lane.b32.xlu0 %v5156, 28
  %v6925 = vpop.permute.xlu0 %6924
  %6926 = vrot.lane.b32.xlu0 %v5157, 28
  %v6927 = vpop.permute.xlu0 %6926
  %6928 = vrot.lane.b32.xlu0 %v5158, 28
  %v6929 = vpop.permute.xlu0 %6928
  %6930 = vrot.lane.b32.xlu0 %v5159, 28
  %v6931 = vpop.permute.xlu0 %6930
  %6932 = vrot.lane.b32.xlu0 %v5160, 28
  %v6933 = vpop.permute.xlu0 %6932
  %6934 = vrot.lane.b32.xlu0 %v5161, 28
  %v6935 = vpop.permute.xlu0 %6934
  %6936 = vrot.lane.b32.xlu0 %v5162, 28
  %v6937 = vpop.permute.xlu0 %6936
  %6938 = vrot.lane.b32.xlu0 %v5163, 28
  %v6939 = vpop.permute.xlu0 %6938
  %6940 = vrot.lane.b32.xlu0 %v5164, 28
  %v6941 = vpop.permute.xlu0 %6940
  %6942 = vrot.lane.b32.xlu0 %v5165, 28
  %v6943 = vpop.permute.xlu0 %6942
  %6944 = vrot.lane.b32.xlu0 %v5166, 28
  %v6945 = vpop.permute.xlu0 %6944
  %6946 = vrot.lane.b32.xlu0 %v5167, 28
  %v6947 = vpop.permute.xlu0 %6946
  %6948 = vrot.lane.b32.xlu0 %v5168, 28
  %v6949 = vpop.permute.xlu0 %6948
  %6950 = vrot.lane.b32.xlu0 %v5169, 28
  %v6951 = vpop.permute.xlu0 %6950
  %6952 = vrot.lane.b32.xlu0 %v5170, 28
  %v6953 = vpop.permute.xlu0 %6952
  %6954 = vrot.lane.b32.xlu0 %v5171, 28
  %v6955 = vpop.permute.xlu0 %6954
  %6956 = vrot.lane.b32.xlu0 %v5172, 28
  %v6957 = vpop.permute.xlu0 %6956
  %6958 = vrot.lane.b32.xlu0 %v5173, 28
  %v6959 = vpop.permute.xlu0 %6958
  %6960 = vrot.lane.b32.xlu0 %v5174, 28
  %v6961 = vpop.permute.xlu0 %6960
  %6962 = vrot.lane.b32.xlu0 %v5175, 28
  %v6963 = vpop.permute.xlu0 %6962
  %6964 = vrot.lane.b32.xlu0 %v5176, 28
  %v6965 = vpop.permute.xlu0 %6964
  %6966 = vrot.lane.b32.xlu0 %v5177, 28
  %v6967 = vpop.permute.xlu0 %6966
  %6968 = vrot.lane.b32.xlu0 %v5178, 28
  %v6969 = vpop.permute.xlu0 %6968
  %6970 = vrot.lane.b32.xlu0 %v5179, 28
  %v6971 = vpop.permute.xlu0 %6970
  %7100 = vrot.lane.b32.xlu0 %v5180, 32
  %v7101 = vpop.permute.xlu0 %7100
  %7102 = vrot.lane.b32.xlu0 %v5181, 32
  %v7103 = vpop.permute.xlu0 %7102
  %7104 = vrot.lane.b32.xlu0 %v5182, 32
  %v7105 = vpop.permute.xlu0 %7104
  %7106 = vrot.lane.b32.xlu0 %v5183, 32
  %v7107 = vpop.permute.xlu0 %7106
  %7108 = vrot.lane.b32.xlu0 %v5184, 32
  %v7109 = vpop.permute.xlu0 %7108
  %7110 = vrot.lane.b32.xlu0 %v5185, 32
  %v7111 = vpop.permute.xlu0 %7110
  %7112 = vrot.lane.b32.xlu0 %v5186, 32
  %v7113 = vpop.permute.xlu0 %7112
  %7114 = vrot.lane.b32.xlu0 %v5187, 32
  %v7115 = vpop.permute.xlu0 %7114
  %7116 = vrot.lane.b32.xlu0 %v5188, 32
  %v7117 = vpop.permute.xlu0 %7116
  %7118 = vrot.lane.b32.xlu0 %v5189, 32
  %v7119 = vpop.permute.xlu0 %7118
  %7120 = vrot.lane.b32.xlu0 %v5190, 32
  %v7121 = vpop.permute.xlu0 %7120
  %7122 = vrot.lane.b32.xlu0 %v5191, 32
  %v7123 = vpop.permute.xlu0 %7122
  %7124 = vrot.lane.b32.xlu0 %v5192, 32
  %v7125 = vpop.permute.xlu0 %7124
  %7126 = vrot.lane.b32.xlu0 %v5193, 32
  %v7127 = vpop.permute.xlu0 %7126
  %7128 = vrot.lane.b32.xlu0 %v5194, 32
  %v7129 = vpop.permute.xlu0 %7128
  %7130 = vrot.lane.b32.xlu0 %v5195, 32
  %v7131 = vpop.permute.xlu0 %7130
  %7132 = vrot.lane.b32.xlu0 %v5196, 32
  %v7133 = vpop.permute.xlu0 %7132
  %7134 = vrot.lane.b32.xlu0 %v5197, 32
  %v7135 = vpop.permute.xlu0 %7134
  %7136 = vrot.lane.b32.xlu0 %v5198, 32
  %v7137 = vpop.permute.xlu0 %7136
  %7138 = vrot.lane.b32.xlu0 %v5199, 32
  %v7139 = vpop.permute.xlu0 %7138
  %7140 = vrot.lane.b32.xlu0 %v5200, 32
  %v7141 = vpop.permute.xlu0 %7140
  %7142 = vrot.lane.b32.xlu0 %v5201, 32
  %v7143 = vpop.permute.xlu0 %7142
  %7144 = vrot.lane.b32.xlu0 %v5202, 32
  %v7145 = vpop.permute.xlu0 %7144
  %7146 = vrot.lane.b32.xlu0 %v5203, 32
  %v7147 = vpop.permute.xlu0 %7146
  %7148 = vrot.lane.b32.xlu0 %v5204, 32
  %v7149 = vpop.permute.xlu0 %7148
  %7150 = vrot.lane.b32.xlu0 %v5205, 32
  %v7151 = vpop.permute.xlu0 %7150
  %7152 = vrot.lane.b32.xlu0 %v5206, 32
  %v7153 = vpop.permute.xlu0 %7152
  %7154 = vrot.lane.b32.xlu0 %v5207, 32
  %v7155 = vpop.permute.xlu0 %7154
  %7156 = vrot.lane.b32.xlu0 %v5208, 32
  %v7157 = vpop.permute.xlu0 %7156
  %7158 = vrot.lane.b32.xlu0 %v5209, 32
  %v7159 = vpop.permute.xlu0 %7158
  %7160 = vrot.lane.b32.xlu0 %v5210, 32
  %v7161 = vpop.permute.xlu0 %7160
  %7162 = vrot.lane.b32.xlu0 %v5211, 32
  %v7163 = vpop.permute.xlu0 %7162
  %7164 = vrot.lane.b32.xlu0 %v5212, 32
  %v7165 = vpop.permute.xlu0 %7164
  %7166 = vrot.lane.b32.xlu0 %v5213, 32
  %v7167 = vpop.permute.xlu0 %7166
  %7168 = vrot.lane.b32.xlu0 %v5214, 32
  %v7169 = vpop.permute.xlu0 %7168
  %7170 = vrot.lane.b32.xlu0 %v5215, 32
  %v7171 = vpop.permute.xlu0 %7170
  %7172 = vrot.lane.b32.xlu0 %v5216, 32
  %v7173 = vpop.permute.xlu0 %7172
  %7174 = vrot.lane.b32.xlu0 %v5217, 32
  %v7175 = vpop.permute.xlu0 %7174
  %7176 = vrot.lane.b32.xlu0 %v5218, 32
  %v7177 = vpop.permute.xlu0 %7176
  %7178 = vrot.lane.b32.xlu0 %v5219, 32
  %v7179 = vpop.permute.xlu0 %7178
  %7180 = vrot.lane.b32.xlu0 %v5220, 32
  %v7181 = vpop.permute.xlu0 %7180
  %7182 = vrot.lane.b32.xlu0 %v5221, 32
  %v7183 = vpop.permute.xlu0 %7182
  %7184 = vrot.lane.b32.xlu0 %v5222, 32
  %v7185 = vpop.permute.xlu0 %7184
  %7186 = vrot.lane.b32.xlu0 %v5223, 32
  %v7187 = vpop.permute.xlu0 %7186
  %7188 = vrot.lane.b32.xlu0 %v5224, 32
  %v7189 = vpop.permute.xlu0 %7188
  %7190 = vrot.lane.b32.xlu0 %v5225, 32
  %v7191 = vpop.permute.xlu0 %7190
  %7192 = vrot.lane.b32.xlu0 %v5226, 32
  %v7193 = vpop.permute.xlu0 %7192
  %7194 = vrot.lane.b32.xlu0 %v5227, 32
  %v7195 = vpop.permute.xlu0 %7194
  %7196 = vrot.lane.b32.xlu0 %v5228, 32
  %v7197 = vpop.permute.xlu0 %7196
  %7198 = vrot.lane.b32.xlu0 %v5229, 32
  %v7199 = vpop.permute.xlu0 %7198
  %7200 = vrot.lane.b32.xlu0 %v5230, 32
  %v7201 = vpop.permute.xlu0 %7200
  %7202 = vrot.lane.b32.xlu0 %v5231, 32
  %v7203 = vpop.permute.xlu0 %7202
  %7204 = vrot.lane.b32.xlu0 %v5232, 32
  %v7205 = vpop.permute.xlu0 %7204
  %7206 = vrot.lane.b32.xlu0 %v5233, 32
  %v7207 = vpop.permute.xlu0 %7206
  %7208 = vrot.lane.b32.xlu0 %v5234, 32
  %v7209 = vpop.permute.xlu0 %7208
  %7210 = vrot.lane.b32.xlu0 %v5235, 32
  %v7211 = vpop.permute.xlu0 %7210
  %7212 = vrot.lane.b32.xlu0 %v5236, 32
  %v7213 = vpop.permute.xlu0 %7212
  %7214 = vrot.lane.b32.xlu0 %v5237, 32
  %v7215 = vpop.permute.xlu0 %7214
  %7216 = vrot.lane.b32.xlu0 %v5238, 32
  %v7217 = vpop.permute.xlu0 %7216
  %7218 = vrot.lane.b32.xlu0 %v5239, 32
  %v7219 = vpop.permute.xlu0 %7218
  %7220 = vrot.lane.b32.xlu0 %v5240, 32
  %v7221 = vpop.permute.xlu0 %7220
  %7222 = vrot.lane.b32.xlu0 %v5241, 32
  %v7223 = vpop.permute.xlu0 %7222
  %7224 = vrot.lane.b32.xlu0 %v5242, 32
  %v7225 = vpop.permute.xlu0 %7224
  %7226 = vrot.lane.b32.xlu0 %v5243, 32
  %v7227 = vpop.permute.xlu0 %7226
  %v7292 = vsel %vm26, %v4667, %v5309
  %v7293 = vsel %vm26, %v4668, %v5311
  %v7294 = vsel %vm26, %v4669, %v5313
  %v7295 = vsel %vm26, %v4670, %v5315
  %v7296 = vsel %vm26, %v4671, %v5317
  %v7297 = vsel %vm26, %v4672, %v5319
  %v7298 = vsel %vm26, %v4673, %v5321
  %v7299 = vsel %vm26, %v4674, %v5323
  %v7300 = vsel %vm26, %v4675, %v5325
  %v7301 = vsel %vm26, %v4676, %v5327
  %v7302 = vsel %vm26, %v4677, %v5329
  %v7303 = vsel %vm26, %v4678, %v5331
  %v7304 = vsel %vm26, %v4679, %v5333
  %v7305 = vsel %vm26, %v4680, %v5335
  %v7306 = vsel %vm26, %v4681, %v5337
  %v7307 = vsel %vm26, %v4682, %v5339
  %v7308 = vsel %vm26, %v4683, %v5341
  %v7309 = vsel %vm26, %v4684, %v5343
  %v7310 = vsel %vm26, %v4685, %v5345
  %v7311 = vsel %vm26, %v4686, %v5347
  %v7312 = vsel %vm26, %v4687, %v5349
  %v7313 = vsel %vm26, %v4688, %v5351
  %v7314 = vsel %vm26, %v4689, %v5353
  %v7315 = vsel %vm26, %v4690, %v5355
  %v7316 = vsel %vm26, %v4691, %v5357
  %v7317 = vsel %vm26, %v4692, %v5359
  %v7318 = vsel %vm26, %v4693, %v5361
  %v7319 = vsel %vm26, %v4694, %v5363
  %v7320 = vsel %vm26, %v4695, %v5365
  %v7321 = vsel %vm26, %v4696, %v5367
  %v7322 = vsel %vm26, %v4697, %v5369
  %v7323 = vsel %vm26, %v4698, %v5371
  %v7324 = vsel %vm26, %v4699, %v5373
  %v7325 = vsel %vm26, %v4700, %v5375
  %v7326 = vsel %vm26, %v4701, %v5377
  %v7327 = vsel %vm26, %v4702, %v5379
  %v7328 = vsel %vm26, %v4703, %v5381
  %v7329 = vsel %vm26, %v4704, %v5383
  %v7330 = vsel %vm26, %v4705, %v5385
  %v7331 = vsel %vm26, %v4706, %v5387
  %v7332 = vsel %vm26, %v4707, %v5389
  %v7333 = vsel %vm26, %v4708, %v5391
  %v7334 = vsel %vm26, %v4709, %v5393
  %v7335 = vsel %vm26, %v4710, %v5395
  %v7336 = vsel %vm26, %v4711, %v5397
  %v7337 = vsel %vm26, %v4712, %v5399
  %v7338 = vsel %vm26, %v4713, %v5401
  %v7339 = vsel %vm26, %v4714, %v5403
  %v7340 = vsel %vm26, %v4715, %v5405
  %v7341 = vsel %vm26, %v4716, %v5407
  %v7342 = vsel %vm26, %v4717, %v5409
  %v7343 = vsel %vm26, %v4718, %v5411
  %v7344 = vsel %vm26, %v4719, %v5413
  %v7345 = vsel %vm26, %v4720, %v5415
  %v7346 = vsel %vm26, %v4721, %v5417
  %v7347 = vsel %vm26, %v4722, %v5419
  %v7348 = vsel %vm26, %v4723, %v5421
  %v7349 = vsel %vm26, %v4724, %v5423
  %v7350 = vsel %vm26, %v4725, %v5425
  %v7351 = vsel %vm26, %v4726, %v5427
  %v7352 = vsel %vm26, %v4727, %v5429
  %v7353 = vsel %vm26, %v4728, %v5431
  %v7354 = vsel %vm26, %v4729, %v5433
  %v7355 = vsel %vm26, %v4730, %v5435
  %v7356 = vsel %vm2954, %v7292, %v5565
  %v7357 = vsel %vm2954, %v7293, %v5567
  %v7358 = vsel %vm2954, %v7294, %v5569
  %v7359 = vsel %vm2954, %v7295, %v5571
  %v7360 = vsel %vm2954, %v7296, %v5573
  %v7361 = vsel %vm2954, %v7297, %v5575
  %v7362 = vsel %vm2954, %v7298, %v5577
  %v7363 = vsel %vm2954, %v7299, %v5579
  %v7364 = vsel %vm2954, %v7300, %v5581
  %v7365 = vsel %vm2954, %v7301, %v5583
  %v7366 = vsel %vm2954, %v7302, %v5585
  %v7367 = vsel %vm2954, %v7303, %v5587
  %v7368 = vsel %vm2954, %v7304, %v5589
  %v7369 = vsel %vm2954, %v7305, %v5591
  %v7370 = vsel %vm2954, %v7306, %v5593
  %v7371 = vsel %vm2954, %v7307, %v5595
  %v7372 = vsel %vm2954, %v7308, %v5597
  %v7373 = vsel %vm2954, %v7309, %v5599
  %v7374 = vsel %vm2954, %v7310, %v5601
  %v7375 = vsel %vm2954, %v7311, %v5603
  %v7376 = vsel %vm2954, %v7312, %v5605
  %v7377 = vsel %vm2954, %v7313, %v5607
  %v7378 = vsel %vm2954, %v7314, %v5609
  %v7379 = vsel %vm2954, %v7315, %v5611
  %v7380 = vsel %vm2954, %v7316, %v5613
  %v7381 = vsel %vm2954, %v7317, %v5615
  %v7382 = vsel %vm2954, %v7318, %v5617
  %v7383 = vsel %vm2954, %v7319, %v5619
  %v7384 = vsel %vm2954, %v7320, %v5621
  %v7385 = vsel %vm2954, %v7321, %v5623
  %v7386 = vsel %vm2954, %v7322, %v5625
  %v7387 = vsel %vm2954, %v7323, %v5627
  %v7388 = vsel %vm2954, %v7324, %v5629
  %v7389 = vsel %vm2954, %v7325, %v5631
  %v7390 = vsel %vm2954, %v7326, %v5633
  %v7391 = vsel %vm2954, %v7327, %v5635
  %v7392 = vsel %vm2954, %v7328, %v5637
  %v7393 = vsel %vm2954, %v7329, %v5639
  %v7394 = vsel %vm2954, %v7330, %v5641
  %v7395 = vsel %vm2954, %v7331, %v5643
  %v7396 = vsel %vm2954, %v7332, %v5645
  %v7397 = vsel %vm2954, %v7333, %v5647
  %v7398 = vsel %vm2954, %v7334, %v5649
  %v7399 = vsel %vm2954, %v7335, %v5651
  %v7400 = vsel %vm2954, %v7336, %v5653
  %v7401 = vsel %vm2954, %v7337, %v5655
  %v7402 = vsel %vm2954, %v7338, %v5657
  %v7403 = vsel %vm2954, %v7339, %v5659
  %v7404 = vsel %vm2954, %v7340, %v5661
  %v7405 = vsel %vm2954, %v7341, %v5663
  %v7406 = vsel %vm2954, %v7342, %v5665
  %v7407 = vsel %vm2954, %v7343, %v5667
  %v7408 = vsel %vm2954, %v7344, %v5669
  %v7409 = vsel %vm2954, %v7345, %v5671
  %v7410 = vsel %vm2954, %v7346, %v5673
  %v7411 = vsel %vm2954, %v7347, %v5675
  %v7412 = vsel %vm2954, %v7348, %v5677
  %v7413 = vsel %vm2954, %v7349, %v5679
  %v7414 = vsel %vm2954, %v7350, %v5681
  %v7415 = vsel %vm2954, %v7351, %v5683
  %v7416 = vsel %vm2954, %v7352, %v5685
  %v7417 = vsel %vm2954, %v7353, %v5687
  %v7418 = vsel %vm2954, %v7354, %v5689
  %v7419 = vsel %vm2954, %v7355, %v5691
  %v7420 = vsel %vm3019, %v7356, %v5821
  %v7421 = vsel %vm3019, %v7357, %v5823
  %v7422 = vsel %vm3019, %v7358, %v5825
  %v7423 = vsel %vm3019, %v7359, %v5827
  %v7424 = vsel %vm3019, %v7360, %v5829
  %v7425 = vsel %vm3019, %v7361, %v5831
  %v7426 = vsel %vm3019, %v7362, %v5833
  %v7427 = vsel %vm3019, %v7363, %v5835
  %v7428 = vsel %vm3019, %v7364, %v5837
  %v7429 = vsel %vm3019, %v7365, %v5839
  %v7430 = vsel %vm3019, %v7366, %v5841
  %v7431 = vsel %vm3019, %v7367, %v5843
  %v7432 = vsel %vm3019, %v7368, %v5845
  %v7433 = vsel %vm3019, %v7369, %v5847
  %v7434 = vsel %vm3019, %v7370, %v5849
  %v7435 = vsel %vm3019, %v7371, %v5851
  %v7436 = vsel %vm3019, %v7372, %v5853
  %v7437 = vsel %vm3019, %v7373, %v5855
  %v7438 = vsel %vm3019, %v7374, %v5857
  %v7439 = vsel %vm3019, %v7375, %v5859
  %v7440 = vsel %vm3019, %v7376, %v5861
  %v7441 = vsel %vm3019, %v7377, %v5863
  %v7442 = vsel %vm3019, %v7378, %v5865
  %v7443 = vsel %vm3019, %v7379, %v5867
  %v7444 = vsel %vm3019, %v7380, %v5869
  %v7445 = vsel %vm3019, %v7381, %v5871
  %v7446 = vsel %vm3019, %v7382, %v5873
  %v7447 = vsel %vm3019, %v7383, %v5875
  %v7448 = vsel %vm3019, %v7384, %v5877
  %v7449 = vsel %vm3019, %v7385, %v5879
  %v7450 = vsel %vm3019, %v7386, %v5881
  %v7451 = vsel %vm3019, %v7387, %v5883
  %v7452 = vsel %vm3019, %v7388, %v5885
  %v7453 = vsel %vm3019, %v7389, %v5887
  %v7454 = vsel %vm3019, %v7390, %v5889
  %v7455 = vsel %vm3019, %v7391, %v5891
  %v7456 = vsel %vm3019, %v7392, %v5893
  %v7457 = vsel %vm3019, %v7393, %v5895
  %v7458 = vsel %vm3019, %v7394, %v5897
  %v7459 = vsel %vm3019, %v7395, %v5899
  %v7460 = vsel %vm3019, %v7396, %v5901
  %v7461 = vsel %vm3019, %v7397, %v5903
  %v7462 = vsel %vm3019, %v7398, %v5905
  %v7463 = vsel %vm3019, %v7399, %v5907
  %v7464 = vsel %vm3019, %v7400, %v5909
  %v7465 = vsel %vm3019, %v7401, %v5911
  %v7466 = vsel %vm3019, %v7402, %v5913
  %v7467 = vsel %vm3019, %v7403, %v5915
  %v7468 = vsel %vm3019, %v7404, %v5917
  %v7469 = vsel %vm3019, %v7405, %v5919
  %v7470 = vsel %vm3019, %v7406, %v5921
  %v7471 = vsel %vm3019, %v7407, %v5923
  %v7472 = vsel %vm3019, %v7408, %v5925
  %v7473 = vsel %vm3019, %v7409, %v5927
  %v7474 = vsel %vm3019, %v7410, %v5929
  %v7475 = vsel %vm3019, %v7411, %v5931
  %v7476 = vsel %vm3019, %v7412, %v5933
  %v7477 = vsel %vm3019, %v7413, %v5935
  %v7478 = vsel %vm3019, %v7414, %v5937
  %v7479 = vsel %vm3019, %v7415, %v5939
  %v7480 = vsel %vm3019, %v7416, %v5941
  %v7481 = vsel %vm3019, %v7417, %v5943
  %v7482 = vsel %vm3019, %v7418, %v5945
  %v7483 = vsel %vm3019, %v7419, %v5947
  %v7484 = vsel %vm3084, %v7420, %v6077
  %v7485 = vsel %vm3084, %v7421, %v6079
  %v7486 = vsel %vm3084, %v7422, %v6081
  %v7487 = vsel %vm3084, %v7423, %v6083
  %v7488 = vsel %vm3084, %v7424, %v6085
  %v7489 = vsel %vm3084, %v7425, %v6087
  %v7490 = vsel %vm3084, %v7426, %v6089
  %v7491 = vsel %vm3084, %v7427, %v6091
  %v7492 = vsel %vm3084, %v7428, %v6093
  %v7493 = vsel %vm3084, %v7429, %v6095
  %v7494 = vsel %vm3084, %v7430, %v6097
  %v7495 = vsel %vm3084, %v7431, %v6099
  %v7496 = vsel %vm3084, %v7432, %v6101
  %v7497 = vsel %vm3084, %v7433, %v6103
  %v7498 = vsel %vm3084, %v7434, %v6105
  %v7499 = vsel %vm3084, %v7435, %v6107
  %v7500 = vsel %vm3084, %v7436, %v6109
  %v7501 = vsel %vm3084, %v7437, %v6111
  %v7502 = vsel %vm3084, %v7438, %v6113
  %v7503 = vsel %vm3084, %v7439, %v6115
  %v7504 = vsel %vm3084, %v7440, %v6117
  %v7505 = vsel %vm3084, %v7441, %v6119
  %v7506 = vsel %vm3084, %v7442, %v6121
  %v7507 = vsel %vm3084, %v7443, %v6123
  %v7508 = vsel %vm3084, %v7444, %v6125
  %v7509 = vsel %vm3084, %v7445, %v6127
  %v7510 = vsel %vm3084, %v7446, %v6129
  %v7511 = vsel %vm3084, %v7447, %v6131
  %v7512 = vsel %vm3084, %v7448, %v6133
  %v7513 = vsel %vm3084, %v7449, %v6135
  %v7514 = vsel %vm3084, %v7450, %v6137
  %v7515 = vsel %vm3084, %v7451, %v6139
  %v7516 = vsel %vm3084, %v7452, %v6141
  %v7517 = vsel %vm3084, %v7453, %v6143
  %v7518 = vsel %vm3084, %v7454, %v6145
  %v7519 = vsel %vm3084, %v7455, %v6147
  %v7520 = vsel %vm3084, %v7456, %v6149
  %v7521 = vsel %vm3084, %v7457, %v6151
  %v7522 = vsel %vm3084, %v7458, %v6153
  %v7523 = vsel %vm3084, %v7459, %v6155
  %v7524 = vsel %vm3084, %v7460, %v6157
  %v7525 = vsel %vm3084, %v7461, %v6159
  %v7526 = vsel %vm3084, %v7462, %v6161
  %v7527 = vsel %vm3084, %v7463, %v6163
  %v7528 = vsel %vm3084, %v7464, %v6165
  %v7529 = vsel %vm3084, %v7465, %v6167
  %v7530 = vsel %vm3084, %v7466, %v6169
  %v7531 = vsel %vm3084, %v7467, %v6171
  %v7532 = vsel %vm3084, %v7468, %v6173
  %v7533 = vsel %vm3084, %v7469, %v6175
  %v7534 = vsel %vm3084, %v7470, %v6177
  %v7535 = vsel %vm3084, %v7471, %v6179
  %v7536 = vsel %vm3084, %v7472, %v6181
  %v7537 = vsel %vm3084, %v7473, %v6183
  %v7538 = vsel %vm3084, %v7474, %v6185
  %v7539 = vsel %vm3084, %v7475, %v6187
  %v7540 = vsel %vm3084, %v7476, %v6189
  %v7541 = vsel %vm3084, %v7477, %v6191
  %v7542 = vsel %vm3084, %v7478, %v6193
  %v7543 = vsel %vm3084, %v7479, %v6195
  %v7544 = vsel %vm3084, %v7480, %v6197
  %v7545 = vsel %vm3084, %v7481, %v6199
  %v7546 = vsel %vm3084, %v7482, %v6201
  %v7547 = vsel %vm3084, %v7483, %v6203
  %v7548 = vsel %vm3149, %v7484, %v6333
  %v7549 = vsel %vm3149, %v7485, %v6335
  %v7550 = vsel %vm3149, %v7486, %v6337
  %v7551 = vsel %vm3149, %v7487, %v6339
  %v7552 = vsel %vm3149, %v7488, %v6341
  %v7553 = vsel %vm3149, %v7489, %v6343
  %v7554 = vsel %vm3149, %v7490, %v6345
  %v7555 = vsel %vm3149, %v7491, %v6347
  %v7556 = vsel %vm3149, %v7492, %v6349
  %v7557 = vsel %vm3149, %v7493, %v6351
  %v7558 = vsel %vm3149, %v7494, %v6353
  %v7559 = vsel %vm3149, %v7495, %v6355
  %v7560 = vsel %vm3149, %v7496, %v6357
  %v7561 = vsel %vm3149, %v7497, %v6359
  %v7562 = vsel %vm3149, %v7498, %v6361
  %v7563 = vsel %vm3149, %v7499, %v6363
  %v7564 = vsel %vm3149, %v7500, %v6365
  %v7565 = vsel %vm3149, %v7501, %v6367
  %v7566 = vsel %vm3149, %v7502, %v6369
  %v7567 = vsel %vm3149, %v7503, %v6371
  %v7568 = vsel %vm3149, %v7504, %v6373
  %v7569 = vsel %vm3149, %v7505, %v6375
  %v7570 = vsel %vm3149, %v7506, %v6377
  %v7571 = vsel %vm3149, %v7507, %v6379
  %v7572 = vsel %vm3149, %v7508, %v6381
  %v7573 = vsel %vm3149, %v7509, %v6383
  %v7574 = vsel %vm3149, %v7510, %v6385
  %v7575 = vsel %vm3149, %v7511, %v6387
  %v7576 = vsel %vm3149, %v7512, %v6389
  %v7577 = vsel %vm3149, %v7513, %v6391
  %v7578 = vsel %vm3149, %v7514, %v6393
  %v7579 = vsel %vm3149, %v7515, %v6395
  %v7580 = vsel %vm3149, %v7516, %v6397
  %v7581 = vsel %vm3149, %v7517, %v6399
  %v7582 = vsel %vm3149, %v7518, %v6401
  %v7583 = vsel %vm3149, %v7519, %v6403
  %v7584 = vsel %vm3149, %v7520, %v6405
  %v7585 = vsel %vm3149, %v7521, %v6407
  %v7586 = vsel %vm3149, %v7522, %v6409
  %v7587 = vsel %vm3149, %v7523, %v6411
  %v7588 = vsel %vm3149, %v7524, %v6413
  %v7589 = vsel %vm3149, %v7525, %v6415
  %v7590 = vsel %vm3149, %v7526, %v6417
  %v7591 = vsel %vm3149, %v7527, %v6419
  %v7592 = vsel %vm3149, %v7528, %v6421
  %v7593 = vsel %vm3149, %v7529, %v6423
  %v7594 = vsel %vm3149, %v7530, %v6425
  %v7595 = vsel %vm3149, %v7531, %v6427
  %v7596 = vsel %vm3149, %v7532, %v6429
  %v7597 = vsel %vm3149, %v7533, %v6431
  %v7598 = vsel %vm3149, %v7534, %v6433
  %v7599 = vsel %vm3149, %v7535, %v6435
  %v7600 = vsel %vm3149, %v7536, %v6437
  %v7601 = vsel %vm3149, %v7537, %v6439
  %v7602 = vsel %vm3149, %v7538, %v6441
  %v7603 = vsel %vm3149, %v7539, %v6443
  %v7604 = vsel %vm3149, %v7540, %v6445
  %v7605 = vsel %vm3149, %v7541, %v6447
  %v7606 = vsel %vm3149, %v7542, %v6449
  %v7607 = vsel %vm3149, %v7543, %v6451
  %v7608 = vsel %vm3149, %v7544, %v6453
  %v7609 = vsel %vm3149, %v7545, %v6455
  %v7610 = vsel %vm3149, %v7546, %v6457
  %v7611 = vsel %vm3149, %v7547, %v6459
  %v7612 = vsel %vm3214, %v7548, %v6589
  %v7613 = vsel %vm3214, %v7549, %v6591
  %v7614 = vsel %vm3214, %v7550, %v6593
  %v7615 = vsel %vm3214, %v7551, %v6595
  %v7616 = vsel %vm3214, %v7552, %v6597
  %v7617 = vsel %vm3214, %v7553, %v6599
  %v7618 = vsel %vm3214, %v7554, %v6601
  %v7619 = vsel %vm3214, %v7555, %v6603
  %v7620 = vsel %vm3214, %v7556, %v6605
  %v7621 = vsel %vm3214, %v7557, %v6607
  %v7622 = vsel %vm3214, %v7558, %v6609
  %v7623 = vsel %vm3214, %v7559, %v6611
  %v7624 = vsel %vm3214, %v7560, %v6613
  %v7625 = vsel %vm3214, %v7561, %v6615
  %v7626 = vsel %vm3214, %v7562, %v6617
  %v7627 = vsel %vm3214, %v7563, %v6619
  %v7628 = vsel %vm3214, %v7564, %v6621
  %v7629 = vsel %vm3214, %v7565, %v6623
  %v7630 = vsel %vm3214, %v7566, %v6625
  %v7631 = vsel %vm3214, %v7567, %v6627
  %v7632 = vsel %vm3214, %v7568, %v6629
  %v7633 = vsel %vm3214, %v7569, %v6631
  %v7634 = vsel %vm3214, %v7570, %v6633
  %v7635 = vsel %vm3214, %v7571, %v6635
  %v7636 = vsel %vm3214, %v7572, %v6637
  %v7637 = vsel %vm3214, %v7573, %v6639
  %v7638 = vsel %vm3214, %v7574, %v6641
  %v7639 = vsel %vm3214, %v7575, %v6643
  %v7640 = vsel %vm3214, %v7576, %v6645
  %v7641 = vsel %vm3214, %v7577, %v6647
  %v7642 = vsel %vm3214, %v7578, %v6649
  %v7643 = vsel %vm3214, %v7579, %v6651
  %v7644 = vsel %vm3214, %v7580, %v6653
  %v7645 = vsel %vm3214, %v7581, %v6655
  %v7646 = vsel %vm3214, %v7582, %v6657
  %v7647 = vsel %vm3214, %v7583, %v6659
  %v7648 = vsel %vm3214, %v7584, %v6661
  %v7649 = vsel %vm3214, %v7585, %v6663
  %v7650 = vsel %vm3214, %v7586, %v6665
  %v7651 = vsel %vm3214, %v7587, %v6667
  %v7652 = vsel %vm3214, %v7588, %v6669
  %v7653 = vsel %vm3214, %v7589, %v6671
  %v7654 = vsel %vm3214, %v7590, %v6673
  %v7655 = vsel %vm3214, %v7591, %v6675
  %v7656 = vsel %vm3214, %v7592, %v6677
  %v7657 = vsel %vm3214, %v7593, %v6679
  %v7658 = vsel %vm3214, %v7594, %v6681
  %v7659 = vsel %vm3214, %v7595, %v6683
  %v7660 = vsel %vm3214, %v7596, %v6685
  %v7661 = vsel %vm3214, %v7597, %v6687
  %v7662 = vsel %vm3214, %v7598, %v6689
  %v7663 = vsel %vm3214, %v7599, %v6691
  %v7664 = vsel %vm3214, %v7600, %v6693
  %v7665 = vsel %vm3214, %v7601, %v6695
  %v7666 = vsel %vm3214, %v7602, %v6697
  %v7667 = vsel %vm3214, %v7603, %v6699
  %v7668 = vsel %vm3214, %v7604, %v6701
  %v7669 = vsel %vm3214, %v7605, %v6703
  %v7670 = vsel %vm3214, %v7606, %v6705
  %v7671 = vsel %vm3214, %v7607, %v6707
  %v7672 = vsel %vm3214, %v7608, %v6709
  %v7673 = vsel %vm3214, %v7609, %v6711
  %v7674 = vsel %vm3214, %v7610, %v6713
  %v7675 = vsel %vm3214, %v7611, %v6715
  %v7676 = vsel %vm3279, %v7612, %v6845
  %v7677 = vsel %vm3279, %v7613, %v6847
  %v7678 = vsel %vm3279, %v7614, %v6849
  %v7679 = vsel %vm3279, %v7615, %v6851
  %v7680 = vsel %vm3279, %v7616, %v6853
  %v7681 = vsel %vm3279, %v7617, %v6855
  %v7682 = vsel %vm3279, %v7618, %v6857
  %v7683 = vsel %vm3279, %v7619, %v6859
  %v7684 = vsel %vm3279, %v7620, %v6861
  %v7685 = vsel %vm3279, %v7621, %v6863
  %v7686 = vsel %vm3279, %v7622, %v6865
  %v7687 = vsel %vm3279, %v7623, %v6867
  %v7688 = vsel %vm3279, %v7624, %v6869
  %v7689 = vsel %vm3279, %v7625, %v6871
  %v7690 = vsel %vm3279, %v7626, %v6873
  %v7691 = vsel %vm3279, %v7627, %v6875
  %v7692 = vsel %vm3279, %v7628, %v6877
  %v7693 = vsel %vm3279, %v7629, %v6879
  %v7694 = vsel %vm3279, %v7630, %v6881
  %v7695 = vsel %vm3279, %v7631, %v6883
  %v7696 = vsel %vm3279, %v7632, %v6885
  %v7697 = vsel %vm3279, %v7633, %v6887
  %v7698 = vsel %vm3279, %v7634, %v6889
  %v7699 = vsel %vm3279, %v7635, %v6891
  %v7700 = vsel %vm3279, %v7636, %v6893
  %v7701 = vsel %vm3279, %v7637, %v6895
  %v7702 = vsel %vm3279, %v7638, %v6897
  %v7703 = vsel %vm3279, %v7639, %v6899
  %v7704 = vsel %vm3279, %v7640, %v6901
  %v7705 = vsel %vm3279, %v7641, %v6903
  %v7706 = vsel %vm3279, %v7642, %v6905
  %v7707 = vsel %vm3279, %v7643, %v6907
  %v7708 = vsel %vm3279, %v7644, %v6909
  %v7709 = vsel %vm3279, %v7645, %v6911
  %v7710 = vsel %vm3279, %v7646, %v6913
  %v7711 = vsel %vm3279, %v7647, %v6915
  %v7712 = vsel %vm3279, %v7648, %v6917
  %v7713 = vsel %vm3279, %v7649, %v6919
  %v7714 = vsel %vm3279, %v7650, %v6921
  %v7715 = vsel %vm3279, %v7651, %v6923
  %v7716 = vsel %vm3279, %v7652, %v6925
  %v7717 = vsel %vm3279, %v7653, %v6927
  %v7718 = vsel %vm3279, %v7654, %v6929
  %v7719 = vsel %vm3279, %v7655, %v6931
  %v7720 = vsel %vm3279, %v7656, %v6933
  %v7721 = vsel %vm3279, %v7657, %v6935
  %v7722 = vsel %vm3279, %v7658, %v6937
  %v7723 = vsel %vm3279, %v7659, %v6939
  %v7724 = vsel %vm3279, %v7660, %v6941
  %v7725 = vsel %vm3279, %v7661, %v6943
  %v7726 = vsel %vm3279, %v7662, %v6945
  %v7727 = vsel %vm3279, %v7663, %v6947
  %v7728 = vsel %vm3279, %v7664, %v6949
  %v7729 = vsel %vm3279, %v7665, %v6951
  %v7730 = vsel %vm3279, %v7666, %v6953
  %v7731 = vsel %vm3279, %v7667, %v6955
  %v7732 = vsel %vm3279, %v7668, %v6957
  %v7733 = vsel %vm3279, %v7669, %v6959
  %v7734 = vsel %vm3279, %v7670, %v6961
  %v7735 = vsel %vm3279, %v7671, %v6963
  %v7736 = vsel %vm3279, %v7672, %v6965
  %v7737 = vsel %vm3279, %v7673, %v6967
  %v7738 = vsel %vm3279, %v7674, %v6969
  %v7739 = vsel %vm3279, %v7675, %v6971
  %v7740 = vsel %vm3344, %v7676, %v7101
  %v7741 = vsel %vm3344, %v7677, %v7103
  %v7742 = vsel %vm3344, %v7678, %v7105
  %v7743 = vsel %vm3344, %v7679, %v7107
  %v7744 = vsel %vm3344, %v7680, %v7109
  %v7745 = vsel %vm3344, %v7681, %v7111
  %v7746 = vsel %vm3344, %v7682, %v7113
  %v7747 = vsel %vm3344, %v7683, %v7115
  %v7748 = vsel %vm3344, %v7684, %v7117
  %v7749 = vsel %vm3344, %v7685, %v7119
  %v7750 = vsel %vm3344, %v7686, %v7121
  %v7751 = vsel %vm3344, %v7687, %v7123
  %v7752 = vsel %vm3344, %v7688, %v7125
  %v7753 = vsel %vm3344, %v7689, %v7127
  %v7754 = vsel %vm3344, %v7690, %v7129
  %v7755 = vsel %vm3344, %v7691, %v7131
  %v7756 = vsel %vm3344, %v7692, %v7133
  %v7757 = vsel %vm3344, %v7693, %v7135
  %v7758 = vsel %vm3344, %v7694, %v7137
  %v7759 = vsel %vm3344, %v7695, %v7139
  %v7760 = vsel %vm3344, %v7696, %v7141
  %v7761 = vsel %vm3344, %v7697, %v7143
  %v7762 = vsel %vm3344, %v7698, %v7145
  %v7763 = vsel %vm3344, %v7699, %v7147
  %v7764 = vsel %vm3344, %v7700, %v7149
  %v7765 = vsel %vm3344, %v7701, %v7151
  %v7766 = vsel %vm3344, %v7702, %v7153
  %v7767 = vsel %vm3344, %v7703, %v7155
  %v7768 = vsel %vm3344, %v7704, %v7157
  %v7769 = vsel %vm3344, %v7705, %v7159
  %v7770 = vsel %vm3344, %v7706, %v7161
  %v7771 = vsel %vm3344, %v7707, %v7163
  %v7772 = vsel %vm3344, %v7708, %v7165
  %v7773 = vsel %vm3344, %v7709, %v7167
  %v7774 = vsel %vm3344, %v7710, %v7169
  %v7775 = vsel %vm3344, %v7711, %v7171
  %v7776 = vsel %vm3344, %v7712, %v7173
  %v7777 = vsel %vm3344, %v7713, %v7175
  %v7778 = vsel %vm3344, %v7714, %v7177
  %v7779 = vsel %vm3344, %v7715, %v7179
  %v7780 = vsel %vm3344, %v7716, %v7181
  %v7781 = vsel %vm3344, %v7717, %v7183
  %v7782 = vsel %vm3344, %v7718, %v7185
  %v7783 = vsel %vm3344, %v7719, %v7187
  %v7784 = vsel %vm3344, %v7720, %v7189
  %v7785 = vsel %vm3344, %v7721, %v7191
  %v7786 = vsel %vm3344, %v7722, %v7193
  %v7787 = vsel %vm3344, %v7723, %v7195
  %v7788 = vsel %vm3344, %v7724, %v7197
  %v7789 = vsel %vm3344, %v7725, %v7199
  %v7790 = vsel %vm3344, %v7726, %v7201
  %v7791 = vsel %vm3344, %v7727, %v7203
  %v7792 = vsel %vm3344, %v7728, %v7205
  %v7793 = vsel %vm3344, %v7729, %v7207
  %v7794 = vsel %vm3344, %v7730, %v7209
  %v7795 = vsel %vm3344, %v7731, %v7211
  %v7796 = vsel %vm3344, %v7732, %v7213
  %v7797 = vsel %vm3344, %v7733, %v7215
  %v7798 = vsel %vm3344, %v7734, %v7217
  %v7799 = vsel %vm3344, %v7735, %v7219
  %v7800 = vsel %vm3344, %v7736, %v7221
  %v7801 = vsel %vm3344, %v7737, %v7223
  %v7802 = vsel %vm3344, %v7738, %v7225
  %v7803 = vsel %vm3344, %v7739, %v7227
  %v7804 = vld [vmem:[%s2] sm:$0xff]
  %v7805 = vld [vmem:[%s2 + $0x8] sm:$0xff]
  %v7806 = vld [vmem:[%s2 + $0x10] sm:$0xff]
  %v7807 = vld [vmem:[%s2 + $0x18] sm:$0xff]
  %v7808 = vld [vmem:[%s2 + $0x20] sm:$0xf]
  %v7810 = vsel %vm3414, %v7740, 0
  %v7813 = vsel %vm3414, %v7741, 0
  %v7816 = vsel %vm3414, %v7742, 0
  %v7819 = vsel %vm3414, %v7743, 0
  %v7822 = vsel %vm3414, %v7744, 0
  %v7825 = vsel %vm3414, %v7745, 0
  %v7828 = vsel %vm3414, %v7746, 0
  %v7831 = vsel %vm3414, %v7747, 0
  %v7834 = vsel %vm3414, %v7748, 0
  %v7837 = vsel %vm3414, %v7749, 0
  %v7840 = vsel %vm3414, %v7750, 0
  %v7843 = vsel %vm3414, %v7751, 0
  %v7846 = vsel %vm3414, %v7752, 0
  %v7849 = vsel %vm3414, %v7753, 0
  %v7852 = vsel %vm3414, %v7754, 0
  %v7855 = vsel %vm3414, %v7755, 0
  %v7858 = vsel %vm3414, %v7756, 0
  %v7861 = vsel %vm3414, %v7757, 0
  %v7864 = vsel %vm3414, %v7758, 0
  %v7867 = vsel %vm3414, %v7759, 0
  %v7870 = vsel %vm3414, %v7760, 0
  %v7873 = vsel %vm3414, %v7761, 0
  %v7876 = vsel %vm3414, %v7762, 0
  %v7879 = vsel %vm3414, %v7763, 0
  %v7882 = vsel %vm3414, %v7764, 0
  %v7885 = vsel %vm3414, %v7765, 0
  %v7888 = vsel %vm3414, %v7766, 0
  %v7891 = vsel %vm3414, %v7767, 0
  %v7894 = vsel %vm3414, %v7768, 0
  %v7897 = vsel %vm3414, %v7769, 0
  %v7900 = vsel %vm3414, %v7770, 0
  %v7903 = vsel %vm3414, %v7771, 0
  %v7906 = vsel %vm3414, %v7772, 0
  %v7909 = vsel %vm3414, %v7773, 0
  %v7912 = vsel %vm3414, %v7774, 0
  %v7915 = vsel %vm3414, %v7775, 0
  %v7918 = vsel %vm3414, %v7776, 0
  %v7921 = vsel %vm3414, %v7777, 0
  %v7924 = vsel %vm3414, %v7778, 0
  %v7927 = vsel %vm3414, %v7779, 0
  %v7930 = vsel %vm3414, %v7780, 0
  %v7933 = vsel %vm3414, %v7781, 0
  %v7936 = vsel %vm3414, %v7782, 0
  %v7939 = vsel %vm3414, %v7783, 0
  %v7942 = vsel %vm3414, %v7784, 0
  %v7945 = vsel %vm3414, %v7785, 0
  %v7948 = vsel %vm3414, %v7786, 0
  %v7951 = vsel %vm3414, %v7787, 0
  %v7954 = vsel %vm3414, %v7788, 0
  %v7957 = vsel %vm3414, %v7789, 0
  %v7960 = vsel %vm3414, %v7790, 0
  %v7963 = vsel %vm3414, %v7791, 0
  %v7966 = vsel %vm3414, %v7792, 0
  %v7969 = vsel %vm3414, %v7793, 0
  %v7972 = vsel %vm3414, %v7794, 0
  %v7975 = vsel %vm3414, %v7795, 0
  %v7978 = vsel %vm3414, %v7796, 0
  %v7981 = vsel %vm3414, %v7797, 0
  %v7984 = vsel %vm3414, %v7798, 0
  %v7987 = vsel %vm3414, %v7799, 0
  %v7990 = vsel %vm3414, %v7800, 0
  %v7993 = vsel %vm3414, %v7801, 0
  %v7996 = vsel %vm3414, %v7802, 0
  %v7999 = vsel %vm3414, %v7803, 0
  %v8002 = vsel %vm3607, %v7808, 0
  %8004 = vmatpush.msra.mxu0 0.0
  %8005 = vmatpush.msra.mxu0 0.0
  %8006 = vmatpush.msra.mxu0 0.0
  %8007 = vmatpush.msra.mxu0 0.0
  %8008 = vmatpush.msra.mxu0 0.0
  %8009 = vmatpush.msra.mxu0 0.0
  %8010 = vmatpush.msra.mxu0 0.0
  %8011 = vmatpush.msra.mxu0 0.0
  %8012 = vmatpush.msra.mxu0 0.0
  %8013 = vmatpush.msra.mxu0 0.0
  %8014 = vmatpush.msra.mxu0 0.0
  %8015 = vmatpush.msra.mxu0 %v8002
  %8016 = vmatpush.msra.mxu0 %v7807
  %8017 = vmatpush.msra.mxu0 %v7806
  %8018 = vmatpush.msra.mxu0 %v7805
  %8019 = vmatpush.msra.mxu0 %v7804
  %8020 = vmatmul.f32.gmra.mxu0 %v7810
  %v8021 = vpop.f32.mrf.mxu0
  %v8022 = vadd.f32 0.0, %v8021
  %8023 = vmatmul.f32.gmra.mxu0 %v7813
  %v8024 = vpop.f32.mrf.mxu0
  %v8025 = vadd.f32 0.0, %v8024
  %8026 = vmatmul.f32.gmra.mxu0 %v7816
  %v8027 = vpop.f32.mrf.mxu0
  %v8028 = vadd.f32 0.0, %v8027
  %8029 = vmatmul.f32.gmra.mxu0 %v7819
  %v8030 = vpop.f32.mrf.mxu0
  %v8031 = vadd.f32 0.0, %v8030
  %8032 = vmatmul.f32.gmra.mxu0 %v7822
  %v8033 = vpop.f32.mrf.mxu0
  %v8034 = vadd.f32 0.0, %v8033
  %8035 = vmatmul.f32.gmra.mxu0 %v7825
  %v8036 = vpop.f32.mrf.mxu0
  %v8037 = vadd.f32 0.0, %v8036
  %8038 = vmatmul.f32.gmra.mxu0 %v7828
  %v8039 = vpop.f32.mrf.mxu0
  %v8040 = vadd.f32 0.0, %v8039
  %8041 = vmatmul.f32.gmra.mxu0 %v7831
  %v8042 = vpop.f32.mrf.mxu0
  %v8043 = vadd.f32 0.0, %v8042
  %8044 = vmatmul.f32.gmra.mxu0 %v7834
  %v8045 = vpop.f32.mrf.mxu0
  %v8046 = vadd.f32 0.0, %v8045
  %8047 = vmatmul.f32.gmra.mxu0 %v7837
  %v8048 = vpop.f32.mrf.mxu0
  %v8049 = vadd.f32 0.0, %v8048
  %8050 = vmatmul.f32.gmra.mxu0 %v7840
  %v8051 = vpop.f32.mrf.mxu0
  %v8052 = vadd.f32 0.0, %v8051
  %8053 = vmatmul.f32.gmra.mxu0 %v7843
  %v8054 = vpop.f32.mrf.mxu0
  %v8055 = vadd.f32 0.0, %v8054
  %8056 = vmatmul.f32.gmra.mxu0 %v7846
  %v8057 = vpop.f32.mrf.mxu0
  %v8058 = vadd.f32 0.0, %v8057
  %8059 = vmatmul.f32.gmra.mxu0 %v7849
  %v8060 = vpop.f32.mrf.mxu0
  %v8061 = vadd.f32 0.0, %v8060
  %8062 = vmatmul.f32.gmra.mxu0 %v7852
  %v8063 = vpop.f32.mrf.mxu0
  %v8064 = vadd.f32 0.0, %v8063
  %8065 = vmatmul.f32.gmra.mxu0 %v7855
  %v8066 = vpop.f32.mrf.mxu0
  %v8067 = vadd.f32 0.0, %v8066
  %8068 = vmatmul.f32.gmra.mxu0 %v7858
  %v8069 = vpop.f32.mrf.mxu0
  %v8070 = vadd.f32 0.0, %v8069
  %8071 = vmatmul.f32.gmra.mxu0 %v7861
  %v8072 = vpop.f32.mrf.mxu0
  %v8073 = vadd.f32 0.0, %v8072
  %8074 = vmatmul.f32.gmra.mxu0 %v7864
  %v8075 = vpop.f32.mrf.mxu0
  %v8076 = vadd.f32 0.0, %v8075
  %8077 = vmatmul.f32.gmra.mxu0 %v7867
  %v8078 = vpop.f32.mrf.mxu0
  %v8079 = vadd.f32 0.0, %v8078
  %8080 = vmatmul.f32.gmra.mxu0 %v7870
  %v8081 = vpop.f32.mrf.mxu0
  %v8082 = vadd.f32 0.0, %v8081
  %8083 = vmatmul.f32.gmra.mxu0 %v7873
  %v8084 = vpop.f32.mrf.mxu0
  %v8085 = vadd.f32 0.0, %v8084
  %8086 = vmatmul.f32.gmra.mxu0 %v7876
  %v8087 = vpop.f32.mrf.mxu0
  %v8088 = vadd.f32 0.0, %v8087
  %8089 = vmatmul.f32.gmra.mxu0 %v7879
  %v8090 = vpop.f32.mrf.mxu0
  %v8091 = vadd.f32 0.0, %v8090
  %8092 = vmatmul.f32.gmra.mxu0 %v7882
  %v8093 = vpop.f32.mrf.mxu0
  %v8094 = vadd.f32 0.0, %v8093
  %8095 = vmatmul.f32.gmra.mxu0 %v7885
  %v8096 = vpop.f32.mrf.mxu0
  %v8097 = vadd.f32 0.0, %v8096
  %8098 = vmatmul.f32.gmra.mxu0 %v7888
  %v8099 = vpop.f32.mrf.mxu0
  %v8100 = vadd.f32 0.0, %v8099
  %8101 = vmatmul.f32.gmra.mxu0 %v7891
  %v8102 = vpop.f32.mrf.mxu0
  %v8103 = vadd.f32 0.0, %v8102
  %8104 = vmatmul.f32.gmra.mxu0 %v7894
  %v8105 = vpop.f32.mrf.mxu0
  %v8106 = vadd.f32 0.0, %v8105
  %8107 = vmatmul.f32.gmra.mxu0 %v7897
  %v8108 = vpop.f32.mrf.mxu0
  %v8109 = vadd.f32 0.0, %v8108
  %8110 = vmatmul.f32.gmra.mxu0 %v7900
  %v8111 = vpop.f32.mrf.mxu0
  %v8112 = vadd.f32 0.0, %v8111
  %8113 = vmatmul.f32.gmra.mxu0 %v7903
  %v8114 = vpop.f32.mrf.mxu0
  %v8115 = vadd.f32 0.0, %v8114
  %8116 = vmatmul.f32.gmra.mxu0 %v7906
  %v8117 = vpop.f32.mrf.mxu0
  %v8118 = vadd.f32 0.0, %v8117
  %8119 = vmatmul.f32.gmra.mxu0 %v7909
  %v8120 = vpop.f32.mrf.mxu0
  %v8121 = vadd.f32 0.0, %v8120
  %8122 = vmatmul.f32.gmra.mxu0 %v7912
  %v8123 = vpop.f32.mrf.mxu0
  %v8124 = vadd.f32 0.0, %v8123
  %8125 = vmatmul.f32.gmra.mxu0 %v7915
  %v8126 = vpop.f32.mrf.mxu0
  %v8127 = vadd.f32 0.0, %v8126
  %8128 = vmatmul.f32.gmra.mxu0 %v7918
  %v8129 = vpop.f32.mrf.mxu0
  %v8130 = vadd.f32 0.0, %v8129
  %8131 = vmatmul.f32.gmra.mxu0 %v7921
  %v8132 = vpop.f32.mrf.mxu0
  %v8133 = vadd.f32 0.0, %v8132
  %8134 = vmatmul.f32.gmra.mxu0 %v7924
  %v8135 = vpop.f32.mrf.mxu0
  %v8136 = vadd.f32 0.0, %v8135
  %8137 = vmatmul.f32.gmra.mxu0 %v7927
  %v8138 = vpop.f32.mrf.mxu0
  %v8139 = vadd.f32 0.0, %v8138
  %8140 = vmatmul.f32.gmra.mxu0 %v7930
  %v8141 = vpop.f32.mrf.mxu0
  %v8142 = vadd.f32 0.0, %v8141
  %8143 = vmatmul.f32.gmra.mxu0 %v7933
  %v8144 = vpop.f32.mrf.mxu0
  %v8145 = vadd.f32 0.0, %v8144
  %8146 = vmatmul.f32.gmra.mxu0 %v7936
  %v8147 = vpop.f32.mrf.mxu0
  %v8148 = vadd.f32 0.0, %v8147
  %8149 = vmatmul.f32.gmra.mxu0 %v7939
  %v8150 = vpop.f32.mrf.mxu0
  %v8151 = vadd.f32 0.0, %v8150
  %8152 = vmatmul.f32.gmra.mxu0 %v7942
  %v8153 = vpop.f32.mrf.mxu0
  %v8154 = vadd.f32 0.0, %v8153
  %8155 = vmatmul.f32.gmra.mxu0 %v7945
  %v8156 = vpop.f32.mrf.mxu0
  %v8157 = vadd.f32 0.0, %v8156
  %8158 = vmatmul.f32.gmra.mxu0 %v7948
  %v8159 = vpop.f32.mrf.mxu0
  %v8160 = vadd.f32 0.0, %v8159
  %8161 = vmatmul.f32.gmra.mxu0 %v7951
  %v8162 = vpop.f32.mrf.mxu0
  %v8163 = vadd.f32 0.0, %v8162
  %8164 = vmatmul.f32.gmra.mxu0 %v7954
  %v8165 = vpop.f32.mrf.mxu0
  %v8166 = vadd.f32 0.0, %v8165
  %8167 = vmatmul.f32.gmra.mxu0 %v7957
  %v8168 = vpop.f32.mrf.mxu0
  %v8169 = vadd.f32 0.0, %v8168
  %8170 = vmatmul.f32.gmra.mxu0 %v7960
  %v8171 = vpop.f32.mrf.mxu0
  %v8172 = vadd.f32 0.0, %v8171
  %8173 = vmatmul.f32.gmra.mxu0 %v7963
  %v8174 = vpop.f32.mrf.mxu0
  %v8175 = vadd.f32 0.0, %v8174
  %8176 = vmatmul.f32.gmra.mxu0 %v7966
  %v8177 = vpop.f32.mrf.mxu0
  %v8178 = vadd.f32 0.0, %v8177
  %8179 = vmatmul.f32.gmra.mxu0 %v7969
  %v8180 = vpop.f32.mrf.mxu0
  %v8181 = vadd.f32 0.0, %v8180
  %8182 = vmatmul.f32.gmra.mxu0 %v7972
  %v8183 = vpop.f32.mrf.mxu0
  %v8184 = vadd.f32 0.0, %v8183
  %8185 = vmatmul.f32.gmra.mxu0 %v7975
  %v8186 = vpop.f32.mrf.mxu0
  %v8187 = vadd.f32 0.0, %v8186
  %8188 = vmatmul.f32.gmra.mxu0 %v7978
  %v8189 = vpop.f32.mrf.mxu0
  %v8190 = vadd.f32 0.0, %v8189
  %8191 = vmatmul.f32.gmra.mxu0 %v7981
  %v8192 = vpop.f32.mrf.mxu0
  %v8193 = vadd.f32 0.0, %v8192
  %8194 = vmatmul.f32.gmra.mxu0 %v7984
  %v8195 = vpop.f32.mrf.mxu0
  %v8196 = vadd.f32 0.0, %v8195
  %8197 = vmatmul.f32.gmra.mxu0 %v7987
  %v8198 = vpop.f32.mrf.mxu0
  %v8199 = vadd.f32 0.0, %v8198
  %8200 = vmatmul.f32.gmra.mxu0 %v7990
  %v8201 = vpop.f32.mrf.mxu0
  %v8202 = vadd.f32 0.0, %v8201
  %8203 = vmatmul.f32.gmra.mxu0 %v7993
  %v8204 = vpop.f32.mrf.mxu0
  %v8205 = vadd.f32 0.0, %v8204
  %8206 = vmatmul.f32.gmra.mxu0 %v7996
  %v8207 = vpop.f32.mrf.mxu0
  %v8208 = vadd.f32 0.0, %v8207
  %8209 = vmatmul.f32.gmra.mxu0 %v7999
  %v8210 = vpop.f32.mrf.mxu0
  %v8211 = vadd.f32 0.0, %v8210
  %8212 = vdwg.mxu0
  %v8213 = vld [vmem:[%s5] sm:$0x1]
  %v8214 = vld [vmem:[%s6] sm:$0x1]
  %v8215 = vsel %vm26, %v8022, 0.0
  %v8216 = vsel %vm26, %v8025, 0.0
  %v8217 = vadd.f32 %v8215, %v8216
  %v8218 = vsel %vm26, %v8028, 0.0
  %v8219 = vadd.f32 %v8217, %v8218
  %v8220 = vsel %vm26, %v8031, 0.0
  %v8221 = vadd.f32 %v8219, %v8220
  %v8222 = vsel %vm26, %v8034, 0.0
  %v8223 = vadd.f32 %v8221, %v8222
  %v8224 = vsel %vm26, %v8037, 0.0
  %v8225 = vadd.f32 %v8223, %v8224
  %v8226 = vsel %vm26, %v8040, 0.0
  %v8227 = vadd.f32 %v8225, %v8226
  %v8228 = vsel %vm26, %v8043, 0.0
  %v8229 = vadd.f32 %v8227, %v8228
  %v8230 = vsel %vm26, %v8046, 0.0
  %v8231 = vadd.f32 %v8229, %v8230
  %v8232 = vsel %vm26, %v8049, 0.0
  %v8233 = vadd.f32 %v8231, %v8232
  %v8234 = vsel %vm26, %v8052, 0.0
  %v8235 = vadd.f32 %v8233, %v8234
  %v8236 = vsel %vm26, %v8055, 0.0
  %v8237 = vadd.f32 %v8235, %v8236
  %v8238 = vsel %vm26, %v8058, 0.0
  %v8239 = vadd.f32 %v8237, %v8238
  %v8240 = vsel %vm26, %v8061, 0.0
  %v8241 = vadd.f32 %v8239, %v8240
  %v8242 = vsel %vm26, %v8064, 0.0
  %v8243 = vadd.f32 %v8241, %v8242
  %v8244 = vsel %vm26, %v8067, 0.0
  %v8245 = vadd.f32 %v8243, %v8244
  %v8246 = vsel %vm26, %v8070, 0.0
  %v8247 = vadd.f32 %v8245, %v8246
  %v8248 = vsel %vm26, %v8073, 0.0
  %v8249 = vadd.f32 %v8247, %v8248
  %v8250 = vsel %vm26, %v8076, 0.0
  %v8251 = vadd.f32 %v8249, %v8250
  %v8252 = vsel %vm26, %v8079, 0.0
  %v8253 = vadd.f32 %v8251, %v8252
  %v8254 = vsel %vm26, %v8082, 0.0
  %v8255 = vadd.f32 %v8253, %v8254
  %v8256 = vsel %vm26, %v8085, 0.0
  %v8257 = vadd.f32 %v8255, %v8256
  %v8258 = vsel %vm26, %v8088, 0.0
  %v8259 = vadd.f32 %v8257, %v8258
  %v8260 = vsel %vm26, %v8091, 0.0
  %v8261 = vadd.f32 %v8259, %v8260
  %v8262 = vsel %vm26, %v8094, 0.0
  %v8263 = vadd.f32 %v8261, %v8262
  %v8264 = vsel %vm26, %v8097, 0.0
  %v8265 = vadd.f32 %v8263, %v8264
  %v8266 = vsel %vm26, %v8100, 0.0
  %v8267 = vadd.f32 %v8265, %v8266
  %v8268 = vsel %vm26, %v8103, 0.0
  %v8269 = vadd.f32 %v8267, %v8268
  %v8270 = vsel %vm26, %v8106, 0.0
  %v8271 = vadd.f32 %v8269, %v8270
  %v8272 = vsel %vm26, %v8109, 0.0
  %v8273 = vadd.f32 %v8271, %v8272
  %v8274 = vsel %vm26, %v8112, 0.0
  %v8275 = vadd.f32 %v8273, %v8274
  %v8276 = vsel %vm26, %v8115, 0.0
  %v8277 = vadd.f32 %v8275, %v8276
  %v8278 = vsel %vm26, %v8118, 0.0
  %v8279 = vadd.f32 %v8277, %v8278
  %v8280 = vsel %vm26, %v8121, 0.0
  %v8281 = vadd.f32 %v8279, %v8280
  %v8282 = vsel %vm26, %v8124, 0.0
  %v8283 = vadd.f32 %v8281, %v8282
  %v8284 = vsel %vm26, %v8127, 0.0
  %v8285 = vadd.f32 %v8283, %v8284
  %v8286 = vsel %vm26, %v8130, 0.0
  %v8287 = vadd.f32 %v8285, %v8286
  %v8288 = vsel %vm26, %v8133, 0.0
  %v8289 = vadd.f32 %v8287, %v8288
  %v8290 = vsel %vm26, %v8136, 0.0
  %v8291 = vadd.f32 %v8289, %v8290
  %v8292 = vsel %vm26, %v8139, 0.0
  %v8293 = vadd.f32 %v8291, %v8292
  %v8294 = vsel %vm26, %v8142, 0.0
  %v8295 = vadd.f32 %v8293, %v8294
  %v8296 = vsel %vm26, %v8145, 0.0
  %v8297 = vadd.f32 %v8295, %v8296
  %v8298 = vsel %vm26, %v8148, 0.0
  %v8299 = vadd.f32 %v8297, %v8298
  %v8300 = vsel %vm26, %v8151, 0.0
  %v8301 = vadd.f32 %v8299, %v8300
  %v8302 = vsel %vm26, %v8154, 0.0
  %v8303 = vadd.f32 %v8301, %v8302
  %v8304 = vsel %vm26, %v8157, 0.0
  %v8305 = vadd.f32 %v8303, %v8304
  %v8306 = vsel %vm26, %v8160, 0.0
  %v8307 = vadd.f32 %v8305, %v8306
  %v8308 = vsel %vm26, %v8163, 0.0
  %v8309 = vadd.f32 %v8307, %v8308
  %v8310 = vsel %vm26, %v8166, 0.0
  %v8311 = vadd.f32 %v8309, %v8310
  %v8312 = vsel %vm26, %v8169, 0.0
  %v8313 = vadd.f32 %v8311, %v8312
  %v8314 = vsel %vm26, %v8172, 0.0
  %v8315 = vadd.f32 %v8313, %v8314
  %v8316 = vsel %vm26, %v8175, 0.0
  %v8317 = vadd.f32 %v8315, %v8316
  %v8318 = vsel %vm26, %v8178, 0.0
  %v8319 = vadd.f32 %v8317, %v8318
  %v8320 = vsel %vm26, %v8181, 0.0
  %v8321 = vadd.f32 %v8319, %v8320
  %v8322 = vsel %vm26, %v8184, 0.0
  %v8323 = vadd.f32 %v8321, %v8322
  %v8324 = vsel %vm26, %v8187, 0.0
  %v8325 = vadd.f32 %v8323, %v8324
  %v8326 = vsel %vm26, %v8190, 0.0
  %v8327 = vadd.f32 %v8325, %v8326
  %v8328 = vsel %vm26, %v8193, 0.0
  %v8329 = vadd.f32 %v8327, %v8328
  %v8330 = vsel %vm26, %v8196, 0.0
  %v8331 = vadd.f32 %v8329, %v8330
  %v8332 = vsel %vm26, %v8199, 0.0
  %v8333 = vadd.f32 %v8331, %v8332
  %v8334 = vsel %vm26, %v8202, 0.0
  %v8335 = vadd.f32 %v8333, %v8334
  %v8336 = vsel %vm26, %v8205, 0.0
  %v8337 = vadd.f32 %v8335, %v8336
  %v8338 = vsel %vm26, %v8208, 0.0
  %v8339 = vadd.f32 %v8337, %v8338
  %v8340 = vsel %vm26, %v8211, 0.0
  %v8341 = vadd.f32 %v8339, %v8340
  %v8342 = vrot.slane %v8341, 4
  %v8343 = vadd.f32 %v8341, %v8342
  %v8344 = vrot.slane %v8343, 2
  %v8345 = vadd.f32 %v8343, %v8344
  %v8346 = vrot.slane %v8345, 1
  %v8347 = vadd.f32 %v8345, %v8346
  %v8348 = vmul.f32 %v8347, 0.001953125
  %v8349 = vmul.f32 %v8022, %v8022
  %v8350 = vmul.f32 %v8025, %v8025
  %v8351 = vmul.f32 %v8028, %v8028
  %v8352 = vmul.f32 %v8031, %v8031
  %v8353 = vmul.f32 %v8034, %v8034
  %v8354 = vmul.f32 %v8037, %v8037
  %v8355 = vmul.f32 %v8040, %v8040
  %v8356 = vmul.f32 %v8043, %v8043
  %v8357 = vmul.f32 %v8046, %v8046
  %v8358 = vmul.f32 %v8049, %v8049
  %v8359 = vmul.f32 %v8052, %v8052
  %v8360 = vmul.f32 %v8055, %v8055
  %v8361 = vmul.f32 %v8058, %v8058
  %v8362 = vmul.f32 %v8061, %v8061
  %v8363 = vmul.f32 %v8064, %v8064
  %v8364 = vmul.f32 %v8067, %v8067
  %v8365 = vmul.f32 %v8070, %v8070
  %v8366 = vmul.f32 %v8073, %v8073
  %v8367 = vmul.f32 %v8076, %v8076
  %v8368 = vmul.f32 %v8079, %v8079
  %v8369 = vmul.f32 %v8082, %v8082
  %v8370 = vmul.f32 %v8085, %v8085
  %v8371 = vmul.f32 %v8088, %v8088
  %v8372 = vmul.f32 %v8091, %v8091
  %v8373 = vmul.f32 %v8094, %v8094
  %v8374 = vmul.f32 %v8097, %v8097
  %v8375 = vmul.f32 %v8100, %v8100
  %v8376 = vmul.f32 %v8103, %v8103
  %v8377 = vmul.f32 %v8106, %v8106
  %v8378 = vmul.f32 %v8109, %v8109
  %v8379 = vmul.f32 %v8112, %v8112
  %v8380 = vmul.f32 %v8115, %v8115
  %v8381 = vmul.f32 %v8118, %v8118
  %v8382 = vmul.f32 %v8121, %v8121
  %v8383 = vmul.f32 %v8124, %v8124
  %v8384 = vmul.f32 %v8127, %v8127
  %v8385 = vmul.f32 %v8130, %v8130
  %v8386 = vmul.f32 %v8133, %v8133
  %v8387 = vmul.f32 %v8136, %v8136
  %v8388 = vmul.f32 %v8139, %v8139
  %v8389 = vmul.f32 %v8142, %v8142
  %v8390 = vmul.f32 %v8145, %v8145
  %v8391 = vmul.f32 %v8148, %v8148
  %v8392 = vmul.f32 %v8151, %v8151
  %v8393 = vmul.f32 %v8154, %v8154
  %v8394 = vmul.f32 %v8157, %v8157
  %v8395 = vmul.f32 %v8160, %v8160
  %v8396 = vmul.f32 %v8163, %v8163
  %v8397 = vmul.f32 %v8166, %v8166
  %v8398 = vmul.f32 %v8169, %v8169
  %v8399 = vmul.f32 %v8172, %v8172
  %v8400 = vmul.f32 %v8175, %v8175
  %v8401 = vmul.f32 %v8178, %v8178
  %v8402 = vmul.f32 %v8181, %v8181
  %v8403 = vmul.f32 %v8184, %v8184
  %v8404 = vmul.f32 %v8187, %v8187
  %v8405 = vmul.f32 %v8190, %v8190
  %v8406 = vmul.f32 %v8193, %v8193
  %v8407 = vmul.f32 %v8196, %v8196
  %v8408 = vmul.f32 %v8199, %v8199
  %v8409 = vmul.f32 %v8202, %v8202
  %v8410 = vmul.f32 %v8205, %v8205
  %v8411 = vmul.f32 %v8208, %v8208
  %v8412 = vmul.f32 %v8211, %v8211
  %v8413 = vsel %vm26, %v8349, 0.0
  %v8414 = vsel %vm26, %v8350, 0.0
  %v8415 = vadd.f32 %v8413, %v8414
  %v8416 = vsel %vm26, %v8351, 0.0
  %v8417 = vadd.f32 %v8415, %v8416
  %v8418 = vsel %vm26, %v8352, 0.0
  %v8419 = vadd.f32 %v8417, %v8418
  %v8420 = vsel %vm26, %v8353, 0.0
  %v8421 = vadd.f32 %v8419, %v8420
  %v8422 = vsel %vm26, %v8354, 0.0
  %v8423 = vadd.f32 %v8421, %v8422
  %v8424 = vsel %vm26, %v8355, 0.0
  %v8425 = vadd.f32 %v8423, %v8424
  %v8426 = vsel %vm26, %v8356, 0.0
  %v8427 = vadd.f32 %v8425, %v8426
  %v8428 = vsel %vm26, %v8357, 0.0
  %v8429 = vadd.f32 %v8427, %v8428
  %v8430 = vsel %vm26, %v8358, 0.0
  %v8431 = vadd.f32 %v8429, %v8430
  %v8432 = vsel %vm26, %v8359, 0.0
  %v8433 = vadd.f32 %v8431, %v8432
  %v8434 = vsel %vm26, %v8360, 0.0
  %v8435 = vadd.f32 %v8433, %v8434
  %v8436 = vsel %vm26, %v8361, 0.0
  %v8437 = vadd.f32 %v8435, %v8436
  %v8438 = vsel %vm26, %v8362, 0.0
  %v8439 = vadd.f32 %v8437, %v8438
  %v8440 = vsel %vm26, %v8363, 0.0
  %v8441 = vadd.f32 %v8439, %v8440
  %v8442 = vsel %vm26, %v8364, 0.0
  %v8443 = vadd.f32 %v8441, %v8442
  %v8444 = vsel %vm26, %v8365, 0.0
  %v8445 = vadd.f32 %v8443, %v8444
  %v8446 = vsel %vm26, %v8366, 0.0
  %v8447 = vadd.f32 %v8445, %v8446
  %v8448 = vsel %vm26, %v8367, 0.0
  %v8449 = vadd.f32 %v8447, %v8448
  %v8450 = vsel %vm26, %v8368, 0.0
  %v8451 = vadd.f32 %v8449, %v8450
  %v8452 = vsel %vm26, %v8369, 0.0
  %v8453 = vadd.f32 %v8451, %v8452
  %v8454 = vsel %vm26, %v8370, 0.0
  %v8455 = vadd.f32 %v8453, %v8454
  %v8456 = vsel %vm26, %v8371, 0.0
  %v8457 = vadd.f32 %v8455, %v8456
  %v8458 = vsel %vm26, %v8372, 0.0
  %v8459 = vadd.f32 %v8457, %v8458
  %v8460 = vsel %vm26, %v8373, 0.0
  %v8461 = vadd.f32 %v8459, %v8460
  %v8462 = vsel %vm26, %v8374, 0.0
  %v8463 = vadd.f32 %v8461, %v8462
  %v8464 = vsel %vm26, %v8375, 0.0
  %v8465 = vadd.f32 %v8463, %v8464
  %v8466 = vsel %vm26, %v8376, 0.0
  %v8467 = vadd.f32 %v8465, %v8466
  %v8468 = vsel %vm26, %v8377, 0.0
  %v8469 = vadd.f32 %v8467, %v8468
  %v8470 = vsel %vm26, %v8378, 0.0
  %v8471 = vadd.f32 %v8469, %v8470
  %v8472 = vsel %vm26, %v8379, 0.0
  %v8473 = vadd.f32 %v8471, %v8472
  %v8474 = vsel %vm26, %v8380, 0.0
  %v8475 = vadd.f32 %v8473, %v8474
  %v8476 = vsel %vm26, %v8381, 0.0
  %v8477 = vadd.f32 %v8475, %v8476
  %v8478 = vsel %vm26, %v8382, 0.0
  %v8479 = vadd.f32 %v8477, %v8478
  %v8480 = vsel %vm26, %v8383, 0.0
  %v8481 = vadd.f32 %v8479, %v8480
  %v8482 = vsel %vm26, %v8384, 0.0
  %v8483 = vadd.f32 %v8481, %v8482
  %v8484 = vsel %vm26, %v8385, 0.0
  %v8485 = vadd.f32 %v8483, %v8484
  %v8486 = vsel %vm26, %v8386, 0.0
  %v8487 = vadd.f32 %v8485, %v8486
  %v8488 = vsel %vm26, %v8387, 0.0
  %v8489 = vadd.f32 %v8487, %v8488
  %v8490 = vsel %vm26, %v8388, 0.0
  %v8491 = vadd.f32 %v8489, %v8490
  %v8492 = vsel %vm26, %v8389, 0.0
  %v8493 = vadd.f32 %v8491, %v8492
  %v8494 = vsel %vm26, %v8390, 0.0
  %v8495 = vadd.f32 %v8493, %v8494
  %v8496 = vsel %vm26, %v8391, 0.0
  %v8497 = vadd.f32 %v8495, %v8496
  %v8498 = vsel %vm26, %v8392, 0.0
  %v8499 = vadd.f32 %v8497, %v8498
  %v8500 = vsel %vm26, %v8393, 0.0
  %v8501 = vadd.f32 %v8499, %v8500
  %v8502 = vsel %vm26, %v8394, 0.0
  %v8503 = vadd.f32 %v8501, %v8502
  %v8504 = vsel %vm26, %v8395, 0.0
  %v8505 = vadd.f32 %v8503, %v8504
  %v8506 = vsel %vm26, %v8396, 0.0
  %v8507 = vadd.f32 %v8505, %v8506
  %v8508 = vsel %vm26, %v8397, 0.0
  %v8509 = vadd.f32 %v8507, %v8508
  %v8510 = vsel %vm26, %v8398, 0.0
  %v8511 = vadd.f32 %v8509, %v8510
  %v8512 = vsel %vm26, %v8399, 0.0
  %v8513 = vadd.f32 %v8511, %v8512
  %v8514 = vsel %vm26, %v8400, 0.0
  %v8515 = vadd.f32 %v8513, %v8514
  %v8516 = vsel %vm26, %v8401, 0.0
  %v8517 = vadd.f32 %v8515, %v8516
  %v8518 = vsel %vm26, %v8402, 0.0
  %v8519 = vadd.f32 %v8517, %v8518
  %v8520 = vsel %vm26, %v8403, 0.0
  %v8521 = vadd.f32 %v8519, %v8520
  %v8522 = vsel %vm26, %v8404, 0.0
  %v8523 = vadd.f32 %v8521, %v8522
  %v8524 = vsel %vm26, %v8405, 0.0
  %v8525 = vadd.f32 %v8523, %v8524
  %v8526 = vsel %vm26, %v8406, 0.0
  %v8527 = vadd.f32 %v8525, %v8526
  %v8528 = vsel %vm26, %v8407, 0.0
  %v8529 = vadd.f32 %v8527, %v8528
  %v8530 = vsel %vm26, %v8408, 0.0
  %v8531 = vadd.f32 %v8529, %v8530
  %v8532 = vsel %vm26, %v8409, 0.0
  %v8533 = vadd.f32 %v8531, %v8532
  %v8534 = vsel %vm26, %v8410, 0.0
  %v8535 = vadd.f32 %v8533, %v8534
  %v8536 = vsel %vm26, %v8411, 0.0
  %v8537 = vadd.f32 %v8535, %v8536
  %v8538 = vsel %vm26, %v8412, 0.0
  %v8539 = vadd.f32 %v8537, %v8538
  %v8540 = vrot.slane %v8539, 4
  %v8541 = vadd.f32 %v8539, %v8540
  %v8542 = vrot.slane %v8541, 2
  %v8543 = vadd.f32 %v8541, %v8542
  %v8544 = vrot.slane %v8543, 1
  %v8545 = vadd.f32 %v8543, %v8544
  %v8546 = vmul.f32 %v8545, 0.001953125
  %v8547 = vmul.f32 %v8348, %v8348
  %v8548 = vsub.f32 %v8546, %v8547
  %v8549 = vmax.f32 %v8548, 0.0
  %v8550 = vsub.f32 %v8022, %v8348
  %v8551 = vsub.f32 %v8025, %v8348
  %v8552 = vsub.f32 %v8028, %v8348
  %v8553 = vsub.f32 %v8031, %v8348
  %v8554 = vsub.f32 %v8034, %v8348
  %v8555 = vsub.f32 %v8037, %v8348
  %v8556 = vsub.f32 %v8040, %v8348
  %v8557 = vsub.f32 %v8043, %v8348
  %v8558 = vsub.f32 %v8046, %v8348
  %v8559 = vsub.f32 %v8049, %v8348
  %v8560 = vsub.f32 %v8052, %v8348
  %v8561 = vsub.f32 %v8055, %v8348
  %v8562 = vsub.f32 %v8058, %v8348
  %v8563 = vsub.f32 %v8061, %v8348
  %v8564 = vsub.f32 %v8064, %v8348
  %v8565 = vsub.f32 %v8067, %v8348
  %v8566 = vsub.f32 %v8070, %v8348
  %v8567 = vsub.f32 %v8073, %v8348
  %v8568 = vsub.f32 %v8076, %v8348
  %v8569 = vsub.f32 %v8079, %v8348
  %v8570 = vsub.f32 %v8082, %v8348
  %v8571 = vsub.f32 %v8085, %v8348
  %v8572 = vsub.f32 %v8088, %v8348
  %v8573 = vsub.f32 %v8091, %v8348
  %v8574 = vsub.f32 %v8094, %v8348
  %v8575 = vsub.f32 %v8097, %v8348
  %v8576 = vsub.f32 %v8100, %v8348
  %v8577 = vsub.f32 %v8103, %v8348
  %v8578 = vsub.f32 %v8106, %v8348
  %v8579 = vsub.f32 %v8109, %v8348
  %v8580 = vsub.f32 %v8112, %v8348
  %v8581 = vsub.f32 %v8115, %v8348
  %v8582 = vsub.f32 %v8118, %v8348
  %v8583 = vsub.f32 %v8121, %v8348
  %v8584 = vsub.f32 %v8124, %v8348
  %v8585 = vsub.f32 %v8127, %v8348
  %v8586 = vsub.f32 %v8130, %v8348
  %v8587 = vsub.f32 %v8133, %v8348
  %v8588 = vsub.f32 %v8136, %v8348
  %v8589 = vsub.f32 %v8139, %v8348
  %v8590 = vsub.f32 %v8142, %v8348
  %v8591 = vsub.f32 %v8145, %v8348
  %v8592 = vsub.f32 %v8148, %v8348
  %v8593 = vsub.f32 %v8151, %v8348
  %v8594 = vsub.f32 %v8154, %v8348
  %v8595 = vsub.f32 %v8157, %v8348
  %v8596 = vsub.f32 %v8160, %v8348
  %v8597 = vsub.f32 %v8163, %v8348
  %v8598 = vsub.f32 %v8166, %v8348
  %v8599 = vsub.f32 %v8169, %v8348
  %v8600 = vsub.f32 %v8172, %v8348
  %v8601 = vsub.f32 %v8175, %v8348
  %v8602 = vsub.f32 %v8178, %v8348
  %v8603 = vsub.f32 %v8181, %v8348
  %v8604 = vsub.f32 %v8184, %v8348
  %v8605 = vsub.f32 %v8187, %v8348
  %v8606 = vsub.f32 %v8190, %v8348
  %v8607 = vsub.f32 %v8193, %v8348
  %v8608 = vsub.f32 %v8196, %v8348
  %v8609 = vsub.f32 %v8199, %v8348
  %v8610 = vsub.f32 %v8202, %v8348
  %v8611 = vsub.f32 %v8205, %v8348
  %v8612 = vsub.f32 %v8208, %v8348
  %v8613 = vsub.f32 %v8211, %v8348
  %v8614 = vadd.f32 %v8549, 1e-05
  %v8615 = vrsqrt.pop %v8614
  %v8616 = vmul.f32 %v8615, %v8614
  %v8617 = vmul.f32 %v8616, %v8615
  %v8618 = vmul.f32 0.5, %v8617
  %v8619 = vsub.f32 1.5, %v8618
  %v8620 = vmul.f32 %v8615, %v8619
  %vm8621 = vweird.f32 %v8614
  %vm8622 = vweird.f32 %v8615
  %vm8623 = vmor %vm8621, %vm8622
  %v8624 = vsel %vm8623, %v8615, %v8620
  %v8625 = vmul.f32 %v8550, %v8624
  %v8626 = vmul.f32 %v8551, %v8624
  %v8627 = vmul.f32 %v8552, %v8624
  %v8628 = vmul.f32 %v8553, %v8624
  %v8629 = vmul.f32 %v8554, %v8624
  %v8630 = vmul.f32 %v8555, %v8624
  %v8631 = vmul.f32 %v8556, %v8624
  %v8632 = vmul.f32 %v8557, %v8624
  %v8633 = vmul.f32 %v8558, %v8624
  %v8634 = vmul.f32 %v8559, %v8624
  %v8635 = vmul.f32 %v8560, %v8624
  %v8636 = vmul.f32 %v8561, %v8624
  %v8637 = vmul.f32 %v8562, %v8624
  %v8638 = vmul.f32 %v8563, %v8624
  %v8639 = vmul.f32 %v8564, %v8624
  %v8640 = vmul.f32 %v8565, %v8624
  %v8641 = vmul.f32 %v8566, %v8624
  %v8642 = vmul.f32 %v8567, %v8624
  %v8643 = vmul.f32 %v8568, %v8624
  %v8644 = vmul.f32 %v8569, %v8624
  %v8645 = vmul.f32 %v8570, %v8624
  %v8646 = vmul.f32 %v8571, %v8624
  %v8647 = vmul.f32 %v8572, %v8624
  %v8648 = vmul.f32 %v8573, %v8624
  %v8649 = vmul.f32 %v8574, %v8624
  %v8650 = vmul.f32 %v8575, %v8624
  %v8651 = vmul.f32 %v8576, %v8624
  %v8652 = vmul.f32 %v8577, %v8624
  %v8653 = vmul.f32 %v8578, %v8624
  %v8654 = vmul.f32 %v8579, %v8624
  %v8655 = vmul.f32 %v8580, %v8624
  %v8656 = vmul.f32 %v8581, %v8624
  %v8657 = vmul.f32 %v8582, %v8624
  %v8658 = vmul.f32 %v8583, %v8624
  %v8659 = vmul.f32 %v8584, %v8624
  %v8660 = vmul.f32 %v8585, %v8624
  %v8661 = vmul.f32 %v8586, %v8624
  %v8662 = vmul.f32 %v8587, %v8624
  %v8663 = vmul.f32 %v8588, %v8624
  %v8664 = vmul.f32 %v8589, %v8624
  %v8665 = vmul.f32 %v8590, %v8624
  %v8666 = vmul.f32 %v8591, %v8624
  %v8667 = vmul.f32 %v8592, %v8624
  %v8668 = vmul.f32 %v8593, %v8624
  %v8669 = vmul.f32 %v8594, %v8624
  %v8670 = vmul.f32 %v8595, %v8624
  %v8671 = vmul.f32 %v8596, %v8624
  %v8672 = vmul.f32 %v8597, %v8624
  %v8673 = vmul.f32 %v8598, %v8624
  %v8674 = vmul.f32 %v8599, %v8624
  %v8675 = vmul.f32 %v8600, %v8624
  %v8676 = vmul.f32 %v8601, %v8624
  %v8677 = vmul.f32 %v8602, %v8624
  %v8678 = vmul.f32 %v8603, %v8624
  %v8679 = vmul.f32 %v8604, %v8624
  %v8680 = vmul.f32 %v8605, %v8624
  %v8681 = vmul.f32 %v8606, %v8624
  %v8682 = vmul.f32 %v8607, %v8624
  %v8683 = vmul.f32 %v8608, %v8624
  %v8684 = vmul.f32 %v8609, %v8624
  %v8685 = vmul.f32 %v8610, %v8624
  %v8686 = vmul.f32 %v8611, %v8624
  %v8687 = vmul.f32 %v8612, %v8624
  %v8688 = vmul.f32 %v8613, %v8624
  %v8690 = vperm.slane %v8213, 0
  %v8692 = vmul.f32 %v8625, %v8690
  %v8693 = vmul.f32 %v8626, %v8690
  %v8694 = vmul.f32 %v8627, %v8690
  %v8695 = vmul.f32 %v8628, %v8690
  %v8696 = vmul.f32 %v8629, %v8690
  %v8697 = vmul.f32 %v8630, %v8690
  %v8698 = vmul.f32 %v8631, %v8690
  %v8699 = vmul.f32 %v8632, %v8690
  %v8700 = vmul.f32 %v8633, %v8690
  %v8701 = vmul.f32 %v8634, %v8690
  %v8702 = vmul.f32 %v8635, %v8690
  %v8703 = vmul.f32 %v8636, %v8690
  %v8704 = vmul.f32 %v8637, %v8690
  %v8705 = vmul.f32 %v8638, %v8690
  %v8706 = vmul.f32 %v8639, %v8690
  %v8707 = vmul.f32 %v8640, %v8690
  %v8708 = vmul.f32 %v8641, %v8690
  %v8709 = vmul.f32 %v8642, %v8690
  %v8710 = vmul.f32 %v8643, %v8690
  %v8711 = vmul.f32 %v8644, %v8690
  %v8712 = vmul.f32 %v8645, %v8690
  %v8713 = vmul.f32 %v8646, %v8690
  %v8714 = vmul.f32 %v8647, %v8690
  %v8715 = vmul.f32 %v8648, %v8690
  %v8716 = vmul.f32 %v8649, %v8690
  %v8717 = vmul.f32 %v8650, %v8690
  %v8718 = vmul.f32 %v8651, %v8690
  %v8719 = vmul.f32 %v8652, %v8690
  %v8720 = vmul.f32 %v8653, %v8690
  %v8721 = vmul.f32 %v8654, %v8690
  %v8722 = vmul.f32 %v8655, %v8690
  %v8723 = vmul.f32 %v8656, %v8690
  %v8724 = vmul.f32 %v8657, %v8690
  %v8725 = vmul.f32 %v8658, %v8690
  %v8726 = vmul.f32 %v8659, %v8690
  %v8727 = vmul.f32 %v8660, %v8690
  %v8728 = vmul.f32 %v8661, %v8690
  %v8729 = vmul.f32 %v8662, %v8690
  %v8730 = vmul.f32 %v8663, %v8690
  %v8731 = vmul.f32 %v8664, %v8690
  %v8732 = vmul.f32 %v8665, %v8690
  %v8733 = vmul.f32 %v8666, %v8690
  %v8734 = vmul.f32 %v8667, %v8690
  %v8735 = vmul.f32 %v8668, %v8690
  %v8736 = vmul.f32 %v8669, %v8690
  %v8737 = vmul.f32 %v8670, %v8690
  %v8738 = vmul.f32 %v8671, %v8690
  %v8739 = vmul.f32 %v8672, %v8690
  %v8740 = vmul.f32 %v8673, %v8690
  %v8741 = vmul.f32 %v8674, %v8690
  %v8742 = vmul.f32 %v8675, %v8690
  %v8743 = vmul.f32 %v8676, %v8690
  %v8744 = vmul.f32 %v8677, %v8690
  %v8745 = vmul.f32 %v8678, %v8690
  %v8746 = vmul.f32 %v8679, %v8690
  %v8747 = vmul.f32 %v8680, %v8690
  %v8748 = vmul.f32 %v8681, %v8690
  %v8749 = vmul.f32 %v8682, %v8690
  %v8750 = vmul.f32 %v8683, %v8690
  %v8751 = vmul.f32 %v8684, %v8690
  %v8752 = vmul.f32 %v8685, %v8690
  %v8753 = vmul.f32 %v8686, %v8690
  %v8754 = vmul.f32 %v8687, %v8690
  %v8755 = vmul.f32 %v8688, %v8690
  %v8757 = vperm.slane %v8214, 0
  %v8759 = vadd.f32 %v8692, %v8757
  %v8760 = vadd.f32 %v8693, %v8757
  %v8761 = vadd.f32 %v8694, %v8757
  %v8762 = vadd.f32 %v8695, %v8757
  %v8763 = vadd.f32 %v8696, %v8757
  %v8764 = vadd.f32 %v8697, %v8757
  %v8765 = vadd.f32 %v8698, %v8757
  %v8766 = vadd.f32 %v8699, %v8757
  %v8767 = vadd.f32 %v8700, %v8757
  %v8768 = vadd.f32 %v8701, %v8757
  %v8769 = vadd.f32 %v8702, %v8757
  %v8770 = vadd.f32 %v8703, %v8757
  %v8771 = vadd.f32 %v8704, %v8757
  %v8772 = vadd.f32 %v8705, %v8757
  %v8773 = vadd.f32 %v8706, %v8757
  %v8774 = vadd.f32 %v8707, %v8757
  %v8775 = vadd.f32 %v8708, %v8757
  %v8776 = vadd.f32 %v8709, %v8757
  %v8777 = vadd.f32 %v8710, %v8757
  %v8778 = vadd.f32 %v8711, %v8757
  %v8779 = vadd.f32 %v8712, %v8757
  %v8780 = vadd.f32 %v8713, %v8757
  %v8781 = vadd.f32 %v8714, %v8757
  %v8782 = vadd.f32 %v8715, %v8757
  %v8783 = vadd.f32 %v8716, %v8757
  %v8784 = vadd.f32 %v8717, %v8757
  %v8785 = vadd.f32 %v8718, %v8757
  %v8786 = vadd.f32 %v8719, %v8757
  %v8787 = vadd.f32 %v8720, %v8757
  %v8788 = vadd.f32 %v8721, %v8757
  %v8789 = vadd.f32 %v8722, %v8757
  %v8790 = vadd.f32 %v8723, %v8757
  %v8791 = vadd.f32 %v8724, %v8757
  %v8792 = vadd.f32 %v8725, %v8757
  %v8793 = vadd.f32 %v8726, %v8757
  %v8794 = vadd.f32 %v8727, %v8757
  %v8795 = vadd.f32 %v8728, %v8757
  %v8796 = vadd.f32 %v8729, %v8757
  %v8797 = vadd.f32 %v8730, %v8757
  %v8798 = vadd.f32 %v8731, %v8757
  %v8799 = vadd.f32 %v8732, %v8757
  %v8800 = vadd.f32 %v8733, %v8757
  %v8801 = vadd.f32 %v8734, %v8757
  %v8802 = vadd.f32 %v8735, %v8757
  %v8803 = vadd.f32 %v8736, %v8757
  %v8804 = vadd.f32 %v8737, %v8757
  %v8805 = vadd.f32 %v8738, %v8757
  %v8806 = vadd.f32 %v8739, %v8757
  %v8807 = vadd.f32 %v8740, %v8757
  %v8808 = vadd.f32 %v8741, %v8757
  %v8809 = vadd.f32 %v8742, %v8757
  %v8810 = vadd.f32 %v8743, %v8757
  %v8811 = vadd.f32 %v8744, %v8757
  %v8812 = vadd.f32 %v8745, %v8757
  %v8813 = vadd.f32 %v8746, %v8757
  %v8814 = vadd.f32 %v8747, %v8757
  %v8815 = vadd.f32 %v8748, %v8757
  %v8816 = vadd.f32 %v8749, %v8757
  %v8817 = vadd.f32 %v8750, %v8757
  %v8818 = vadd.f32 %v8751, %v8757
  %v8819 = vadd.f32 %v8752, %v8757
  %v8820 = vadd.f32 %v8753, %v8757
  %v8821 = vadd.f32 %v8754, %v8757
  %v8822 = vadd.f32 %v8755, %v8757
  %v8823 = vld [vmem:[%s0] sm:$0xff]
  %v8824 = vld [vmem:[%s0 + $0x8] sm:$0xff]
  %v8825 = vld [vmem:[%s0 + $0x10] sm:$0xff]
  %v8826 = vld [vmem:[%s0 + $0x18] sm:$0xff]
  %v8827 = vld [vmem:[%s0 + $0x20] sm:$0xff]
  %v8828 = vld [vmem:[%s0 + $0x28] sm:$0xff]
  %v8829 = vld [vmem:[%s0 + $0x30] sm:$0xff]
  %v8830 = vld [vmem:[%s0 + $0x38] sm:$0xff]
  %v8831 = vld [vmem:[%s0 + $0x40] sm:$0xff]
  %v8832 = vld [vmem:[%s0 + $0x48] sm:$0xff]
  %v8833 = vld [vmem:[%s0 + $0x50] sm:$0xff]
  %v8834 = vld [vmem:[%s0 + $0x58] sm:$0xff]
  %v8835 = vld [vmem:[%s0 + $0x60] sm:$0xff]
  %v8836 = vld [vmem:[%s0 + $0x68] sm:$0xff]
  %v8837 = vld [vmem:[%s0 + $0x70] sm:$0xff]
  %v8838 = vld [vmem:[%s0 + $0x78] sm:$0xff]
  %v8839 = vld [vmem:[%s0 + $0x80] sm:$0xff]
  %v8840 = vld [vmem:[%s0 + $0x88] sm:$0xff]
  %v8841 = vld [vmem:[%s0 + $0x90] sm:$0xff]
  %v8842 = vld [vmem:[%s0 + $0x98] sm:$0xff]
  %v8843 = vld [vmem:[%s0 + $0xa0] sm:$0xff]
  %v8844 = vld [vmem:[%s0 + $0xa8] sm:$0xff]
  %v8845 = vld [vmem:[%s0 + $0xb0] sm:$0xff]
  %v8846 = vld [vmem:[%s0 + $0xb8] sm:$0xff]
  %v8847 = vld [vmem:[%s0 + $0xc0] sm:$0xff]
  %v8848 = vld [vmem:[%s0 + $0xc8] sm:$0xff]
  %v8849 = vld [vmem:[%s0 + $0xd0] sm:$0xff]
  %v8850 = vld [vmem:[%s0 + $0xd8] sm:$0xff]
  %v8851 = vld [vmem:[%s0 + $0xe0] sm:$0xff]
  %v8852 = vld [vmem:[%s0 + $0xe8] sm:$0xff]
  %v8853 = vld [vmem:[%s0 + $0xf0] sm:$0xff]
  %v8854 = vld [vmem:[%s0 + $0xf8] sm:$0xff]
  %v8855 = vld [vmem:[%s0 + $0x100] sm:$0xff]
  %v8856 = vld [vmem:[%s0 + $0x108] sm:$0xff]
  %v8857 = vld [vmem:[%s0 + $0x110] sm:$0xff]
  %v8858 = vld [vmem:[%s0 + $0x118] sm:$0xff]
  %v8859 = vld [vmem:[%s0 + $0x120] sm:$0xff]
  %v8860 = vld [vmem:[%s0 + $0x128] sm:$0xff]
  %v8861 = vld [vmem:[%s0 + $0x130] sm:$0xff]
  %v8862 = vld [vmem:[%s0 + $0x138] sm:$0xff]
  %v8863 = vld [vmem:[%s0 + $0x140] sm:$0xff]
  %v8864 = vld [vmem:[%s0 + $0x148] sm:$0xff]
  %v8865 = vld [vmem:[%s0 + $0x150] sm:$0xff]
  %v8866 = vld [vmem:[%s0 + $0x158] sm:$0xff]
  %v8867 = vld [vmem:[%s0 + $0x160] sm:$0xff]
  %v8868 = vld [vmem:[%s0 + $0x168] sm:$0xff]
  %v8869 = vld [vmem:[%s0 + $0x170] sm:$0xff]
  %v8870 = vld [vmem:[%s0 + $0x178] sm:$0xff]
  %v8871 = vld [vmem:[%s0 + $0x180] sm:$0xff]
  %v8872 = vld [vmem:[%s0 + $0x188] sm:$0xff]
  %v8873 = vld [vmem:[%s0 + $0x190] sm:$0xff]
  %v8874 = vld [vmem:[%s0 + $0x198] sm:$0xff]
  %v8875 = vld [vmem:[%s0 + $0x1a0] sm:$0xff]
  %v8876 = vld [vmem:[%s0 + $0x1a8] sm:$0xff]
  %v8877 = vld [vmem:[%s0 + $0x1b0] sm:$0xff]
  %v8878 = vld [vmem:[%s0 + $0x1b8] sm:$0xff]
  %v8879 = vld [vmem:[%s0 + $0x1c0] sm:$0xff]
  %v8880 = vld [vmem:[%s0 + $0x1c8] sm:$0xff]
  %v8881 = vld [vmem:[%s0 + $0x1d0] sm:$0xff]
  %v8882 = vld [vmem:[%s0 + $0x1d8] sm:$0xff]
  %v8883 = vld [vmem:[%s0 + $0x1e0] sm:$0xff]
  %v8884 = vld [vmem:[%s0 + $0x1e8] sm:$0xff]
  %v8885 = vld [vmem:[%s0 + $0x1f0] sm:$0xff]
  %v8886 = vld [vmem:[%s0 + $0x1f8] sm:$0xff]
  %v8887 = vadd.f32 %v8759, %v8823
  %v8888 = vadd.f32 %v8760, %v8824
  %v8889 = vadd.f32 %v8761, %v8825
  %v8890 = vadd.f32 %v8762, %v8826
  %v8891 = vadd.f32 %v8763, %v8827
  %v8892 = vadd.f32 %v8764, %v8828
  %v8893 = vadd.f32 %v8765, %v8829
  %v8894 = vadd.f32 %v8766, %v8830
  %v8895 = vadd.f32 %v8767, %v8831
  %v8896 = vadd.f32 %v8768, %v8832
  %v8897 = vadd.f32 %v8769, %v8833
  %v8898 = vadd.f32 %v8770, %v8834
  %v8899 = vadd.f32 %v8771, %v8835
  %v8900 = vadd.f32 %v8772, %v8836
  %v8901 = vadd.f32 %v8773, %v8837
  %v8902 = vadd.f32 %v8774, %v8838
  %v8903 = vadd.f32 %v8775, %v8839
  %v8904 = vadd.f32 %v8776, %v8840
  %v8905 = vadd.f32 %v8777, %v8841
  %v8906 = vadd.f32 %v8778, %v8842
  %v8907 = vadd.f32 %v8779, %v8843
  %v8908 = vadd.f32 %v8780, %v8844
  %v8909 = vadd.f32 %v8781, %v8845
  %v8910 = vadd.f32 %v8782, %v8846
  %v8911 = vadd.f32 %v8783, %v8847
  %v8912 = vadd.f32 %v8784, %v8848
  %v8913 = vadd.f32 %v8785, %v8849
  %v8914 = vadd.f32 %v8786, %v8850
  %v8915 = vadd.f32 %v8787, %v8851
  %v8916 = vadd.f32 %v8788, %v8852
  %v8917 = vadd.f32 %v8789, %v8853
  %v8918 = vadd.f32 %v8790, %v8854
  %v8919 = vadd.f32 %v8791, %v8855
  %v8920 = vadd.f32 %v8792, %v8856
  %v8921 = vadd.f32 %v8793, %v8857
  %v8922 = vadd.f32 %v8794, %v8858
  %v8923 = vadd.f32 %v8795, %v8859
  %v8924 = vadd.f32 %v8796, %v8860
  %v8925 = vadd.f32 %v8797, %v8861
  %v8926 = vadd.f32 %v8798, %v8862
  %v8927 = vadd.f32 %v8799, %v8863
  %v8928 = vadd.f32 %v8800, %v8864
  %v8929 = vadd.f32 %v8801, %v8865
  %v8930 = vadd.f32 %v8802, %v8866
  %v8931 = vadd.f32 %v8803, %v8867
  %v8932 = vadd.f32 %v8804, %v8868
  %v8933 = vadd.f32 %v8805, %v8869
  %v8934 = vadd.f32 %v8806, %v8870
  %v8935 = vadd.f32 %v8807, %v8871
  %v8936 = vadd.f32 %v8808, %v8872
  %v8937 = vadd.f32 %v8809, %v8873
  %v8938 = vadd.f32 %v8810, %v8874
  %v8939 = vadd.f32 %v8811, %v8875
  %v8940 = vadd.f32 %v8812, %v8876
  %v8941 = vadd.f32 %v8813, %v8877
  %v8942 = vadd.f32 %v8814, %v8878
  %v8943 = vadd.f32 %v8815, %v8879
  %v8944 = vadd.f32 %v8816, %v8880
  %v8945 = vadd.f32 %v8817, %v8881
  %v8946 = vadd.f32 %v8818, %v8882
  %v8947 = vadd.f32 %v8819, %v8883
  %v8948 = vadd.f32 %v8820, %v8884
  %v8949 = vadd.f32 %v8821, %v8885
  %v8950 = vadd.f32 %v8822, %v8886
  %v8951 = vmax.f32 %v8887, 0.0
  %v8952 = vmax.f32 %v8888, 0.0
  %v8953 = vmax.f32 %v8889, 0.0
  %v8954 = vmax.f32 %v8890, 0.0
  %v8955 = vmax.f32 %v8891, 0.0
  %v8956 = vmax.f32 %v8892, 0.0
  %v8957 = vmax.f32 %v8893, 0.0
  %v8958 = vmax.f32 %v8894, 0.0
  %v8959 = vmax.f32 %v8895, 0.0
  %v8960 = vmax.f32 %v8896, 0.0
  %v8961 = vmax.f32 %v8897, 0.0
  %v8962 = vmax.f32 %v8898, 0.0
  %v8963 = vmax.f32 %v8899, 0.0
  %v8964 = vmax.f32 %v8900, 0.0
  %v8965 = vmax.f32 %v8901, 0.0
  %v8966 = vmax.f32 %v8902, 0.0
  %v8967 = vmax.f32 %v8903, 0.0
  %v8968 = vmax.f32 %v8904, 0.0
  %v8969 = vmax.f32 %v8905, 0.0
  %v8970 = vmax.f32 %v8906, 0.0
  %v8971 = vmax.f32 %v8907, 0.0
  %v8972 = vmax.f32 %v8908, 0.0
  %v8973 = vmax.f32 %v8909, 0.0
  %v8974 = vmax.f32 %v8910, 0.0
  %v8975 = vmax.f32 %v8911, 0.0
  %v8976 = vmax.f32 %v8912, 0.0
  %v8977 = vmax.f32 %v8913, 0.0
  %v8978 = vmax.f32 %v8914, 0.0
  %v8979 = vmax.f32 %v8915, 0.0
  %v8980 = vmax.f32 %v8916, 0.0
  %v8981 = vmax.f32 %v8917, 0.0
  %v8982 = vmax.f32 %v8918, 0.0
  %v8983 = vmax.f32 %v8919, 0.0
  %v8984 = vmax.f32 %v8920, 0.0
  %v8985 = vmax.f32 %v8921, 0.0
  %v8986 = vmax.f32 %v8922, 0.0
  %v8987 = vmax.f32 %v8923, 0.0
  %v8988 = vmax.f32 %v8924, 0.0
  %v8989 = vmax.f32 %v8925, 0.0
  %v8990 = vmax.f32 %v8926, 0.0
  %v8991 = vmax.f32 %v8927, 0.0
  %v8992 = vmax.f32 %v8928, 0.0
  %v8993 = vmax.f32 %v8929, 0.0
  %v8994 = vmax.f32 %v8930, 0.0
  %v8995 = vmax.f32 %v8931, 0.0
  %v8996 = vmax.f32 %v8932, 0.0
  %v8997 = vmax.f32 %v8933, 0.0
  %v8998 = vmax.f32 %v8934, 0.0
  %v8999 = vmax.f32 %v8935, 0.0
  %v9000 = vmax.f32 %v8936, 0.0
  %v9001 = vmax.f32 %v8937, 0.0
  %v9002 = vmax.f32 %v8938, 0.0
  %v9003 = vmax.f32 %v8939, 0.0
  %v9004 = vmax.f32 %v8940, 0.0
  %v9005 = vmax.f32 %v8941, 0.0
  %v9006 = vmax.f32 %v8942, 0.0
  %v9007 = vmax.f32 %v8943, 0.0
  %v9008 = vmax.f32 %v8944, 0.0
  %v9009 = vmax.f32 %v8945, 0.0
  %v9010 = vmax.f32 %v8946, 0.0
  %v9011 = vmax.f32 %v8947, 0.0
  %v9012 = vmax.f32 %v8948, 0.0
  %v9013 = vmax.f32 %v8949, 0.0
  %v9014 = vmax.f32 %v8950, 0.0
  %9015 = vst.msk [vmem:[%s7] sm:$0xff] %vm26, %v8951
  %9016 = vst.msk [vmem:[%s7 + $0x8] sm:$0xff] %vm26, %v8952
  %9017 = vst.msk [vmem:[%s7 + $0x10] sm:$0xff] %vm26, %v8953
  %9018 = vst.msk [vmem:[%s7 + $0x18] sm:$0xff] %vm26, %v8954
  %9019 = vst.msk [vmem:[%s7 + $0x20] sm:$0xff] %vm26, %v8955
  %9020 = vst.msk [vmem:[%s7 + $0x28] sm:$0xff] %vm26, %v8956
  %9021 = vst.msk [vmem:[%s7 + $0x30] sm:$0xff] %vm26, %v8957
  %9022 = vst.msk [vmem:[%s7 + $0x38] sm:$0xff] %vm26, %v8958
  %9023 = vst.msk [vmem:[%s7 + $0x40] sm:$0xff] %vm26, %v8959
  %9024 = vst.msk [vmem:[%s7 + $0x48] sm:$0xff] %vm26, %v8960
  %9025 = vst.msk [vmem:[%s7 + $0x50] sm:$0xff] %vm26, %v8961
  %9026 = vst.msk [vmem:[%s7 + $0x58] sm:$0xff] %vm26, %v8962
  %9027 = vst.msk [vmem:[%s7 + $0x60] sm:$0xff] %vm26, %v8963
  %9028 = vst.msk [vmem:[%s7 + $0x68] sm:$0xff] %vm26, %v8964
  %9029 = vst.msk [vmem:[%s7 + $0x70] sm:$0xff] %vm26, %v8965
  %9030 = vst.msk [vmem:[%s7 + $0x78] sm:$0xff] %vm26, %v8966
  %9031 = vst.msk [vmem:[%s7 + $0x80] sm:$0xff] %vm26, %v8967
  %9032 = vst.msk [vmem:[%s7 + $0x88] sm:$0xff] %vm26, %v8968
  %9033 = vst.msk [vmem:[%s7 + $0x90] sm:$0xff] %vm26, %v8969
  %9034 = vst.msk [vmem:[%s7 + $0x98] sm:$0xff] %vm26, %v8970
  %9035 = vst.msk [vmem:[%s7 + $0xa0] sm:$0xff] %vm26, %v8971
  %9036 = vst.msk [vmem:[%s7 + $0xa8] sm:$0xff] %vm26, %v8972
  %9037 = vst.msk [vmem:[%s7 + $0xb0] sm:$0xff] %vm26, %v8973
  %9038 = vst.msk [vmem:[%s7 + $0xb8] sm:$0xff] %vm26, %v8974
  %9039 = vst.msk [vmem:[%s7 + $0xc0] sm:$0xff] %vm26, %v8975
  %9040 = vst.msk [vmem:[%s7 + $0xc8] sm:$0xff] %vm26, %v8976
  %9041 = vst.msk [vmem:[%s7 + $0xd0] sm:$0xff] %vm26, %v8977
  %9042 = vst.msk [vmem:[%s7 + $0xd8] sm:$0xff] %vm26, %v8978
  %9043 = vst.msk [vmem:[%s7 + $0xe0] sm:$0xff] %vm26, %v8979
  %9044 = vst.msk [vmem:[%s7 + $0xe8] sm:$0xff] %vm26, %v8980
  %9045 = vst.msk [vmem:[%s7 + $0xf0] sm:$0xff] %vm26, %v8981
  %9046 = vst.msk [vmem:[%s7 + $0xf8] sm:$0xff] %vm26, %v8982
  %9047 = vst.msk [vmem:[%s7 + $0x100] sm:$0xff] %vm26, %v8983
  %9048 = vst.msk [vmem:[%s7 + $0x108] sm:$0xff] %vm26, %v8984
  %9049 = vst.msk [vmem:[%s7 + $0x110] sm:$0xff] %vm26, %v8985
  %9050 = vst.msk [vmem:[%s7 + $0x118] sm:$0xff] %vm26, %v8986
  %9051 = vst.msk [vmem:[%s7 + $0x120] sm:$0xff] %vm26, %v8987
  %9052 = vst.msk [vmem:[%s7 + $0x128] sm:$0xff] %vm26, %v8988
  %9053 = vst.msk [vmem:[%s7 + $0x130] sm:$0xff] %vm26, %v8989
  %9054 = vst.msk [vmem:[%s7 + $0x138] sm:$0xff] %vm26, %v8990
  %9055 = vst.msk [vmem:[%s7 + $0x140] sm:$0xff] %vm26, %v8991
  %9056 = vst.msk [vmem:[%s7 + $0x148] sm:$0xff] %vm26, %v8992
  %9057 = vst.msk [vmem:[%s7 + $0x150] sm:$0xff] %vm26, %v8993
  %9058 = vst.msk [vmem:[%s7 + $0x158] sm:$0xff] %vm26, %v8994
  %9059 = vst.msk [vmem:[%s7 + $0x160] sm:$0xff] %vm26, %v8995
  %9060 = vst.msk [vmem:[%s7 + $0x168] sm:$0xff] %vm26, %v8996
  %9061 = vst.msk [vmem:[%s7 + $0x170] sm:$0xff] %vm26, %v8997
  %9062 = vst.msk [vmem:[%s7 + $0x178] sm:$0xff] %vm26, %v8998
  %9063 = vst.msk [vmem:[%s7 + $0x180] sm:$0xff] %vm26, %v8999
  %9064 = vst.msk [vmem:[%s7 + $0x188] sm:$0xff] %vm26, %v9000
  %9065 = vst.msk [vmem:[%s7 + $0x190] sm:$0xff] %vm26, %v9001
  %9066 = vst.msk [vmem:[%s7 + $0x198] sm:$0xff] %vm26, %v9002
  %9067 = vst.msk [vmem:[%s7 + $0x1a0] sm:$0xff] %vm26, %v9003
  %9068 = vst.msk [vmem:[%s7 + $0x1a8] sm:$0xff] %vm26, %v9004
  %9069 = vst.msk [vmem:[%s7 + $0x1b0] sm:$0xff] %vm26, %v9005
  %9070 = vst.msk [vmem:[%s7 + $0x1b8] sm:$0xff] %vm26, %v9006
  %9071 = vst.msk [vmem:[%s7 + $0x1c0] sm:$0xff] %vm26, %v9007
  %9072 = vst.msk [vmem:[%s7 + $0x1c8] sm:$0xff] %vm26, %v9008
  %9073 = vst.msk [vmem:[%s7 + $0x1d0] sm:$0xff] %vm26, %v9009
  %9074 = vst.msk [vmem:[%s7 + $0x1d8] sm:$0xff] %vm26, %v9010
  %9075 = vst.msk [vmem:[%s7 + $0x1e0] sm:$0xff] %vm26, %v9011
  %9076 = vst.msk [vmem:[%s7 + $0x1e8] sm:$0xff] %vm26, %v9012
  %9077 = vst.msk [vmem:[%s7 + $0x1f0] sm:$0xff] %vm26, %v9013
  %9078 = vst.msk [vmem:[%s7 + $0x1f8] sm:$0xff] %vm26, %v9014
  // Predicated region
  $region30: #{restnet_basic_block.1} parent=0 // pred_check
    _
  $region31: #{restnet_basic_block.1} parent=0 // pred_check_branch
    %9080 = sbr.rel (0) target = $region33
  $region32: #{restnet_basic_block.1} parent=0 // pred_region
    _
  $region33: #{restnet_basic_block.1} parent=0 // pred_fallthru
    _
  // Predicated region
  $region34: #{restnet_basic_block.1} parent=0 // pred_check
    _
  $region35: #{restnet_basic_block.1} parent=0 // pred_check_branch
    %9082 = sbr.rel (0) target = $region37
  $region36: #{restnet_basic_block.1} parent=0 // pred_region
    _
  $region37: #{restnet_basic_block.1} parent=0 // pred_fallthru
    _

</llo_original>
